<compile_context>
chip_gen: v6e
topology: v6e:2x2x1
jax: 0.10.0
libtpu: 0.0.40
codegen_flags: <defaults>
</compile_context>

<pallas_src>
import functools

import jax
import jax.numpy as jnp
from jax.experimental import pallas as pl
from jax.experimental.pallas import tpu as pltpu

_EPS = 1e-5
_IN_DTYPE = jnp.bfloat16          # MXU inputs / inter-layer activations


def _round_up(x, m):
    return ((x + m - 1) // m) * m


def _full_spec(shape):
    # whole array as a single block (block shape == array shape)
    return pl.BlockSpec(shape, lambda i: (0,) * len(shape))


# ----------------------------- Pallas kernels ------------------------------

def _fused_convt_bn_relu_kernel(x_ref, w_ref, vy0_ref, vy1_ref, vx0_ref, vx1_ref,
                                ry_ref, rx_ref, p_ref, g_ref, b_ref, o_ref,
                                *, inv_count, eps):
    """ConvTranspose-as-matmul (bf16 MXU, f32 acc) + train-mode BatchNorm + ReLU.

    Rows of the matmul are patch positions (n, py, px); columns are (phase, co).
    A patch row contributes to a phase column only if it maps to a real output
    pixel, so BN statistics use mask = my * mx with
        my = ry ? (py >= 1) : (py <= H-1),   mx analogous,
    provided via precomputed 0/1 row factors (vy0, vy1, vx0, vx1) and column
    factors (ry, rx).  The per-(phase, co) masked sums are pooled over phases —
    and broadcast back to every phase column — by a tiny 0/1 pooling matmul P.
    """
    y = jnp.dot(x_ref[...], w_ref[...], preferred_element_type=jnp.float32)  # (Mp, Cp)

    ry = ry_ref[...]
    rx = rx_ref[...]
    my = ry * vy1_ref[...] + (1.0 - ry) * vy0_ref[...]     # (Mp, Cp)
    mx = rx * vx1_ref[...] + (1.0 - rx) * vx0_ref[...]
    mask = my * mx

    ym = y * mask
    s1 = jnp.sum(jnp.dot(ym, p_ref[...], preferred_element_type=jnp.float32),
                 axis=0, keepdims=True)                     # (1, Cp)
    s2 = jnp.sum(jnp.dot(ym * ym, p_ref[...], preferred_element_type=jnp.float32),
                 axis=0, keepdims=True)

    mean = s1 * inv_count
    var = jnp.maximum(s2 * inv_count - mean * mean, 0.0)
    scale = g_ref[...] * jax.lax.rsqrt(var + eps)
    shift = b_ref[...] - mean * scale
    o_ref[...] = jnp.maximum(y * scale + shift, 0.0).astype(o_ref.dtype)


def _convt_tanh_kernel(w_ref, x_ref, b_ref, o_ref):
    # transposed (lane-dense) matmul for the Co=1 last layer: (8, K) @ (K, Mp)
    y = jnp.dot(w_ref[...], x_ref[...], preferred_element_type=jnp.float32)
    o_ref[...] = jnp.tanh(y + b_ref[...])


# ----------------------------- Pallas wrappers ------------------------------

def fused_convt_bn_relu(x, aux, *, inv_count, eps=_EPS, out_dtype=_IN_DTYPE):
    Mp, Kp = x.shape
    Cp = aux["w"].shape[1]
    kern = functools.partial(_fused_convt_bn_relu_kernel,
                             inv_count=inv_count, eps=eps)
    return pl.pallas_call(
        kern,
        out_shape=jax.ShapeDtypeStruct((Mp, Cp), out_dtype),
        grid=(1,),
        in_specs=[
            _full_spec((Mp, Kp)), _full_spec((Kp, Cp)),
            _full_spec((Mp, 1)), _full_spec((Mp, 1)),
            _full_spec((Mp, 1)), _full_spec((Mp, 1)),
            _full_spec((1, Cp)), _full_spec((1, Cp)),
            _full_spec((Cp, Cp)), _full_spec((1, Cp)), _full_spec((1, Cp)),
        ],
        out_specs=_full_spec((Mp, Cp)),
        compiler_params=pltpu.CompilerParams(dimension_semantics=("arbitrary",)),
    )(x, aux["w"], aux["vy0"], aux["vy1"], aux["vx0"], aux["vx1"],
      aux["ry"], aux["rx"], aux["P"], aux["g"], aux["b"])


def convt_tanh(wT, xT, bias):
    Ct, K = wT.shape
    Mp = xT.shape[1]
    return pl.pallas_call(
        _convt_tanh_kernel,
        out_shape=jax.ShapeDtypeStruct((Ct, Mp), jnp.float32),
        grid=(1,),
        in_specs=[_full_spec((Ct, K)), _full_spec((K, Mp)), _full_spec((Ct, 1))],
        out_specs=_full_spec((Ct, Mp)),
        compiler_params=pltpu.CompilerParams(dimension_semantics=("arbitrary",)),
    )(wT, xT, bias)


# ------------------------- one-time parameter prep --------------------------

def _polyphase_weight(w_t):
    """PyTorch ConvTranspose2d weight (Ci, Co, 4, 4), stride 2, pad 1 ->
    polyphase matmul weight (4*Ci, 4*Co); K order (dy, dx, ci), cols (phase, co),
    phase p = 2*ry + rx, tap (ky, kx) = (3 - 2*dy - ry, 3 - 2*dx - rx)."""
    Ci, Co = w_t.shape[0], w_t.shape[1]
    cols = []
    for ry in range(2):
        for rx in range(2):
            taps = w_t[:, :, (3 - ry, 1 - ry), :][:, :, :, (3 - rx, 1 - rx)]  # (Ci,Co,2,2)
            cols.append(jnp.transpose(taps, (2, 3, 0, 1)).reshape(4 * Ci, Co))
    return jnp.concatenate(cols, axis=1)


def _pool_matrix(Co, G, Cp):
    """0/1 matrix pooling the G phase column-groups of each channel (and
    broadcasting the pooled value back to every phase column)."""
    c = jnp.arange(Cp)
    real = c < (G * Co)
    same = (c[:, None] % Co) == (c[None, :] % Co)
    return (same & real[:, None] & real[None, :]).astype(jnp.float32)


def preprocess(params, batch, z_dim, image_size):
    """Hoisted, one-time preprocessing: padded bf16 weights, BN column vectors,
    validity-mask factors and pooling matrices for every layer."""
    N = batch
    arrays, meta = [], []

    def aux_rows(Mp, M, H, W):
        r = jnp.arange(Mp)
        rem = r % ((H + 1) * (W + 1))
        py = rem // (W + 1)
        px = rem % (W + 1)
        valid = r < M

        def col(v):
            return (v & valid).astype(jnp.float32).reshape(Mp, 1)

        return col(py <= H - 1), col(py >= 1), col(px <= W - 1), col(px >= 1)

    def aux_cols(Co, G, Cp):
        c = jnp.arange(Cp)
        p = jnp.where(c < G * Co, c // Co, 0)
        return ((p // 2).astype(jnp.float32).reshape(1, Cp),
                (p % 2).astype(jnp.float32).reshape(1, Cp))

    # ---------------- layer 1: 1x1 -> 4x4, stride 1 (16 pixels on rows) -------
    w, _b, g, bt = params["layer1"]           # conv bias dropped (BN cancels it)
    Ci, Co = w.shape[0], w.shape[1]
    K = 16 * Ci
    Kp, Cp = _round_up(K, 128), _round_up(Co, 128)
    M = N * 16
    Mp = _round_up(M, 16)
    w_mat = jnp.transpose(w, (2, 3, 0, 1)).reshape(K, Co)
    ones_m = (jnp.arange(Mp) < M).astype(jnp.float32).reshape(Mp, 1)
    ry, rx = aux_cols(Co, 1, Cp)
    arrays.append(dict(
        w=jnp.zeros((Kp, Cp), jnp.float32).at[:K, :Co].set(w_mat).astype(_IN_DTYPE),
        vy0=ones_m, vy1=ones_m, vx0=ones_m, vx1=ones_m, ry=ry, rx=rx,
        P=_pool_matrix(Co, 1, Cp),
        g=jnp.zeros((1, Cp), jnp.float32).at[0, :Co].set(g),
        b=jnp.zeros((1, Cp), jnp.float32).at[0, :Co].set(bt)))
    meta.append(dict(Co=Co, inv_count=1.0 / (N * 16)))

    # ---------------- layers 2-4: stride-2 polyphase ---------------------------
    spatial_in = {"layer2": 4, "layer3": 8, "layer4": 16}
    for name in ("layer2", "layer3", "layer4"):
        w, _b, g, bt = params[name]           # conv bias dropped (BN cancels it)
        Ci, Co = w.shape[0], w.shape[1]
        H = W = spatial_in[name]
        K = 4 * Ci
        Creal = 4 * Co
        Kp, Cp = _round_up(K, 128), _round_up(Creal, 128)
        M = N * (H + 1) * (W + 1)
        Mp = _round_up(M, 16)
        wm = _polyphase_weight(w)
        vy0, vy1, vx0, vx1 = aux_rows(Mp, M, H, W)
        ry, rx = aux_cols(Co, 4, Cp)
        arrays.append(dict(
            w=jnp.zeros((Kp, Cp), jnp.float32).at[:K, :Creal].set(wm).astype(_IN_DTYPE),
            vy0=vy0, vy1=vy1, vx0=vx0, vx1=vx1, ry=ry, rx=rx,
            P=_pool_matrix(Co, 4, Cp),
            g=jnp.zeros((1, Cp), jnp.float32).at[0, :Creal].set(jnp.tile(g, 4)),
            b=jnp.zeros((1, Cp), jnp.float32).at[0, :Creal].set(jnp.tile(bt, 4))))
        meta.append(dict(Co=Co, inv_count=1.0 / (N * (2 * H) * (2 * W))))

    # ---------------- last layer: stride-2 polyphase, Co=1, tanh ---------------
    w, b = params["last"]
    Ci, Co = w.shape[0], w.shape[1]           # Co == 1
    H = W = 32
    K = 4 * Ci
    Ct = _round_up(4 * Co, 8)
    M = N * (H + 1) * (W + 1)
    Mp = _round_up(M, 128)                    # lane dim of the transposed output
    wm = _polyphase_weight(w)                 # (4*Ci, 4*Co)
    arrays.append(dict(
        wT=jnp.zeros((Ct, K), jnp.float32).at[:4 * Co, :].set(wm.T).astype(_IN_DTYPE),
        bias=jnp.zeros((Ct, 1), jnp.float32).at[:4 * Co, 0].set(jnp.tile(b, 4))))
    meta.append(dict(Mp=Mp))

    return arrays, tuple(meta)


# ----------------------------- forward glue ---------------------------------

def _build_patches(x):
    """(N, H, W, C) -> (N*(H+1)*(W+1), 4*C) 2x2 patches over a 1-pixel zero pad."""
    N, H, W, C = x.shape
    xp = jnp.pad(x, ((0, 0), (1, 1), (1, 1), (0, 0)))
    p = jnp.stack([xp[:, 0:H + 1, 0:W + 1, :], xp[:, 0:H + 1, 1:W + 2, :],
                   xp[:, 1:H + 2, 0:W + 1, :], xp[:, 1:H + 2, 1:W + 2, :]], axis=3)
    return p.reshape(N * (H + 1) * (W + 1), 4 * C)


def _depth_to_space(y, N, H, W, Co):
    """(Mp, Cp) polyphase matmul output -> (N, 2H, 2W, Co)."""
    M = N * (H + 1) * (W + 1)
    Y = y[:M, :4 * Co].reshape(N, H + 1, W + 1, 2, 2, Co)
    out = jnp.zeros((N, 2 * H, 2 * W, Co), y.dtype)
    for ry in range(2):
        for rx in range(2):
            out = out.at[:, ry::2, rx::2, :].set(Y[:, ry:ry + H, rx:rx + W, ry, rx, :])
    return out


def dcgan_generator_forward(z_nchw, arrays, *, meta):
    N = z_nchw.shape[0]
    z = z_nchw.reshape(N, -1).astype(jnp.float32)          # (N, z_dim)
    zc = z.shape[1]

    # ---- layer 1: (N, z_dim, 1, 1) -> (N, 4, 4, 8*image_size) ----------------
    a, m = arrays[0], meta[0]
    Kp, Mp = a["w"].shape[0], a["vy0"].shape[0]
    X1 = jnp.einsum("st,nc->nstc", jnp.eye(16, dtype=jnp.float32), z)
    X1 = X1.reshape(N * 16, 16 * zc)
    X1 = jnp.zeros((Mp, Kp), jnp.float32).at[:N * 16, :16 * zc].set(X1)
    y = fused_convt_bn_relu(X1.astype(_IN_DTYPE), a, inv_count=m["inv_count"])
    x = y[:N * 16, :m["Co"]].reshape(N, 4, 4, m["Co"])     # NHWC, bf16

    # ---- layers 2-4: fused polyphase ConvTranspose + BN + ReLU ---------------
    for li in range(1, 4):
        a, m = arrays[li], meta[li]
        Kp, Mp = a["w"].shape[0], a["vy0"].shape[0]
        _, H, W, _Ci = x.shape
        xm = _build_patches(x)                              # (M, 4*Ci) bf16
        M, K = xm.shape
        xm = jnp.pad(xm, ((0, Mp - M), (0, Kp - K)))
        y = fused_convt_bn_relu(xm, a, inv_count=m["inv_count"])
        x = _depth_to_space(y, N, H, W, m["Co"])            # (N, 2H, 2W, Co)

    # ---- last layer: lane-dense transposed matmul + bias + tanh (Co = 1) -----
    a, m = arrays[4], meta[4]
    _, H, W, _Ci = x.shape
    xT = _build_patches(x).T                                # (4*Ci, M)
    K, M = xT.shape
    xT = jnp.pad(xT, ((0, 0), (0, m["Mp"] - M))).astype(_IN_DTYPE)
    oT = convt_tanh(a["wT"], xT, a["bias"])                 # (8, Mp) f32
    Y = oT[:4, :M].reshape(2, 2, N, H + 1, W + 1)           # (ry, rx, n, py, px)
    img = jnp.zeros((N, 2 * H, 2 * W), jnp.float32)
    for ry in range(2):
        for rx in range(2):
            img = img.at[:, ry::2, rx::2].set(Y[ry, rx, :, ry:ry + H, rx:rx + W])
    return img[:, None, :, :]                               # NCHW (N, 1, 64, 64)


# ----------------------------- parameters -----------------------------------

def init_params(key, z_dim=8, image_size=16):
    """Deterministic synthetic parameters (DCGAN-style N(0, 0.02) weights)."""
    chans = [z_dim, image_size * 8, image_size * 4, image_size * 2, image_size, 1]
    params = {}
    keys = jax.random.split(key, 5)
    for li in range(5):
        ci, co = chans[li], chans[li + 1]
        w = 0.02 * jax.random.normal(keys[li], (ci, co, 4, 4), jnp.float32)
        b = jnp.zeros((co,), jnp.float32)
        if li < 4:
            params[f"layer{li + 1}"] = (w, b,
                                        jnp.ones((co,), jnp.float32),   # BN gamma
                                        jnp.zeros((co,), jnp.float32))  # BN beta
        else:
            params["last"] = (w, b)
    return params


if __name__ == "__main__":
    Z_DIM, IMAGE_SIZE, BATCH = 8, 16, 2
    key = jax.random.PRNGKey(0)
    kz, kp = jax.random.split(key)

    z = jax.random.normal(kz, (BATCH, Z_DIM, 1, 1), jnp.float32)  # NCHW, like PyTorch
    params = init_params(kp, z_dim=Z_DIM, image_size=IMAGE_SIZE)

    arrays, meta = preprocess(params, BATCH, Z_DIM, IMAGE_SIZE)   # one-time prep
    forward = jax.jit(functools.partial(dcgan_generator_forward, meta=meta))

    out = jax.block_until_ready(forward(z, arrays))

    assert out.shape == (BATCH, 1, 64, 64), out.shape
    assert out.dtype == jnp.float32
    assert bool(jnp.all(jnp.isfinite(out)))
    assert bool(jnp.all(jnp.abs(out) <= 1.0 + 1e-6))  # tanh range
    print("KERNEL_OK")
</pallas_src>

<mosaic_0001>
module attributes {stable_mosaic.version = 11 : i64} {
  func.func @_fused_convt_bn_relu_kernel(%arg0: i32, %arg1: memref<32x128xbf16, #tpu.memory_space<vmem>>, %arg2: memref<128x128xbf16, #tpu.memory_space<vmem>>, %arg3: memref<32x1xf32, #tpu.memory_space<vmem>>, %arg4: memref<32x1xf32, #tpu.memory_space<vmem>>, %arg5: memref<32x1xf32, #tpu.memory_space<vmem>>, %arg6: memref<32x1xf32, #tpu.memory_space<vmem>>, %arg7: memref<1x128xf32, #tpu.memory_space<vmem>>, %arg8: memref<1x128xf32, #tpu.memory_space<vmem>>, %arg9: memref<128x128xf32, #tpu.memory_space<vmem>>, %arg10: memref<1x128xf32, #tpu.memory_space<vmem>>, %arg11: memref<1x128xf32, #tpu.memory_space<vmem>>, %arg12: memref<32x128xbf16, #tpu.memory_space<vmem>>) attributes {dimension_semantics = [#tpu.dimension_semantics<arbitrary>], iteration_bounds = array<i64: 1>, scalar_prefetch = 0 : i64, scratch_operands = 0 : i64, tpu.core_type = #tpu.core_type<tc>, window_params = [{pipeline_mode = #tpu.pipeline_mode<synchronous>, transform_indices = @transform_0, window_bounds = array<i64: 32, 128>}, {pipeline_mode = #tpu.pipeline_mode<synchronous>, transform_indices = @transform_1, window_bounds = array<i64: 128, 128>}, {pipeline_mode = #tpu.pipeline_mode<synchronous>, transform_indices = @transform_2, window_bounds = array<i64: 32, 1>}, {pipeline_mode = #tpu.pipeline_mode<synchronous>, transform_indices = @transform_3, window_bounds = array<i64: 32, 1>}, {pipeline_mode = #tpu.pipeline_mode<synchronous>, transform_indices = @transform_4, window_bounds = array<i64: 32, 1>}, {pipeline_mode = #tpu.pipeline_mode<synchronous>, transform_indices = @transform_5, window_bounds = array<i64: 32, 1>}, {pipeline_mode = #tpu.pipeline_mode<synchronous>, transform_indices = @transform_6, window_bounds = array<i64: 1, 128>}, {pipeline_mode = #tpu.pipeline_mode<synchronous>, transform_indices = @transform_7, window_bounds = array<i64: 1, 128>}, {pipeline_mode = #tpu.pipeline_mode<synchronous>, transform_indices = @transform_8, window_bounds = array<i64: 128, 128>}, {pipeline_mode = #tpu.pipeline_mode<synchronous>, transform_indices = @transform_9, window_bounds = array<i64: 1, 128>}, {pipeline_mode = #tpu.pipeline_mode<synchronous>, transform_indices = @transform_10, window_bounds = array<i64: 1, 128>}, {pipeline_mode = #tpu.pipeline_mode<synchronous>, transform_indices = @transform_11, window_bounds = array<i64: 32, 128>}]} {
    %c0 = arith.constant 0 : index
    %c0_0 = arith.constant 0 : index
    %0 = vector.load %arg1[%c0, %c0_0] : memref<32x128xbf16, #tpu.memory_space<vmem>>, vector<32x128xbf16>
    %c0_1 = arith.constant 0 : index
    %c0_2 = arith.constant 0 : index
    %1 = vector.load %arg2[%c0_1, %c0_2] : memref<128x128xbf16, #tpu.memory_space<vmem>>, vector<128x128xbf16>
    %cst = arith.constant dense<0.000000e+00> : vector<32x128xf32>
    %2 = tpu.matmul %0, %1, %cst {dimension_numbers = #tpu.dot_dimension_numbers<[1], [0], [0], [1], [0, 0, 1, 1], [], []>} : vector<32x128xbf16>, vector<128x128xbf16>, vector<32x128xf32> -> vector<32x128xf32>
    %c0_3 = arith.constant 0 : index
    %c0_4 = arith.constant 0 : index
    %3 = vector.load %arg7[%c0_3, %c0_4] : memref<1x128xf32, #tpu.memory_space<vmem>>, vector<1x128xf32>
    %c0_5 = arith.constant 0 : index
    %c0_6 = arith.constant 0 : index
    %4 = vector.load %arg8[%c0_5, %c0_6] : memref<1x128xf32, #tpu.memory_space<vmem>>, vector<1x128xf32>
    %c0_7 = arith.constant 0 : index
    %c0_8 = arith.constant 0 : index
    %5 = vector.load %arg4[%c0_7, %c0_8] : memref<32x1xf32, #tpu.memory_space<vmem>>, vector<32x1xf32>
    %6 = vector.broadcast %3 : vector<1x128xf32> to vector<32x128xf32>
    %7 = vector.broadcast %5 : vector<32x1xf32> to vector<32x128xf32>
    %8 = arith.mulf %6, %7 : vector<32x128xf32>
    %cst_9 = arith.constant 1.000000e+00 : f32
    %9 = vector.broadcast %cst_9 : f32 to vector<1x128xf32>
    %10 = arith.subf %9, %3 : vector<1x128xf32>
    %c0_10 = arith.constant 0 : index
    %c0_11 = arith.constant 0 : index
    %11 = vector.load %arg3[%c0_10, %c0_11] : memref<32x1xf32, #tpu.memory_space<vmem>>, vector<32x1xf32>
    %12 = vector.broadcast %10 : vector<1x128xf32> to vector<32x128xf32>
    %13 = vector.broadcast %11 : vector<32x1xf32> to vector<32x128xf32>
    %14 = arith.mulf %12, %13 : vector<32x128xf32>
    %15 = arith.addf %8, %14 : vector<32x128xf32>
    %c0_12 = arith.constant 0 : index
    %c0_13 = arith.constant 0 : index
    %16 = vector.load %arg6[%c0_12, %c0_13] : memref<32x1xf32, #tpu.memory_space<vmem>>, vector<32x1xf32>
    %17 = vector.broadcast %4 : vector<1x128xf32> to vector<32x128xf32>
    %18 = vector.broadcast %16 : vector<32x1xf32> to vector<32x128xf32>
    %19 = arith.mulf %17, %18 : vector<32x128xf32>
    %cst_14 = arith.constant 1.000000e+00 : f32
    %20 = vector.broadcast %cst_14 : f32 to vector<1x128xf32>
    %21 = arith.subf %20, %4 : vector<1x128xf32>
    %c0_15 = arith.constant 0 : index
    %c0_16 = arith.constant 0 : index
    %22 = vector.load %arg5[%c0_15, %c0_16] : memref<32x1xf32, #tpu.memory_space<vmem>>, vector<32x1xf32>
    %23 = vector.broadcast %21 : vector<1x128xf32> to vector<32x128xf32>
    %24 = vector.broadcast %22 : vector<32x1xf32> to vector<32x128xf32>
    %25 = arith.mulf %23, %24 : vector<32x128xf32>
    %26 = arith.addf %19, %25 : vector<32x128xf32>
    %27 = arith.mulf %15, %26 : vector<32x128xf32>
    %28 = arith.mulf %2, %27 : vector<32x128xf32>
    %c0_17 = arith.constant 0 : index
    %c0_18 = arith.constant 0 : index
    %29 = vector.load %arg9[%c0_17, %c0_18] : memref<128x128xf32, #tpu.memory_space<vmem>>, vector<128x128xf32>
    %cst_19 = arith.constant dense<0.000000e+00> : vector<32x128xf32>
    %30 = tpu.matmul %28, %29, %cst_19 {dimension_numbers = #tpu.dot_dimension_numbers<[1], [0], [0], [1], [0, 0, 1, 1], [], []>} : vector<32x128xf32>, vector<128x128xf32>, vector<32x128xf32> -> vector<32x128xf32>
    %cst_20 = arith.constant dense<0.000000e+00> : vector<128xf32>
    %31 = vector.multi_reduction <add>, %30, %cst_20 [0] : vector<32x128xf32> to vector<128xf32>
    %32 = vector.shape_cast %31 : vector<128xf32> to vector<1x128xf32>
    %33 = arith.mulf %28, %28 : vector<32x128xf32>
    %c0_21 = arith.constant 0 : index
    %c0_22 = arith.constant 0 : index
    %34 = vector.load %arg9[%c0_21, %c0_22] : memref<128x128xf32, #tpu.memory_space<vmem>>, vector<128x128xf32>
    %cst_23 = arith.constant dense<0.000000e+00> : vector<32x128xf32>
    %35 = tpu.matmul %33, %34, %cst_23 {dimension_numbers = #tpu.dot_dimension_numbers<[1], [0], [0], [1], [0, 0, 1, 1], [], []>} : vector<32x128xf32>, vector<128x128xf32>, vector<32x128xf32> -> vector<32x128xf32>
    %cst_24 = arith.constant dense<0.000000e+00> : vector<128xf32>
    %36 = vector.multi_reduction <add>, %35, %cst_24 [0] : vector<32x128xf32> to vector<128xf32>
    %37 = vector.shape_cast %36 : vector<128xf32> to vector<1x128xf32>
    %cst_25 = arith.constant 3.125000e-02 : f32
    %38 = vector.broadcast %cst_25 : f32 to vector<1x128xf32>
    %39 = arith.mulf %32, %38 : vector<1x128xf32>
    %cst_26 = arith.constant 3.125000e-02 : f32
    %40 = vector.broadcast %cst_26 : f32 to vector<1x128xf32>
    %41 = arith.mulf %37, %40 : vector<1x128xf32>
    %42 = arith.mulf %39, %39 : vector<1x128xf32>
    %43 = arith.subf %41, %42 : vector<1x128xf32>
    %cst_27 = arith.constant 0.000000e+00 : f32
    %44 = vector.broadcast %cst_27 : f32 to vector<1x128xf32>
    %45 = arith.maximumf %43, %44 : vector<1x128xf32>
    %c0_28 = arith.constant 0 : index
    %c0_29 = arith.constant 0 : index
    %46 = vector.load %arg10[%c0_28, %c0_29] : memref<1x128xf32, #tpu.memory_space<vmem>>, vector<1x128xf32>
    %cst_30 = arith.constant 9.99999974E-6 : f32
    %47 = vector.broadcast %cst_30 : f32 to vector<1x128xf32>
    %48 = arith.addf %45, %47 : vector<1x128xf32>
    %49 = math.rsqrt %48 : vector<1x128xf32>
    %50 = arith.mulf %46, %49 : vector<1x128xf32>
    %c0_31 = arith.constant 0 : index
    %c0_32 = arith.constant 0 : index
    %51 = vector.load %arg11[%c0_31, %c0_32] : memref<1x128xf32, #tpu.memory_space<vmem>>, vector<1x128xf32>
    %52 = arith.mulf %39, %50 : vector<1x128xf32>
    %53 = arith.subf %51, %52 : vector<1x128xf32>
    %54 = vector.broadcast %50 : vector<1x128xf32> to vector<32x128xf32>
    %55 = arith.mulf %2, %54 : vector<32x128xf32>
    %56 = vector.broadcast %53 : vector<1x128xf32> to vector<32x128xf32>
    %57 = arith.addf %55, %56 : vector<32x128xf32>
    %cst_33 = arith.constant 0.000000e+00 : f32
    %58 = vector.broadcast %cst_33 : f32 to vector<32x128xf32>
    %59 = arith.maximumf %57, %58 : vector<32x128xf32>
    %60 = arith.truncf %59 : vector<32x128xf32> to vector<32x128xbf16>
    %c0_34 = arith.constant 0 : index
    %c0_35 = arith.constant 0 : index
    %61 = vector.load %arg12[%c0_34, %c0_35] : memref<32x128xbf16, #tpu.memory_space<vmem>>, vector<32x128xbf16>
    tpu.vector_store %arg12[%c0_34, %c0_35], %60 {strides = array<i32>} : memref<32x128xbf16, #tpu.memory_space<vmem>>, vector<32x128xbf16>,
    return
  }
  func.func @transform_0(%arg0: i32) -> (i32, i32) {
    %c0_i32 = arith.constant 0 : i32
    %c0_i32_0 = arith.constant 0 : i32
    %c0_i32_1 = arith.constant 0 : i32
    return %c0_i32, %c0_i32_0 : i32, i32
  }
  func.func @transform_1(%arg0: i32) -> (i32, i32) {
    %c0_i32 = arith.constant 0 : i32
    %c0_i32_0 = arith.constant 0 : i32
    %c0_i32_1 = arith.constant 0 : i32
    return %c0_i32, %c0_i32_0 : i32, i32
  }
  func.func @transform_2(%arg0: i32) -> (i32, i32) {
    %c0_i32 = arith.constant 0 : i32
    %c0_i32_0 = arith.constant 0 : i32
    %c0_i32_1 = arith.constant 0 : i32
    return %c0_i32, %c0_i32_0 : i32, i32
  }
  func.func @transform_3(%arg0: i32) -> (i32, i32) {
    %c0_i32 = arith.constant 0 : i32
    %c0_i32_0 = arith.constant 0 : i32
    %c0_i32_1 = arith.constant 0 : i32
    return %c0_i32, %c0_i32_0 : i32, i32
  }
  func.func @transform_4(%arg0: i32) -> (i32, i32) {
    %c0_i32 = arith.constant 0 : i32
    %c0_i32_0 = arith.constant 0 : i32
    %c0_i32_1 = arith.constant 0 : i32
    return %c0_i32, %c0_i32_0 : i32, i32
  }
  func.func @transform_5(%arg0: i32) -> (i32, i32) {
    %c0_i32 = arith.constant 0 : i32
    %c0_i32_0 = arith.constant 0 : i32
    %c0_i32_1 = arith.constant 0 : i32
    return %c0_i32, %c0_i32_0 : i32, i32
  }
  func.func @transform_6(%arg0: i32) -> (i32, i32) {
    %c0_i32 = arith.constant 0 : i32
    %c0_i32_0 = arith.constant 0 : i32
    %c0_i32_1 = arith.constant 0 : i32
    return %c0_i32, %c0_i32_0 : i32, i32
  }
  func.func @transform_7(%arg0: i32) -> (i32, i32) {
    %c0_i32 = arith.constant 0 : i32
    %c0_i32_0 = arith.constant 0 : i32
    %c0_i32_1 = arith.constant 0 : i32
    return %c0_i32, %c0_i32_0 : i32, i32
  }
  func.func @transform_8(%arg0: i32) -> (i32, i32) {
    %c0_i32 = arith.constant 0 : i32
    %c0_i32_0 = arith.constant 0 : i32
    %c0_i32_1 = arith.constant 0 : i32
    return %c0_i32, %c0_i32_0 : i32, i32
  }
  func.func @transform_9(%arg0: i32) -> (i32, i32) {
    %c0_i32 = arith.constant 0 : i32
    %c0_i32_0 = arith.constant 0 : i32
    %c0_i32_1 = arith.constant 0 : i32
    return %c0_i32, %c0_i32_0 : i32, i32
  }
  func.func @transform_10(%arg0: i32) -> (i32, i32) {
    %c0_i32 = arith.constant 0 : i32
    %c0_i32_0 = arith.constant 0 : i32
    %c0_i32_1 = arith.constant 0 : i32
    return %c0_i32, %c0_i32_0 : i32, i32
  }
  func.func @transform_11(%arg0: i32) -> (i32, i32) {
    %c0_i32 = arith.constant 0 : i32
    %c0_i32_0 = arith.constant 0 : i32
    %c0_i32_1 = arith.constant 0 : i32
    return %c0_i32, %c0_i32_0 : i32, i32
  }
}

module attributes {stable_mosaic.version = 11 : i64} {
  func.func @_fused_convt_bn_relu_kernel(%arg0: i32, %arg1: memref<64x512xbf16, #tpu.memory_space<vmem>>, %arg2: memref<512x256xbf16, #tpu.memory_space<vmem>>, %arg3: memref<64x1xf32, #tpu.memory_space<vmem>>, %arg4: memref<64x1xf32, #tpu.memory_space<vmem>>, %arg5: memref<64x1xf32, #tpu.memory_space<vmem>>, %arg6: memref<64x1xf32, #tpu.memory_space<vmem>>, %arg7: memref<1x256xf32, #tpu.memory_space<vmem>>, %arg8: memref<1x256xf32, #tpu.memory_space<vmem>>, %arg9: memref<256x256xf32, #tpu.memory_space<vmem>>, %arg10: memref<1x256xf32, #tpu.memory_space<vmem>>, %arg11: memref<1x256xf32, #tpu.memory_space<vmem>>, %arg12: memref<64x256xbf16, #tpu.memory_space<vmem>>) attributes {dimension_semantics = [#tpu.dimension_semantics<arbitrary>], iteration_bounds = array<i64: 1>, scalar_prefetch = 0 : i64, scratch_operands = 0 : i64, tpu.core_type = #tpu.core_type<tc>, window_params = [{pipeline_mode = #tpu.pipeline_mode<synchronous>, transform_indices = @transform_0, window_bounds = array<i64: 64, 512>}, {pipeline_mode = #tpu.pipeline_mode<synchronous>, transform_indices = @transform_1, window_bounds = array<i64: 512, 256>}, {pipeline_mode = #tpu.pipeline_mode<synchronous>, transform_indices = @transform_2, window_bounds = array<i64: 64, 1>}, {pipeline_mode = #tpu.pipeline_mode<synchronous>, transform_indices = @transform_3, window_bounds = array<i64: 64, 1>}, {pipeline_mode = #tpu.pipeline_mode<synchronous>, transform_indices = @transform_4, window_bounds = array<i64: 64, 1>}, {pipeline_mode = #tpu.pipeline_mode<synchronous>, transform_indices = @transform_5, window_bounds = array<i64: 64, 1>}, {pipeline_mode = #tpu.pipeline_mode<synchronous>, transform_indices = @transform_6, window_bounds = array<i64: 1, 256>}, {pipeline_mode = #tpu.pipeline_mode<synchronous>, transform_indices = @transform_7, window_bounds = array<i64: 1, 256>}, {pipeline_mode = #tpu.pipeline_mode<synchronous>, transform_indices = @transform_8, window_bounds = array<i64: 256, 256>}, {pipeline_mode = #tpu.pipeline_mode<synchronous>, transform_indices = @transform_9, window_bounds = array<i64: 1, 256>}, {pipeline_mode = #tpu.pipeline_mode<synchronous>, transform_indices = @transform_10, window_bounds = array<i64: 1, 256>}, {pipeline_mode = #tpu.pipeline_mode<synchronous>, transform_indices = @transform_11, window_bounds = array<i64: 64, 256>}]} {
    %c0 = arith.constant 0 : index
    %c0_0 = arith.constant 0 : index
    %0 = vector.load %arg1[%c0, %c0_0] : memref<64x512xbf16, #tpu.memory_space<vmem>>, vector<64x512xbf16>
    %c0_1 = arith.constant 0 : index
    %c0_2 = arith.constant 0 : index
    %1 = vector.load %arg2[%c0_1, %c0_2] : memref<512x256xbf16, #tpu.memory_space<vmem>>, vector<512x256xbf16>
    %cst = arith.constant dense<0.000000e+00> : vector<64x256xf32>
    %2 = tpu.matmul %0, %1, %cst {dimension_numbers = #tpu.dot_dimension_numbers<[1], [0], [0], [1], [0, 0, 1, 1], [], []>} : vector<64x512xbf16>, vector<512x256xbf16>, vector<64x256xf32> -> vector<64x256xf32>
    %c0_3 = arith.constant 0 : index
    %c0_4 = arith.constant 0 : index
    %3 = vector.load %arg7[%c0_3, %c0_4] : memref<1x256xf32, #tpu.memory_space<vmem>>, vector<1x256xf32>
    %c0_5 = arith.constant 0 : index
    %c0_6 = arith.constant 0 : index
    %4 = vector.load %arg8[%c0_5, %c0_6] : memref<1x256xf32, #tpu.memory_space<vmem>>, vector<1x256xf32>
    %c0_7 = arith.constant 0 : index
    %c0_8 = arith.constant 0 : index
    %5 = vector.load %arg4[%c0_7, %c0_8] : memref<64x1xf32, #tpu.memory_space<vmem>>, vector<64x1xf32>
    %6 = vector.broadcast %3 : vector<1x256xf32> to vector<64x256xf32>
    %7 = vector.broadcast %5 : vector<64x1xf32> to vector<64x256xf32>
    %8 = arith.mulf %6, %7 : vector<64x256xf32>
    %cst_9 = arith.constant 1.000000e+00 : f32
    %9 = vector.broadcast %cst_9 : f32 to vector<1x256xf32>
    %10 = arith.subf %9, %3 : vector<1x256xf32>
    %c0_10 = arith.constant 0 : index
    %c0_11 = arith.constant 0 : index
    %11 = vector.load %arg3[%c0_10, %c0_11] : memref<64x1xf32, #tpu.memory_space<vmem>>, vector<64x1xf32>
    %12 = vector.broadcast %10 : vector<1x256xf32> to vector<64x256xf32>
    %13 = vector.broadcast %11 : vector<64x1xf32> to vector<64x256xf32>
    %14 = arith.mulf %12, %13 : vector<64x256xf32>
    %15 = arith.addf %8, %14 : vector<64x256xf32>
    %c0_12 = arith.constant 0 : index
    %c0_13 = arith.constant 0 : index
    %16 = vector.load %arg6[%c0_12, %c0_13] : memref<64x1xf32, #tpu.memory_space<vmem>>, vector<64x1xf32>
    %17 = vector.broadcast %4 : vector<1x256xf32> to vector<64x256xf32>
    %18 = vector.broadcast %16 : vector<64x1xf32> to vector<64x256xf32>
    %19 = arith.mulf %17, %18 : vector<64x256xf32>
    %cst_14 = arith.constant 1.000000e+00 : f32
    %20 = vector.broadcast %cst_14 : f32 to vector<1x256xf32>
    %21 = arith.subf %20, %4 : vector<1x256xf32>
    %c0_15 = arith.constant 0 : index
    %c0_16 = arith.constant 0 : index
    %22 = vector.load %arg5[%c0_15, %c0_16] : memref<64x1xf32, #tpu.memory_space<vmem>>, vector<64x1xf32>
    %23 = vector.broadcast %21 : vector<1x256xf32> to vector<64x256xf32>
    %24 = vector.broadcast %22 : vector<64x1xf32> to vector<64x256xf32>
    %25 = arith.mulf %23, %24 : vector<64x256xf32>
    %26 = arith.addf %19, %25 : vector<64x256xf32>
    %27 = arith.mulf %15, %26 : vector<64x256xf32>
    %28 = arith.mulf %2, %27 : vector<64x256xf32>
    %c0_17 = arith.constant 0 : index
    %c0_18 = arith.constant 0 : index
    %29 = vector.load %arg9[%c0_17, %c0_18] : memref<256x256xf32, #tpu.memory_space<vmem>>, vector<256x256xf32>
    %cst_19 = arith.constant dense<0.000000e+00> : vector<64x256xf32>
    %30 = tpu.matmul %28, %29, %cst_19 {dimension_numbers = #tpu.dot_dimension_numbers<[1], [0], [0], [1], [0, 0, 1, 1], [], []>} : vector<64x256xf32>, vector<256x256xf32>, vector<64x256xf32> -> vector<64x256xf32>
    %cst_20 = arith.constant dense<0.000000e+00> : vector<256xf32>
    %31 = vector.multi_reduction <add>, %30, %cst_20 [0] : vector<64x256xf32> to vector<256xf32>
    %32 = vector.shape_cast %31 : vector<256xf32> to vector<1x256xf32>
    %33 = arith.mulf %28, %28 : vector<64x256xf32>
    %c0_21 = arith.constant 0 : index
    %c0_22 = arith.constant 0 : index
    %34 = vector.load %arg9[%c0_21, %c0_22] : memref<256x256xf32, #tpu.memory_space<vmem>>, vector<256x256xf32>
    %cst_23 = arith.constant dense<0.000000e+00> : vector<64x256xf32>
    %35 = tpu.matmul %33, %34, %cst_23 {dimension_numbers = #tpu.dot_dimension_numbers<[1], [0], [0], [1], [0, 0, 1, 1], [], []>} : vector<64x256xf32>, vector<256x256xf32>, vector<64x256xf32> -> vector<64x256xf32>
    %cst_24 = arith.constant dense<0.000000e+00> : vector<256xf32>
    %36 = vector.multi_reduction <add>, %35, %cst_24 [0] : vector<64x256xf32> to vector<256xf32>
    %37 = vector.shape_cast %36 : vector<256xf32> to vector<1x256xf32>
    %cst_25 = arith.constant 7.812500e-03 : f32
    %38 = vector.broadcast %cst_25 : f32 to vector<1x256xf32>
    %39 = arith.mulf %32, %38 : vector<1x256xf32>
    %cst_26 = arith.constant 7.812500e-03 : f32
    %40 = vector.broadcast %cst_26 : f32 to vector<1x256xf32>
    %41 = arith.mulf %37, %40 : vector<1x256xf32>
    %42 = arith.mulf %39, %39 : vector<1x256xf32>
    %43 = arith.subf %41, %42 : vector<1x256xf32>
    %cst_27 = arith.constant 0.000000e+00 : f32
    %44 = vector.broadcast %cst_27 : f32 to vector<1x256xf32>
    %45 = arith.maximumf %43, %44 : vector<1x256xf32>
    %c0_28 = arith.constant 0 : index
    %c0_29 = arith.constant 0 : index
    %46 = vector.load %arg10[%c0_28, %c0_29] : memref<1x256xf32, #tpu.memory_space<vmem>>, vector<1x256xf32>
    %cst_30 = arith.constant 9.99999974E-6 : f32
    %47 = vector.broadcast %cst_30 : f32 to vector<1x256xf32>
    %48 = arith.addf %45, %47 : vector<1x256xf32>
    %49 = math.rsqrt %48 : vector<1x256xf32>
    %50 = arith.mulf %46, %49 : vector<1x256xf32>
    %c0_31 = arith.constant 0 : index
    %c0_32 = arith.constant 0 : index
    %51 = vector.load %arg11[%c0_31, %c0_32] : memref<1x256xf32, #tpu.memory_space<vmem>>, vector<1x256xf32>
    %52 = arith.mulf %39, %50 : vector<1x256xf32>
    %53 = arith.subf %51, %52 : vector<1x256xf32>
    %54 = vector.broadcast %50 : vector<1x256xf32> to vector<64x256xf32>
    %55 = arith.mulf %2, %54 : vector<64x256xf32>
    %56 = vector.broadcast %53 : vector<1x256xf32> to vector<64x256xf32>
    %57 = arith.addf %55, %56 : vector<64x256xf32>
    %cst_33 = arith.constant 0.000000e+00 : f32
    %58 = vector.broadcast %cst_33 : f32 to vector<64x256xf32>
    %59 = arith.maximumf %57, %58 : vector<64x256xf32>
    %60 = arith.truncf %59 : vector<64x256xf32> to vector<64x256xbf16>
    %c0_34 = arith.constant 0 : index
    %c0_35 = arith.constant 0 : index
    %61 = vector.load %arg12[%c0_34, %c0_35] : memref<64x256xbf16, #tpu.memory_space<vmem>>, vector<64x256xbf16>
    tpu.vector_store %arg12[%c0_34, %c0_35], %60 {strides = array<i32>} : memref<64x256xbf16, #tpu.memory_space<vmem>>, vector<64x256xbf16>,
    return
  }
  func.func @transform_0(%arg0: i32) -> (i32, i32) {
    %c0_i32 = arith.constant 0 : i32
    %c0_i32_0 = arith.constant 0 : i32
    %c0_i32_1 = arith.constant 0 : i32
    return %c0_i32, %c0_i32_0 : i32, i32
  }
  func.func @transform_1(%arg0: i32) -> (i32, i32) {
    %c0_i32 = arith.constant 0 : i32
    %c0_i32_0 = arith.constant 0 : i32
    %c0_i32_1 = arith.constant 0 : i32
    return %c0_i32, %c0_i32_0 : i32, i32
  }
  func.func @transform_2(%arg0: i32) -> (i32, i32) {
    %c0_i32 = arith.constant 0 : i32
    %c0_i32_0 = arith.constant 0 : i32
    %c0_i32_1 = arith.constant 0 : i32
    return %c0_i32, %c0_i32_0 : i32, i32
  }
  func.func @transform_3(%arg0: i32) -> (i32, i32) {
    %c0_i32 = arith.constant 0 : i32
    %c0_i32_0 = arith.constant 0 : i32
    %c0_i32_1 = arith.constant 0 : i32
    return %c0_i32, %c0_i32_0 : i32, i32
  }
  func.func @transform_4(%arg0: i32) -> (i32, i32) {
    %c0_i32 = arith.constant 0 : i32
    %c0_i32_0 = arith.constant 0 : i32
    %c0_i32_1 = arith.constant 0 : i32
    return %c0_i32, %c0_i32_0 : i32, i32
  }
  func.func @transform_5(%arg0: i32) -> (i32, i32) {
    %c0_i32 = arith.constant 0 : i32
    %c0_i32_0 = arith.constant 0 : i32
    %c0_i32_1 = arith.constant 0 : i32
    return %c0_i32, %c0_i32_0 : i32, i32
  }
  func.func @transform_6(%arg0: i32) -> (i32, i32) {
    %c0_i32 = arith.constant 0 : i32
    %c0_i32_0 = arith.constant 0 : i32
    %c0_i32_1 = arith.constant 0 : i32
    return %c0_i32, %c0_i32_0 : i32, i32
  }
  func.func @transform_7(%arg0: i32) -> (i32, i32) {
    %c0_i32 = arith.constant 0 : i32
    %c0_i32_0 = arith.constant 0 : i32
    %c0_i32_1 = arith.constant 0 : i32
    return %c0_i32, %c0_i32_0 : i32, i32
  }
  func.func @transform_8(%arg0: i32) -> (i32, i32) {
    %c0_i32 = arith.constant 0 : i32
    %c0_i32_0 = arith.constant 0 : i32
    %c0_i32_1 = arith.constant 0 : i32
    return %c0_i32, %c0_i32_0 : i32, i32
  }
  func.func @transform_9(%arg0: i32) -> (i32, i32) {
    %c0_i32 = arith.constant 0 : i32
    %c0_i32_0 = arith.constant 0 : i32
    %c0_i32_1 = arith.constant 0 : i32
    return %c0_i32, %c0_i32_0 : i32, i32
  }
  func.func @transform_10(%arg0: i32) -> (i32, i32) {
    %c0_i32 = arith.constant 0 : i32
    %c0_i32_0 = arith.constant 0 : i32
    %c0_i32_1 = arith.constant 0 : i32
    return %c0_i32, %c0_i32_0 : i32, i32
  }
  func.func @transform_11(%arg0: i32) -> (i32, i32) {
    %c0_i32 = arith.constant 0 : i32
    %c0_i32_0 = arith.constant 0 : i32
    %c0_i32_1 = arith.constant 0 : i32
    return %c0_i32, %c0_i32_0 : i32, i32
  }
}

module attributes {stable_mosaic.version = 11 : i64} {
  func.func @_fused_convt_bn_relu_kernel(%arg0: i32, %arg1: memref<176x256xbf16, #tpu.memory_space<vmem>>, %arg2: memref<256x128xbf16, #tpu.memory_space<vmem>>, %arg3: memref<176x1xf32, #tpu.memory_space<vmem>>, %arg4: memref<176x1xf32, #tpu.memory_space<vmem>>, %arg5: memref<176x1xf32, #tpu.memory_space<vmem>>, %arg6: memref<176x1xf32, #tpu.memory_space<vmem>>, %arg7: memref<1x128xf32, #tpu.memory_space<vmem>>, %arg8: memref<1x128xf32, #tpu.memory_space<vmem>>, %arg9: memref<128x128xf32, #tpu.memory_space<vmem>>, %arg10: memref<1x128xf32, #tpu.memory_space<vmem>>, %arg11: memref<1x128xf32, #tpu.memory_space<vmem>>, %arg12: memref<176x128xbf16, #tpu.memory_space<vmem>>) attributes {dimension_semantics = [#tpu.dimension_semantics<arbitrary>], iteration_bounds = array<i64: 1>, scalar_prefetch = 0 : i64, scratch_operands = 0 : i64, tpu.core_type = #tpu.core_type<tc>, window_params = [{pipeline_mode = #tpu.pipeline_mode<synchronous>, transform_indices = @transform_0, window_bounds = array<i64: 176, 256>}, {pipeline_mode = #tpu.pipeline_mode<synchronous>, transform_indices = @transform_1, window_bounds = array<i64: 256, 128>}, {pipeline_mode = #tpu.pipeline_mode<synchronous>, transform_indices = @transform_2, window_bounds = array<i64: 176, 1>}, {pipeline_mode = #tpu.pipeline_mode<synchronous>, transform_indices = @transform_3, window_bounds = array<i64: 176, 1>}, {pipeline_mode = #tpu.pipeline_mode<synchronous>, transform_indices = @transform_4, window_bounds = array<i64: 176, 1>}, {pipeline_mode = #tpu.pipeline_mode<synchronous>, transform_indices = @transform_5, window_bounds = array<i64: 176, 1>}, {pipeline_mode = #tpu.pipeline_mode<synchronous>, transform_indices = @transform_6, window_bounds = array<i64: 1, 128>}, {pipeline_mode = #tpu.pipeline_mode<synchronous>, transform_indices = @transform_7, window_bounds = array<i64: 1, 128>}, {pipeline_mode = #tpu.pipeline_mode<synchronous>, transform_indices = @transform_8, window_bounds = array<i64: 128, 128>}, {pipeline_mode = #tpu.pipeline_mode<synchronous>, transform_indices = @transform_9, window_bounds = array<i64: 1, 128>}, {pipeline_mode = #tpu.pipeline_mode<synchronous>, transform_indices = @transform_10, window_bounds = array<i64: 1, 128>}, {pipeline_mode = #tpu.pipeline_mode<synchronous>, transform_indices = @transform_11, window_bounds = array<i64: 176, 128>}]} {
    %c0 = arith.constant 0 : index
    %c0_0 = arith.constant 0 : index
    %0 = vector.load %arg1[%c0, %c0_0] : memref<176x256xbf16, #tpu.memory_space<vmem>>, vector<176x256xbf16>
    %c0_1 = arith.constant 0 : index
    %c0_2 = arith.constant 0 : index
    %1 = vector.load %arg2[%c0_1, %c0_2] : memref<256x128xbf16, #tpu.memory_space<vmem>>, vector<256x128xbf16>
    %cst = arith.constant dense<0.000000e+00> : vector<176x128xf32>
    %2 = tpu.matmul %0, %1, %cst {dimension_numbers = #tpu.dot_dimension_numbers<[1], [0], [0], [1], [0, 0, 1, 1], [], []>} : vector<176x256xbf16>, vector<256x128xbf16>, vector<176x128xf32> -> vector<176x128xf32>
    %c0_3 = arith.constant 0 : index
    %c0_4 = arith.constant 0 : index
    %3 = vector.load %arg7[%c0_3, %c0_4] : memref<1x128xf32, #tpu.memory_space<vmem>>, vector<1x128xf32>
    %c0_5 = arith.constant 0 : index
    %c0_6 = arith.constant 0 : index
    %4 = vector.load %arg8[%c0_5, %c0_6] : memref<1x128xf32, #tpu.memory_space<vmem>>, vector<1x128xf32>
    %c0_7 = arith.constant 0 : index
    %c0_8 = arith.constant 0 : index
    %5 = vector.load %arg4[%c0_7, %c0_8] : memref<176x1xf32, #tpu.memory_space<vmem>>, vector<176x1xf32>
    %6 = vector.broadcast %3 : vector<1x128xf32> to vector<176x128xf32>
    %7 = vector.broadcast %5 : vector<176x1xf32> to vector<176x128xf32>
    %8 = arith.mulf %6, %7 : vector<176x128xf32>
    %cst_9 = arith.constant 1.000000e+00 : f32
    %9 = vector.broadcast %cst_9 : f32 to vector<1x128xf32>
    %10 = arith.subf %9, %3 : vector<1x128xf32>
    %c0_10 = arith.constant 0 : index
    %c0_11 = arith.constant 0 : index
    %11 = vector.load %arg3[%c0_10, %c0_11] : memref<176x1xf32, #tpu.memory_space<vmem>>, vector<176x1xf32>
    %12 = vector.broadcast %10 : vector<1x128xf32> to vector<176x128xf32>
    %13 = vector.broadcast %11 : vector<176x1xf32> to vector<176x128xf32>
    %14 = arith.mulf %12, %13 : vector<176x128xf32>
    %15 = arith.addf %8, %14 : vector<176x128xf32>
    %c0_12 = arith.constant 0 : index
    %c0_13 = arith.constant 0 : index
    %16 = vector.load %arg6[%c0_12, %c0_13] : memref<176x1xf32, #tpu.memory_space<vmem>>, vector<176x1xf32>
    %17 = vector.broadcast %4 : vector<1x128xf32> to vector<176x128xf32>
    %18 = vector.broadcast %16 : vector<176x1xf32> to vector<176x128xf32>
    %19 = arith.mulf %17, %18 : vector<176x128xf32>
    %cst_14 = arith.constant 1.000000e+00 : f32
    %20 = vector.broadcast %cst_14 : f32 to vector<1x128xf32>
    %21 = arith.subf %20, %4 : vector<1x128xf32>
    %c0_15 = arith.constant 0 : index
    %c0_16 = arith.constant 0 : index
    %22 = vector.load %arg5[%c0_15, %c0_16] : memref<176x1xf32, #tpu.memory_space<vmem>>, vector<176x1xf32>
    %23 = vector.broadcast %21 : vector<1x128xf32> to vector<176x128xf32>
    %24 = vector.broadcast %22 : vector<176x1xf32> to vector<176x128xf32>
    %25 = arith.mulf %23, %24 : vector<176x128xf32>
    %26 = arith.addf %19, %25 : vector<176x128xf32>
    %27 = arith.mulf %15, %26 : vector<176x128xf32>
    %28 = arith.mulf %2, %27 : vector<176x128xf32>
    %c0_17 = arith.constant 0 : index
    %c0_18 = arith.constant 0 : index
    %29 = vector.load %arg9[%c0_17, %c0_18] : memref<128x128xf32, #tpu.memory_space<vmem>>, vector<128x128xf32>
    %cst_19 = arith.constant dense<0.000000e+00> : vector<176x128xf32>
    %30 = tpu.matmul %28, %29, %cst_19 {dimension_numbers = #tpu.dot_dimension_numbers<[1], [0], [0], [1], [0, 0, 1, 1], [], []>} : vector<176x128xf32>, vector<128x128xf32>, vector<176x128xf32> -> vector<176x128xf32>
    %cst_20 = arith.constant dense<0.000000e+00> : vector<128xf32>
    %31 = vector.multi_reduction <add>, %30, %cst_20 [0] : vector<176x128xf32> to vector<128xf32>
    %32 = vector.shape_cast %31 : vector<128xf32> to vector<1x128xf32>
    %33 = arith.mulf %28, %28 : vector<176x128xf32>
    %c0_21 = arith.constant 0 : index
    %c0_22 = arith.constant 0 : index
    %34 = vector.load %arg9[%c0_21, %c0_22] : memref<128x128xf32, #tpu.memory_space<vmem>>, vector<128x128xf32>
    %cst_23 = arith.constant dense<0.000000e+00> : vector<176x128xf32>
    %35 = tpu.matmul %33, %34, %cst_23 {dimension_numbers = #tpu.dot_dimension_numbers<[1], [0], [0], [1], [0, 0, 1, 1], [], []>} : vector<176x128xf32>, vector<128x128xf32>, vector<176x128xf32> -> vector<176x128xf32>
    %cst_24 = arith.constant dense<0.000000e+00> : vector<128xf32>
    %36 = vector.multi_reduction <add>, %35, %cst_24 [0] : vector<176x128xf32> to vector<128xf32>
    %37 = vector.shape_cast %36 : vector<128xf32> to vector<1x128xf32>
    %cst_25 = arith.constant 0.001953125 : f32
    %38 = vector.broadcast %cst_25 : f32 to vector<1x128xf32>
    %39 = arith.mulf %32, %38 : vector<1x128xf32>
    %cst_26 = arith.constant 0.001953125 : f32
    %40 = vector.broadcast %cst_26 : f32 to vector<1x128xf32>
    %41 = arith.mulf %37, %40 : vector<1x128xf32>
    %42 = arith.mulf %39, %39 : vector<1x128xf32>
    %43 = arith.subf %41, %42 : vector<1x128xf32>
    %cst_27 = arith.constant 0.000000e+00 : f32
    %44 = vector.broadcast %cst_27 : f32 to vector<1x128xf32>
    %45 = arith.maximumf %43, %44 : vector<1x128xf32>
    %c0_28 = arith.constant 0 : index
    %c0_29 = arith.constant 0 : index
    %46 = vector.load %arg10[%c0_28, %c0_29] : memref<1x128xf32, #tpu.memory_space<vmem>>, vector<1x128xf32>
    %cst_30 = arith.constant 9.99999974E-6 : f32
    %47 = vector.broadcast %cst_30 : f32 to vector<1x128xf32>
    %48 = arith.addf %45, %47 : vector<1x128xf32>
    %49 = math.rsqrt %48 : vector<1x128xf32>
    %50 = arith.mulf %46, %49 : vector<1x128xf32>
    %c0_31 = arith.constant 0 : index
    %c0_32 = arith.constant 0 : index
    %51 = vector.load %arg11[%c0_31, %c0_32] : memref<1x128xf32, #tpu.memory_space<vmem>>, vector<1x128xf32>
    %52 = arith.mulf %39, %50 : vector<1x128xf32>
    %53 = arith.subf %51, %52 : vector<1x128xf32>
    %54 = vector.broadcast %50 : vector<1x128xf32> to vector<176x128xf32>
    %55 = arith.mulf %2, %54 : vector<176x128xf32>
    %56 = vector.broadcast %53 : vector<1x128xf32> to vector<176x128xf32>
    %57 = arith.addf %55, %56 : vector<176x128xf32>
    %cst_33 = arith.constant 0.000000e+00 : f32
    %58 = vector.broadcast %cst_33 : f32 to vector<176x128xf32>
    %59 = arith.maximumf %57, %58 : vector<176x128xf32>
    %60 = arith.truncf %59 : vector<176x128xf32> to vector<176x128xbf16>
    %c0_34 = arith.constant 0 : index
    %c0_35 = arith.constant 0 : index
    %61 = vector.load %arg12[%c0_34, %c0_35] : memref<176x128xbf16, #tpu.memory_space<vmem>>, vector<176x128xbf16>
    tpu.vector_store %arg12[%c0_34, %c0_35], %60 {strides = array<i32>} : memref<176x128xbf16, #tpu.memory_space<vmem>>, vector<176x128xbf16>,
    return
  }
  func.func @transform_0(%arg0: i32) -> (i32, i32) {
    %c0_i32 = arith.constant 0 : i32
    %c0_i32_0 = arith.constant 0 : i32
    %c0_i32_1 = arith.constant 0 : i32
    return %c0_i32, %c0_i32_0 : i32, i32
  }
  func.func @transform_1(%arg0: i32) -> (i32, i32) {
    %c0_i32 = arith.constant 0 : i32
    %c0_i32_0 = arith.constant 0 : i32
    %c0_i32_1 = arith.constant 0 : i32
    return %c0_i32, %c0_i32_0 : i32, i32
  }
  func.func @transform_2(%arg0: i32) -> (i32, i32) {
    %c0_i32 = arith.constant 0 : i32
    %c0_i32_0 = arith.constant 0 : i32
    %c0_i32_1 = arith.constant 0 : i32
    return %c0_i32, %c0_i32_0 : i32, i32
  }
  func.func @transform_3(%arg0: i32) -> (i32, i32) {
    %c0_i32 = arith.constant 0 : i32
    %c0_i32_0 = arith.constant 0 : i32
    %c0_i32_1 = arith.constant 0 : i32
    return %c0_i32, %c0_i32_0 : i32, i32
  }
  func.func @transform_4(%arg0: i32) -> (i32, i32) {
    %c0_i32 = arith.constant 0 : i32
    %c0_i32_0 = arith.constant 0 : i32
    %c0_i32_1 = arith.constant 0 : i32
    return %c0_i32, %c0_i32_0 : i32, i32
  }
  func.func @transform_5(%arg0: i32) -> (i32, i32) {
    %c0_i32 = arith.constant 0 : i32
    %c0_i32_0 = arith.constant 0 : i32
    %c0_i32_1 = arith.constant 0 : i32
    return %c0_i32, %c0_i32_0 : i32, i32
  }
  func.func @transform_6(%arg0: i32) -> (i32, i32) {
    %c0_i32 = arith.constant 0 : i32
    %c0_i32_0 = arith.constant 0 : i32
    %c0_i32_1 = arith.constant 0 : i32
    return %c0_i32, %c0_i32_0 : i32, i32
  }
  func.func @transform_7(%arg0: i32) -> (i32, i32) {
    %c0_i32 = arith.constant 0 : i32
    %c0_i32_0 = arith.constant 0 : i32
    %c0_i32_1 = arith.constant 0 : i32
    return %c0_i32, %c0_i32_0 : i32, i32
  }
  func.func @transform_8(%arg0: i32) -> (i32, i32) {
    %c0_i32 = arith.constant 0 : i32
    %c0_i32_0 = arith.constant 0 : i32
    %c0_i32_1 = arith.constant 0 : i32
    return %c0_i32, %c0_i32_0 : i32, i32
  }
  func.func @transform_9(%arg0: i32) -> (i32, i32) {
    %c0_i32 = arith.constant 0 : i32
    %c0_i32_0 = arith.constant 0 : i32
    %c0_i32_1 = arith.constant 0 : i32
    return %c0_i32, %c0_i32_0 : i32, i32
  }
  func.func @transform_10(%arg0: i32) -> (i32, i32) {
    %c0_i32 = arith.constant 0 : i32
    %c0_i32_0 = arith.constant 0 : i32
    %c0_i32_1 = arith.constant 0 : i32
    return %c0_i32, %c0_i32_0 : i32, i32
  }
  func.func @transform_11(%arg0: i32) -> (i32, i32) {
    %c0_i32 = arith.constant 0 : i32
    %c0_i32_0 = arith.constant 0 : i32
    %c0_i32_1 = arith.constant 0 : i32
    return %c0_i32, %c0_i32_0 : i32, i32
  }
}

module attributes {stable_mosaic.version = 11 : i64} {
  func.func @_fused_convt_bn_relu_kernel(%arg0: i32, %arg1: memref<592x128xbf16, #tpu.memory_space<vmem>>, %arg2: memref<128x128xbf16, #tpu.memory_space<vmem>>, %arg3: memref<592x1xf32, #tpu.memory_space<vmem>>, %arg4: memref<592x1xf32, #tpu.memory_space<vmem>>, %arg5: memref<592x1xf32, #tpu.memory_space<vmem>>, %arg6: memref<592x1xf32, #tpu.memory_space<vmem>>, %arg7: memref<1x128xf32, #tpu.memory_space<vmem>>, %arg8: memref<1x128xf32, #tpu.memory_space<vmem>>, %arg9: memref<128x128xf32, #tpu.memory_space<vmem>>, %arg10: memref<1x128xf32, #tpu.memory_space<vmem>>, %arg11: memref<1x128xf32, #tpu.memory_space<vmem>>, %arg12: memref<592x128xbf16, #tpu.memory_space<vmem>>) attributes {dimension_semantics = [#tpu.dimension_semantics<arbitrary>], iteration_bounds = array<i64: 1>, scalar_prefetch = 0 : i64, scratch_operands = 0 : i64, tpu.core_type = #tpu.core_type<tc>, window_params = [{pipeline_mode = #tpu.pipeline_mode<synchronous>, transform_indices = @transform_0, window_bounds = array<i64: 592, 128>}, {pipeline_mode = #tpu.pipeline_mode<synchronous>, transform_indices = @transform_1, window_bounds = array<i64: 128, 128>}, {pipeline_mode = #tpu.pipeline_mode<synchronous>, transform_indices = @transform_2, window_bounds = array<i64: 592, 1>}, {pipeline_mode = #tpu.pipeline_mode<synchronous>, transform_indices = @transform_3, window_bounds = array<i64: 592, 1>}, {pipeline_mode = #tpu.pipeline_mode<synchronous>, transform_indices = @transform_4, window_bounds = array<i64: 592, 1>}, {pipeline_mode = #tpu.pipeline_mode<synchronous>, transform_indices = @transform_5, window_bounds = array<i64: 592, 1>}, {pipeline_mode = #tpu.pipeline_mode<synchronous>, transform_indices = @transform_6, window_bounds = array<i64: 1, 128>}, {pipeline_mode = #tpu.pipeline_mode<synchronous>, transform_indices = @transform_7, window_bounds = array<i64: 1, 128>}, {pipeline_mode = #tpu.pipeline_mode<synchronous>, transform_indices = @transform_8, window_bounds = array<i64: 128, 128>}, {pipeline_mode = #tpu.pipeline_mode<synchronous>, transform_indices = @transform_9, window_bounds = array<i64: 1, 128>}, {pipeline_mode = #tpu.pipeline_mode<synchronous>, transform_indices = @transform_10, window_bounds = array<i64: 1, 128>}, {pipeline_mode = #tpu.pipeline_mode<synchronous>, transform_indices = @transform_11, window_bounds = array<i64: 592, 128>}]} {
    %c0 = arith.constant 0 : index
    %c0_0 = arith.constant 0 : index
    %0 = vector.load %arg1[%c0, %c0_0] : memref<592x128xbf16, #tpu.memory_space<vmem>>, vector<592x128xbf16>
    %c0_1 = arith.constant 0 : index
    %c0_2 = arith.constant 0 : index
    %1 = vector.load %arg2[%c0_1, %c0_2] : memref<128x128xbf16, #tpu.memory_space<vmem>>, vector<128x128xbf16>
    %cst = arith.constant dense<0.000000e+00> : vector<592x128xf32>
    %2 = tpu.matmul %0, %1, %cst {dimension_numbers = #tpu.dot_dimension_numbers<[1], [0], [0], [1], [0, 0, 1, 1], [], []>} : vector<592x128xbf16>, vector<128x128xbf16>, vector<592x128xf32> -> vector<592x128xf32>
    %c0_3 = arith.constant 0 : index
    %c0_4 = arith.constant 0 : index
    %3 = vector.load %arg7[%c0_3, %c0_4] : memref<1x128xf32, #tpu.memory_space<vmem>>, vector<1x128xf32>
    %c0_5 = arith.constant 0 : index
    %c0_6 = arith.constant 0 : index
    %4 = vector.load %arg8[%c0_5, %c0_6] : memref<1x128xf32, #tpu.memory_space<vmem>>, vector<1x128xf32>
    %c0_7 = arith.constant 0 : index
    %c0_8 = arith.constant 0 : index
    %5 = vector.load %arg4[%c0_7, %c0_8] : memref<592x1xf32, #tpu.memory_space<vmem>>, vector<592x1xf32>
    %6 = vector.broadcast %3 : vector<1x128xf32> to vector<592x128xf32>
    %7 = vector.broadcast %5 : vector<592x1xf32> to vector<592x128xf32>
    %8 = arith.mulf %6, %7 : vector<592x128xf32>
    %cst_9 = arith.constant 1.000000e+00 : f32
    %9 = vector.broadcast %cst_9 : f32 to vector<1x128xf32>
    %10 = arith.subf %9, %3 : vector<1x128xf32>
    %c0_10 = arith.constant 0 : index
    %c0_11 = arith.constant 0 : index
    %11 = vector.load %arg3[%c0_10, %c0_11] : memref<592x1xf32, #tpu.memory_space<vmem>>, vector<592x1xf32>
    %12 = vector.broadcast %10 : vector<1x128xf32> to vector<592x128xf32>
    %13 = vector.broadcast %11 : vector<592x1xf32> to vector<592x128xf32>
    %14 = arith.mulf %12, %13 : vector<592x128xf32>
    %15 = arith.addf %8, %14 : vector<592x128xf32>
    %c0_12 = arith.constant 0 : index
    %c0_13 = arith.constant 0 : index
    %16 = vector.load %arg6[%c0_12, %c0_13] : memref<592x1xf32, #tpu.memory_space<vmem>>, vector<592x1xf32>
    %17 = vector.broadcast %4 : vector<1x128xf32> to vector<592x128xf32>
    %18 = vector.broadcast %16 : vector<592x1xf32> to vector<592x128xf32>
    %19 = arith.mulf %17, %18 : vector<592x128xf32>
    %cst_14 = arith.constant 1.000000e+00 : f32
    %20 = vector.broadcast %cst_14 : f32 to vector<1x128xf32>
    %21 = arith.subf %20, %4 : vector<1x128xf32>
    %c0_15 = arith.constant 0 : index
    %c0_16 = arith.constant 0 : index
    %22 = vector.load %arg5[%c0_15, %c0_16] : memref<592x1xf32, #tpu.memory_space<vmem>>, vector<592x1xf32>
    %23 = vector.broadcast %21 : vector<1x128xf32> to vector<592x128xf32>
    %24 = vector.broadcast %22 : vector<592x1xf32> to vector<592x128xf32>
    %25 = arith.mulf %23, %24 : vector<592x128xf32>
    %26 = arith.addf %19, %25 : vector<592x128xf32>
    %27 = arith.mulf %15, %26 : vector<592x128xf32>
    %28 = arith.mulf %2, %27 : vector<592x128xf32>
    %c0_17 = arith.constant 0 : index
    %c0_18 = arith.constant 0 : index
    %29 = vector.load %arg9[%c0_17, %c0_18] : memref<128x128xf32, #tpu.memory_space<vmem>>, vector<128x128xf32>
    %cst_19 = arith.constant dense<0.000000e+00> : vector<592x128xf32>
    %30 = tpu.matmul %28, %29, %cst_19 {dimension_numbers = #tpu.dot_dimension_numbers<[1], [0], [0], [1], [0, 0, 1, 1], [], []>} : vector<592x128xf32>, vector<128x128xf32>, vector<592x128xf32> -> vector<592x128xf32>
    %cst_20 = arith.constant dense<0.000000e+00> : vector<128xf32>
    %31 = vector.multi_reduction <add>, %30, %cst_20 [0] : vector<592x128xf32> to vector<128xf32>
    %32 = vector.shape_cast %31 : vector<128xf32> to vector<1x128xf32>
    %33 = arith.mulf %28, %28 : vector<592x128xf32>
    %c0_21 = arith.constant 0 : index
    %c0_22 = arith.constant 0 : index
    %34 = vector.load %arg9[%c0_21, %c0_22] : memref<128x128xf32, #tpu.memory_space<vmem>>, vector<128x128xf32>
    %cst_23 = arith.constant dense<0.000000e+00> : vector<592x128xf32>
    %35 = tpu.matmul %33, %34, %cst_23 {dimension_numbers = #tpu.dot_dimension_numbers<[1], [0], [0], [1], [0, 0, 1, 1], [], []>} : vector<592x128xf32>, vector<128x128xf32>, vector<592x128xf32> -> vector<592x128xf32>
    %cst_24 = arith.constant dense<0.000000e+00> : vector<128xf32>
    %36 = vector.multi_reduction <add>, %35, %cst_24 [0] : vector<592x128xf32> to vector<128xf32>
    %37 = vector.shape_cast %36 : vector<128xf32> to vector<1x128xf32>
    %cst_25 = arith.constant 4.8828125E-4 : f32
    %38 = vector.broadcast %cst_25 : f32 to vector<1x128xf32>
    %39 = arith.mulf %32, %38 : vector<1x128xf32>
    %cst_26 = arith.constant 4.8828125E-4 : f32
    %40 = vector.broadcast %cst_26 : f32 to vector<1x128xf32>
    %41 = arith.mulf %37, %40 : vector<1x128xf32>
    %42 = arith.mulf %39, %39 : vector<1x128xf32>
    %43 = arith.subf %41, %42 : vector<1x128xf32>
    %cst_27 = arith.constant 0.000000e+00 : f32
    %44 = vector.broadcast %cst_27 : f32 to vector<1x128xf32>
    %45 = arith.maximumf %43, %44 : vector<1x128xf32>
    %c0_28 = arith.constant 0 : index
    %c0_29 = arith.constant 0 : index
    %46 = vector.load %arg10[%c0_28, %c0_29] : memref<1x128xf32, #tpu.memory_space<vmem>>, vector<1x128xf32>
    %cst_30 = arith.constant 9.99999974E-6 : f32
    %47 = vector.broadcast %cst_30 : f32 to vector<1x128xf32>
    %48 = arith.addf %45, %47 : vector<1x128xf32>
    %49 = math.rsqrt %48 : vector<1x128xf32>
    %50 = arith.mulf %46, %49 : vector<1x128xf32>
    %c0_31 = arith.constant 0 : index
    %c0_32 = arith.constant 0 : index
    %51 = vector.load %arg11[%c0_31, %c0_32] : memref<1x128xf32, #tpu.memory_space<vmem>>, vector<1x128xf32>
    %52 = arith.mulf %39, %50 : vector<1x128xf32>
    %53 = arith.subf %51, %52 : vector<1x128xf32>
    %54 = vector.broadcast %50 : vector<1x128xf32> to vector<592x128xf32>
    %55 = arith.mulf %2, %54 : vector<592x128xf32>
    %56 = vector.broadcast %53 : vector<1x128xf32> to vector<592x128xf32>
    %57 = arith.addf %55, %56 : vector<592x128xf32>
    %cst_33 = arith.constant 0.000000e+00 : f32
    %58 = vector.broadcast %cst_33 : f32 to vector<592x128xf32>
    %59 = arith.maximumf %57, %58 : vector<592x128xf32>
    %60 = arith.truncf %59 : vector<592x128xf32> to vector<592x128xbf16>
    %c0_34 = arith.constant 0 : index
    %c0_35 = arith.constant 0 : index
    %61 = vector.load %arg12[%c0_34, %c0_35] : memref<592x128xbf16, #tpu.memory_space<vmem>>, vector<592x128xbf16>
    tpu.vector_store %arg12[%c0_34, %c0_35], %60 {strides = array<i32>} : memref<592x128xbf16, #tpu.memory_space<vmem>>, vector<592x128xbf16>,
    return
  }
  func.func @transform_0(%arg0: i32) -> (i32, i32) {
    %c0_i32 = arith.constant 0 : i32
    %c0_i32_0 = arith.constant 0 : i32
    %c0_i32_1 = arith.constant 0 : i32
    return %c0_i32, %c0_i32_0 : i32, i32
  }
  func.func @transform_1(%arg0: i32) -> (i32, i32) {
    %c0_i32 = arith.constant 0 : i32
    %c0_i32_0 = arith.constant 0 : i32
    %c0_i32_1 = arith.constant 0 : i32
    return %c0_i32, %c0_i32_0 : i32, i32
  }
  func.func @transform_2(%arg0: i32) -> (i32, i32) {
    %c0_i32 = arith.constant 0 : i32
    %c0_i32_0 = arith.constant 0 : i32
    %c0_i32_1 = arith.constant 0 : i32
    return %c0_i32, %c0_i32_0 : i32, i32
  }
  func.func @transform_3(%arg0: i32) -> (i32, i32) {
    %c0_i32 = arith.constant 0 : i32
    %c0_i32_0 = arith.constant 0 : i32
    %c0_i32_1 = arith.constant 0 : i32
    return %c0_i32, %c0_i32_0 : i32, i32
  }
  func.func @transform_4(%arg0: i32) -> (i32, i32) {
    %c0_i32 = arith.constant 0 : i32
    %c0_i32_0 = arith.constant 0 : i32
    %c0_i32_1 = arith.constant 0 : i32
    return %c0_i32, %c0_i32_0 : i32, i32
  }
  func.func @transform_5(%arg0: i32) -> (i32, i32) {
    %c0_i32 = arith.constant 0 : i32
    %c0_i32_0 = arith.constant 0 : i32
    %c0_i32_1 = arith.constant 0 : i32
    return %c0_i32, %c0_i32_0 : i32, i32
  }
  func.func @transform_6(%arg0: i32) -> (i32, i32) {
    %c0_i32 = arith.constant 0 : i32
    %c0_i32_0 = arith.constant 0 : i32
    %c0_i32_1 = arith.constant 0 : i32
    return %c0_i32, %c0_i32_0 : i32, i32
  }
  func.func @transform_7(%arg0: i32) -> (i32, i32) {
    %c0_i32 = arith.constant 0 : i32
    %c0_i32_0 = arith.constant 0 : i32
    %c0_i32_1 = arith.constant 0 : i32
    return %c0_i32, %c0_i32_0 : i32, i32
  }
  func.func @transform_8(%arg0: i32) -> (i32, i32) {
    %c0_i32 = arith.constant 0 : i32
    %c0_i32_0 = arith.constant 0 : i32
    %c0_i32_1 = arith.constant 0 : i32
    return %c0_i32, %c0_i32_0 : i32, i32
  }
  func.func @transform_9(%arg0: i32) -> (i32, i32) {
    %c0_i32 = arith.constant 0 : i32
    %c0_i32_0 = arith.constant 0 : i32
    %c0_i32_1 = arith.constant 0 : i32
    return %c0_i32, %c0_i32_0 : i32, i32
  }
  func.func @transform_10(%arg0: i32) -> (i32, i32) {
    %c0_i32 = arith.constant 0 : i32
    %c0_i32_0 = arith.constant 0 : i32
    %c0_i32_1 = arith.constant 0 : i32
    return %c0_i32, %c0_i32_0 : i32, i32
  }
  func.func @transform_11(%arg0: i32) -> (i32, i32) {
    %c0_i32 = arith.constant 0 : i32
    %c0_i32_0 = arith.constant 0 : i32
    %c0_i32_1 = arith.constant 0 : i32
    return %c0_i32, %c0_i32_0 : i32, i32
  }
}

module attributes {stable_mosaic.version = 11 : i64} {
  func.func @_convt_tanh_kernel(%arg0: i32, %arg1: memref<8x64xbf16, #tpu.memory_space<vmem>>, %arg2: memref<64x2304xbf16, #tpu.memory_space<vmem>>, %arg3: memref<8x1xf32, #tpu.memory_space<vmem>>, %arg4: memref<8x2304xf32, #tpu.memory_space<vmem>>) attributes {dimension_semantics = [#tpu.dimension_semantics<arbitrary>], iteration_bounds = array<i64: 1>, scalar_prefetch = 0 : i64, scratch_operands = 0 : i64, tpu.core_type = #tpu.core_type<tc>, window_params = [{pipeline_mode = #tpu.pipeline_mode<synchronous>, transform_indices = @transform_0, window_bounds = array<i64: 8, 64>}, {pipeline_mode = #tpu.pipeline_mode<synchronous>, transform_indices = @transform_1, window_bounds = array<i64: 64, 2304>}, {pipeline_mode = #tpu.pipeline_mode<synchronous>, transform_indices = @transform_2, window_bounds = array<i64: 8, 1>}, {pipeline_mode = #tpu.pipeline_mode<synchronous>, transform_indices = @transform_3, window_bounds = array<i64: 8, 2304>}]} {
    %c0 = arith.constant 0 : index
    %c0_0 = arith.constant 0 : index
    %0 = vector.load %arg1[%c0, %c0_0] : memref<8x64xbf16, #tpu.memory_space<vmem>>, vector<8x64xbf16>
    %c0_1 = arith.constant 0 : index
    %c0_2 = arith.constant 0 : index
    %1 = vector.load %arg2[%c0_1, %c0_2] : memref<64x2304xbf16, #tpu.memory_space<vmem>>, vector<64x2304xbf16>
    %cst = arith.constant dense<0.000000e+00> : vector<8x2304xf32>
    %2 = tpu.matmul %0, %1, %cst {dimension_numbers = #tpu.dot_dimension_numbers<[1], [0], [0], [1], [0, 0, 1, 1], [], []>} : vector<8x64xbf16>, vector<64x2304xbf16>, vector<8x2304xf32> -> vector<8x2304xf32>
    %c0_3 = arith.constant 0 : index
    %c0_4 = arith.constant 0 : index
    %3 = vector.load %arg3[%c0_3, %c0_4] : memref<8x1xf32, #tpu.memory_space<vmem>>, vector<8x1xf32>
    %4 = vector.broadcast %3 : vector<8x1xf32> to vector<8x2304xf32>
    %5 = arith.addf %2, %4 : vector<8x2304xf32>
    %6 = math.tanh %5 : vector<8x2304xf32>
    %c0_5 = arith.constant 0 : index
    %c0_6 = arith.constant 0 : index
    %7 = vector.load %arg4[%c0_5, %c0_6] : memref<8x2304xf32, #tpu.memory_space<vmem>>, vector<8x2304xf32>
    tpu.vector_store %arg4[%c0_5, %c0_6], %6 {strides = array<i32>} : memref<8x2304xf32, #tpu.memory_space<vmem>>, vector<8x2304xf32>,
    return
  }
  func.func @transform_0(%arg0: i32) -> (i32, i32) {
    %c0_i32 = arith.constant 0 : i32
    %c0_i32_0 = arith.constant 0 : i32
    %c0_i32_1 = arith.constant 0 : i32
    return %c0_i32, %c0_i32_0 : i32, i32
  }
  func.func @transform_1(%arg0: i32) -> (i32, i32) {
    %c0_i32 = arith.constant 0 : i32
    %c0_i32_0 = arith.constant 0 : i32
    %c0_i32_1 = arith.constant 0 : i32
    return %c0_i32, %c0_i32_0 : i32, i32
  }
  func.func @transform_2(%arg0: i32) -> (i32, i32) {
    %c0_i32 = arith.constant 0 : i32
    %c0_i32_0 = arith.constant 0 : i32
    %c0_i32_1 = arith.constant 0 : i32
    return %c0_i32, %c0_i32_0 : i32, i32
  }
  func.func @transform_3(%arg0: i32) -> (i32, i32) {
    %c0_i32 = arith.constant 0 : i32
    %c0_i32_0 = arith.constant 0 : i32
    %c0_i32_1 = arith.constant 0 : i32
    return %c0_i32, %c0_i32_0 : i32, i32
  }
}

</mosaic_0001>

<llo_original>
// kernel: dcgan_generator_forward.5
$region0: #{dcgan_generator_forward.5}
  #allocation0 [shape = 'u32[]', space=smem, size = 0x4, offset = 0x4, fixed_abs, tag = 'smem constant byte address 0x4 - core index']
  #allocation1 [shape = 'u32[144,128]{1,0:T(1,128)}', space=vmem, size = 0x12000, scoped, tag = 'internal scratch']
  %s0 = inlined_call_operand.vmem [shape: bf16[32,128], index: 0, kind: input, shape index: {}]
  %s1 = inlined_call_operand.hbm [shape: bf16[128,128], index: 1, kind: input, shape index: {}]
  %s2 = inlined_call_operand.vmem [shape: f32[32,1], index: 2, kind: input, shape index: {}]
  %s3 = inlined_call_operand.vmem [shape: f32[32,1], index: 3, kind: input, shape index: {}]
  %s4 = inlined_call_operand.vmem [shape: f32[32,1], index: 4, kind: input, shape index: {}]
  %s5 = inlined_call_operand.vmem [shape: f32[32,1], index: 5, kind: input, shape index: {}]
  %s6 = inlined_call_operand.hbm [shape: f32[1,128], index: 6, kind: input, shape index: {}]
  %s7 = inlined_call_operand.hbm [shape: f32[1,128], index: 7, kind: input, shape index: {}]
  %s8 = inlined_call_operand.hbm [shape: f32[128,128], index: 8, kind: input, shape index: {}]
  %s9 = inlined_call_operand.hbm [shape: f32[1,128], index: 9, kind: input, shape index: {}]
  %s10 = inlined_call_operand.hbm [shape: f32[1,128], index: 10, kind: input, shape index: {}]
  %s11 = inlined_call_operand.vmem [shape: bf16[32,128], index: 11, kind: output, shape index: {}]
  %s12 = sld [smem:[#allocation0]]
  $region78: #{dcgan_generator_forward.5} parent=0
    _
  %s14 = ssub.s32 1, %s12
  %s15 = scalar_select 0, %s14, %s12
  $region1: #{dcgan_generator_forward.5} parent=0
    #allocation2 [shape = 'u8[32768]{0}', space=vmem, size = 0x8000, scoped, tag = 'input window, operand 1, single buffered']
    #allocation3 [shape = 's32[1]{0}', space=sflag, size = 0x4, scoped, tag = 'scoped memory for dcgan_generator_forward.5']
    #allocation4 [shape = 'u8[512]{0}', space=vmem, size = 0x400, scoped, tag = 'input window, operand 6, single buffered']
    #allocation5 [shape = 's32[1]{0}', space=sflag, size = 0x4, scoped, tag = 'scoped memory for dcgan_generator_forward.5']
    #allocation6 [shape = 'u8[512]{0}', space=vmem, size = 0x400, scoped, tag = 'input window, operand 7, single buffered']
    #allocation7 [shape = 'u8[65536]{0}', space=vmem, size = 0x10000, scoped, tag = 'input window, operand 8, single buffered']
    #allocation8 [shape = 's32[1]{0}', space=sflag, size = 0x4, scoped, tag = 'scoped memory for dcgan_generator_forward.5']
    #allocation9 [shape = 'u8[512]{0}', space=vmem, size = 0x400, scoped, tag = 'input window, operand 9, single buffered']
    #allocation10 [shape = 'u8[512]{0}', space=vmem, size = 0x400, scoped, tag = 'input window, operand 10, single buffered']
    #allocation11 [shape = 's32[1]{0}', space=sflag, size = 0x4, scoped, tag = 'scoped memory for dcgan_generator_forward.5']
    %16 = vsyncpa [#allocation3], 0
    %17 = vsyncpa [#allocation5], 0
    %18 = vsyncpa [#allocation8], 0
    %19 = vsyncpa [#allocation11], 0
    // Predicated region
    $region2: #{dcgan_generator_forward.5} parent=1 // pred_check
      _
    $region3: #{dcgan_generator_forward.5} parent=1 // pred_check_branch
      %21 = sbr.rel (0) target = $region5
    $region4: #{dcgan_generator_forward.5} parent=1 // pred_region
      _
    $region5: #{dcgan_generator_forward.5} parent=1 // pred_fallthru
      _
    // Predicated region
    $region6: #{dcgan_generator_forward.5} parent=1 // pred_check
      _
    $region7: #{dcgan_generator_forward.5} parent=1 // pred_check_branch
      %23 = sbr.rel (0) target = $region9
    $region8: #{dcgan_generator_forward.5} parent=1 // pred_region
      %s25 = ssub.s32 1024, 1024
      %26 = vsyncadd [#allocation3], %s25
      %s27 = sshll.u32 [#allocation2], 4
      %s28 = int_to_ptr.vmem [resolvable:$true] %s27
      %33 = dma.hbm_to_vmem [thread:$0]  %s1, 1024, %s28, [#allocation3], 64, 64, 4
    $region9: #{dcgan_generator_forward.5} parent=1 // pred_fallthru
      _
    // Predicated region
    $region10: #{dcgan_generator_forward.5} parent=1 // pred_check
      _
    $region11: #{dcgan_generator_forward.5} parent=1 // pred_check_branch
      %35 = sbr.rel (0) target = $region13
    $region12: #{dcgan_generator_forward.5} parent=1 // pred_region
      _
    $region13: #{dcgan_generator_forward.5} parent=1 // pred_fallthru
      _
    // Predicated region
    $region14: #{dcgan_generator_forward.5} parent=1 // pred_check
      _
    $region15: #{dcgan_generator_forward.5} parent=1 // pred_check_branch
      %37 = sbr.rel (0) target = $region17
    $region16: #{dcgan_generator_forward.5} parent=1 // pred_region
      _
    $region17: #{dcgan_generator_forward.5} parent=1 // pred_fallthru
      _
    // Predicated region
    $region18: #{dcgan_generator_forward.5} parent=1 // pred_check
      _
    $region19: #{dcgan_generator_forward.5} parent=1 // pred_check_branch
      %39 = sbr.rel (0) target = $region21
    $region20: #{dcgan_generator_forward.5} parent=1 // pred_region
      _
    $region21: #{dcgan_generator_forward.5} parent=1 // pred_fallthru
      _
    // Predicated region
    $region22: #{dcgan_generator_forward.5} parent=1 // pred_check
      _
    $region23: #{dcgan_generator_forward.5} parent=1 // pred_check_branch
      %41 = sbr.rel (0) target = $region25
    $region24: #{dcgan_generator_forward.5} parent=1 // pred_region
      _
    $region25: #{dcgan_generator_forward.5} parent=1 // pred_fallthru
      _
    // Predicated region
    $region26: #{dcgan_generator_forward.5} parent=1 // pred_check
      _
    $region27: #{dcgan_generator_forward.5} parent=1 // pred_check_branch
      %43 = sbr.rel (0) target = $region29
    $region28: #{dcgan_generator_forward.5} parent=1 // pred_region
      %s45 = ssub.s32 16, 16
      %46 = vsyncadd [#allocation5], %s45
      %s48 = sshll.u32 [#allocation4], 4
      %s49 = int_to_ptr.vmem [resolvable:$true] %s48
      %51 = dma.hbm_to_vmem [thread:$0]  %s6, 16, %s49, [#allocation5]
    $region29: #{dcgan_generator_forward.5} parent=1 // pred_fallthru
      _
    // Predicated region
    $region30: #{dcgan_generator_forward.5} parent=1 // pred_check
      _
    $region31: #{dcgan_generator_forward.5} parent=1 // pred_check_branch
      %53 = sbr.rel (0) target = $region33
    $region32: #{dcgan_generator_forward.5} parent=1 // pred_region
      %s55 = ssub.s32 16, 16
      %56 = vsyncadd [#allocation5], %s55
      %s58 = sshll.u32 [#allocation6], 4
      %s59 = int_to_ptr.vmem [resolvable:$true] %s58
      %61 = dma.hbm_to_vmem [thread:$0]  %s7, 16, %s59, [#allocation5]
    $region33: #{dcgan_generator_forward.5} parent=1 // pred_fallthru
      _
    // Predicated region
    $region34: #{dcgan_generator_forward.5} parent=1 // pred_check
      _
    $region35: #{dcgan_generator_forward.5} parent=1 // pred_check_branch
      %63 = sbr.rel (0) target = $region37
    $region36: #{dcgan_generator_forward.5} parent=1 // pred_region
      %s65 = ssub.s32 2048, 2048
      %66 = vsyncadd [#allocation8], %s65
      %s67 = sshll.u32 [#allocation7], 4
      %s68 = int_to_ptr.vmem [resolvable:$true] %s67
      %73 = dma.hbm_to_vmem [thread:$0]  %s8, 2048, %s68, [#allocation8], 128, 128, 8
    $region37: #{dcgan_generator_forward.5} parent=1 // pred_fallthru
      _
    // Predicated region
    $region38: #{dcgan_generator_forward.5} parent=1 // pred_check
      _
    $region39: #{dcgan_generator_forward.5} parent=1 // pred_check_branch
      %75 = sbr.rel (0) target = $region41
    $region40: #{dcgan_generator_forward.5} parent=1 // pred_region
      %s77 = ssub.s32 16, 16
      %78 = vsyncadd [#allocation8], %s77
      %s80 = sshll.u32 [#allocation9], 4
      %s81 = int_to_ptr.vmem [resolvable:$true] %s80
      %83 = dma.hbm_to_vmem [thread:$0]  %s9, 16, %s81, [#allocation8]
    $region41: #{dcgan_generator_forward.5} parent=1 // pred_fallthru
      _
    // Predicated region
    $region42: #{dcgan_generator_forward.5} parent=1 // pred_check
      _
    $region43: #{dcgan_generator_forward.5} parent=1 // pred_check_branch
      %85 = sbr.rel (0) target = $region45
    $region44: #{dcgan_generator_forward.5} parent=1 // pred_region
      %s87 = ssub.s32 16, 16
      %88 = vsyncadd [#allocation11], %s87
      %s90 = sshll.u32 [#allocation10], 4
      %s91 = int_to_ptr.vmem [resolvable:$true] %s90
      %93 = dma.hbm_to_vmem [thread:$0]  %s10, 16, %s91, [#allocation11]
    $region45: #{dcgan_generator_forward.5} parent=1 // pred_fallthru
      _
    // Predicated region
    $region46: #{dcgan_generator_forward.5} parent=1 // pred_check
      _
    $region47: #{dcgan_generator_forward.5} parent=1 // pred_check_branch
      %95 = sbr.rel (0) target = $region49
    $region48: #{dcgan_generator_forward.5} parent=1 // pred_region
      %96 = dma.done [#allocation3], 1024
    $region49: #{dcgan_generator_forward.5} parent=1 // pred_fallthru
      _
    // Predicated region
    $region50: #{dcgan_generator_forward.5} parent=1 // pred_check
      _
    $region51: #{dcgan_generator_forward.5} parent=1 // pred_check_branch
      %98 = sbr.rel (0) target = $region53
    $region52: #{dcgan_generator_forward.5} parent=1 // pred_region
      %99 = dma.done [#allocation5], 16
    $region53: #{dcgan_generator_forward.5} parent=1 // pred_fallthru
      _
    // Predicated region
    $region54: #{dcgan_generator_forward.5} parent=1 // pred_check
      _
    $region55: #{dcgan_generator_forward.5} parent=1 // pred_check_branch
      %101 = sbr.rel (0) target = $region57
    $region56: #{dcgan_generator_forward.5} parent=1 // pred_region
      %102 = dma.done [#allocation5], 16
    $region57: #{dcgan_generator_forward.5} parent=1 // pred_fallthru
      _
    // Predicated region
    $region58: #{dcgan_generator_forward.5} parent=1 // pred_check
      _
    $region59: #{dcgan_generator_forward.5} parent=1 // pred_check_branch
      %104 = sbr.rel (0) target = $region61
    $region60: #{dcgan_generator_forward.5} parent=1 // pred_region
      %105 = dma.done [#allocation8], 2048
    $region61: #{dcgan_generator_forward.5} parent=1 // pred_fallthru
      _
    // Predicated region
    $region62: #{dcgan_generator_forward.5} parent=1 // pred_check
      _
    $region63: #{dcgan_generator_forward.5} parent=1 // pred_check_branch
      %107 = sbr.rel (0) target = $region65
    $region64: #{dcgan_generator_forward.5} parent=1 // pred_region
      %108 = dma.done [#allocation8], 16
    $region65: #{dcgan_generator_forward.5} parent=1 // pred_fallthru
      _
    // Predicated region
    $region66: #{dcgan_generator_forward.5} parent=1 // pred_check
      _
    $region67: #{dcgan_generator_forward.5} parent=1 // pred_check_branch
      %110 = sbr.rel (0) target = $region69
    $region68: #{dcgan_generator_forward.5} parent=1 // pred_region
      %111 = dma.done [#allocation11], 16
    $region69: #{dcgan_generator_forward.5} parent=1 // pred_fallthru
      _
    %v113 = vld [vmem:[%s0] sm:$0xf]
    %v114 = vld [vmem:[%s0 + $0x4] sm:$0xf]
    %v115 = vld [vmem:[%s0 + $0x8] sm:$0xf]
    %v116 = vld [vmem:[%s0 + $0xc] sm:$0xf]
    %v117 = vld [vmem:[#allocation2] sm:$0xf]
    %v118 = vld [vmem:[#allocation2 + $0x4] sm:$0xf]
    %v119 = vld [vmem:[#allocation2 + $0x8] sm:$0xf]
    %v120 = vld [vmem:[#allocation2 + $0xc] sm:$0xf]
    %v121 = vld [vmem:[#allocation2 + $0x10] sm:$0xf]
    %v122 = vld [vmem:[#allocation2 + $0x14] sm:$0xf]
    %v123 = vld [vmem:[#allocation2 + $0x18] sm:$0xf]
    %v124 = vld [vmem:[#allocation2 + $0x1c] sm:$0xf]
    %v125 = vld [vmem:[#allocation2 + $0x20] sm:$0xf]
    %v126 = vld [vmem:[#allocation2 + $0x24] sm:$0xf]
    %v127 = vld [vmem:[#allocation2 + $0x28] sm:$0xf]
    %v128 = vld [vmem:[#allocation2 + $0x2c] sm:$0xf]
    %v129 = vld [vmem:[#allocation2 + $0x30] sm:$0xf]
    %v130 = vld [vmem:[#allocation2 + $0x34] sm:$0xf]
    %v131 = vld [vmem:[#allocation2 + $0x38] sm:$0xf]
    %v132 = vld [vmem:[#allocation2 + $0x3c] sm:$0xf]
    %v137 = vunpack.c.l.b16 %v113
    %v138 = vunpack.c.l.b16 %v114
    %v139 = vunpack.c.l.b16 %v115
    %v140 = vunpack.c.l.b16 %v116
    %v141 = vpack.c.b16 %v138, %v137
    %v142 = vpack.c.b16 %v140, %v139
    %v161 = vunpack.c.l.b16 %v117
    %v162 = vunpack.c.l.b16 %v118
    %v163 = vunpack.c.l.b16 %v119
    %v164 = vunpack.c.l.b16 %v120
    %v165 = vunpack.c.l.b16 %v121
    %v166 = vunpack.c.l.b16 %v122
    %v167 = vunpack.c.l.b16 %v123
    %v168 = vunpack.c.l.b16 %v124
    %v169 = vunpack.c.l.b16 %v125
    %v170 = vunpack.c.l.b16 %v126
    %v171 = vunpack.c.l.b16 %v127
    %v172 = vunpack.c.l.b16 %v128
    %v173 = vunpack.c.l.b16 %v129
    %v174 = vunpack.c.l.b16 %v130
    %v175 = vunpack.c.l.b16 %v131
    %v176 = vunpack.c.l.b16 %v132
    %v177 = vpack.c.b16 %v162, %v161
    %v178 = vpack.c.b16 %v164, %v163
    %v179 = vpack.c.b16 %v166, %v165
    %v180 = vpack.c.b16 %v168, %v167
    %v181 = vpack.c.b16 %v170, %v169
    %v182 = vpack.c.b16 %v172, %v171
    %v183 = vpack.c.b16 %v174, %v173
    %v184 = vpack.c.b16 %v176, %v175
    %193 = vmatprep.subr.bf16.mxu0 0
    %194 = vmatpush1.bf16.msra.mxu0 %v184
    %195 = vmatprep.subr.bf16.mxu0 0
    %196 = vmatpush1.bf16.msra.mxu0 %v183
    %197 = vmatprep.subr.bf16.mxu0 0
    %198 = vmatpush1.bf16.msra.mxu0 %v182
    %199 = vmatprep.subr.bf16.mxu0 0
    %200 = vmatpush1.bf16.msra.mxu0 %v181
    %201 = vmatprep.subr.bf16.mxu0 0
    %202 = vmatpush1.bf16.msra.mxu0 %v180
    %203 = vmatprep.subr.bf16.mxu0 0
    %204 = vmatpush1.bf16.msra.mxu0 %v179
    %205 = vmatprep.subr.bf16.mxu0 0
    %206 = vmatpush1.bf16.msra.mxu0 %v178
    %207 = vmatprep.subr.bf16.mxu0 0
    %208 = vmatpush1.bf16.msra.mxu0 %v177
    %209 = vmatprep.subr.bf16.mxu0 0
    %210 = vmatpush2.bf16.msra.mxu0 0
    %211 = vmatprep.subr.bf16.mxu0 0
    %212 = vmatpush2.bf16.msra.mxu0 0
    %213 = vmatprep.subr.bf16.mxu0 0
    %214 = vmatpush2.bf16.msra.mxu0 0
    %215 = vmatprep.subr.bf16.mxu0 0
    %216 = vmatpush2.bf16.msra.mxu0 0
    %217 = vmatprep.subr.bf16.mxu0 0
    %218 = vmatpush2.bf16.msra.mxu0 0
    %219 = vmatprep.subr.bf16.mxu0 0
    %220 = vmatpush2.bf16.msra.mxu0 0
    %221 = vmatprep.subr.bf16.mxu0 0
    %222 = vmatpush2.bf16.msra.mxu0 0
    %223 = vmatprep.subr.bf16.mxu0 0
    %224 = vmatpush2.bf16.msra.mxu0 0
    %225 = vmatprep.mubr.bf16.mxu0 0
    %226 = vmatmul.mubr.bf16.gmra.mxu0 %v141
    %v227 = vpop.f32.mrf.mxu0
    %v228 = vadd.f32 0.0, %v227
    %v229 = vpop.f32.mrf.mxu0
    %v230 = vpop.f32.mrf.mxu0
    %v231 = vadd.f32 0.0, %v230
    %v232 = vpop.f32.mrf.mxu0
    %233 = vmatprep.mubr.bf16.mxu0 0
    %234 = vmatmul.mubr.bf16.gmra.mxu0 %v142
    %v235 = vpop.f32.mrf.mxu0
    %v236 = vadd.f32 0.0, %v235
    %v237 = vpop.f32.mrf.mxu0
    %v238 = vpop.f32.mrf.mxu0
    %v239 = vadd.f32 0.0, %v238
    %v240 = vpop.f32.mrf.mxu0
    %241 = vdwg.mxu0
    %v242 = vld [vmem:[#allocation4] sm:$0x1]
    %v243 = vld [vmem:[#allocation6] sm:$0x1]
    %v244 = vld [vmem:[%s3] sm:$0xff]
    %v245 = vld [vmem:[%s3 + $0x8] sm:$0xff]
    %v246 = vld [vmem:[%s3 + $0x10] sm:$0xff]
    %v247 = vld [vmem:[%s3 + $0x18] sm:$0xff]
    %v249 = vlaneseq
    %v250 = vshrl.u32 %v249, 7
    %v251 = vsub.s32 0, %v250
    %v252 = vrot.slane %v242, %v251
    %255 = vset.pattern.permute.xlu0 0
    %256 = vperm.xlu0 %255, %v244
    %v257 = vpop.permute.xlu0 %256
    %260 = vset.pattern.permute.xlu0 0
    %261 = vperm.xlu0 %260, %v245
    %v262 = vpop.permute.xlu0 %261
    %265 = vset.pattern.permute.xlu0 0
    %266 = vperm.xlu0 %265, %v246
    %v267 = vpop.permute.xlu0 %266
    %270 = vset.pattern.permute.xlu0 0
    %271 = vperm.xlu0 %270, %v247
    %v272 = vpop.permute.xlu0 %271
    %v274 = vmul.f32 %v252, %v257
    %v275 = vmul.f32 %v252, %v262
    %v276 = vmul.f32 %v252, %v267
    %v277 = vmul.f32 %v252, %v272
    %v278 = vsub.f32 1.0, %v242
    %v279 = vld [vmem:[%s2] sm:$0xff]
    %v280 = vld [vmem:[%s2 + $0x8] sm:$0xff]
    %v281 = vld [vmem:[%s2 + $0x10] sm:$0xff]
    %v282 = vld [vmem:[%s2 + $0x18] sm:$0xff]
    %v284 = vlaneseq
    %v285 = vshrl.u32 %v284, 7
    %v286 = vsub.s32 0, %v285
    %v287 = vrot.slane %v278, %v286
    %290 = vset.pattern.permute.xlu0 0
    %291 = vperm.xlu0 %290, %v279
    %v292 = vpop.permute.xlu0 %291
    %295 = vset.pattern.permute.xlu0 0
    %296 = vperm.xlu0 %295, %v280
    %v297 = vpop.permute.xlu0 %296
    %300 = vset.pattern.permute.xlu0 0
    %301 = vperm.xlu0 %300, %v281
    %v302 = vpop.permute.xlu0 %301
    %305 = vset.pattern.permute.xlu0 0
    %306 = vperm.xlu0 %305, %v282
    %v307 = vpop.permute.xlu0 %306
    %v309 = vmul.f32 %v287, %v292
    %v310 = vmul.f32 %v287, %v297
    %v311 = vmul.f32 %v287, %v302
    %v312 = vmul.f32 %v287, %v307
    %v313 = vadd.f32 %v274, %v309
    %v314 = vadd.f32 %v275, %v310
    %v315 = vadd.f32 %v276, %v311
    %v316 = vadd.f32 %v277, %v312
    %v317 = vld [vmem:[%s5] sm:$0xff]
    %v318 = vld [vmem:[%s5 + $0x8] sm:$0xff]
    %v319 = vld [vmem:[%s5 + $0x10] sm:$0xff]
    %v320 = vld [vmem:[%s5 + $0x18] sm:$0xff]
    %v322 = vlaneseq
    %v323 = vshrl.u32 %v322, 7
    %v324 = vsub.s32 0, %v323
    %v325 = vrot.slane %v243, %v324
    %328 = vset.pattern.permute.xlu0 0
    %329 = vperm.xlu0 %328, %v317
    %v330 = vpop.permute.xlu0 %329
    %333 = vset.pattern.permute.xlu0 0
    %334 = vperm.xlu0 %333, %v318
    %v335 = vpop.permute.xlu0 %334
    %338 = vset.pattern.permute.xlu0 0
    %339 = vperm.xlu0 %338, %v319
    %v340 = vpop.permute.xlu0 %339
    %343 = vset.pattern.permute.xlu0 0
    %344 = vperm.xlu0 %343, %v320
    %v345 = vpop.permute.xlu0 %344
    %v347 = vmul.f32 %v325, %v330
    %v348 = vmul.f32 %v325, %v335
    %v349 = vmul.f32 %v325, %v340
    %v350 = vmul.f32 %v325, %v345
    %v351 = vsub.f32 1.0, %v243
    %v352 = vld [vmem:[%s4] sm:$0xff]
    %v353 = vld [vmem:[%s4 + $0x8] sm:$0xff]
    %v354 = vld [vmem:[%s4 + $0x10] sm:$0xff]
    %v355 = vld [vmem:[%s4 + $0x18] sm:$0xff]
    %v357 = vlaneseq
    %v358 = vshrl.u32 %v357, 7
    %v359 = vsub.s32 0, %v358
    %v360 = vrot.slane %v351, %v359
    %363 = vset.pattern.permute.xlu0 0
    %364 = vperm.xlu0 %363, %v352
    %v365 = vpop.permute.xlu0 %364
    %368 = vset.pattern.permute.xlu0 0
    %369 = vperm.xlu0 %368, %v353
    %v370 = vpop.permute.xlu0 %369
    %373 = vset.pattern.permute.xlu0 0
    %374 = vperm.xlu0 %373, %v354
    %v375 = vpop.permute.xlu0 %374
    %378 = vset.pattern.permute.xlu0 0
    %379 = vperm.xlu0 %378, %v355
    %v380 = vpop.permute.xlu0 %379
    %v382 = vmul.f32 %v360, %v365
    %v383 = vmul.f32 %v360, %v370
    %v384 = vmul.f32 %v360, %v375
    %v385 = vmul.f32 %v360, %v380
    %v386 = vadd.f32 %v347, %v382
    %v387 = vadd.f32 %v348, %v383
    %v388 = vadd.f32 %v349, %v384
    %v389 = vadd.f32 %v350, %v385
    %v390 = vmul.f32 %v313, %v386
    %v391 = vmul.f32 %v314, %v387
    %v392 = vmul.f32 %v315, %v388
    %v393 = vmul.f32 %v316, %v389
    %v394 = vmul.f32 %v228, %v390
    %v395 = vmul.f32 %v231, %v391
    %v396 = vmul.f32 %v236, %v392
    %v397 = vmul.f32 %v239, %v393
    %v398 = vld [vmem:[#allocation7] sm:$0xff]
    %v399 = vld [vmem:[#allocation7 + $0x8] sm:$0xff]
    %v400 = vld [vmem:[#allocation7 + $0x10] sm:$0xff]
    %v401 = vld [vmem:[#allocation7 + $0x18] sm:$0xff]
    %v402 = vld [vmem:[#allocation7 + $0x20] sm:$0xff]
    %v403 = vld [vmem:[#allocation7 + $0x28] sm:$0xff]
    %v404 = vld [vmem:[#allocation7 + $0x30] sm:$0xff]
    %v405 = vld [vmem:[#allocation7 + $0x38] sm:$0xff]
    %v406 = vld [vmem:[#allocation7 + $0x40] sm:$0xff]
    %v407 = vld [vmem:[#allocation7 + $0x48] sm:$0xff]
    %v408 = vld [vmem:[#allocation7 + $0x50] sm:$0xff]
    %v409 = vld [vmem:[#allocation7 + $0x58] sm:$0xff]
    %v410 = vld [vmem:[#allocation7 + $0x60] sm:$0xff]
    %v411 = vld [vmem:[#allocation7 + $0x68] sm:$0xff]
    %v412 = vld [vmem:[#allocation7 + $0x70] sm:$0xff]
    %v413 = vld [vmem:[#allocation7 + $0x78] sm:$0xff]
    %414 = vmatprep.subr.mxu0 0.0
    %415 = vmatpush1.msra.mxu0 %v413
    %416 = vmatprep.subr.mxu0 0.0
    %417 = vmatpush1.msra.mxu0 %v412
    %418 = vmatprep.subr.mxu0 0.0
    %419 = vmatpush1.msra.mxu0 %v411
    %420 = vmatprep.subr.mxu0 0.0
    %421 = vmatpush1.msra.mxu0 %v410
    %422 = vmatprep.subr.mxu0 0.0
    %423 = vmatpush1.msra.mxu0 %v409
    %424 = vmatprep.subr.mxu0 0.0
    %425 = vmatpush1.msra.mxu0 %v408
    %426 = vmatprep.subr.mxu0 0.0
    %427 = vmatpush1.msra.mxu0 %v407
    %428 = vmatprep.subr.mxu0 0.0
    %429 = vmatpush1.msra.mxu0 %v406
    %430 = vmatprep.subr.mxu0 0.0
    %431 = vmatpush1.msra.mxu0 %v405
    %432 = vmatprep.subr.mxu0 0.0
    %433 = vmatpush1.msra.mxu0 %v404
    %434 = vmatprep.subr.mxu0 0.0
    %435 = vmatpush1.msra.mxu0 %v403
    %436 = vmatprep.subr.mxu0 0.0
    %437 = vmatpush1.msra.mxu0 %v402
    %438 = vmatprep.subr.mxu0 0.0
    %439 = vmatpush1.msra.mxu0 %v401
    %440 = vmatprep.subr.mxu0 0.0
    %441 = vmatpush1.msra.mxu0 %v400
    %442 = vmatprep.subr.mxu0 0.0
    %443 = vmatpush1.msra.mxu0 %v399
    %444 = vmatprep.subr.mxu0 0.0
    %445 = vmatpush1.msra.mxu0 %v398
    %446 = vmatprep.subr.mxu0 0.0
    %447 = vmatpush2.msra.mxu0 0.0
    %448 = vmatprep.subr.mxu0 0.0
    %449 = vmatpush2.msra.mxu0 0.0
    %450 = vmatprep.subr.mxu0 0.0
    %451 = vmatpush2.msra.mxu0 0.0
    %452 = vmatprep.subr.mxu0 0.0
    %453 = vmatpush2.msra.mxu0 0.0
    %454 = vmatprep.subr.mxu0 0.0
    %455 = vmatpush2.msra.mxu0 0.0
    %456 = vmatprep.subr.mxu0 0.0
    %457 = vmatpush2.msra.mxu0 0.0
    %458 = vmatprep.subr.mxu0 0.0
    %459 = vmatpush2.msra.mxu0 0.0
    %460 = vmatprep.subr.mxu0 0.0
    %461 = vmatpush2.msra.mxu0 0.0
    %462 = vmatprep.subr.mxu0 0.0
    %463 = vmatpush2.msra.mxu0 0.0
    %464 = vmatprep.subr.mxu0 0.0
    %465 = vmatpush2.msra.mxu0 0.0
    %466 = vmatprep.subr.mxu0 0.0
    %467 = vmatpush2.msra.mxu0 0.0
    %468 = vmatprep.subr.mxu0 0.0
    %469 = vmatpush2.msra.mxu0 0.0
    %470 = vmatprep.subr.mxu0 0.0
    %471 = vmatpush2.msra.mxu0 0.0
    %472 = vmatprep.subr.mxu0 0.0
    %473 = vmatpush2.msra.mxu0 0.0
    %474 = vmatprep.subr.mxu0 0.0
    %475 = vmatpush2.msra.mxu0 0.0
    %476 = vmatprep.subr.mxu0 0.0
    %477 = vmatpush2.msra.mxu0 0.0
    %478 = vmatprep.mubr.f32.mxu0 0.0
    %479 = vmatmul.mubr.f32.gmra.mxu0 %v394
    %v480 = vpop.f32.mrf.mxu0
    %v481 = vadd.f32 0.0, %v480
    %v482 = vpop.f32.mrf.mxu0
    %483 = vmatprep.mubr.f32.mxu0 0.0
    %484 = vmatmul.mubr.f32.gmra.mxu0 %v395
    %v485 = vpop.f32.mrf.mxu0
    %v486 = vadd.f32 0.0, %v485
    %v487 = vpop.f32.mrf.mxu0
    %488 = vmatprep.mubr.f32.mxu0 0.0
    %489 = vmatmul.mubr.f32.gmra.mxu0 %v396
    %v490 = vpop.f32.mrf.mxu0
    %v491 = vadd.f32 0.0, %v490
    %v492 = vpop.f32.mrf.mxu0
    %493 = vmatprep.mubr.f32.mxu0 0.0
    %494 = vmatmul.mubr.f32.gmra.mxu0 %v397
    %v495 = vpop.f32.mrf.mxu0
    %v496 = vadd.f32 0.0, %v495
    %v497 = vpop.f32.mrf.mxu0
    %498 = vdwg.mxu0
    %v499 = vadd.f32 %v481, %v486
    %v500 = vadd.f32 %v499, %v491
    %v501 = vadd.f32 %v500, %v496
    %v502 = vrot.slane %v501, 4
    %v503 = vadd.f32 %v501, %v502
    %v504 = vrot.slane %v503, 2
    %v505 = vadd.f32 %v503, %v504
    %v506 = vrot.slane %v505, 1
    %v507 = vadd.f32 %v505, %v506
    %v508 = vmul.f32 %v394, %v394
    %v509 = vmul.f32 %v395, %v395
    %v510 = vmul.f32 %v396, %v396
    %v511 = vmul.f32 %v397, %v397
    %512 = vmatprep.subr.mxu0 0.0
    %513 = vmatpush1.msra.mxu0 %v413
    %514 = vmatprep.subr.mxu0 0.0
    %515 = vmatpush1.msra.mxu0 %v412
    %516 = vmatprep.subr.mxu0 0.0
    %517 = vmatpush1.msra.mxu0 %v411
    %518 = vmatprep.subr.mxu0 0.0
    %519 = vmatpush1.msra.mxu0 %v410
    %520 = vmatprep.subr.mxu0 0.0
    %521 = vmatpush1.msra.mxu0 %v409
    %522 = vmatprep.subr.mxu0 0.0
    %523 = vmatpush1.msra.mxu0 %v408
    %524 = vmatprep.subr.mxu0 0.0
    %525 = vmatpush1.msra.mxu0 %v407
    %526 = vmatprep.subr.mxu0 0.0
    %527 = vmatpush1.msra.mxu0 %v406
    %528 = vmatprep.subr.mxu0 0.0
    %529 = vmatpush1.msra.mxu0 %v405
    %530 = vmatprep.subr.mxu0 0.0
    %531 = vmatpush1.msra.mxu0 %v404
    %532 = vmatprep.subr.mxu0 0.0
    %533 = vmatpush1.msra.mxu0 %v403
    %534 = vmatprep.subr.mxu0 0.0
    %535 = vmatpush1.msra.mxu0 %v402
    %536 = vmatprep.subr.mxu0 0.0
    %537 = vmatpush1.msra.mxu0 %v401
    %538 = vmatprep.subr.mxu0 0.0
    %539 = vmatpush1.msra.mxu0 %v400
    %540 = vmatprep.subr.mxu0 0.0
    %541 = vmatpush1.msra.mxu0 %v399
    %542 = vmatprep.subr.mxu0 0.0
    %543 = vmatpush1.msra.mxu0 %v398
    %544 = vmatprep.subr.mxu0 0.0
    %545 = vmatpush2.msra.mxu0 0.0
    %546 = vmatprep.subr.mxu0 0.0
    %547 = vmatpush2.msra.mxu0 0.0
    %548 = vmatprep.subr.mxu0 0.0
    %549 = vmatpush2.msra.mxu0 0.0
    %550 = vmatprep.subr.mxu0 0.0
    %551 = vmatpush2.msra.mxu0 0.0
    %552 = vmatprep.subr.mxu0 0.0
    %553 = vmatpush2.msra.mxu0 0.0
    %554 = vmatprep.subr.mxu0 0.0
    %555 = vmatpush2.msra.mxu0 0.0
    %556 = vmatprep.subr.mxu0 0.0
    %557 = vmatpush2.msra.mxu0 0.0
    %558 = vmatprep.subr.mxu0 0.0
    %559 = vmatpush2.msra.mxu0 0.0
    %560 = vmatprep.subr.mxu0 0.0
    %561 = vmatpush2.msra.mxu0 0.0
    %562 = vmatprep.subr.mxu0 0.0
    %563 = vmatpush2.msra.mxu0 0.0
    %564 = vmatprep.subr.mxu0 0.0
    %565 = vmatpush2.msra.mxu0 0.0
    %566 = vmatprep.subr.mxu0 0.0
    %567 = vmatpush2.msra.mxu0 0.0
    %568 = vmatprep.subr.mxu0 0.0
    %569 = vmatpush2.msra.mxu0 0.0
    %570 = vmatprep.subr.mxu0 0.0
    %571 = vmatpush2.msra.mxu0 0.0
    %572 = vmatprep.subr.mxu0 0.0
    %573 = vmatpush2.msra.mxu0 0.0
    %574 = vmatprep.subr.mxu0 0.0
    %575 = vmatpush2.msra.mxu0 0.0
    %576 = vmatprep.mubr.f32.mxu0 0.0
    %577 = vmatmul.mubr.f32.gmra.mxu0 %v508
    %v578 = vpop.f32.mrf.mxu0
    %v579 = vadd.f32 0.0, %v578
    %v580 = vpop.f32.mrf.mxu0
    %581 = vmatprep.mubr.f32.mxu0 0.0
    %582 = vmatmul.mubr.f32.gmra.mxu0 %v509
    %v583 = vpop.f32.mrf.mxu0
    %v584 = vadd.f32 0.0, %v583
    %v585 = vpop.f32.mrf.mxu0
    %586 = vmatprep.mubr.f32.mxu0 0.0
    %587 = vmatmul.mubr.f32.gmra.mxu0 %v510
    %v588 = vpop.f32.mrf.mxu0
    %v589 = vadd.f32 0.0, %v588
    %v590 = vpop.f32.mrf.mxu0
    %591 = vmatprep.mubr.f32.mxu0 0.0
    %592 = vmatmul.mubr.f32.gmra.mxu0 %v511
    %v593 = vpop.f32.mrf.mxu0
    %v594 = vadd.f32 0.0, %v593
    %v595 = vpop.f32.mrf.mxu0
    %596 = vdwg.mxu0
    %v597 = vadd.f32 %v579, %v584
    %v598 = vadd.f32 %v597, %v589
    %v599 = vadd.f32 %v598, %v594
    %v600 = vrot.slane %v599, 4
    %v601 = vadd.f32 %v599, %v600
    %v602 = vrot.slane %v601, 2
    %v603 = vadd.f32 %v601, %v602
    %v604 = vrot.slane %v603, 1
    %v605 = vadd.f32 %v603, %v604
    %v606 = vmul.f32 %v507, 0.03125
    %v607 = vmul.f32 %v605, 0.03125
    %v608 = vmul.f32 %v606, %v606
    %v609 = vsub.f32 %v607, %v608
    %v610 = vmax.f32 %v609, 0.0
    %v611 = vld [vmem:[#allocation9] sm:$0x1]
    %v612 = vadd.f32 %v610, 1e-05
    %v613 = vrsqrt.pop %v612
    %v614 = vmul.f32 %v611, %v613
    %v615 = vld [vmem:[#allocation10] sm:$0x1]
    %v616 = vmul.f32 %v606, %v614
    %v617 = vsub.f32 %v615, %v616
    %v619 = vlaneseq
    %v620 = vshrl.u32 %v619, 7
    %v621 = vsub.s32 0, %v620
    %v622 = vrot.slane %v614, %v621
    %v624 = vmul.f32 %v228, %v622
    %v625 = vmul.f32 %v231, %v622
    %v626 = vmul.f32 %v236, %v622
    %v627 = vmul.f32 %v239, %v622
    %v629 = vlaneseq
    %v630 = vshrl.u32 %v629, 7
    %v631 = vsub.s32 0, %v630
    %v632 = vrot.slane %v617, %v631
    %v634 = vadd.f32 %v624, %v632
    %v635 = vadd.f32 %v625, %v632
    %v636 = vadd.f32 %v626, %v632
    %v637 = vadd.f32 %v627, %v632
    %v638 = vmax.f32 %v634, 0.0
    %v639 = vmax.f32 %v635, 0.0
    %v640 = vmax.f32 %v636, 0.0
    %v641 = vmax.f32 %v637, 0.0
    %v642 = vpack.c.bf16 %v639, %v638
    %v643 = vpack.c.bf16 %v641, %v640
    %v646 = vunpack.c.l.b16 %v642
    %v647 = vunpack.c.h.b16 %v642
    %v648 = vunpack.c.l.b16 %v643
    %v649 = vunpack.c.h.b16 %v643
    %v650 = vpack.c.b16 %v646, %v646
    %v651 = vpack.c.b16 %v647, %v647
    %v652 = vpack.c.b16 %v648, %v648
    %v653 = vpack.c.b16 %v649, %v649
    %658 = vst [vmem:[%s11] sm:$0xf] %v650
    %659 = vst [vmem:[%s11 + $0x4] sm:$0xf] %v651
    %660 = vst [vmem:[%s11 + $0x8] sm:$0xf] %v652
    %661 = vst [vmem:[%s11 + $0xc] sm:$0xf] %v653
    // Predicated region
    $region70: #{dcgan_generator_forward.5} parent=1 // pred_check
      _
    $region71: #{dcgan_generator_forward.5} parent=1 // pred_check_branch
      %663 = sbr.rel (0) target = $region73
    $region72: #{dcgan_generator_forward.5} parent=1 // pred_region
      _
    $region73: #{dcgan_generator_forward.5} parent=1 // pred_fallthru
      _
    // Predicated region
    $region74: #{dcgan_generator_forward.5} parent=1 // pred_check
      _
    $region75: #{dcgan_generator_forward.5} parent=1 // pred_check_branch
      %665 = sbr.rel (0) target = $region77
    $region76: #{dcgan_generator_forward.5} parent=1 // pred_region
      _
    $region77: #{dcgan_generator_forward.5} parent=1 // pred_fallthru
      _
    %666 = vsyncpa [#allocation3], 1
    %667 = vsyncpa [#allocation5], 1
    %668 = vsyncpa [#allocation8], 1
    %669 = vsyncpa [#allocation11], 1

// kernel: dcgan_generator_forward.6
$region0: #{dcgan_generator_forward.6}
  #allocation0 [shape = 'u32[]', space=smem, size = 0x4, offset = 0x4, fixed_abs, tag = 'smem constant byte address 0x4 - core index']
  #allocation1 [shape = 'u32[144,128]{1,0:T(1,128)}', space=vmem, size = 0x12000, scoped, tag = 'internal scratch']
  %s0 = inlined_call_operand.vmem [shape: bf16[64,512], index: 0, kind: input, shape index: {}]
  %s1 = inlined_call_operand.hbm [shape: bf16[512,256], index: 1, kind: input, shape index: {}]
  %s2 = inlined_call_operand.vmem [shape: f32[64,1], index: 2, kind: input, shape index: {}]
  %s3 = inlined_call_operand.vmem [shape: f32[64,1], index: 3, kind: input, shape index: {}]
  %s4 = inlined_call_operand.vmem [shape: f32[64,1], index: 4, kind: input, shape index: {}]
  %s5 = inlined_call_operand.vmem [shape: f32[64,1], index: 5, kind: input, shape index: {}]
  %s6 = inlined_call_operand.hbm [shape: f32[1,256], index: 6, kind: input, shape index: {}]
  %s7 = inlined_call_operand.hbm [shape: f32[1,256], index: 7, kind: input, shape index: {}]
  %s8 = inlined_call_operand.hbm [shape: f32[256,256], index: 8, kind: input, shape index: {}]
  %s9 = inlined_call_operand.hbm [shape: f32[1,256], index: 9, kind: input, shape index: {}]
  %s10 = inlined_call_operand.hbm [shape: f32[1,256], index: 10, kind: input, shape index: {}]
  %s11 = inlined_call_operand.vmem [shape: bf16[64,256], index: 11, kind: output, shape index: {}]
  %s12 = sld [smem:[#allocation0]]
  $region78: #{dcgan_generator_forward.6} parent=0
    _
  %s14 = ssub.s32 1, %s12
  %s15 = scalar_select 0, %s14, %s12
  $region1: #{dcgan_generator_forward.6} parent=0
    #allocation2 [shape = 'u8[262144]{0}', space=vmem, size = 0x40000, scoped, tag = 'input window, operand 1, single buffered']
    #allocation3 [shape = 's32[1]{0}', space=sflag, size = 0x4, scoped, tag = 'scoped memory for dcgan_generator_forward.6']
    #allocation4 [shape = 'u8[1024]{0}', space=vmem, size = 0x400, scoped, tag = 'input window, operand 6, single buffered']
    #allocation5 [shape = 's32[1]{0}', space=sflag, size = 0x4, scoped, tag = 'scoped memory for dcgan_generator_forward.6']
    #allocation6 [shape = 'u8[1024]{0}', space=vmem, size = 0x400, scoped, tag = 'input window, operand 7, single buffered']
    #allocation7 [shape = 'u8[262144]{0}', space=vmem, size = 0x40000, scoped, tag = 'input window, operand 8, single buffered']
    #allocation8 [shape = 's32[1]{0}', space=sflag, size = 0x4, scoped, tag = 'scoped memory for dcgan_generator_forward.6']
    #allocation9 [shape = 'u8[1024]{0}', space=vmem, size = 0x400, scoped, tag = 'input window, operand 9, single buffered']
    #allocation10 [shape = 'u8[1024]{0}', space=vmem, size = 0x400, scoped, tag = 'input window, operand 10, single buffered']
    #allocation11 [shape = 's32[1]{0}', space=sflag, size = 0x4, scoped, tag = 'scoped memory for dcgan_generator_forward.6']
    %16 = vsyncpa [#allocation3], 0
    %17 = vsyncpa [#allocation5], 0
    %18 = vsyncpa [#allocation8], 0
    %19 = vsyncpa [#allocation11], 0
    // Predicated region
    $region2: #{dcgan_generator_forward.6} parent=1 // pred_check
      _
    $region3: #{dcgan_generator_forward.6} parent=1 // pred_check_branch
      %21 = sbr.rel (0) target = $region5
    $region4: #{dcgan_generator_forward.6} parent=1 // pred_region
      _
    $region5: #{dcgan_generator_forward.6} parent=1 // pred_fallthru
      _
    // Predicated region
    $region6: #{dcgan_generator_forward.6} parent=1 // pred_check
      _
    $region7: #{dcgan_generator_forward.6} parent=1 // pred_check_branch
      %23 = sbr.rel (0) target = $region9
    $region8: #{dcgan_generator_forward.6} parent=1 // pred_region
      %s25 = ssub.s32 8192, 8192
      %26 = vsyncadd [#allocation3], %s25
      %s27 = sshll.u32 [#allocation2], 4
      %s28 = int_to_ptr.vmem [resolvable:$true] %s27
      %33 = dma.hbm_to_vmem [thread:$0]  %s1, 8192, %s28, [#allocation3], 128, 128, 8
    $region9: #{dcgan_generator_forward.6} parent=1 // pred_fallthru
      _
    // Predicated region
    $region10: #{dcgan_generator_forward.6} parent=1 // pred_check
      _
    $region11: #{dcgan_generator_forward.6} parent=1 // pred_check_branch
      %35 = sbr.rel (0) target = $region13
    $region12: #{dcgan_generator_forward.6} parent=1 // pred_region
      _
    $region13: #{dcgan_generator_forward.6} parent=1 // pred_fallthru
      _
    // Predicated region
    $region14: #{dcgan_generator_forward.6} parent=1 // pred_check
      _
    $region15: #{dcgan_generator_forward.6} parent=1 // pred_check_branch
      %37 = sbr.rel (0) target = $region17
    $region16: #{dcgan_generator_forward.6} parent=1 // pred_region
      _
    $region17: #{dcgan_generator_forward.6} parent=1 // pred_fallthru
      _
    // Predicated region
    $region18: #{dcgan_generator_forward.6} parent=1 // pred_check
      _
    $region19: #{dcgan_generator_forward.6} parent=1 // pred_check_branch
      %39 = sbr.rel (0) target = $region21
    $region20: #{dcgan_generator_forward.6} parent=1 // pred_region
      _
    $region21: #{dcgan_generator_forward.6} parent=1 // pred_fallthru
      _
    // Predicated region
    $region22: #{dcgan_generator_forward.6} parent=1 // pred_check
      _
    $region23: #{dcgan_generator_forward.6} parent=1 // pred_check_branch
      %41 = sbr.rel (0) target = $region25
    $region24: #{dcgan_generator_forward.6} parent=1 // pred_region
      _
    $region25: #{dcgan_generator_forward.6} parent=1 // pred_fallthru
      _
    // Predicated region
    $region26: #{dcgan_generator_forward.6} parent=1 // pred_check
      _
    $region27: #{dcgan_generator_forward.6} parent=1 // pred_check_branch
      %43 = sbr.rel (0) target = $region29
    $region28: #{dcgan_generator_forward.6} parent=1 // pred_region
      %s45 = ssub.s32 32, 32
      %46 = vsyncadd [#allocation5], %s45
      %s48 = sshll.u32 [#allocation4], 4
      %s49 = int_to_ptr.vmem [resolvable:$true] %s48
      %51 = dma.hbm_to_vmem [thread:$0]  %s6, 32, %s49, [#allocation5]
    $region29: #{dcgan_generator_forward.6} parent=1 // pred_fallthru
      _
    // Predicated region
    $region30: #{dcgan_generator_forward.6} parent=1 // pred_check
      _
    $region31: #{dcgan_generator_forward.6} parent=1 // pred_check_branch
      %53 = sbr.rel (0) target = $region33
    $region32: #{dcgan_generator_forward.6} parent=1 // pred_region
      %s55 = ssub.s32 32, 32
      %56 = vsyncadd [#allocation5], %s55
      %s58 = sshll.u32 [#allocation6], 4
      %s59 = int_to_ptr.vmem [resolvable:$true] %s58
      %61 = dma.hbm_to_vmem [thread:$0]  %s7, 32, %s59, [#allocation5]
    $region33: #{dcgan_generator_forward.6} parent=1 // pred_fallthru
      _
    // Predicated region
    $region34: #{dcgan_generator_forward.6} parent=1 // pred_check
      _
    $region35: #{dcgan_generator_forward.6} parent=1 // pred_check_branch
      %63 = sbr.rel (0) target = $region37
    $region36: #{dcgan_generator_forward.6} parent=1 // pred_region
      %s65 = ssub.s32 8192, 8192
      %66 = vsyncadd [#allocation8], %s65
      %s67 = sshll.u32 [#allocation7], 4
      %s68 = int_to_ptr.vmem [resolvable:$true] %s67
      %73 = dma.hbm_to_vmem [thread:$0]  %s8, 8192, %s68, [#allocation8], 256, 256, 16
    $region37: #{dcgan_generator_forward.6} parent=1 // pred_fallthru
      _
    // Predicated region
    $region38: #{dcgan_generator_forward.6} parent=1 // pred_check
      _
    $region39: #{dcgan_generator_forward.6} parent=1 // pred_check_branch
      %75 = sbr.rel (0) target = $region41
    $region40: #{dcgan_generator_forward.6} parent=1 // pred_region
      %s77 = ssub.s32 32, 32
      %78 = vsyncadd [#allocation8], %s77
      %s80 = sshll.u32 [#allocation9], 4
      %s81 = int_to_ptr.vmem [resolvable:$true] %s80
      %83 = dma.hbm_to_vmem [thread:$0]  %s9, 32, %s81, [#allocation8]
    $region41: #{dcgan_generator_forward.6} parent=1 // pred_fallthru
      _
    // Predicated region
    $region42: #{dcgan_generator_forward.6} parent=1 // pred_check
      _
    $region43: #{dcgan_generator_forward.6} parent=1 // pred_check_branch
      %85 = sbr.rel (0) target = $region45
    $region44: #{dcgan_generator_forward.6} parent=1 // pred_region
      %s87 = ssub.s32 32, 32
      %88 = vsyncadd [#allocation11], %s87
      %s90 = sshll.u32 [#allocation10], 4
      %s91 = int_to_ptr.vmem [resolvable:$true] %s90
      %93 = dma.hbm_to_vmem [thread:$0]  %s10, 32, %s91, [#allocation11]
    $region45: #{dcgan_generator_forward.6} parent=1 // pred_fallthru
      _
    // Predicated region
    $region46: #{dcgan_generator_forward.6} parent=1 // pred_check
      _
    $region47: #{dcgan_generator_forward.6} parent=1 // pred_check_branch
      %95 = sbr.rel (0) target = $region49
    $region48: #{dcgan_generator_forward.6} parent=1 // pred_region
      %96 = dma.done [#allocation3], 8192
    $region49: #{dcgan_generator_forward.6} parent=1 // pred_fallthru
      _
    // Predicated region
    $region50: #{dcgan_generator_forward.6} parent=1 // pred_check
      _
    $region51: #{dcgan_generator_forward.6} parent=1 // pred_check_branch
      %98 = sbr.rel (0) target = $region53
    $region52: #{dcgan_generator_forward.6} parent=1 // pred_region
      %99 = dma.done [#allocation5], 32
    $region53: #{dcgan_generator_forward.6} parent=1 // pred_fallthru
      _
    // Predicated region
    $region54: #{dcgan_generator_forward.6} parent=1 // pred_check
      _
    $region55: #{dcgan_generator_forward.6} parent=1 // pred_check_branch
      %101 = sbr.rel (0) target = $region57
    $region56: #{dcgan_generator_forward.6} parent=1 // pred_region
      %102 = dma.done [#allocation5], 32
    $region57: #{dcgan_generator_forward.6} parent=1 // pred_fallthru
      _
    // Predicated region
    $region58: #{dcgan_generator_forward.6} parent=1 // pred_check
      _
    $region59: #{dcgan_generator_forward.6} parent=1 // pred_check_branch
      %104 = sbr.rel (0) target = $region61
    $region60: #{dcgan_generator_forward.6} parent=1 // pred_region
      %105 = dma.done [#allocation8], 8192
    $region61: #{dcgan_generator_forward.6} parent=1 // pred_fallthru
      _
    // Predicated region
    $region62: #{dcgan_generator_forward.6} parent=1 // pred_check
      _
    $region63: #{dcgan_generator_forward.6} parent=1 // pred_check_branch
      %107 = sbr.rel (0) target = $region65
    $region64: #{dcgan_generator_forward.6} parent=1 // pred_region
      %108 = dma.done [#allocation8], 32
    $region65: #{dcgan_generator_forward.6} parent=1 // pred_fallthru
      _
    // Predicated region
    $region66: #{dcgan_generator_forward.6} parent=1 // pred_check
      _
    $region67: #{dcgan_generator_forward.6} parent=1 // pred_check_branch
      %110 = sbr.rel (0) target = $region69
    $region68: #{dcgan_generator_forward.6} parent=1 // pred_region
      %111 = dma.done [#allocation11], 32
    $region69: #{dcgan_generator_forward.6} parent=1 // pred_fallthru
      _
    %v112 = vld [vmem:[%s0] sm:$0xff]
    %v113 = vld [vmem:[%s0 + $0x8] sm:$0xff]
    %v114 = vld [vmem:[%s0 + $0x10] sm:$0xff]
    %v115 = vld [vmem:[%s0 + $0x18] sm:$0xff]
    %v116 = vld [vmem:[%s0 + $0x20] sm:$0xff]
    %v117 = vld [vmem:[%s0 + $0x28] sm:$0xff]
    %v118 = vld [vmem:[%s0 + $0x30] sm:$0xff]
    %v119 = vld [vmem:[%s0 + $0x38] sm:$0xff]
    %v120 = vld [vmem:[%s0 + $0x40] sm:$0xff]
    %v121 = vld [vmem:[%s0 + $0x48] sm:$0xff]
    %v122 = vld [vmem:[%s0 + $0x50] sm:$0xff]
    %v123 = vld [vmem:[%s0 + $0x58] sm:$0xff]
    %v124 = vld [vmem:[%s0 + $0x60] sm:$0xff]
    %v125 = vld [vmem:[%s0 + $0x68] sm:$0xff]
    %v126 = vld [vmem:[%s0 + $0x70] sm:$0xff]
    %v127 = vld [vmem:[%s0 + $0x78] sm:$0xff]
    %v128 = vld [vmem:[#allocation2] sm:$0xff]
    %v129 = vld [vmem:[#allocation2 + $0x8] sm:$0xff]
    %v130 = vld [vmem:[#allocation2 + $0x10] sm:$0xff]
    %v131 = vld [vmem:[#allocation2 + $0x18] sm:$0xff]
    %v132 = vld [vmem:[#allocation2 + $0x20] sm:$0xff]
    %v133 = vld [vmem:[#allocation2 + $0x28] sm:$0xff]
    %v134 = vld [vmem:[#allocation2 + $0x30] sm:$0xff]
    %v135 = vld [vmem:[#allocation2 + $0x38] sm:$0xff]
    %v136 = vld [vmem:[#allocation2 + $0x40] sm:$0xff]
    %v137 = vld [vmem:[#allocation2 + $0x48] sm:$0xff]
    %v138 = vld [vmem:[#allocation2 + $0x50] sm:$0xff]
    %v139 = vld [vmem:[#allocation2 + $0x58] sm:$0xff]
    %v140 = vld [vmem:[#allocation2 + $0x60] sm:$0xff]
    %v141 = vld [vmem:[#allocation2 + $0x68] sm:$0xff]
    %v142 = vld [vmem:[#allocation2 + $0x70] sm:$0xff]
    %v143 = vld [vmem:[#allocation2 + $0x78] sm:$0xff]
    %v144 = vld [vmem:[#allocation2 + $0x80] sm:$0xff]
    %v145 = vld [vmem:[#allocation2 + $0x88] sm:$0xff]
    %v146 = vld [vmem:[#allocation2 + $0x90] sm:$0xff]
    %v147 = vld [vmem:[#allocation2 + $0x98] sm:$0xff]
    %v148 = vld [vmem:[#allocation2 + $0xa0] sm:$0xff]
    %v149 = vld [vmem:[#allocation2 + $0xa8] sm:$0xff]
    %v150 = vld [vmem:[#allocation2 + $0xb0] sm:$0xff]
    %v151 = vld [vmem:[#allocation2 + $0xb8] sm:$0xff]
    %v152 = vld [vmem:[#allocation2 + $0xc0] sm:$0xff]
    %v153 = vld [vmem:[#allocation2 + $0xc8] sm:$0xff]
    %v154 = vld [vmem:[#allocation2 + $0xd0] sm:$0xff]
    %v155 = vld [vmem:[#allocation2 + $0xd8] sm:$0xff]
    %v156 = vld [vmem:[#allocation2 + $0xe0] sm:$0xff]
    %v157 = vld [vmem:[#allocation2 + $0xe8] sm:$0xff]
    %v158 = vld [vmem:[#allocation2 + $0xf0] sm:$0xff]
    %v159 = vld [vmem:[#allocation2 + $0xf8] sm:$0xff]
    %v160 = vld [vmem:[#allocation2 + $0x100] sm:$0xff]
    %v161 = vld [vmem:[#allocation2 + $0x108] sm:$0xff]
    %v162 = vld [vmem:[#allocation2 + $0x110] sm:$0xff]
    %v163 = vld [vmem:[#allocation2 + $0x118] sm:$0xff]
    %v164 = vld [vmem:[#allocation2 + $0x120] sm:$0xff]
    %v165 = vld [vmem:[#allocation2 + $0x128] sm:$0xff]
    %v166 = vld [vmem:[#allocation2 + $0x130] sm:$0xff]
    %v167 = vld [vmem:[#allocation2 + $0x138] sm:$0xff]
    %v168 = vld [vmem:[#allocation2 + $0x140] sm:$0xff]
    %v169 = vld [vmem:[#allocation2 + $0x148] sm:$0xff]
    %v170 = vld [vmem:[#allocation2 + $0x150] sm:$0xff]
    %v171 = vld [vmem:[#allocation2 + $0x158] sm:$0xff]
    %v172 = vld [vmem:[#allocation2 + $0x160] sm:$0xff]
    %v173 = vld [vmem:[#allocation2 + $0x168] sm:$0xff]
    %v174 = vld [vmem:[#allocation2 + $0x170] sm:$0xff]
    %v175 = vld [vmem:[#allocation2 + $0x178] sm:$0xff]
    %v176 = vld [vmem:[#allocation2 + $0x180] sm:$0xff]
    %v177 = vld [vmem:[#allocation2 + $0x188] sm:$0xff]
    %v178 = vld [vmem:[#allocation2 + $0x190] sm:$0xff]
    %v179 = vld [vmem:[#allocation2 + $0x198] sm:$0xff]
    %v180 = vld [vmem:[#allocation2 + $0x1a0] sm:$0xff]
    %v181 = vld [vmem:[#allocation2 + $0x1a8] sm:$0xff]
    %v182 = vld [vmem:[#allocation2 + $0x1b0] sm:$0xff]
    %v183 = vld [vmem:[#allocation2 + $0x1b8] sm:$0xff]
    %v184 = vld [vmem:[#allocation2 + $0x1c0] sm:$0xff]
    %v185 = vld [vmem:[#allocation2 + $0x1c8] sm:$0xff]
    %v186 = vld [vmem:[#allocation2 + $0x1d0] sm:$0xff]
    %v187 = vld [vmem:[#allocation2 + $0x1d8] sm:$0xff]
    %v188 = vld [vmem:[#allocation2 + $0x1e0] sm:$0xff]
    %v189 = vld [vmem:[#allocation2 + $0x1e8] sm:$0xff]
    %v190 = vld [vmem:[#allocation2 + $0x1f0] sm:$0xff]
    %v191 = vld [vmem:[#allocation2 + $0x1f8] sm:$0xff]
    %v208 = vunpack.c.l.b16 %v112
    %v209 = vunpack.c.h.b16 %v112
    %v210 = vunpack.c.l.b16 %v113
    %v211 = vunpack.c.h.b16 %v113
    %v212 = vunpack.c.l.b16 %v114
    %v213 = vunpack.c.h.b16 %v114
    %v214 = vunpack.c.l.b16 %v115
    %v215 = vunpack.c.h.b16 %v115
    %v216 = vunpack.c.l.b16 %v116
    %v217 = vunpack.c.h.b16 %v116
    %v218 = vunpack.c.l.b16 %v117
    %v219 = vunpack.c.h.b16 %v117
    %v220 = vunpack.c.l.b16 %v118
    %v221 = vunpack.c.h.b16 %v118
    %v222 = vunpack.c.l.b16 %v119
    %v223 = vunpack.c.h.b16 %v119
    %v224 = vunpack.c.l.b16 %v120
    %v225 = vunpack.c.h.b16 %v120
    %v226 = vunpack.c.l.b16 %v121
    %v227 = vunpack.c.h.b16 %v121
    %v228 = vunpack.c.l.b16 %v122
    %v229 = vunpack.c.h.b16 %v122
    %v230 = vunpack.c.l.b16 %v123
    %v231 = vunpack.c.h.b16 %v123
    %v232 = vunpack.c.l.b16 %v124
    %v233 = vunpack.c.h.b16 %v124
    %v234 = vunpack.c.l.b16 %v125
    %v235 = vunpack.c.h.b16 %v125
    %v236 = vunpack.c.l.b16 %v126
    %v237 = vunpack.c.h.b16 %v126
    %v238 = vunpack.c.l.b16 %v127
    %v239 = vunpack.c.h.b16 %v127
    %v240 = vpack.c.b16 %v212, %v208
    %v241 = vpack.c.b16 %v213, %v209
    %v242 = vpack.c.b16 %v214, %v210
    %v243 = vpack.c.b16 %v215, %v211
    %v244 = vpack.c.b16 %v220, %v216
    %v245 = vpack.c.b16 %v221, %v217
    %v246 = vpack.c.b16 %v222, %v218
    %v247 = vpack.c.b16 %v223, %v219
    %v248 = vpack.c.b16 %v228, %v224
    %v249 = vpack.c.b16 %v229, %v225
    %v250 = vpack.c.b16 %v230, %v226
    %v251 = vpack.c.b16 %v231, %v227
    %v252 = vpack.c.b16 %v236, %v232
    %v253 = vpack.c.b16 %v237, %v233
    %v254 = vpack.c.b16 %v238, %v234
    %v255 = vpack.c.b16 %v239, %v235
    %v336 = vunpack.c.l.b16 %v128
    %v337 = vunpack.c.h.b16 %v128
    %v338 = vunpack.c.l.b16 %v129
    %v339 = vunpack.c.h.b16 %v129
    %v340 = vunpack.c.l.b16 %v130
    %v341 = vunpack.c.h.b16 %v130
    %v342 = vunpack.c.l.b16 %v131
    %v343 = vunpack.c.h.b16 %v131
    %v344 = vunpack.c.l.b16 %v132
    %v345 = vunpack.c.h.b16 %v132
    %v346 = vunpack.c.l.b16 %v133
    %v347 = vunpack.c.h.b16 %v133
    %v348 = vunpack.c.l.b16 %v134
    %v349 = vunpack.c.h.b16 %v134
    %v350 = vunpack.c.l.b16 %v135
    %v351 = vunpack.c.h.b16 %v135
    %v352 = vunpack.c.l.b16 %v136
    %v353 = vunpack.c.h.b16 %v136
    %v354 = vunpack.c.l.b16 %v137
    %v355 = vunpack.c.h.b16 %v137
    %v356 = vunpack.c.l.b16 %v138
    %v357 = vunpack.c.h.b16 %v138
    %v358 = vunpack.c.l.b16 %v139
    %v359 = vunpack.c.h.b16 %v139
    %v360 = vunpack.c.l.b16 %v140
    %v361 = vunpack.c.h.b16 %v140
    %v362 = vunpack.c.l.b16 %v141
    %v363 = vunpack.c.h.b16 %v141
    %v364 = vunpack.c.l.b16 %v142
    %v365 = vunpack.c.h.b16 %v142
    %v366 = vunpack.c.l.b16 %v143
    %v367 = vunpack.c.h.b16 %v143
    %v368 = vunpack.c.l.b16 %v144
    %v369 = vunpack.c.h.b16 %v144
    %v370 = vunpack.c.l.b16 %v145
    %v371 = vunpack.c.h.b16 %v145
    %v372 = vunpack.c.l.b16 %v146
    %v373 = vunpack.c.h.b16 %v146
    %v374 = vunpack.c.l.b16 %v147
    %v375 = vunpack.c.h.b16 %v147
    %v376 = vunpack.c.l.b16 %v148
    %v377 = vunpack.c.h.b16 %v148
    %v378 = vunpack.c.l.b16 %v149
    %v379 = vunpack.c.h.b16 %v149
    %v380 = vunpack.c.l.b16 %v150
    %v381 = vunpack.c.h.b16 %v150
    %v382 = vunpack.c.l.b16 %v151
    %v383 = vunpack.c.h.b16 %v151
    %v384 = vunpack.c.l.b16 %v152
    %v385 = vunpack.c.h.b16 %v152
    %v386 = vunpack.c.l.b16 %v153
    %v387 = vunpack.c.h.b16 %v153
    %v388 = vunpack.c.l.b16 %v154
    %v389 = vunpack.c.h.b16 %v154
    %v390 = vunpack.c.l.b16 %v155
    %v391 = vunpack.c.h.b16 %v155
    %v392 = vunpack.c.l.b16 %v156
    %v393 = vunpack.c.h.b16 %v156
    %v394 = vunpack.c.l.b16 %v157
    %v395 = vunpack.c.h.b16 %v157
    %v396 = vunpack.c.l.b16 %v158
    %v397 = vunpack.c.h.b16 %v158
    %v398 = vunpack.c.l.b16 %v159
    %v399 = vunpack.c.h.b16 %v159
    %v400 = vunpack.c.l.b16 %v160
    %v401 = vunpack.c.h.b16 %v160
    %v402 = vunpack.c.l.b16 %v161
    %v403 = vunpack.c.h.b16 %v161
    %v404 = vunpack.c.l.b16 %v162
    %v405 = vunpack.c.h.b16 %v162
    %v406 = vunpack.c.l.b16 %v163
    %v407 = vunpack.c.h.b16 %v163
    %v408 = vunpack.c.l.b16 %v164
    %v409 = vunpack.c.h.b16 %v164
    %v410 = vunpack.c.l.b16 %v165
    %v411 = vunpack.c.h.b16 %v165
    %v412 = vunpack.c.l.b16 %v166
    %v413 = vunpack.c.h.b16 %v166
    %v414 = vunpack.c.l.b16 %v167
    %v415 = vunpack.c.h.b16 %v167
    %v416 = vunpack.c.l.b16 %v168
    %v417 = vunpack.c.h.b16 %v168
    %v418 = vunpack.c.l.b16 %v169
    %v419 = vunpack.c.h.b16 %v169
    %v420 = vunpack.c.l.b16 %v170
    %v421 = vunpack.c.h.b16 %v170
    %v422 = vunpack.c.l.b16 %v171
    %v423 = vunpack.c.h.b16 %v171
    %v424 = vunpack.c.l.b16 %v172
    %v425 = vunpack.c.h.b16 %v172
    %v426 = vunpack.c.l.b16 %v173
    %v427 = vunpack.c.h.b16 %v173
    %v428 = vunpack.c.l.b16 %v174
    %v429 = vunpack.c.h.b16 %v174
    %v430 = vunpack.c.l.b16 %v175
    %v431 = vunpack.c.h.b16 %v175
    %v432 = vunpack.c.l.b16 %v176
    %v433 = vunpack.c.h.b16 %v176
    %v434 = vunpack.c.l.b16 %v177
    %v435 = vunpack.c.h.b16 %v177
    %v436 = vunpack.c.l.b16 %v178
    %v437 = vunpack.c.h.b16 %v178
    %v438 = vunpack.c.l.b16 %v179
    %v439 = vunpack.c.h.b16 %v179
    %v440 = vunpack.c.l.b16 %v180
    %v441 = vunpack.c.h.b16 %v180
    %v442 = vunpack.c.l.b16 %v181
    %v443 = vunpack.c.h.b16 %v181
    %v444 = vunpack.c.l.b16 %v182
    %v445 = vunpack.c.h.b16 %v182
    %v446 = vunpack.c.l.b16 %v183
    %v447 = vunpack.c.h.b16 %v183
    %v448 = vunpack.c.l.b16 %v184
    %v449 = vunpack.c.h.b16 %v184
    %v450 = vunpack.c.l.b16 %v185
    %v451 = vunpack.c.h.b16 %v185
    %v452 = vunpack.c.l.b16 %v186
    %v453 = vunpack.c.h.b16 %v186
    %v454 = vunpack.c.l.b16 %v187
    %v455 = vunpack.c.h.b16 %v187
    %v456 = vunpack.c.l.b16 %v188
    %v457 = vunpack.c.h.b16 %v188
    %v458 = vunpack.c.l.b16 %v189
    %v459 = vunpack.c.h.b16 %v189
    %v460 = vunpack.c.l.b16 %v190
    %v461 = vunpack.c.h.b16 %v190
    %v462 = vunpack.c.l.b16 %v191
    %v463 = vunpack.c.h.b16 %v191
    %v464 = vpack.c.b16 %v338, %v336
    %v465 = vpack.c.b16 %v339, %v337
    %v466 = vpack.c.b16 %v342, %v340
    %v467 = vpack.c.b16 %v343, %v341
    %v468 = vpack.c.b16 %v346, %v344
    %v469 = vpack.c.b16 %v347, %v345
    %v470 = vpack.c.b16 %v350, %v348
    %v471 = vpack.c.b16 %v351, %v349
    %v472 = vpack.c.b16 %v354, %v352
    %v473 = vpack.c.b16 %v355, %v353
    %v474 = vpack.c.b16 %v358, %v356
    %v475 = vpack.c.b16 %v359, %v357
    %v476 = vpack.c.b16 %v362, %v360
    %v477 = vpack.c.b16 %v363, %v361
    %v478 = vpack.c.b16 %v366, %v364
    %v479 = vpack.c.b16 %v367, %v365
    %v480 = vpack.c.b16 %v370, %v368
    %v481 = vpack.c.b16 %v371, %v369
    %v482 = vpack.c.b16 %v374, %v372
    %v483 = vpack.c.b16 %v375, %v373
    %v484 = vpack.c.b16 %v378, %v376
    %v485 = vpack.c.b16 %v379, %v377
    %v486 = vpack.c.b16 %v382, %v380
    %v487 = vpack.c.b16 %v383, %v381
    %v488 = vpack.c.b16 %v386, %v384
    %v489 = vpack.c.b16 %v387, %v385
    %v490 = vpack.c.b16 %v390, %v388
    %v491 = vpack.c.b16 %v391, %v389
    %v492 = vpack.c.b16 %v394, %v392
    %v493 = vpack.c.b16 %v395, %v393
    %v494 = vpack.c.b16 %v398, %v396
    %v495 = vpack.c.b16 %v399, %v397
    %v496 = vpack.c.b16 %v402, %v400
    %v497 = vpack.c.b16 %v403, %v401
    %v498 = vpack.c.b16 %v406, %v404
    %v499 = vpack.c.b16 %v407, %v405
    %v500 = vpack.c.b16 %v410, %v408
    %v501 = vpack.c.b16 %v411, %v409
    %v502 = vpack.c.b16 %v414, %v412
    %v503 = vpack.c.b16 %v415, %v413
    %v504 = vpack.c.b16 %v418, %v416
    %v505 = vpack.c.b16 %v419, %v417
    %v506 = vpack.c.b16 %v422, %v420
    %v507 = vpack.c.b16 %v423, %v421
    %v508 = vpack.c.b16 %v426, %v424
    %v509 = vpack.c.b16 %v427, %v425
    %v510 = vpack.c.b16 %v430, %v428
    %v511 = vpack.c.b16 %v431, %v429
    %v512 = vpack.c.b16 %v434, %v432
    %v513 = vpack.c.b16 %v435, %v433
    %v514 = vpack.c.b16 %v438, %v436
    %v515 = vpack.c.b16 %v439, %v437
    %v516 = vpack.c.b16 %v442, %v440
    %v517 = vpack.c.b16 %v443, %v441
    %v518 = vpack.c.b16 %v446, %v444
    %v519 = vpack.c.b16 %v447, %v445
    %v520 = vpack.c.b16 %v450, %v448
    %v521 = vpack.c.b16 %v451, %v449
    %v522 = vpack.c.b16 %v454, %v452
    %v523 = vpack.c.b16 %v455, %v453
    %v524 = vpack.c.b16 %v458, %v456
    %v525 = vpack.c.b16 %v459, %v457
    %v526 = vpack.c.b16 %v462, %v460
    %v527 = vpack.c.b16 %v463, %v461
    %592 = vmatprep.subr.bf16.mxu0 %v479
    %593 = vmatpush1.bf16.msra.mxu0 %v478
    %594 = vmatprep.subr.bf16.mxu0 %v477
    %595 = vmatpush1.bf16.msra.mxu0 %v476
    %596 = vmatprep.subr.bf16.mxu0 %v475
    %597 = vmatpush1.bf16.msra.mxu0 %v474
    %598 = vmatprep.subr.bf16.mxu0 %v473
    %599 = vmatpush1.bf16.msra.mxu0 %v472
    %600 = vmatprep.subr.bf16.mxu0 %v471
    %601 = vmatpush1.bf16.msra.mxu0 %v470
    %602 = vmatprep.subr.bf16.mxu0 %v469
    %603 = vmatpush1.bf16.msra.mxu0 %v468
    %604 = vmatprep.subr.bf16.mxu0 %v467
    %605 = vmatpush1.bf16.msra.mxu0 %v466
    %606 = vmatprep.subr.bf16.mxu0 %v465
    %607 = vmatpush1.bf16.msra.mxu0 %v464
    %608 = vmatprep.subr.bf16.mxu0 %v495
    %609 = vmatpush2.bf16.msra.mxu0 %v494
    %610 = vmatprep.subr.bf16.mxu0 %v493
    %611 = vmatpush2.bf16.msra.mxu0 %v492
    %612 = vmatprep.subr.bf16.mxu0 %v491
    %613 = vmatpush2.bf16.msra.mxu0 %v490
    %614 = vmatprep.subr.bf16.mxu0 %v489
    %615 = vmatpush2.bf16.msra.mxu0 %v488
    %616 = vmatprep.subr.bf16.mxu0 %v487
    %617 = vmatpush2.bf16.msra.mxu0 %v486
    %618 = vmatprep.subr.bf16.mxu0 %v485
    %619 = vmatpush2.bf16.msra.mxu0 %v484
    %620 = vmatprep.subr.bf16.mxu0 %v483
    %621 = vmatpush2.bf16.msra.mxu0 %v482
    %622 = vmatprep.subr.bf16.mxu0 %v481
    %623 = vmatpush2.bf16.msra.mxu0 %v480
    %624 = vmatprep.mubr.bf16.mxu0 %v241
    %625 = vmatmul.mubr.bf16.gmra.mxu0 %v240
    %v626 = vpop.f32.mrf.mxu0
    %v627 = vadd.f32 0.0, %v626
    %v628 = vpop.f32.mrf.mxu0
    %v629 = vadd.f32 0.0, %v628
    %v630 = vpop.f32.mrf.mxu0
    %v631 = vadd.f32 0.0, %v630
    %v632 = vpop.f32.mrf.mxu0
    %v633 = vadd.f32 0.0, %v632
    %634 = vmatprep.mubr.bf16.mxu0 %v245
    %635 = vmatmul.mubr.bf16.gmra.mxu0 %v244
    %v636 = vpop.f32.mrf.mxu0
    %v637 = vadd.f32 0.0, %v636
    %v638 = vpop.f32.mrf.mxu0
    %v639 = vadd.f32 0.0, %v638
    %v640 = vpop.f32.mrf.mxu0
    %v641 = vadd.f32 0.0, %v640
    %v642 = vpop.f32.mrf.mxu0
    %v643 = vadd.f32 0.0, %v642
    %644 = vmatprep.mubr.bf16.mxu0 %v249
    %645 = vmatmul.mubr.bf16.gmra.mxu0 %v248
    %v646 = vpop.f32.mrf.mxu0
    %v647 = vadd.f32 0.0, %v646
    %v648 = vpop.f32.mrf.mxu0
    %v649 = vadd.f32 0.0, %v648
    %v650 = vpop.f32.mrf.mxu0
    %v651 = vadd.f32 0.0, %v650
    %v652 = vpop.f32.mrf.mxu0
    %v653 = vadd.f32 0.0, %v652
    %654 = vmatprep.mubr.bf16.mxu0 %v253
    %655 = vmatmul.mubr.bf16.gmra.mxu0 %v252
    %v656 = vpop.f32.mrf.mxu0
    %v657 = vadd.f32 0.0, %v656
    %v658 = vpop.f32.mrf.mxu0
    %v659 = vadd.f32 0.0, %v658
    %v660 = vpop.f32.mrf.mxu0
    %v661 = vadd.f32 0.0, %v660
    %v662 = vpop.f32.mrf.mxu0
    %v663 = vadd.f32 0.0, %v662
    %664 = vdwg.mxu0
    %665 = vmatprep.subr.bf16.mxu0 %v511
    %666 = vmatpush1.bf16.msra.mxu0 %v510
    %667 = vmatprep.subr.bf16.mxu0 %v509
    %668 = vmatpush1.bf16.msra.mxu0 %v508
    %669 = vmatprep.subr.bf16.mxu0 %v507
    %670 = vmatpush1.bf16.msra.mxu0 %v506
    %671 = vmatprep.subr.bf16.mxu0 %v505
    %672 = vmatpush1.bf16.msra.mxu0 %v504
    %673 = vmatprep.subr.bf16.mxu0 %v503
    %674 = vmatpush1.bf16.msra.mxu0 %v502
    %675 = vmatprep.subr.bf16.mxu0 %v501
    %676 = vmatpush1.bf16.msra.mxu0 %v500
    %677 = vmatprep.subr.bf16.mxu0 %v499
    %678 = vmatpush1.bf16.msra.mxu0 %v498
    %679 = vmatprep.subr.bf16.mxu0 %v497
    %680 = vmatpush1.bf16.msra.mxu0 %v496
    %681 = vmatprep.subr.bf16.mxu0 %v527
    %682 = vmatpush2.bf16.msra.mxu0 %v526
    %683 = vmatprep.subr.bf16.mxu0 %v525
    %684 = vmatpush2.bf16.msra.mxu0 %v524
    %685 = vmatprep.subr.bf16.mxu0 %v523
    %686 = vmatpush2.bf16.msra.mxu0 %v522
    %687 = vmatprep.subr.bf16.mxu0 %v521
    %688 = vmatpush2.bf16.msra.mxu0 %v520
    %689 = vmatprep.subr.bf16.mxu0 %v519
    %690 = vmatpush2.bf16.msra.mxu0 %v518
    %691 = vmatprep.subr.bf16.mxu0 %v517
    %692 = vmatpush2.bf16.msra.mxu0 %v516
    %693 = vmatprep.subr.bf16.mxu0 %v515
    %694 = vmatpush2.bf16.msra.mxu0 %v514
    %695 = vmatprep.subr.bf16.mxu0 %v513
    %696 = vmatpush2.bf16.msra.mxu0 %v512
    %697 = vmatprep.mubr.bf16.mxu0 %v243
    %698 = vmatmul.mubr.bf16.gmra.mxu0 %v242
    %v699 = vpop.f32.mrf.mxu0
    %v700 = vadd.f32 %v627, %v699
    %v701 = vpop.f32.mrf.mxu0
    %v702 = vadd.f32 %v629, %v701
    %v703 = vpop.f32.mrf.mxu0
    %v704 = vadd.f32 %v631, %v703
    %v705 = vpop.f32.mrf.mxu0
    %v706 = vadd.f32 %v633, %v705
    %707 = vmatprep.mubr.bf16.mxu0 %v247
    %708 = vmatmul.mubr.bf16.gmra.mxu0 %v246
    %v709 = vpop.f32.mrf.mxu0
    %v710 = vadd.f32 %v637, %v709
    %v711 = vpop.f32.mrf.mxu0
    %v712 = vadd.f32 %v639, %v711
    %v713 = vpop.f32.mrf.mxu0
    %v714 = vadd.f32 %v641, %v713
    %v715 = vpop.f32.mrf.mxu0
    %v716 = vadd.f32 %v643, %v715
    %717 = vmatprep.mubr.bf16.mxu0 %v251
    %718 = vmatmul.mubr.bf16.gmra.mxu0 %v250
    %v719 = vpop.f32.mrf.mxu0
    %v720 = vadd.f32 %v647, %v719
    %v721 = vpop.f32.mrf.mxu0
    %v722 = vadd.f32 %v649, %v721
    %v723 = vpop.f32.mrf.mxu0
    %v724 = vadd.f32 %v651, %v723
    %v725 = vpop.f32.mrf.mxu0
    %v726 = vadd.f32 %v653, %v725
    %727 = vmatprep.mubr.bf16.mxu0 %v255
    %728 = vmatmul.mubr.bf16.gmra.mxu0 %v254
    %v729 = vpop.f32.mrf.mxu0
    %v730 = vadd.f32 %v657, %v729
    %v731 = vpop.f32.mrf.mxu0
    %v732 = vadd.f32 %v659, %v731
    %v733 = vpop.f32.mrf.mxu0
    %v734 = vadd.f32 %v661, %v733
    %v735 = vpop.f32.mrf.mxu0
    %v736 = vadd.f32 %v663, %v735
    %737 = vdwg.mxu0
    %v738 = vld [vmem:[#allocation4] sm:$0x3]
    %v739 = vld [vmem:[#allocation6] sm:$0x3]
    %v740 = vld [vmem:[%s3] sm:$0xff]
    %v741 = vld [vmem:[%s3 + $0x8] sm:$0xff]
    %v742 = vld [vmem:[%s3 + $0x10] sm:$0xff]
    %v743 = vld [vmem:[%s3 + $0x18] sm:$0xff]
    %v744 = vld [vmem:[%s3 + $0x20] sm:$0xff]
    %v745 = vld [vmem:[%s3 + $0x28] sm:$0xff]
    %v746 = vld [vmem:[%s3 + $0x30] sm:$0xff]
    %v747 = vld [vmem:[%s3 + $0x38] sm:$0xff]
    %v749 = vlaneseq
    %v750 = vshrl.u32 %v749, 7
    %v751 = vsub.s32 0, %v750
    %v752 = vrot.slane %v738, %v751
    %v753 = vlaneseq
    %v754 = vshrl.u32 %v753, 7
    %v755 = vsub.s32 1, %v754
    %v756 = vrot.slane %v738, %v755
    %760 = vset.pattern.permute.xlu0 0
    %761 = vperm.xlu0 %760, %v740
    %v762 = vpop.permute.xlu0 %761
    %765 = vset.pattern.permute.xlu0 0
    %766 = vperm.xlu0 %765, %v741
    %v767 = vpop.permute.xlu0 %766
    %770 = vset.pattern.permute.xlu0 0
    %771 = vperm.xlu0 %770, %v742
    %v772 = vpop.permute.xlu0 %771
    %775 = vset.pattern.permute.xlu0 0
    %776 = vperm.xlu0 %775, %v743
    %v777 = vpop.permute.xlu0 %776
    %780 = vset.pattern.permute.xlu0 0
    %781 = vperm.xlu0 %780, %v744
    %v782 = vpop.permute.xlu0 %781
    %785 = vset.pattern.permute.xlu0 0
    %786 = vperm.xlu0 %785, %v745
    %v787 = vpop.permute.xlu0 %786
    %790 = vset.pattern.permute.xlu0 0
    %791 = vperm.xlu0 %790, %v746
    %v792 = vpop.permute.xlu0 %791
    %795 = vset.pattern.permute.xlu0 0
    %796 = vperm.xlu0 %795, %v747
    %v797 = vpop.permute.xlu0 %796
    %v799 = vmul.f32 %v752, %v762
    %v800 = vmul.f32 %v756, %v762
    %v801 = vmul.f32 %v752, %v767
    %v802 = vmul.f32 %v756, %v767
    %v803 = vmul.f32 %v752, %v772
    %v804 = vmul.f32 %v756, %v772
    %v805 = vmul.f32 %v752, %v777
    %v806 = vmul.f32 %v756, %v777
    %v807 = vmul.f32 %v752, %v782
    %v808 = vmul.f32 %v756, %v782
    %v809 = vmul.f32 %v752, %v787
    %v810 = vmul.f32 %v756, %v787
    %v811 = vmul.f32 %v752, %v792
    %v812 = vmul.f32 %v756, %v792
    %v813 = vmul.f32 %v752, %v797
    %v814 = vmul.f32 %v756, %v797
    %v815 = vsub.f32 1.0, %v738
    %v816 = vld [vmem:[%s2] sm:$0xff]
    %v817 = vld [vmem:[%s2 + $0x8] sm:$0xff]
    %v818 = vld [vmem:[%s2 + $0x10] sm:$0xff]
    %v819 = vld [vmem:[%s2 + $0x18] sm:$0xff]
    %v820 = vld [vmem:[%s2 + $0x20] sm:$0xff]
    %v821 = vld [vmem:[%s2 + $0x28] sm:$0xff]
    %v822 = vld [vmem:[%s2 + $0x30] sm:$0xff]
    %v823 = vld [vmem:[%s2 + $0x38] sm:$0xff]
    %v825 = vlaneseq
    %v826 = vshrl.u32 %v825, 7
    %v827 = vsub.s32 0, %v826
    %v828 = vrot.slane %v815, %v827
    %v829 = vlaneseq
    %v830 = vshrl.u32 %v829, 7
    %v831 = vsub.s32 1, %v830
    %v832 = vrot.slane %v815, %v831
    %836 = vset.pattern.permute.xlu0 0
    %837 = vperm.xlu0 %836, %v816
    %v838 = vpop.permute.xlu0 %837
    %841 = vset.pattern.permute.xlu0 0
    %842 = vperm.xlu0 %841, %v817
    %v843 = vpop.permute.xlu0 %842
    %846 = vset.pattern.permute.xlu0 0
    %847 = vperm.xlu0 %846, %v818
    %v848 = vpop.permute.xlu0 %847
    %851 = vset.pattern.permute.xlu0 0
    %852 = vperm.xlu0 %851, %v819
    %v853 = vpop.permute.xlu0 %852
    %856 = vset.pattern.permute.xlu0 0
    %857 = vperm.xlu0 %856, %v820
    %v858 = vpop.permute.xlu0 %857
    %861 = vset.pattern.permute.xlu0 0
    %862 = vperm.xlu0 %861, %v821
    %v863 = vpop.permute.xlu0 %862
    %866 = vset.pattern.permute.xlu0 0
    %867 = vperm.xlu0 %866, %v822
    %v868 = vpop.permute.xlu0 %867
    %871 = vset.pattern.permute.xlu0 0
    %872 = vperm.xlu0 %871, %v823
    %v873 = vpop.permute.xlu0 %872
    %v875 = vmul.f32 %v828, %v838
    %v876 = vmul.f32 %v832, %v838
    %v877 = vmul.f32 %v828, %v843
    %v878 = vmul.f32 %v832, %v843
    %v879 = vmul.f32 %v828, %v848
    %v880 = vmul.f32 %v832, %v848
    %v881 = vmul.f32 %v828, %v853
    %v882 = vmul.f32 %v832, %v853
    %v883 = vmul.f32 %v828, %v858
    %v884 = vmul.f32 %v832, %v858
    %v885 = vmul.f32 %v828, %v863
    %v886 = vmul.f32 %v832, %v863
    %v887 = vmul.f32 %v828, %v868
    %v888 = vmul.f32 %v832, %v868
    %v889 = vmul.f32 %v828, %v873
    %v890 = vmul.f32 %v832, %v873
    %v891 = vadd.f32 %v799, %v875
    %v892 = vadd.f32 %v800, %v876
    %v893 = vadd.f32 %v801, %v877
    %v894 = vadd.f32 %v802, %v878
    %v895 = vadd.f32 %v803, %v879
    %v896 = vadd.f32 %v804, %v880
    %v897 = vadd.f32 %v805, %v881
    %v898 = vadd.f32 %v806, %v882
    %v899 = vadd.f32 %v807, %v883
    %v900 = vadd.f32 %v808, %v884
    %v901 = vadd.f32 %v809, %v885
    %v902 = vadd.f32 %v810, %v886
    %v903 = vadd.f32 %v811, %v887
    %v904 = vadd.f32 %v812, %v888
    %v905 = vadd.f32 %v813, %v889
    %v906 = vadd.f32 %v814, %v890
    %v907 = vld [vmem:[%s5] sm:$0xff]
    %v908 = vld [vmem:[%s5 + $0x8] sm:$0xff]
    %v909 = vld [vmem:[%s5 + $0x10] sm:$0xff]
    %v910 = vld [vmem:[%s5 + $0x18] sm:$0xff]
    %v911 = vld [vmem:[%s5 + $0x20] sm:$0xff]
    %v912 = vld [vmem:[%s5 + $0x28] sm:$0xff]
    %v913 = vld [vmem:[%s5 + $0x30] sm:$0xff]
    %v914 = vld [vmem:[%s5 + $0x38] sm:$0xff]
    %v916 = vlaneseq
    %v917 = vshrl.u32 %v916, 7
    %v918 = vsub.s32 0, %v917
    %v919 = vrot.slane %v739, %v918
    %v920 = vlaneseq
    %v921 = vshrl.u32 %v920, 7
    %v922 = vsub.s32 1, %v921
    %v923 = vrot.slane %v739, %v922
    %927 = vset.pattern.permute.xlu0 0
    %928 = vperm.xlu0 %927, %v907
    %v929 = vpop.permute.xlu0 %928
    %932 = vset.pattern.permute.xlu0 0
    %933 = vperm.xlu0 %932, %v908
    %v934 = vpop.permute.xlu0 %933
    %937 = vset.pattern.permute.xlu0 0
    %938 = vperm.xlu0 %937, %v909
    %v939 = vpop.permute.xlu0 %938
    %942 = vset.pattern.permute.xlu0 0
    %943 = vperm.xlu0 %942, %v910
    %v944 = vpop.permute.xlu0 %943
    %947 = vset.pattern.permute.xlu0 0
    %948 = vperm.xlu0 %947, %v911
    %v949 = vpop.permute.xlu0 %948
    %952 = vset.pattern.permute.xlu0 0
    %953 = vperm.xlu0 %952, %v912
    %v954 = vpop.permute.xlu0 %953
    %957 = vset.pattern.permute.xlu0 0
    %958 = vperm.xlu0 %957, %v913
    %v959 = vpop.permute.xlu0 %958
    %962 = vset.pattern.permute.xlu0 0
    %963 = vperm.xlu0 %962, %v914
    %v964 = vpop.permute.xlu0 %963
    %v966 = vmul.f32 %v919, %v929
    %v967 = vmul.f32 %v923, %v929
    %v968 = vmul.f32 %v919, %v934
    %v969 = vmul.f32 %v923, %v934
    %v970 = vmul.f32 %v919, %v939
    %v971 = vmul.f32 %v923, %v939
    %v972 = vmul.f32 %v919, %v944
    %v973 = vmul.f32 %v923, %v944
    %v974 = vmul.f32 %v919, %v949
    %v975 = vmul.f32 %v923, %v949
    %v976 = vmul.f32 %v919, %v954
    %v977 = vmul.f32 %v923, %v954
    %v978 = vmul.f32 %v919, %v959
    %v979 = vmul.f32 %v923, %v959
    %v980 = vmul.f32 %v919, %v964
    %v981 = vmul.f32 %v923, %v964
    %v982 = vsub.f32 1.0, %v739
    %v983 = vld [vmem:[%s4] sm:$0xff]
    %v984 = vld [vmem:[%s4 + $0x8] sm:$0xff]
    %v985 = vld [vmem:[%s4 + $0x10] sm:$0xff]
    %v986 = vld [vmem:[%s4 + $0x18] sm:$0xff]
    %v987 = vld [vmem:[%s4 + $0x20] sm:$0xff]
    %v988 = vld [vmem:[%s4 + $0x28] sm:$0xff]
    %v989 = vld [vmem:[%s4 + $0x30] sm:$0xff]
    %v990 = vld [vmem:[%s4 + $0x38] sm:$0xff]
    %v992 = vlaneseq
    %v993 = vshrl.u32 %v992, 7
    %v994 = vsub.s32 0, %v993
    %v995 = vrot.slane %v982, %v994
    %v996 = vlaneseq
    %v997 = vshrl.u32 %v996, 7
    %v998 = vsub.s32 1, %v997
    %v999 = vrot.slane %v982, %v998
    %1003 = vset.pattern.permute.xlu0 0
    %1004 = vperm.xlu0 %1003, %v983
    %v1005 = vpop.permute.xlu0 %1004
    %1008 = vset.pattern.permute.xlu0 0
    %1009 = vperm.xlu0 %1008, %v984
    %v1010 = vpop.permute.xlu0 %1009
    %1013 = vset.pattern.permute.xlu0 0
    %1014 = vperm.xlu0 %1013, %v985
    %v1015 = vpop.permute.xlu0 %1014
    %1018 = vset.pattern.permute.xlu0 0
    %1019 = vperm.xlu0 %1018, %v986
    %v1020 = vpop.permute.xlu0 %1019
    %1023 = vset.pattern.permute.xlu0 0
    %1024 = vperm.xlu0 %1023, %v987
    %v1025 = vpop.permute.xlu0 %1024
    %1028 = vset.pattern.permute.xlu0 0
    %1029 = vperm.xlu0 %1028, %v988
    %v1030 = vpop.permute.xlu0 %1029
    %1033 = vset.pattern.permute.xlu0 0
    %1034 = vperm.xlu0 %1033, %v989
    %v1035 = vpop.permute.xlu0 %1034
    %1038 = vset.pattern.permute.xlu0 0
    %1039 = vperm.xlu0 %1038, %v990
    %v1040 = vpop.permute.xlu0 %1039
    %v1042 = vmul.f32 %v995, %v1005
    %v1043 = vmul.f32 %v999, %v1005
    %v1044 = vmul.f32 %v995, %v1010
    %v1045 = vmul.f32 %v999, %v1010
    %v1046 = vmul.f32 %v995, %v1015
    %v1047 = vmul.f32 %v999, %v1015
    %v1048 = vmul.f32 %v995, %v1020
    %v1049 = vmul.f32 %v999, %v1020
    %v1050 = vmul.f32 %v995, %v1025
    %v1051 = vmul.f32 %v999, %v1025
    %v1052 = vmul.f32 %v995, %v1030
    %v1053 = vmul.f32 %v999, %v1030
    %v1054 = vmul.f32 %v995, %v1035
    %v1055 = vmul.f32 %v999, %v1035
    %v1056 = vmul.f32 %v995, %v1040
    %v1057 = vmul.f32 %v999, %v1040
    %v1058 = vadd.f32 %v966, %v1042
    %v1059 = vadd.f32 %v967, %v1043
    %v1060 = vadd.f32 %v968, %v1044
    %v1061 = vadd.f32 %v969, %v1045
    %v1062 = vadd.f32 %v970, %v1046
    %v1063 = vadd.f32 %v971, %v1047
    %v1064 = vadd.f32 %v972, %v1048
    %v1065 = vadd.f32 %v973, %v1049
    %v1066 = vadd.f32 %v974, %v1050
    %v1067 = vadd.f32 %v975, %v1051
    %v1068 = vadd.f32 %v976, %v1052
    %v1069 = vadd.f32 %v977, %v1053
    %v1070 = vadd.f32 %v978, %v1054
    %v1071 = vadd.f32 %v979, %v1055
    %v1072 = vadd.f32 %v980, %v1056
    %v1073 = vadd.f32 %v981, %v1057
    %v1074 = vmul.f32 %v891, %v1058
    %v1075 = vmul.f32 %v892, %v1059
    %v1076 = vmul.f32 %v893, %v1060
    %v1077 = vmul.f32 %v894, %v1061
    %v1078 = vmul.f32 %v895, %v1062
    %v1079 = vmul.f32 %v896, %v1063
    %v1080 = vmul.f32 %v897, %v1064
    %v1081 = vmul.f32 %v898, %v1065
    %v1082 = vmul.f32 %v899, %v1066
    %v1083 = vmul.f32 %v900, %v1067
    %v1084 = vmul.f32 %v901, %v1068
    %v1085 = vmul.f32 %v902, %v1069
    %v1086 = vmul.f32 %v903, %v1070
    %v1087 = vmul.f32 %v904, %v1071
    %v1088 = vmul.f32 %v905, %v1072
    %v1089 = vmul.f32 %v906, %v1073
    %v1090 = vmul.f32 %v700, %v1074
    %v1091 = vmul.f32 %v702, %v1075
    %v1092 = vmul.f32 %v704, %v1076
    %v1093 = vmul.f32 %v706, %v1077
    %v1094 = vmul.f32 %v710, %v1078
    %v1095 = vmul.f32 %v712, %v1079
    %v1096 = vmul.f32 %v714, %v1080
    %v1097 = vmul.f32 %v716, %v1081
    %v1098 = vmul.f32 %v720, %v1082
    %v1099 = vmul.f32 %v722, %v1083
    %v1100 = vmul.f32 %v724, %v1084
    %v1101 = vmul.f32 %v726, %v1085
    %v1102 = vmul.f32 %v730, %v1086
    %v1103 = vmul.f32 %v732, %v1087
    %v1104 = vmul.f32 %v734, %v1088
    %v1105 = vmul.f32 %v736, %v1089
    %v1106 = vld [vmem:[#allocation7] sm:$0xff]
    %v1107 = vld [vmem:[#allocation7 + $0x8] sm:$0xff]
    %v1108 = vld [vmem:[#allocation7 + $0x10] sm:$0xff]
    %v1109 = vld [vmem:[#allocation7 + $0x18] sm:$0xff]
    %v1110 = vld [vmem:[#allocation7 + $0x20] sm:$0xff]
    %v1111 = vld [vmem:[#allocation7 + $0x28] sm:$0xff]
    %v1112 = vld [vmem:[#allocation7 + $0x30] sm:$0xff]
    %v1113 = vld [vmem:[#allocation7 + $0x38] sm:$0xff]
    %v1114 = vld [vmem:[#allocation7 + $0x40] sm:$0xff]
    %v1115 = vld [vmem:[#allocation7 + $0x48] sm:$0xff]
    %v1116 = vld [vmem:[#allocation7 + $0x50] sm:$0xff]
    %v1117 = vld [vmem:[#allocation7 + $0x58] sm:$0xff]
    %v1118 = vld [vmem:[#allocation7 + $0x60] sm:$0xff]
    %v1119 = vld [vmem:[#allocation7 + $0x68] sm:$0xff]
    %v1120 = vld [vmem:[#allocation7 + $0x70] sm:$0xff]
    %v1121 = vld [vmem:[#allocation7 + $0x78] sm:$0xff]
    %v1122 = vld [vmem:[#allocation7 + $0x80] sm:$0xff]
    %v1123 = vld [vmem:[#allocation7 + $0x88] sm:$0xff]
    %v1124 = vld [vmem:[#allocation7 + $0x90] sm:$0xff]
    %v1125 = vld [vmem:[#allocation7 + $0x98] sm:$0xff]
    %v1126 = vld [vmem:[#allocation7 + $0xa0] sm:$0xff]
    %v1127 = vld [vmem:[#allocation7 + $0xa8] sm:$0xff]
    %v1128 = vld [vmem:[#allocation7 + $0xb0] sm:$0xff]
    %v1129 = vld [vmem:[#allocation7 + $0xb8] sm:$0xff]
    %v1130 = vld [vmem:[#allocation7 + $0xc0] sm:$0xff]
    %v1131 = vld [vmem:[#allocation7 + $0xc8] sm:$0xff]
    %v1132 = vld [vmem:[#allocation7 + $0xd0] sm:$0xff]
    %v1133 = vld [vmem:[#allocation7 + $0xd8] sm:$0xff]
    %v1134 = vld [vmem:[#allocation7 + $0xe0] sm:$0xff]
    %v1135 = vld [vmem:[#allocation7 + $0xe8] sm:$0xff]
    %v1136 = vld [vmem:[#allocation7 + $0xf0] sm:$0xff]
    %v1137 = vld [vmem:[#allocation7 + $0xf8] sm:$0xff]
    %v1138 = vld [vmem:[#allocation7 + $0x100] sm:$0xff]
    %v1139 = vld [vmem:[#allocation7 + $0x108] sm:$0xff]
    %v1140 = vld [vmem:[#allocation7 + $0x110] sm:$0xff]
    %v1141 = vld [vmem:[#allocation7 + $0x118] sm:$0xff]
    %v1142 = vld [vmem:[#allocation7 + $0x120] sm:$0xff]
    %v1143 = vld [vmem:[#allocation7 + $0x128] sm:$0xff]
    %v1144 = vld [vmem:[#allocation7 + $0x130] sm:$0xff]
    %v1145 = vld [vmem:[#allocation7 + $0x138] sm:$0xff]
    %v1146 = vld [vmem:[#allocation7 + $0x140] sm:$0xff]
    %v1147 = vld [vmem:[#allocation7 + $0x148] sm:$0xff]
    %v1148 = vld [vmem:[#allocation7 + $0x150] sm:$0xff]
    %v1149 = vld [vmem:[#allocation7 + $0x158] sm:$0xff]
    %v1150 = vld [vmem:[#allocation7 + $0x160] sm:$0xff]
    %v1151 = vld [vmem:[#allocation7 + $0x168] sm:$0xff]
    %v1152 = vld [vmem:[#allocation7 + $0x170] sm:$0xff]
    %v1153 = vld [vmem:[#allocation7 + $0x178] sm:$0xff]
    %v1154 = vld [vmem:[#allocation7 + $0x180] sm:$0xff]
    %v1155 = vld [vmem:[#allocation7 + $0x188] sm:$0xff]
    %v1156 = vld [vmem:[#allocation7 + $0x190] sm:$0xff]
    %v1157 = vld [vmem:[#allocation7 + $0x198] sm:$0xff]
    %v1158 = vld [vmem:[#allocation7 + $0x1a0] sm:$0xff]
    %v1159 = vld [vmem:[#allocation7 + $0x1a8] sm:$0xff]
    %v1160 = vld [vmem:[#allocation7 + $0x1b0] sm:$0xff]
    %v1161 = vld [vmem:[#allocation7 + $0x1b8] sm:$0xff]
    %v1162 = vld [vmem:[#allocation7 + $0x1c0] sm:$0xff]
    %v1163 = vld [vmem:[#allocation7 + $0x1c8] sm:$0xff]
    %v1164 = vld [vmem:[#allocation7 + $0x1d0] sm:$0xff]
    %v1165 = vld [vmem:[#allocation7 + $0x1d8] sm:$0xff]
    %v1166 = vld [vmem:[#allocation7 + $0x1e0] sm:$0xff]
    %v1167 = vld [vmem:[#allocation7 + $0x1e8] sm:$0xff]
    %v1168 = vld [vmem:[#allocation7 + $0x1f0] sm:$0xff]
    %v1169 = vld [vmem:[#allocation7 + $0x1f8] sm:$0xff]
    %1170 = vmatprep.subr.mxu0 %v1137
    %1171 = vmatpush1.msra.mxu0 %v1136
    %1172 = vmatprep.subr.mxu0 %v1135
    %1173 = vmatpush1.msra.mxu0 %v1134
    %1174 = vmatprep.subr.mxu0 %v1133
    %1175 = vmatpush1.msra.mxu0 %v1132
    %1176 = vmatprep.subr.mxu0 %v1131
    %1177 = vmatpush1.msra.mxu0 %v1130
    %1178 = vmatprep.subr.mxu0 %v1129
    %1179 = vmatpush1.msra.mxu0 %v1128
    %1180 = vmatprep.subr.mxu0 %v1127
    %1181 = vmatpush1.msra.mxu0 %v1126
    %1182 = vmatprep.subr.mxu0 %v1125
    %1183 = vmatpush1.msra.mxu0 %v1124
    %1184 = vmatprep.subr.mxu0 %v1123
    %1185 = vmatpush1.msra.mxu0 %v1122
    %1186 = vmatprep.subr.mxu0 %v1121
    %1187 = vmatpush1.msra.mxu0 %v1120
    %1188 = vmatprep.subr.mxu0 %v1119
    %1189 = vmatpush1.msra.mxu0 %v1118
    %1190 = vmatprep.subr.mxu0 %v1117
    %1191 = vmatpush1.msra.mxu0 %v1116
    %1192 = vmatprep.subr.mxu0 %v1115
    %1193 = vmatpush1.msra.mxu0 %v1114
    %1194 = vmatprep.subr.mxu0 %v1113
    %1195 = vmatpush1.msra.mxu0 %v1112
    %1196 = vmatprep.subr.mxu0 %v1111
    %1197 = vmatpush1.msra.mxu0 %v1110
    %1198 = vmatprep.subr.mxu0 %v1109
    %1199 = vmatpush1.msra.mxu0 %v1108
    %1200 = vmatprep.subr.mxu0 %v1107
    %1201 = vmatpush1.msra.mxu0 %v1106
    %1202 = vmatprep.subr.mxu0 %v1169
    %1203 = vmatpush2.msra.mxu0 %v1168
    %1204 = vmatprep.subr.mxu0 %v1167
    %1205 = vmatpush2.msra.mxu0 %v1166
    %1206 = vmatprep.subr.mxu0 %v1165
    %1207 = vmatpush2.msra.mxu0 %v1164
    %1208 = vmatprep.subr.mxu0 %v1163
    %1209 = vmatpush2.msra.mxu0 %v1162
    %1210 = vmatprep.subr.mxu0 %v1161
    %1211 = vmatpush2.msra.mxu0 %v1160
    %1212 = vmatprep.subr.mxu0 %v1159
    %1213 = vmatpush2.msra.mxu0 %v1158
    %1214 = vmatprep.subr.mxu0 %v1157
    %1215 = vmatpush2.msra.mxu0 %v1156
    %1216 = vmatprep.subr.mxu0 %v1155
    %1217 = vmatpush2.msra.mxu0 %v1154
    %1218 = vmatprep.subr.mxu0 %v1153
    %1219 = vmatpush2.msra.mxu0 %v1152
    %1220 = vmatprep.subr.mxu0 %v1151
    %1221 = vmatpush2.msra.mxu0 %v1150
    %1222 = vmatprep.subr.mxu0 %v1149
    %1223 = vmatpush2.msra.mxu0 %v1148
    %1224 = vmatprep.subr.mxu0 %v1147
    %1225 = vmatpush2.msra.mxu0 %v1146
    %1226 = vmatprep.subr.mxu0 %v1145
    %1227 = vmatpush2.msra.mxu0 %v1144
    %1228 = vmatprep.subr.mxu0 %v1143
    %1229 = vmatpush2.msra.mxu0 %v1142
    %1230 = vmatprep.subr.mxu0 %v1141
    %1231 = vmatpush2.msra.mxu0 %v1140
    %1232 = vmatprep.subr.mxu0 %v1139
    %1233 = vmatpush2.msra.mxu0 %v1138
    %1234 = vmatprep.mubr.f32.mxu0 %v1091
    %1235 = vmatmul.mubr.f32.gmra.mxu0 %v1090
    %v1236 = vpop.f32.mrf.mxu0
    %v1237 = vadd.f32 0.0, %v1236
    %v1238 = vpop.f32.mrf.mxu0
    %v1239 = vadd.f32 0.0, %v1238
    %1240 = vmatprep.mubr.f32.mxu0 %v1093
    %1241 = vmatmul.mubr.f32.gmra.mxu0 %v1092
    %v1242 = vpop.f32.mrf.mxu0
    %v1243 = vadd.f32 0.0, %v1242
    %v1244 = vpop.f32.mrf.mxu0
    %v1245 = vadd.f32 0.0, %v1244
    %1246 = vmatprep.mubr.f32.mxu0 %v1095
    %1247 = vmatmul.mubr.f32.gmra.mxu0 %v1094
    %v1248 = vpop.f32.mrf.mxu0
    %v1249 = vadd.f32 0.0, %v1248
    %v1250 = vpop.f32.mrf.mxu0
    %v1251 = vadd.f32 0.0, %v1250
    %1252 = vmatprep.mubr.f32.mxu0 %v1097
    %1253 = vmatmul.mubr.f32.gmra.mxu0 %v1096
    %v1254 = vpop.f32.mrf.mxu0
    %v1255 = vadd.f32 0.0, %v1254
    %v1256 = vpop.f32.mrf.mxu0
    %v1257 = vadd.f32 0.0, %v1256
    %1258 = vmatprep.mubr.f32.mxu0 %v1099
    %1259 = vmatmul.mubr.f32.gmra.mxu0 %v1098
    %v1260 = vpop.f32.mrf.mxu0
    %v1261 = vadd.f32 0.0, %v1260
    %v1262 = vpop.f32.mrf.mxu0
    %v1263 = vadd.f32 0.0, %v1262
    %1264 = vmatprep.mubr.f32.mxu0 %v1101
    %1265 = vmatmul.mubr.f32.gmra.mxu0 %v1100
    %v1266 = vpop.f32.mrf.mxu0
    %v1267 = vadd.f32 0.0, %v1266
    %v1268 = vpop.f32.mrf.mxu0
    %v1269 = vadd.f32 0.0, %v1268
    %1270 = vmatprep.mubr.f32.mxu0 %v1103
    %1271 = vmatmul.mubr.f32.gmra.mxu0 %v1102
    %v1272 = vpop.f32.mrf.mxu0
    %v1273 = vadd.f32 0.0, %v1272
    %v1274 = vpop.f32.mrf.mxu0
    %v1275 = vadd.f32 0.0, %v1274
    %1276 = vmatprep.mubr.f32.mxu0 %v1105
    %1277 = vmatmul.mubr.f32.gmra.mxu0 %v1104
    %v1278 = vpop.f32.mrf.mxu0
    %v1279 = vadd.f32 0.0, %v1278
    %v1280 = vpop.f32.mrf.mxu0
    %v1281 = vadd.f32 0.0, %v1280
    %1282 = vdwg.mxu0
    %v1283 = vadd.f32 %v1237, %v1243
    %v1284 = vadd.f32 %v1283, %v1249
    %v1285 = vadd.f32 %v1284, %v1255
    %v1286 = vadd.f32 %v1285, %v1261
    %v1287 = vadd.f32 %v1286, %v1267
    %v1288 = vadd.f32 %v1287, %v1273
    %v1289 = vadd.f32 %v1288, %v1279
    %v1290 = vrot.slane %v1289, 4
    %v1291 = vadd.f32 %v1289, %v1290
    %v1292 = vrot.slane %v1291, 2
    %v1293 = vadd.f32 %v1291, %v1292
    %v1294 = vrot.slane %v1293, 1
    %v1295 = vadd.f32 %v1293, %v1294
    %v1296 = vadd.f32 %v1239, %v1245
    %v1297 = vadd.f32 %v1296, %v1251
    %v1298 = vadd.f32 %v1297, %v1257
    %v1299 = vadd.f32 %v1298, %v1263
    %v1300 = vadd.f32 %v1299, %v1269
    %v1301 = vadd.f32 %v1300, %v1275
    %v1302 = vadd.f32 %v1301, %v1281
    %v1303 = vrot.slane %v1302, 4
    %v1304 = vadd.f32 %v1302, %v1303
    %v1305 = vrot.slane %v1304, 2
    %v1306 = vadd.f32 %v1304, %v1305
    %v1307 = vrot.slane %v1306, 1
    %v1308 = vadd.f32 %v1306, %v1307
    %v1309 = vmul.f32 %v1090, %v1090
    %v1310 = vmul.f32 %v1091, %v1091
    %v1311 = vmul.f32 %v1092, %v1092
    %v1312 = vmul.f32 %v1093, %v1093
    %v1313 = vmul.f32 %v1094, %v1094
    %v1314 = vmul.f32 %v1095, %v1095
    %v1315 = vmul.f32 %v1096, %v1096
    %v1316 = vmul.f32 %v1097, %v1097
    %v1317 = vmul.f32 %v1098, %v1098
    %v1318 = vmul.f32 %v1099, %v1099
    %v1319 = vmul.f32 %v1100, %v1100
    %v1320 = vmul.f32 %v1101, %v1101
    %v1321 = vmul.f32 %v1102, %v1102
    %v1322 = vmul.f32 %v1103, %v1103
    %v1323 = vmul.f32 %v1104, %v1104
    %v1324 = vmul.f32 %v1105, %v1105
    %1325 = vmatprep.subr.mxu0 %v1137
    %1326 = vmatpush1.msra.mxu0 %v1136
    %1327 = vmatprep.subr.mxu0 %v1135
    %1328 = vmatpush1.msra.mxu0 %v1134
    %1329 = vmatprep.subr.mxu0 %v1133
    %1330 = vmatpush1.msra.mxu0 %v1132
    %1331 = vmatprep.subr.mxu0 %v1131
    %1332 = vmatpush1.msra.mxu0 %v1130
    %1333 = vmatprep.subr.mxu0 %v1129
    %1334 = vmatpush1.msra.mxu0 %v1128
    %1335 = vmatprep.subr.mxu0 %v1127
    %1336 = vmatpush1.msra.mxu0 %v1126
    %1337 = vmatprep.subr.mxu0 %v1125
    %1338 = vmatpush1.msra.mxu0 %v1124
    %1339 = vmatprep.subr.mxu0 %v1123
    %1340 = vmatpush1.msra.mxu0 %v1122
    %1341 = vmatprep.subr.mxu0 %v1121
    %1342 = vmatpush1.msra.mxu0 %v1120
    %1343 = vmatprep.subr.mxu0 %v1119
    %1344 = vmatpush1.msra.mxu0 %v1118
    %1345 = vmatprep.subr.mxu0 %v1117
    %1346 = vmatpush1.msra.mxu0 %v1116
    %1347 = vmatprep.subr.mxu0 %v1115
    %1348 = vmatpush1.msra.mxu0 %v1114
    %1349 = vmatprep.subr.mxu0 %v1113
    %1350 = vmatpush1.msra.mxu0 %v1112
    %1351 = vmatprep.subr.mxu0 %v1111
    %1352 = vmatpush1.msra.mxu0 %v1110
    %1353 = vmatprep.subr.mxu0 %v1109
    %1354 = vmatpush1.msra.mxu0 %v1108
    %1355 = vmatprep.subr.mxu0 %v1107
    %1356 = vmatpush1.msra.mxu0 %v1106
    %1357 = vmatprep.subr.mxu0 %v1169
    %1358 = vmatpush2.msra.mxu0 %v1168
    %1359 = vmatprep.subr.mxu0 %v1167
    %1360 = vmatpush2.msra.mxu0 %v1166
    %1361 = vmatprep.subr.mxu0 %v1165
    %1362 = vmatpush2.msra.mxu0 %v1164
    %1363 = vmatprep.subr.mxu0 %v1163
    %1364 = vmatpush2.msra.mxu0 %v1162
    %1365 = vmatprep.subr.mxu0 %v1161
    %1366 = vmatpush2.msra.mxu0 %v1160
    %1367 = vmatprep.subr.mxu0 %v1159
    %1368 = vmatpush2.msra.mxu0 %v1158
    %1369 = vmatprep.subr.mxu0 %v1157
    %1370 = vmatpush2.msra.mxu0 %v1156
    %1371 = vmatprep.subr.mxu0 %v1155
    %1372 = vmatpush2.msra.mxu0 %v1154
    %1373 = vmatprep.subr.mxu0 %v1153
    %1374 = vmatpush2.msra.mxu0 %v1152
    %1375 = vmatprep.subr.mxu0 %v1151
    %1376 = vmatpush2.msra.mxu0 %v1150
    %1377 = vmatprep.subr.mxu0 %v1149
    %1378 = vmatpush2.msra.mxu0 %v1148
    %1379 = vmatprep.subr.mxu0 %v1147
    %1380 = vmatpush2.msra.mxu0 %v1146
    %1381 = vmatprep.subr.mxu0 %v1145
    %1382 = vmatpush2.msra.mxu0 %v1144
    %1383 = vmatprep.subr.mxu0 %v1143
    %1384 = vmatpush2.msra.mxu0 %v1142
    %1385 = vmatprep.subr.mxu0 %v1141
    %1386 = vmatpush2.msra.mxu0 %v1140
    %1387 = vmatprep.subr.mxu0 %v1139
    %1388 = vmatpush2.msra.mxu0 %v1138
    %1389 = vmatprep.mubr.f32.mxu0 %v1310
    %1390 = vmatmul.mubr.f32.gmra.mxu0 %v1309
    %v1391 = vpop.f32.mrf.mxu0
    %v1392 = vadd.f32 0.0, %v1391
    %v1393 = vpop.f32.mrf.mxu0
    %v1394 = vadd.f32 0.0, %v1393
    %1395 = vmatprep.mubr.f32.mxu0 %v1312
    %1396 = vmatmul.mubr.f32.gmra.mxu0 %v1311
    %v1397 = vpop.f32.mrf.mxu0
    %v1398 = vadd.f32 0.0, %v1397
    %v1399 = vpop.f32.mrf.mxu0
    %v1400 = vadd.f32 0.0, %v1399
    %1401 = vmatprep.mubr.f32.mxu0 %v1314
    %1402 = vmatmul.mubr.f32.gmra.mxu0 %v1313
    %v1403 = vpop.f32.mrf.mxu0
    %v1404 = vadd.f32 0.0, %v1403
    %v1405 = vpop.f32.mrf.mxu0
    %v1406 = vadd.f32 0.0, %v1405
    %1407 = vmatprep.mubr.f32.mxu0 %v1316
    %1408 = vmatmul.mubr.f32.gmra.mxu0 %v1315
    %v1409 = vpop.f32.mrf.mxu0
    %v1410 = vadd.f32 0.0, %v1409
    %v1411 = vpop.f32.mrf.mxu0
    %v1412 = vadd.f32 0.0, %v1411
    %1413 = vmatprep.mubr.f32.mxu0 %v1318
    %1414 = vmatmul.mubr.f32.gmra.mxu0 %v1317
    %v1415 = vpop.f32.mrf.mxu0
    %v1416 = vadd.f32 0.0, %v1415
    %v1417 = vpop.f32.mrf.mxu0
    %v1418 = vadd.f32 0.0, %v1417
    %1419 = vmatprep.mubr.f32.mxu0 %v1320
    %1420 = vmatmul.mubr.f32.gmra.mxu0 %v1319
    %v1421 = vpop.f32.mrf.mxu0
    %v1422 = vadd.f32 0.0, %v1421
    %v1423 = vpop.f32.mrf.mxu0
    %v1424 = vadd.f32 0.0, %v1423
    %1425 = vmatprep.mubr.f32.mxu0 %v1322
    %1426 = vmatmul.mubr.f32.gmra.mxu0 %v1321
    %v1427 = vpop.f32.mrf.mxu0
    %v1428 = vadd.f32 0.0, %v1427
    %v1429 = vpop.f32.mrf.mxu0
    %v1430 = vadd.f32 0.0, %v1429
    %1431 = vmatprep.mubr.f32.mxu0 %v1324
    %1432 = vmatmul.mubr.f32.gmra.mxu0 %v1323
    %v1433 = vpop.f32.mrf.mxu0
    %v1434 = vadd.f32 0.0, %v1433
    %v1435 = vpop.f32.mrf.mxu0
    %v1436 = vadd.f32 0.0, %v1435
    %1437 = vdwg.mxu0
    %v1438 = vadd.f32 %v1392, %v1398
    %v1439 = vadd.f32 %v1438, %v1404
    %v1440 = vadd.f32 %v1439, %v1410
    %v1441 = vadd.f32 %v1440, %v1416
    %v1442 = vadd.f32 %v1441, %v1422
    %v1443 = vadd.f32 %v1442, %v1428
    %v1444 = vadd.f32 %v1443, %v1434
    %v1445 = vrot.slane %v1444, 4
    %v1446 = vadd.f32 %v1444, %v1445
    %v1447 = vrot.slane %v1446, 2
    %v1448 = vadd.f32 %v1446, %v1447
    %v1449 = vrot.slane %v1448, 1
    %v1450 = vadd.f32 %v1448, %v1449
    %v1451 = vadd.f32 %v1394, %v1400
    %v1452 = vadd.f32 %v1451, %v1406
    %v1453 = vadd.f32 %v1452, %v1412
    %v1454 = vadd.f32 %v1453, %v1418
    %v1455 = vadd.f32 %v1454, %v1424
    %v1456 = vadd.f32 %v1455, %v1430
    %v1457 = vadd.f32 %v1456, %v1436
    %v1458 = vrot.slane %v1457, 4
    %v1459 = vadd.f32 %v1457, %v1458
    %v1460 = vrot.slane %v1459, 2
    %v1461 = vadd.f32 %v1459, %v1460
    %v1462 = vrot.slane %v1461, 1
    %v1463 = vadd.f32 %v1461, %v1462
    %v1464 = vmul.f32 %v1295, 0.0078125
    %v1465 = vmul.f32 %v1308, 0.0078125
    %v1466 = vmul.f32 %v1450, 0.0078125
    %v1467 = vmul.f32 %v1463, 0.0078125
    %v1468 = vmul.f32 %v1464, %v1464
    %v1469 = vmul.f32 %v1465, %v1465
    %v1470 = vsub.f32 %v1466, %v1468
    %v1471 = vsub.f32 %v1467, %v1469
    %v1472 = vmax.f32 %v1470, 0.0
    %v1473 = vmax.f32 %v1471, 0.0
    %v1474 = vld [vmem:[#allocation9] sm:$0x3]
    %v1475 = vadd.f32 %v1472, 1e-05
    %v1476 = vadd.f32 %v1473, 1e-05
    %v1477 = vrsqrt.pop %v1475
    %v1478 = vrsqrt.pop %v1476
    %v1481 = vcombine.low %v1477, %v1478
    %v1483 = vunpack.c.l.s4 1966171168
    %v1484 = vunpack.c.0.s8 %v1483
    %v1485 = vlaneseq
    %v1486 = vshrl.u32 %v1485, 7
    %v1487 = vsub.s32 %v1484, %v1486
    %v1488 = vrot.slane %v1481, %v1487
    %v1490 = vunpack.c.l.s4 1966171168
    %v1491 = vunpack.c.0.s8 %v1490
    %v1492 = vlaneseq
    %v1493 = vshrl.u32 %v1492, 7
    %v1494 = vsub.s32 %v1491, %v1493
    %v1495 = vrot.slane %v1488, %v1494
    %v1497 = vmul.f32 %v1474, %v1495
    %v1498 = vld [vmem:[#allocation10] sm:$0x3]
    %v1500 = vlaneseq
    %v1501 = vshrl.u32 %v1500, 7
    %v1502 = vsub.s32 0, %v1501
    %v1503 = vrot.slane %v1497, %v1502
    %v1504 = vlaneseq
    %v1505 = vshrl.u32 %v1504, 7
    %v1506 = vsub.s32 1, %v1505
    %v1507 = vrot.slane %v1497, %v1506
    %v1510 = vmul.f32 %v1464, %v1503
    %v1511 = vmul.f32 %v1465, %v1507
    %v1514 = vcombine.low %v1510, %v1511
    %v1516 = vunpack.c.l.s4 1966171168
    %v1517 = vunpack.c.0.s8 %v1516
    %v1518 = vlaneseq
    %v1519 = vshrl.u32 %v1518, 7
    %v1520 = vsub.s32 %v1517, %v1519
    %v1521 = vrot.slane %v1514, %v1520
    %v1523 = vunpack.c.l.s4 1966171168
    %v1524 = vunpack.c.0.s8 %v1523
    %v1525 = vlaneseq
    %v1526 = vshrl.u32 %v1525, 7
    %v1527 = vsub.s32 %v1524, %v1526
    %v1528 = vrot.slane %v1521, %v1527
    %v1530 = vsub.f32 %v1498, %v1528
    %v1531 = vmul.f32 %v700, %v1503
    %v1532 = vmul.f32 %v702, %v1507
    %v1533 = vmul.f32 %v704, %v1503
    %v1534 = vmul.f32 %v706, %v1507
    %v1535 = vmul.f32 %v710, %v1503
    %v1536 = vmul.f32 %v712, %v1507
    %v1537 = vmul.f32 %v714, %v1503
    %v1538 = vmul.f32 %v716, %v1507
    %v1539 = vmul.f32 %v720, %v1503
    %v1540 = vmul.f32 %v722, %v1507
    %v1541 = vmul.f32 %v724, %v1503
    %v1542 = vmul.f32 %v726, %v1507
    %v1543 = vmul.f32 %v730, %v1503
    %v1544 = vmul.f32 %v732, %v1507
    %v1545 = vmul.f32 %v734, %v1503
    %v1546 = vmul.f32 %v736, %v1507
    %v1548 = vlaneseq
    %v1549 = vshrl.u32 %v1548, 7
    %v1550 = vsub.s32 0, %v1549
    %v1551 = vrot.slane %v1530, %v1550
    %v1552 = vlaneseq
    %v1553 = vshrl.u32 %v1552, 7
    %v1554 = vsub.s32 1, %v1553
    %v1555 = vrot.slane %v1530, %v1554
    %v1558 = vadd.f32 %v1531, %v1551
    %v1559 = vadd.f32 %v1532, %v1555
    %v1560 = vadd.f32 %v1533, %v1551
    %v1561 = vadd.f32 %v1534, %v1555
    %v1562 = vadd.f32 %v1535, %v1551
    %v1563 = vadd.f32 %v1536, %v1555
    %v1564 = vadd.f32 %v1537, %v1551
    %v1565 = vadd.f32 %v1538, %v1555
    %v1566 = vadd.f32 %v1539, %v1551
    %v1567 = vadd.f32 %v1540, %v1555
    %v1568 = vadd.f32 %v1541, %v1551
    %v1569 = vadd.f32 %v1542, %v1555
    %v1570 = vadd.f32 %v1543, %v1551
    %v1571 = vadd.f32 %v1544, %v1555
    %v1572 = vadd.f32 %v1545, %v1551
    %v1573 = vadd.f32 %v1546, %v1555
    %v1574 = vmax.f32 %v1558, 0.0
    %v1575 = vmax.f32 %v1559, 0.0
    %v1576 = vmax.f32 %v1560, 0.0
    %v1577 = vmax.f32 %v1561, 0.0
    %v1578 = vmax.f32 %v1562, 0.0
    %v1579 = vmax.f32 %v1563, 0.0
    %v1580 = vmax.f32 %v1564, 0.0
    %v1581 = vmax.f32 %v1565, 0.0
    %v1582 = vmax.f32 %v1566, 0.0
    %v1583 = vmax.f32 %v1567, 0.0
    %v1584 = vmax.f32 %v1568, 0.0
    %v1585 = vmax.f32 %v1569, 0.0
    %v1586 = vmax.f32 %v1570, 0.0
    %v1587 = vmax.f32 %v1571, 0.0
    %v1588 = vmax.f32 %v1572, 0.0
    %v1589 = vmax.f32 %v1573, 0.0
    %v1590 = vpack.c.bf16 %v1576, %v1574
    %v1591 = vpack.c.bf16 %v1577, %v1575
    %v1592 = vpack.c.bf16 %v1580, %v1578
    %v1593 = vpack.c.bf16 %v1581, %v1579
    %v1594 = vpack.c.bf16 %v1584, %v1582
    %v1595 = vpack.c.bf16 %v1585, %v1583
    %v1596 = vpack.c.bf16 %v1588, %v1586
    %v1597 = vpack.c.bf16 %v1589, %v1587
    %v1606 = vunpack.c.l.b16 %v1590
    %v1607 = vunpack.c.l.b16 %v1591
    %v1608 = vunpack.c.h.b16 %v1590
    %v1609 = vunpack.c.h.b16 %v1591
    %v1610 = vunpack.c.l.b16 %v1592
    %v1611 = vunpack.c.l.b16 %v1593
    %v1612 = vunpack.c.h.b16 %v1592
    %v1613 = vunpack.c.h.b16 %v1593
    %v1614 = vunpack.c.l.b16 %v1594
    %v1615 = vunpack.c.l.b16 %v1595
    %v1616 = vunpack.c.h.b16 %v1594
    %v1617 = vunpack.c.h.b16 %v1595
    %v1618 = vunpack.c.l.b16 %v1596
    %v1619 = vunpack.c.l.b16 %v1597
    %v1620 = vunpack.c.h.b16 %v1596
    %v1621 = vunpack.c.h.b16 %v1597
    %v1622 = vpack.c.b16 %v1607, %v1606
    %v1623 = vpack.c.b16 %v1609, %v1608
    %v1624 = vpack.c.b16 %v1611, %v1610
    %v1625 = vpack.c.b16 %v1613, %v1612
    %v1626 = vpack.c.b16 %v1615, %v1614
    %v1627 = vpack.c.b16 %v1617, %v1616
    %v1628 = vpack.c.b16 %v1619, %v1618
    %v1629 = vpack.c.b16 %v1621, %v1620
    %1638 = vst [vmem:[%s11] sm:$0xff] %v1622
    %1639 = vst [vmem:[%s11 + $0x8] sm:$0xff] %v1623
    %1640 = vst [vmem:[%s11 + $0x10] sm:$0xff] %v1624
    %1641 = vst [vmem:[%s11 + $0x18] sm:$0xff] %v1625
    %1642 = vst [vmem:[%s11 + $0x20] sm:$0xff] %v1626
    %1643 = vst [vmem:[%s11 + $0x28] sm:$0xff] %v1627
    %1644 = vst [vmem:[%s11 + $0x30] sm:$0xff] %v1628
    %1645 = vst [vmem:[%s11 + $0x38] sm:$0xff] %v1629
    // Predicated region
    $region70: #{dcgan_generator_forward.6} parent=1 // pred_check
      _
    $region71: #{dcgan_generator_forward.6} parent=1 // pred_check_branch
      %1647 = sbr.rel (0) target = $region73
    $region72: #{dcgan_generator_forward.6} parent=1 // pred_region
      _
    $region73: #{dcgan_generator_forward.6} parent=1 // pred_fallthru
      _
    // Predicated region
    $region74: #{dcgan_generator_forward.6} parent=1 // pred_check
      _
    $region75: #{dcgan_generator_forward.6} parent=1 // pred_check_branch
      %1649 = sbr.rel (0) target = $region77
    $region76: #{dcgan_generator_forward.6} parent=1 // pred_region
      _
    $region77: #{dcgan_generator_forward.6} parent=1 // pred_fallthru
      _
    %1650 = vsyncpa [#allocation3], 1
    %1651 = vsyncpa [#allocation5], 1
    %1652 = vsyncpa [#allocation8], 1
    %1653 = vsyncpa [#allocation11], 1

// kernel: dcgan_generator_forward.7
$region0: #{dcgan_generator_forward.7}
  #allocation0 [shape = 'u32[]', space=smem, size = 0x4, offset = 0x4, fixed_abs, tag = 'smem constant byte address 0x4 - core index']
  #allocation1 [shape = 'u32[144,128]{1,0:T(1,128)}', space=vmem, size = 0x12000, scoped, tag = 'internal scratch']
  %s0 = inlined_call_operand.vmem [shape: bf16[176,256], index: 0, kind: input, shape index: {}]
  %s1 = inlined_call_operand.vmem [shape: bf16[256,128], index: 1, kind: input, shape index: {}]
  %s2 = inlined_call_operand.vmem [shape: f32[176,1], index: 2, kind: input, shape index: {}]
  %s3 = inlined_call_operand.vmem [shape: f32[176,1], index: 3, kind: input, shape index: {}]
  %s4 = inlined_call_operand.vmem [shape: f32[176,1], index: 4, kind: input, shape index: {}]
  %s5 = inlined_call_operand.vmem [shape: f32[176,1], index: 5, kind: input, shape index: {}]
  %s6 = inlined_call_operand.vmem [shape: f32[1,128], index: 6, kind: input, shape index: {}]
  %s7 = inlined_call_operand.vmem [shape: f32[1,128], index: 7, kind: input, shape index: {}]
  %s8 = inlined_call_operand.vmem [shape: f32[128,128], index: 8, kind: input, shape index: {}]
  %s9 = inlined_call_operand.vmem [shape: f32[1,128], index: 9, kind: input, shape index: {}]
  %s10 = inlined_call_operand.vmem [shape: f32[1,128], index: 10, kind: input, shape index: {}]
  %s11 = inlined_call_operand.vmem [shape: bf16[176,128], index: 11, kind: output, shape index: {}]
  %s12 = sld [smem:[#allocation0]]
  $region54: #{dcgan_generator_forward.7} parent=0
    _
  %s14 = ssub.s32 1, %s12
  %s15 = scalar_select 0, %s14, %s12
  // Predicated region
  $region2: #{dcgan_generator_forward.7} parent=0 // pred_check
    _
  $region3: #{dcgan_generator_forward.7} parent=0 // pred_check_branch
    %17 = sbr.rel (0) target = $region5
  $region4: #{dcgan_generator_forward.7} parent=0 // pred_region
    _
  $region5: #{dcgan_generator_forward.7} parent=0 // pred_fallthru
    _
  // Predicated region
  $region6: #{dcgan_generator_forward.7} parent=0 // pred_check
    _
  $region7: #{dcgan_generator_forward.7} parent=0 // pred_check_branch
    %19 = sbr.rel (0) target = $region9
  $region8: #{dcgan_generator_forward.7} parent=0 // pred_region
    _
  $region9: #{dcgan_generator_forward.7} parent=0 // pred_fallthru
    _
  // Predicated region
  $region10: #{dcgan_generator_forward.7} parent=0 // pred_check
    _
  $region11: #{dcgan_generator_forward.7} parent=0 // pred_check_branch
    %21 = sbr.rel (0) target = $region13
  $region12: #{dcgan_generator_forward.7} parent=0 // pred_region
    _
  $region13: #{dcgan_generator_forward.7} parent=0 // pred_fallthru
    _
  // Predicated region
  $region14: #{dcgan_generator_forward.7} parent=0 // pred_check
    _
  $region15: #{dcgan_generator_forward.7} parent=0 // pred_check_branch
    %23 = sbr.rel (0) target = $region17
  $region16: #{dcgan_generator_forward.7} parent=0 // pred_region
    _
  $region17: #{dcgan_generator_forward.7} parent=0 // pred_fallthru
    _
  // Predicated region
  $region18: #{dcgan_generator_forward.7} parent=0 // pred_check
    _
  $region19: #{dcgan_generator_forward.7} parent=0 // pred_check_branch
    %25 = sbr.rel (0) target = $region21
  $region20: #{dcgan_generator_forward.7} parent=0 // pred_region
    _
  $region21: #{dcgan_generator_forward.7} parent=0 // pred_fallthru
    _
  // Predicated region
  $region22: #{dcgan_generator_forward.7} parent=0 // pred_check
    _
  $region23: #{dcgan_generator_forward.7} parent=0 // pred_check_branch
    %27 = sbr.rel (0) target = $region25
  $region24: #{dcgan_generator_forward.7} parent=0 // pred_region
    _
  $region25: #{dcgan_generator_forward.7} parent=0 // pred_fallthru
    _
  // Predicated region
  $region26: #{dcgan_generator_forward.7} parent=0 // pred_check
    _
  $region27: #{dcgan_generator_forward.7} parent=0 // pred_check_branch
    %29 = sbr.rel (0) target = $region29
  $region28: #{dcgan_generator_forward.7} parent=0 // pred_region
    _
  $region29: #{dcgan_generator_forward.7} parent=0 // pred_fallthru
    _
  // Predicated region
  $region30: #{dcgan_generator_forward.7} parent=0 // pred_check
    _
  $region31: #{dcgan_generator_forward.7} parent=0 // pred_check_branch
    %31 = sbr.rel (0) target = $region33
  $region32: #{dcgan_generator_forward.7} parent=0 // pred_region
    _
  $region33: #{dcgan_generator_forward.7} parent=0 // pred_fallthru
    _
  // Predicated region
  $region34: #{dcgan_generator_forward.7} parent=0 // pred_check
    _
  $region35: #{dcgan_generator_forward.7} parent=0 // pred_check_branch
    %33 = sbr.rel (0) target = $region37
  $region36: #{dcgan_generator_forward.7} parent=0 // pred_region
    _
  $region37: #{dcgan_generator_forward.7} parent=0 // pred_fallthru
    _
  // Predicated region
  $region38: #{dcgan_generator_forward.7} parent=0 // pred_check
    _
  $region39: #{dcgan_generator_forward.7} parent=0 // pred_check_branch
    %35 = sbr.rel (0) target = $region41
  $region40: #{dcgan_generator_forward.7} parent=0 // pred_region
    _
  $region41: #{dcgan_generator_forward.7} parent=0 // pred_fallthru
    _
  // Predicated region
  $region42: #{dcgan_generator_forward.7} parent=0 // pred_check
    _
  $region43: #{dcgan_generator_forward.7} parent=0 // pred_check_branch
    %37 = sbr.rel (0) target = $region45
  $region44: #{dcgan_generator_forward.7} parent=0 // pred_region
    _
  $region45: #{dcgan_generator_forward.7} parent=0 // pred_fallthru
    _
  %v39 = vld [vmem:[%s0] sm:$0xff]
  %v40 = vld [vmem:[%s0 + $0x8] sm:$0xff]
  %v41 = vld [vmem:[%s0 + $0x10] sm:$0xff]
  %v42 = vld [vmem:[%s0 + $0x18] sm:$0xff]
  %v43 = vld [vmem:[%s0 + $0x20] sm:$0xff]
  %v44 = vld [vmem:[%s0 + $0x28] sm:$0xff]
  %v45 = vld [vmem:[%s0 + $0x30] sm:$0xff]
  %v46 = vld [vmem:[%s0 + $0x38] sm:$0xff]
  %v47 = vld [vmem:[%s0 + $0x40] sm:$0xff]
  %v48 = vld [vmem:[%s0 + $0x48] sm:$0xff]
  %v49 = vld [vmem:[%s0 + $0x50] sm:$0xff]
  %v50 = vld [vmem:[%s0 + $0x58] sm:$0xff]
  %v51 = vld [vmem:[%s0 + $0x60] sm:$0xff]
  %v52 = vld [vmem:[%s0 + $0x68] sm:$0xff]
  %v53 = vld [vmem:[%s0 + $0x70] sm:$0xff]
  %v54 = vld [vmem:[%s0 + $0x78] sm:$0xff]
  %v55 = vld [vmem:[%s0 + $0x80] sm:$0xff]
  %v56 = vld [vmem:[%s0 + $0x88] sm:$0xff]
  %v57 = vld [vmem:[%s0 + $0x90] sm:$0xff]
  %v58 = vld [vmem:[%s0 + $0x98] sm:$0xff]
  %v59 = vld [vmem:[%s0 + $0xa0] sm:$0xff]
  %v60 = vld [vmem:[%s0 + $0xa8] sm:$0xff]
  %v61 = vld [vmem:[%s1] sm:$0xf]
  %v62 = vld [vmem:[%s1 + $0x4] sm:$0xf]
  %v63 = vld [vmem:[%s1 + $0x8] sm:$0xf]
  %v64 = vld [vmem:[%s1 + $0xc] sm:$0xf]
  %v65 = vld [vmem:[%s1 + $0x10] sm:$0xf]
  %v66 = vld [vmem:[%s1 + $0x14] sm:$0xf]
  %v67 = vld [vmem:[%s1 + $0x18] sm:$0xf]
  %v68 = vld [vmem:[%s1 + $0x1c] sm:$0xf]
  %v69 = vld [vmem:[%s1 + $0x20] sm:$0xf]
  %v70 = vld [vmem:[%s1 + $0x24] sm:$0xf]
  %v71 = vld [vmem:[%s1 + $0x28] sm:$0xf]
  %v72 = vld [vmem:[%s1 + $0x2c] sm:$0xf]
  %v73 = vld [vmem:[%s1 + $0x30] sm:$0xf]
  %v74 = vld [vmem:[%s1 + $0x34] sm:$0xf]
  %v75 = vld [vmem:[%s1 + $0x38] sm:$0xf]
  %v76 = vld [vmem:[%s1 + $0x3c] sm:$0xf]
  %v77 = vld [vmem:[%s1 + $0x40] sm:$0xf]
  %v78 = vld [vmem:[%s1 + $0x44] sm:$0xf]
  %v79 = vld [vmem:[%s1 + $0x48] sm:$0xf]
  %v80 = vld [vmem:[%s1 + $0x4c] sm:$0xf]
  %v81 = vld [vmem:[%s1 + $0x50] sm:$0xf]
  %v82 = vld [vmem:[%s1 + $0x54] sm:$0xf]
  %v83 = vld [vmem:[%s1 + $0x58] sm:$0xf]
  %v84 = vld [vmem:[%s1 + $0x5c] sm:$0xf]
  %v85 = vld [vmem:[%s1 + $0x60] sm:$0xf]
  %v86 = vld [vmem:[%s1 + $0x64] sm:$0xf]
  %v87 = vld [vmem:[%s1 + $0x68] sm:$0xf]
  %v88 = vld [vmem:[%s1 + $0x6c] sm:$0xf]
  %v89 = vld [vmem:[%s1 + $0x70] sm:$0xf]
  %v90 = vld [vmem:[%s1 + $0x74] sm:$0xf]
  %v91 = vld [vmem:[%s1 + $0x78] sm:$0xf]
  %v92 = vld [vmem:[%s1 + $0x7c] sm:$0xf]
  %v115 = vunpack.c.l.b16 %v39
  %v116 = vunpack.c.h.b16 %v39
  %v117 = vunpack.c.l.b16 %v40
  %v118 = vunpack.c.h.b16 %v40
  %v119 = vunpack.c.l.b16 %v41
  %v120 = vunpack.c.h.b16 %v41
  %v121 = vunpack.c.l.b16 %v42
  %v122 = vunpack.c.h.b16 %v42
  %v123 = vunpack.c.l.b16 %v43
  %v124 = vunpack.c.h.b16 %v43
  %v125 = vunpack.c.l.b16 %v44
  %v126 = vunpack.c.h.b16 %v44
  %v127 = vunpack.c.l.b16 %v45
  %v128 = vunpack.c.h.b16 %v45
  %v129 = vunpack.c.l.b16 %v46
  %v130 = vunpack.c.h.b16 %v46
  %v131 = vunpack.c.l.b16 %v47
  %v132 = vunpack.c.h.b16 %v47
  %v133 = vunpack.c.l.b16 %v48
  %v134 = vunpack.c.h.b16 %v48
  %v135 = vunpack.c.l.b16 %v49
  %v136 = vunpack.c.h.b16 %v49
  %v137 = vunpack.c.l.b16 %v50
  %v138 = vunpack.c.h.b16 %v50
  %v139 = vunpack.c.l.b16 %v51
  %v140 = vunpack.c.h.b16 %v51
  %v141 = vunpack.c.l.b16 %v52
  %v142 = vunpack.c.h.b16 %v52
  %v143 = vunpack.c.l.b16 %v53
  %v144 = vunpack.c.h.b16 %v53
  %v145 = vunpack.c.l.b16 %v54
  %v146 = vunpack.c.h.b16 %v54
  %v147 = vunpack.c.l.b16 %v55
  %v148 = vunpack.c.h.b16 %v55
  %v149 = vunpack.c.l.b16 %v56
  %v150 = vunpack.c.h.b16 %v56
  %v151 = vunpack.c.l.b16 %v57
  %v152 = vunpack.c.h.b16 %v57
  %v153 = vunpack.c.l.b16 %v58
  %v154 = vunpack.c.h.b16 %v58
  %v155 = vunpack.c.l.b16 %v59
  %v156 = vunpack.c.h.b16 %v59
  %v157 = vunpack.c.l.b16 %v60
  %v158 = vunpack.c.h.b16 %v60
  %v159 = vpack.c.b16 %v117, %v115
  %v160 = vpack.c.b16 %v118, %v116
  %v161 = vpack.c.b16 %v121, %v119
  %v162 = vpack.c.b16 %v122, %v120
  %v163 = vpack.c.b16 %v125, %v123
  %v164 = vpack.c.b16 %v126, %v124
  %v165 = vpack.c.b16 %v129, %v127
  %v166 = vpack.c.b16 %v130, %v128
  %v167 = vpack.c.b16 %v133, %v131
  %v168 = vpack.c.b16 %v134, %v132
  %v169 = vpack.c.b16 %v137, %v135
  %v170 = vpack.c.b16 %v138, %v136
  %v171 = vpack.c.b16 %v141, %v139
  %v172 = vpack.c.b16 %v142, %v140
  %v173 = vpack.c.b16 %v145, %v143
  %v174 = vpack.c.b16 %v146, %v144
  %v175 = vpack.c.b16 %v149, %v147
  %v176 = vpack.c.b16 %v150, %v148
  %v177 = vpack.c.b16 %v153, %v151
  %v178 = vpack.c.b16 %v154, %v152
  %v179 = vpack.c.b16 %v157, %v155
  %v180 = vpack.c.b16 %v158, %v156
  %v235 = vunpack.c.l.b16 %v61
  %v236 = vunpack.c.l.b16 %v62
  %v237 = vunpack.c.l.b16 %v63
  %v238 = vunpack.c.l.b16 %v64
  %v239 = vunpack.c.l.b16 %v65
  %v240 = vunpack.c.l.b16 %v66
  %v241 = vunpack.c.l.b16 %v67
  %v242 = vunpack.c.l.b16 %v68
  %v243 = vunpack.c.l.b16 %v69
  %v244 = vunpack.c.l.b16 %v70
  %v245 = vunpack.c.l.b16 %v71
  %v246 = vunpack.c.l.b16 %v72
  %v247 = vunpack.c.l.b16 %v73
  %v248 = vunpack.c.l.b16 %v74
  %v249 = vunpack.c.l.b16 %v75
  %v250 = vunpack.c.l.b16 %v76
  %v251 = vunpack.c.l.b16 %v77
  %v252 = vunpack.c.l.b16 %v78
  %v253 = vunpack.c.l.b16 %v79
  %v254 = vunpack.c.l.b16 %v80
  %v255 = vunpack.c.l.b16 %v81
  %v256 = vunpack.c.l.b16 %v82
  %v257 = vunpack.c.l.b16 %v83
  %v258 = vunpack.c.l.b16 %v84
  %v259 = vunpack.c.l.b16 %v85
  %v260 = vunpack.c.l.b16 %v86
  %v261 = vunpack.c.l.b16 %v87
  %v262 = vunpack.c.l.b16 %v88
  %v263 = vunpack.c.l.b16 %v89
  %v264 = vunpack.c.l.b16 %v90
  %v265 = vunpack.c.l.b16 %v91
  %v266 = vunpack.c.l.b16 %v92
  %v267 = vpack.c.b16 %v236, %v235
  %v268 = vpack.c.b16 %v238, %v237
  %v269 = vpack.c.b16 %v240, %v239
  %v270 = vpack.c.b16 %v242, %v241
  %v271 = vpack.c.b16 %v244, %v243
  %v272 = vpack.c.b16 %v246, %v245
  %v273 = vpack.c.b16 %v248, %v247
  %v274 = vpack.c.b16 %v250, %v249
  %v275 = vpack.c.b16 %v252, %v251
  %v276 = vpack.c.b16 %v254, %v253
  %v277 = vpack.c.b16 %v256, %v255
  %v278 = vpack.c.b16 %v258, %v257
  %v279 = vpack.c.b16 %v260, %v259
  %v280 = vpack.c.b16 %v262, %v261
  %v281 = vpack.c.b16 %v264, %v263
  %v282 = vpack.c.b16 %v266, %v265
  %299 = vmatprep.subr.bf16.mxu0 0
  %300 = vmatpush1.bf16.msra.mxu0 %v274
  %301 = vmatprep.subr.bf16.mxu0 0
  %302 = vmatpush1.bf16.msra.mxu0 %v273
  %303 = vmatprep.subr.bf16.mxu0 0
  %304 = vmatpush1.bf16.msra.mxu0 %v272
  %305 = vmatprep.subr.bf16.mxu0 0
  %306 = vmatpush1.bf16.msra.mxu0 %v271
  %307 = vmatprep.subr.bf16.mxu0 0
  %308 = vmatpush1.bf16.msra.mxu0 %v270
  %309 = vmatprep.subr.bf16.mxu0 0
  %310 = vmatpush1.bf16.msra.mxu0 %v269
  %311 = vmatprep.subr.bf16.mxu0 0
  %312 = vmatpush1.bf16.msra.mxu0 %v268
  %313 = vmatprep.subr.bf16.mxu0 0
  %314 = vmatpush1.bf16.msra.mxu0 %v267
  %315 = vmatprep.subr.bf16.mxu0 0
  %316 = vmatpush2.bf16.msra.mxu0 %v282
  %317 = vmatprep.subr.bf16.mxu0 0
  %318 = vmatpush2.bf16.msra.mxu0 %v281
  %319 = vmatprep.subr.bf16.mxu0 0
  %320 = vmatpush2.bf16.msra.mxu0 %v280
  %321 = vmatprep.subr.bf16.mxu0 0
  %322 = vmatpush2.bf16.msra.mxu0 %v279
  %323 = vmatprep.subr.bf16.mxu0 0
  %324 = vmatpush2.bf16.msra.mxu0 %v278
  %325 = vmatprep.subr.bf16.mxu0 0
  %326 = vmatpush2.bf16.msra.mxu0 %v277
  %327 = vmatprep.subr.bf16.mxu0 0
  %328 = vmatpush2.bf16.msra.mxu0 %v276
  %329 = vmatprep.subr.bf16.mxu0 0
  %330 = vmatpush2.bf16.msra.mxu0 %v275
  %331 = vmatprep.mubr.bf16.mxu0 %v160
  %332 = vmatmul.mubr.bf16.gmra.mxu0 %v159
  %v333 = vpop.f32.mrf.mxu0
  %v334 = vadd.f32 0.0, %v333
  %v335 = vpop.f32.mrf.mxu0
  %v336 = vpop.f32.mrf.mxu0
  %v337 = vadd.f32 0.0, %v336
  %v338 = vpop.f32.mrf.mxu0
  %339 = vmatprep.mubr.bf16.mxu0 %v162
  %340 = vmatmul.mubr.bf16.gmra.mxu0 %v161
  %v341 = vpop.f32.mrf.mxu0
  %v342 = vadd.f32 0.0, %v341
  %v343 = vpop.f32.mrf.mxu0
  %v344 = vpop.f32.mrf.mxu0
  %v345 = vadd.f32 0.0, %v344
  %v346 = vpop.f32.mrf.mxu0
  %347 = vmatprep.mubr.bf16.mxu0 %v164
  %348 = vmatmul.mubr.bf16.gmra.mxu0 %v163
  %v349 = vpop.f32.mrf.mxu0
  %v350 = vadd.f32 0.0, %v349
  %v351 = vpop.f32.mrf.mxu0
  %v352 = vpop.f32.mrf.mxu0
  %v353 = vadd.f32 0.0, %v352
  %v354 = vpop.f32.mrf.mxu0
  %355 = vmatprep.mubr.bf16.mxu0 %v166
  %356 = vmatmul.mubr.bf16.gmra.mxu0 %v165
  %v357 = vpop.f32.mrf.mxu0
  %v358 = vadd.f32 0.0, %v357
  %v359 = vpop.f32.mrf.mxu0
  %v360 = vpop.f32.mrf.mxu0
  %v361 = vadd.f32 0.0, %v360
  %v362 = vpop.f32.mrf.mxu0
  %363 = vmatprep.mubr.bf16.mxu0 %v168
  %364 = vmatmul.mubr.bf16.gmra.mxu0 %v167
  %v365 = vpop.f32.mrf.mxu0
  %v366 = vadd.f32 0.0, %v365
  %v367 = vpop.f32.mrf.mxu0
  %v368 = vpop.f32.mrf.mxu0
  %v369 = vadd.f32 0.0, %v368
  %v370 = vpop.f32.mrf.mxu0
  %371 = vmatprep.mubr.bf16.mxu0 %v170
  %372 = vmatmul.mubr.bf16.gmra.mxu0 %v169
  %v373 = vpop.f32.mrf.mxu0
  %v374 = vadd.f32 0.0, %v373
  %v375 = vpop.f32.mrf.mxu0
  %v376 = vpop.f32.mrf.mxu0
  %v377 = vadd.f32 0.0, %v376
  %v378 = vpop.f32.mrf.mxu0
  %379 = vmatprep.mubr.bf16.mxu0 %v172
  %380 = vmatmul.mubr.bf16.gmra.mxu0 %v171
  %v381 = vpop.f32.mrf.mxu0
  %v382 = vadd.f32 0.0, %v381
  %v383 = vpop.f32.mrf.mxu0
  %v384 = vpop.f32.mrf.mxu0
  %v385 = vadd.f32 0.0, %v384
  %v386 = vpop.f32.mrf.mxu0
  %387 = vmatprep.mubr.bf16.mxu0 %v174
  %388 = vmatmul.mubr.bf16.gmra.mxu0 %v173
  %v389 = vpop.f32.mrf.mxu0
  %v390 = vadd.f32 0.0, %v389
  %v391 = vpop.f32.mrf.mxu0
  %v392 = vpop.f32.mrf.mxu0
  %v393 = vadd.f32 0.0, %v392
  %v394 = vpop.f32.mrf.mxu0
  %395 = vmatprep.mubr.bf16.mxu0 %v176
  %396 = vmatmul.mubr.bf16.gmra.mxu0 %v175
  %v397 = vpop.f32.mrf.mxu0
  %v398 = vadd.f32 0.0, %v397
  %v399 = vpop.f32.mrf.mxu0
  %v400 = vpop.f32.mrf.mxu0
  %v401 = vadd.f32 0.0, %v400
  %v402 = vpop.f32.mrf.mxu0
  %403 = vmatprep.mubr.bf16.mxu0 %v178
  %404 = vmatmul.mubr.bf16.gmra.mxu0 %v177
  %v405 = vpop.f32.mrf.mxu0
  %v406 = vadd.f32 0.0, %v405
  %v407 = vpop.f32.mrf.mxu0
  %v408 = vpop.f32.mrf.mxu0
  %v409 = vadd.f32 0.0, %v408
  %v410 = vpop.f32.mrf.mxu0
  %411 = vmatprep.mubr.bf16.mxu0 %v180
  %412 = vmatmul.mubr.bf16.gmra.mxu0 %v179
  %v413 = vpop.f32.mrf.mxu0
  %v414 = vadd.f32 0.0, %v413
  %v415 = vpop.f32.mrf.mxu0
  %v416 = vpop.f32.mrf.mxu0
  %v417 = vadd.f32 0.0, %v416
  %v418 = vpop.f32.mrf.mxu0
  %419 = vdwg.mxu0
  %v420 = vld [vmem:[%s6] sm:$0x1]
  %v421 = vld [vmem:[%s7] sm:$0x1]
  %v422 = vld [vmem:[%s3] sm:$0xff]
  %v423 = vld [vmem:[%s3 + $0x8] sm:$0xff]
  %v424 = vld [vmem:[%s3 + $0x10] sm:$0xff]
  %v425 = vld [vmem:[%s3 + $0x18] sm:$0xff]
  %v426 = vld [vmem:[%s3 + $0x20] sm:$0xff]
  %v427 = vld [vmem:[%s3 + $0x28] sm:$0xff]
  %v428 = vld [vmem:[%s3 + $0x30] sm:$0xff]
  %v429 = vld [vmem:[%s3 + $0x38] sm:$0xff]
  %v430 = vld [vmem:[%s3 + $0x40] sm:$0xff]
  %v431 = vld [vmem:[%s3 + $0x48] sm:$0xff]
  %v432 = vld [vmem:[%s3 + $0x50] sm:$0xff]
  %v433 = vld [vmem:[%s3 + $0x58] sm:$0xff]
  %v434 = vld [vmem:[%s3 + $0x60] sm:$0xff]
  %v435 = vld [vmem:[%s3 + $0x68] sm:$0xff]
  %v436 = vld [vmem:[%s3 + $0x70] sm:$0xff]
  %v437 = vld [vmem:[%s3 + $0x78] sm:$0xff]
  %v438 = vld [vmem:[%s3 + $0x80] sm:$0xff]
  %v439 = vld [vmem:[%s3 + $0x88] sm:$0xff]
  %v440 = vld [vmem:[%s3 + $0x90] sm:$0xff]
  %v441 = vld [vmem:[%s3 + $0x98] sm:$0xff]
  %v442 = vld [vmem:[%s3 + $0xa0] sm:$0xff]
  %v443 = vld [vmem:[%s3 + $0xa8] sm:$0xff]
  %v445 = vlaneseq
  %v446 = vshrl.u32 %v445, 7
  %v447 = vsub.s32 0, %v446
  %v448 = vrot.slane %v420, %v447
  %451 = vset.pattern.permute.xlu0 0
  %452 = vperm.xlu0 %451, %v422
  %v453 = vpop.permute.xlu0 %452
  %456 = vset.pattern.permute.xlu0 0
  %457 = vperm.xlu0 %456, %v423
  %v458 = vpop.permute.xlu0 %457
  %461 = vset.pattern.permute.xlu0 0
  %462 = vperm.xlu0 %461, %v424
  %v463 = vpop.permute.xlu0 %462
  %466 = vset.pattern.permute.xlu0 0
  %467 = vperm.xlu0 %466, %v425
  %v468 = vpop.permute.xlu0 %467
  %471 = vset.pattern.permute.xlu0 0
  %472 = vperm.xlu0 %471, %v426
  %v473 = vpop.permute.xlu0 %472
  %476 = vset.pattern.permute.xlu0 0
  %477 = vperm.xlu0 %476, %v427
  %v478 = vpop.permute.xlu0 %477
  %481 = vset.pattern.permute.xlu0 0
  %482 = vperm.xlu0 %481, %v428
  %v483 = vpop.permute.xlu0 %482
  %486 = vset.pattern.permute.xlu0 0
  %487 = vperm.xlu0 %486, %v429
  %v488 = vpop.permute.xlu0 %487
  %491 = vset.pattern.permute.xlu0 0
  %492 = vperm.xlu0 %491, %v430
  %v493 = vpop.permute.xlu0 %492
  %496 = vset.pattern.permute.xlu0 0
  %497 = vperm.xlu0 %496, %v431
  %v498 = vpop.permute.xlu0 %497
  %501 = vset.pattern.permute.xlu0 0
  %502 = vperm.xlu0 %501, %v432
  %v503 = vpop.permute.xlu0 %502
  %506 = vset.pattern.permute.xlu0 0
  %507 = vperm.xlu0 %506, %v433
  %v508 = vpop.permute.xlu0 %507
  %511 = vset.pattern.permute.xlu0 0
  %512 = vperm.xlu0 %511, %v434
  %v513 = vpop.permute.xlu0 %512
  %516 = vset.pattern.permute.xlu0 0
  %517 = vperm.xlu0 %516, %v435
  %v518 = vpop.permute.xlu0 %517
  %521 = vset.pattern.permute.xlu0 0
  %522 = vperm.xlu0 %521, %v436
  %v523 = vpop.permute.xlu0 %522
  %526 = vset.pattern.permute.xlu0 0
  %527 = vperm.xlu0 %526, %v437
  %v528 = vpop.permute.xlu0 %527
  %531 = vset.pattern.permute.xlu0 0
  %532 = vperm.xlu0 %531, %v438
  %v533 = vpop.permute.xlu0 %532
  %536 = vset.pattern.permute.xlu0 0
  %537 = vperm.xlu0 %536, %v439
  %v538 = vpop.permute.xlu0 %537
  %541 = vset.pattern.permute.xlu0 0
  %542 = vperm.xlu0 %541, %v440
  %v543 = vpop.permute.xlu0 %542
  %546 = vset.pattern.permute.xlu0 0
  %547 = vperm.xlu0 %546, %v441
  %v548 = vpop.permute.xlu0 %547
  %551 = vset.pattern.permute.xlu0 0
  %552 = vperm.xlu0 %551, %v442
  %v553 = vpop.permute.xlu0 %552
  %556 = vset.pattern.permute.xlu0 0
  %557 = vperm.xlu0 %556, %v443
  %v558 = vpop.permute.xlu0 %557
  %v560 = vmul.f32 %v448, %v453
  %v561 = vmul.f32 %v448, %v458
  %v562 = vmul.f32 %v448, %v463
  %v563 = vmul.f32 %v448, %v468
  %v564 = vmul.f32 %v448, %v473
  %v565 = vmul.f32 %v448, %v478
  %v566 = vmul.f32 %v448, %v483
  %v567 = vmul.f32 %v448, %v488
  %v568 = vmul.f32 %v448, %v493
  %v569 = vmul.f32 %v448, %v498
  %v570 = vmul.f32 %v448, %v503
  %v571 = vmul.f32 %v448, %v508
  %v572 = vmul.f32 %v448, %v513
  %v573 = vmul.f32 %v448, %v518
  %v574 = vmul.f32 %v448, %v523
  %v575 = vmul.f32 %v448, %v528
  %v576 = vmul.f32 %v448, %v533
  %v577 = vmul.f32 %v448, %v538
  %v578 = vmul.f32 %v448, %v543
  %v579 = vmul.f32 %v448, %v548
  %v580 = vmul.f32 %v448, %v553
  %v581 = vmul.f32 %v448, %v558
  %v582 = vsub.f32 1.0, %v420
  %v583 = vld [vmem:[%s2] sm:$0xff]
  %v584 = vld [vmem:[%s2 + $0x8] sm:$0xff]
  %v585 = vld [vmem:[%s2 + $0x10] sm:$0xff]
  %v586 = vld [vmem:[%s2 + $0x18] sm:$0xff]
  %v587 = vld [vmem:[%s2 + $0x20] sm:$0xff]
  %v588 = vld [vmem:[%s2 + $0x28] sm:$0xff]
  %v589 = vld [vmem:[%s2 + $0x30] sm:$0xff]
  %v590 = vld [vmem:[%s2 + $0x38] sm:$0xff]
  %v591 = vld [vmem:[%s2 + $0x40] sm:$0xff]
  %v592 = vld [vmem:[%s2 + $0x48] sm:$0xff]
  %v593 = vld [vmem:[%s2 + $0x50] sm:$0xff]
  %v594 = vld [vmem:[%s2 + $0x58] sm:$0xff]
  %v595 = vld [vmem:[%s2 + $0x60] sm:$0xff]
  %v596 = vld [vmem:[%s2 + $0x68] sm:$0xff]
  %v597 = vld [vmem:[%s2 + $0x70] sm:$0xff]
  %v598 = vld [vmem:[%s2 + $0x78] sm:$0xff]
  %v599 = vld [vmem:[%s2 + $0x80] sm:$0xff]
  %v600 = vld [vmem:[%s2 + $0x88] sm:$0xff]
  %v601 = vld [vmem:[%s2 + $0x90] sm:$0xff]
  %v602 = vld [vmem:[%s2 + $0x98] sm:$0xff]
  %v603 = vld [vmem:[%s2 + $0xa0] sm:$0xff]
  %v604 = vld [vmem:[%s2 + $0xa8] sm:$0xff]
  %v606 = vlaneseq
  %v607 = vshrl.u32 %v606, 7
  %v608 = vsub.s32 0, %v607
  %v609 = vrot.slane %v582, %v608
  %612 = vset.pattern.permute.xlu0 0
  %613 = vperm.xlu0 %612, %v583
  %v614 = vpop.permute.xlu0 %613
  %617 = vset.pattern.permute.xlu0 0
  %618 = vperm.xlu0 %617, %v584
  %v619 = vpop.permute.xlu0 %618
  %622 = vset.pattern.permute.xlu0 0
  %623 = vperm.xlu0 %622, %v585
  %v624 = vpop.permute.xlu0 %623
  %627 = vset.pattern.permute.xlu0 0
  %628 = vperm.xlu0 %627, %v586
  %v629 = vpop.permute.xlu0 %628
  %632 = vset.pattern.permute.xlu0 0
  %633 = vperm.xlu0 %632, %v587
  %v634 = vpop.permute.xlu0 %633
  %637 = vset.pattern.permute.xlu0 0
  %638 = vperm.xlu0 %637, %v588
  %v639 = vpop.permute.xlu0 %638
  %642 = vset.pattern.permute.xlu0 0
  %643 = vperm.xlu0 %642, %v589
  %v644 = vpop.permute.xlu0 %643
  %647 = vset.pattern.permute.xlu0 0
  %648 = vperm.xlu0 %647, %v590
  %v649 = vpop.permute.xlu0 %648
  %652 = vset.pattern.permute.xlu0 0
  %653 = vperm.xlu0 %652, %v591
  %v654 = vpop.permute.xlu0 %653
  %657 = vset.pattern.permute.xlu0 0
  %658 = vperm.xlu0 %657, %v592
  %v659 = vpop.permute.xlu0 %658
  %662 = vset.pattern.permute.xlu0 0
  %663 = vperm.xlu0 %662, %v593
  %v664 = vpop.permute.xlu0 %663
  %667 = vset.pattern.permute.xlu0 0
  %668 = vperm.xlu0 %667, %v594
  %v669 = vpop.permute.xlu0 %668
  %672 = vset.pattern.permute.xlu0 0
  %673 = vperm.xlu0 %672, %v595
  %v674 = vpop.permute.xlu0 %673
  %677 = vset.pattern.permute.xlu0 0
  %678 = vperm.xlu0 %677, %v596
  %v679 = vpop.permute.xlu0 %678
  %682 = vset.pattern.permute.xlu0 0
  %683 = vperm.xlu0 %682, %v597
  %v684 = vpop.permute.xlu0 %683
  %687 = vset.pattern.permute.xlu0 0
  %688 = vperm.xlu0 %687, %v598
  %v689 = vpop.permute.xlu0 %688
  %692 = vset.pattern.permute.xlu0 0
  %693 = vperm.xlu0 %692, %v599
  %v694 = vpop.permute.xlu0 %693
  %697 = vset.pattern.permute.xlu0 0
  %698 = vperm.xlu0 %697, %v600
  %v699 = vpop.permute.xlu0 %698
  %702 = vset.pattern.permute.xlu0 0
  %703 = vperm.xlu0 %702, %v601
  %v704 = vpop.permute.xlu0 %703
  %707 = vset.pattern.permute.xlu0 0
  %708 = vperm.xlu0 %707, %v602
  %v709 = vpop.permute.xlu0 %708
  %712 = vset.pattern.permute.xlu0 0
  %713 = vperm.xlu0 %712, %v603
  %v714 = vpop.permute.xlu0 %713
  %717 = vset.pattern.permute.xlu0 0
  %718 = vperm.xlu0 %717, %v604
  %v719 = vpop.permute.xlu0 %718
  %v721 = vmul.f32 %v609, %v614
  %v722 = vmul.f32 %v609, %v619
  %v723 = vmul.f32 %v609, %v624
  %v724 = vmul.f32 %v609, %v629
  %v725 = vmul.f32 %v609, %v634
  %v726 = vmul.f32 %v609, %v639
  %v727 = vmul.f32 %v609, %v644
  %v728 = vmul.f32 %v609, %v649
  %v729 = vmul.f32 %v609, %v654
  %v730 = vmul.f32 %v609, %v659
  %v731 = vmul.f32 %v609, %v664
  %v732 = vmul.f32 %v609, %v669
  %v733 = vmul.f32 %v609, %v674
  %v734 = vmul.f32 %v609, %v679
  %v735 = vmul.f32 %v609, %v684
  %v736 = vmul.f32 %v609, %v689
  %v737 = vmul.f32 %v609, %v694
  %v738 = vmul.f32 %v609, %v699
  %v739 = vmul.f32 %v609, %v704
  %v740 = vmul.f32 %v609, %v709
  %v741 = vmul.f32 %v609, %v714
  %v742 = vmul.f32 %v609, %v719
  %v743 = vadd.f32 %v560, %v721
  %v744 = vadd.f32 %v561, %v722
  %v745 = vadd.f32 %v562, %v723
  %v746 = vadd.f32 %v563, %v724
  %v747 = vadd.f32 %v564, %v725
  %v748 = vadd.f32 %v565, %v726
  %v749 = vadd.f32 %v566, %v727
  %v750 = vadd.f32 %v567, %v728
  %v751 = vadd.f32 %v568, %v729
  %v752 = vadd.f32 %v569, %v730
  %v753 = vadd.f32 %v570, %v731
  %v754 = vadd.f32 %v571, %v732
  %v755 = vadd.f32 %v572, %v733
  %v756 = vadd.f32 %v573, %v734
  %v757 = vadd.f32 %v574, %v735
  %v758 = vadd.f32 %v575, %v736
  %v759 = vadd.f32 %v576, %v737
  %v760 = vadd.f32 %v577, %v738
  %v761 = vadd.f32 %v578, %v739
  %v762 = vadd.f32 %v579, %v740
  %v763 = vadd.f32 %v580, %v741
  %v764 = vadd.f32 %v581, %v742
  %v765 = vld [vmem:[%s5] sm:$0xff]
  %v766 = vld [vmem:[%s5 + $0x8] sm:$0xff]
  %v767 = vld [vmem:[%s5 + $0x10] sm:$0xff]
  %v768 = vld [vmem:[%s5 + $0x18] sm:$0xff]
  %v769 = vld [vmem:[%s5 + $0x20] sm:$0xff]
  %v770 = vld [vmem:[%s5 + $0x28] sm:$0xff]
  %v771 = vld [vmem:[%s5 + $0x30] sm:$0xff]
  %v772 = vld [vmem:[%s5 + $0x38] sm:$0xff]
  %v773 = vld [vmem:[%s5 + $0x40] sm:$0xff]
  %v774 = vld [vmem:[%s5 + $0x48] sm:$0xff]
  %v775 = vld [vmem:[%s5 + $0x50] sm:$0xff]
  %v776 = vld [vmem:[%s5 + $0x58] sm:$0xff]
  %v777 = vld [vmem:[%s5 + $0x60] sm:$0xff]
  %v778 = vld [vmem:[%s5 + $0x68] sm:$0xff]
  %v779 = vld [vmem:[%s5 + $0x70] sm:$0xff]
  %v780 = vld [vmem:[%s5 + $0x78] sm:$0xff]
  %v781 = vld [vmem:[%s5 + $0x80] sm:$0xff]
  %v782 = vld [vmem:[%s5 + $0x88] sm:$0xff]
  %v783 = vld [vmem:[%s5 + $0x90] sm:$0xff]
  %v784 = vld [vmem:[%s5 + $0x98] sm:$0xff]
  %v785 = vld [vmem:[%s5 + $0xa0] sm:$0xff]
  %v786 = vld [vmem:[%s5 + $0xa8] sm:$0xff]
  %v788 = vlaneseq
  %v789 = vshrl.u32 %v788, 7
  %v790 = vsub.s32 0, %v789
  %v791 = vrot.slane %v421, %v790
  %794 = vset.pattern.permute.xlu0 0
  %795 = vperm.xlu0 %794, %v765
  %v796 = vpop.permute.xlu0 %795
  %799 = vset.pattern.permute.xlu0 0
  %800 = vperm.xlu0 %799, %v766
  %v801 = vpop.permute.xlu0 %800
  %804 = vset.pattern.permute.xlu0 0
  %805 = vperm.xlu0 %804, %v767
  %v806 = vpop.permute.xlu0 %805
  %809 = vset.pattern.permute.xlu0 0
  %810 = vperm.xlu0 %809, %v768
  %v811 = vpop.permute.xlu0 %810
  %814 = vset.pattern.permute.xlu0 0
  %815 = vperm.xlu0 %814, %v769
  %v816 = vpop.permute.xlu0 %815
  %819 = vset.pattern.permute.xlu0 0
  %820 = vperm.xlu0 %819, %v770
  %v821 = vpop.permute.xlu0 %820
  %824 = vset.pattern.permute.xlu0 0
  %825 = vperm.xlu0 %824, %v771
  %v826 = vpop.permute.xlu0 %825
  %829 = vset.pattern.permute.xlu0 0
  %830 = vperm.xlu0 %829, %v772
  %v831 = vpop.permute.xlu0 %830
  %834 = vset.pattern.permute.xlu0 0
  %835 = vperm.xlu0 %834, %v773
  %v836 = vpop.permute.xlu0 %835
  %839 = vset.pattern.permute.xlu0 0
  %840 = vperm.xlu0 %839, %v774
  %v841 = vpop.permute.xlu0 %840
  %844 = vset.pattern.permute.xlu0 0
  %845 = vperm.xlu0 %844, %v775
  %v846 = vpop.permute.xlu0 %845
  %849 = vset.pattern.permute.xlu0 0
  %850 = vperm.xlu0 %849, %v776
  %v851 = vpop.permute.xlu0 %850
  %854 = vset.pattern.permute.xlu0 0
  %855 = vperm.xlu0 %854, %v777
  %v856 = vpop.permute.xlu0 %855
  %859 = vset.pattern.permute.xlu0 0
  %860 = vperm.xlu0 %859, %v778
  %v861 = vpop.permute.xlu0 %860
  %864 = vset.pattern.permute.xlu0 0
  %865 = vperm.xlu0 %864, %v779
  %v866 = vpop.permute.xlu0 %865
  %869 = vset.pattern.permute.xlu0 0
  %870 = vperm.xlu0 %869, %v780
  %v871 = vpop.permute.xlu0 %870
  %874 = vset.pattern.permute.xlu0 0
  %875 = vperm.xlu0 %874, %v781
  %v876 = vpop.permute.xlu0 %875
  %879 = vset.pattern.permute.xlu0 0
  %880 = vperm.xlu0 %879, %v782
  %v881 = vpop.permute.xlu0 %880
  %884 = vset.pattern.permute.xlu0 0
  %885 = vperm.xlu0 %884, %v783
  %v886 = vpop.permute.xlu0 %885
  %889 = vset.pattern.permute.xlu0 0
  %890 = vperm.xlu0 %889, %v784
  %v891 = vpop.permute.xlu0 %890
  %894 = vset.pattern.permute.xlu0 0
  %895 = vperm.xlu0 %894, %v785
  %v896 = vpop.permute.xlu0 %895
  %899 = vset.pattern.permute.xlu0 0
  %900 = vperm.xlu0 %899, %v786
  %v901 = vpop.permute.xlu0 %900
  %v903 = vmul.f32 %v791, %v796
  %v904 = vmul.f32 %v791, %v801
  %v905 = vmul.f32 %v791, %v806
  %v906 = vmul.f32 %v791, %v811
  %v907 = vmul.f32 %v791, %v816
  %v908 = vmul.f32 %v791, %v821
  %v909 = vmul.f32 %v791, %v826
  %v910 = vmul.f32 %v791, %v831
  %v911 = vmul.f32 %v791, %v836
  %v912 = vmul.f32 %v791, %v841
  %v913 = vmul.f32 %v791, %v846
  %v914 = vmul.f32 %v791, %v851
  %v915 = vmul.f32 %v791, %v856
  %v916 = vmul.f32 %v791, %v861
  %v917 = vmul.f32 %v791, %v866
  %v918 = vmul.f32 %v791, %v871
  %v919 = vmul.f32 %v791, %v876
  %v920 = vmul.f32 %v791, %v881
  %v921 = vmul.f32 %v791, %v886
  %v922 = vmul.f32 %v791, %v891
  %v923 = vmul.f32 %v791, %v896
  %v924 = vmul.f32 %v791, %v901
  %v925 = vsub.f32 1.0, %v421
  %v926 = vld [vmem:[%s4] sm:$0xff]
  %v927 = vld [vmem:[%s4 + $0x8] sm:$0xff]
  %v928 = vld [vmem:[%s4 + $0x10] sm:$0xff]
  %v929 = vld [vmem:[%s4 + $0x18] sm:$0xff]
  %v930 = vld [vmem:[%s4 + $0x20] sm:$0xff]
  %v931 = vld [vmem:[%s4 + $0x28] sm:$0xff]
  %v932 = vld [vmem:[%s4 + $0x30] sm:$0xff]
  %v933 = vld [vmem:[%s4 + $0x38] sm:$0xff]
  %v934 = vld [vmem:[%s4 + $0x40] sm:$0xff]
  %v935 = vld [vmem:[%s4 + $0x48] sm:$0xff]
  %v936 = vld [vmem:[%s4 + $0x50] sm:$0xff]
  %v937 = vld [vmem:[%s4 + $0x58] sm:$0xff]
  %v938 = vld [vmem:[%s4 + $0x60] sm:$0xff]
  %v939 = vld [vmem:[%s4 + $0x68] sm:$0xff]
  %v940 = vld [vmem:[%s4 + $0x70] sm:$0xff]
  %v941 = vld [vmem:[%s4 + $0x78] sm:$0xff]
  %v942 = vld [vmem:[%s4 + $0x80] sm:$0xff]
  %v943 = vld [vmem:[%s4 + $0x88] sm:$0xff]
  %v944 = vld [vmem:[%s4 + $0x90] sm:$0xff]
  %v945 = vld [vmem:[%s4 + $0x98] sm:$0xff]
  %v946 = vld [vmem:[%s4 + $0xa0] sm:$0xff]
  %v947 = vld [vmem:[%s4 + $0xa8] sm:$0xff]
  %v949 = vlaneseq
  %v950 = vshrl.u32 %v949, 7
  %v951 = vsub.s32 0, %v950
  %v952 = vrot.slane %v925, %v951
  %955 = vset.pattern.permute.xlu0 0
  %956 = vperm.xlu0 %955, %v926
  %v957 = vpop.permute.xlu0 %956
  %960 = vset.pattern.permute.xlu0 0
  %961 = vperm.xlu0 %960, %v927
  %v962 = vpop.permute.xlu0 %961
  %965 = vset.pattern.permute.xlu0 0
  %966 = vperm.xlu0 %965, %v928
  %v967 = vpop.permute.xlu0 %966
  %970 = vset.pattern.permute.xlu0 0
  %971 = vperm.xlu0 %970, %v929
  %v972 = vpop.permute.xlu0 %971
  %975 = vset.pattern.permute.xlu0 0
  %976 = vperm.xlu0 %975, %v930
  %v977 = vpop.permute.xlu0 %976
  %980 = vset.pattern.permute.xlu0 0
  %981 = vperm.xlu0 %980, %v931
  %v982 = vpop.permute.xlu0 %981
  %985 = vset.pattern.permute.xlu0 0
  %986 = vperm.xlu0 %985, %v932
  %v987 = vpop.permute.xlu0 %986
  %990 = vset.pattern.permute.xlu0 0
  %991 = vperm.xlu0 %990, %v933
  %v992 = vpop.permute.xlu0 %991
  %995 = vset.pattern.permute.xlu0 0
  %996 = vperm.xlu0 %995, %v934
  %v997 = vpop.permute.xlu0 %996
  %1000 = vset.pattern.permute.xlu0 0
  %1001 = vperm.xlu0 %1000, %v935
  %v1002 = vpop.permute.xlu0 %1001
  %1005 = vset.pattern.permute.xlu0 0
  %1006 = vperm.xlu0 %1005, %v936
  %v1007 = vpop.permute.xlu0 %1006
  %1010 = vset.pattern.permute.xlu0 0
  %1011 = vperm.xlu0 %1010, %v937
  %v1012 = vpop.permute.xlu0 %1011
  %1015 = vset.pattern.permute.xlu0 0
  %1016 = vperm.xlu0 %1015, %v938
  %v1017 = vpop.permute.xlu0 %1016
  %1020 = vset.pattern.permute.xlu0 0
  %1021 = vperm.xlu0 %1020, %v939
  %v1022 = vpop.permute.xlu0 %1021
  %1025 = vset.pattern.permute.xlu0 0
  %1026 = vperm.xlu0 %1025, %v940
  %v1027 = vpop.permute.xlu0 %1026
  %1030 = vset.pattern.permute.xlu0 0
  %1031 = vperm.xlu0 %1030, %v941
  %v1032 = vpop.permute.xlu0 %1031
  %1035 = vset.pattern.permute.xlu0 0
  %1036 = vperm.xlu0 %1035, %v942
  %v1037 = vpop.permute.xlu0 %1036
  %1040 = vset.pattern.permute.xlu0 0
  %1041 = vperm.xlu0 %1040, %v943
  %v1042 = vpop.permute.xlu0 %1041
  %1045 = vset.pattern.permute.xlu0 0
  %1046 = vperm.xlu0 %1045, %v944
  %v1047 = vpop.permute.xlu0 %1046
  %1050 = vset.pattern.permute.xlu0 0
  %1051 = vperm.xlu0 %1050, %v945
  %v1052 = vpop.permute.xlu0 %1051
  %1055 = vset.pattern.permute.xlu0 0
  %1056 = vperm.xlu0 %1055, %v946
  %v1057 = vpop.permute.xlu0 %1056
  %1060 = vset.pattern.permute.xlu0 0
  %1061 = vperm.xlu0 %1060, %v947
  %v1062 = vpop.permute.xlu0 %1061
  %v1064 = vmul.f32 %v952, %v957
  %v1065 = vmul.f32 %v952, %v962
  %v1066 = vmul.f32 %v952, %v967
  %v1067 = vmul.f32 %v952, %v972
  %v1068 = vmul.f32 %v952, %v977
  %v1069 = vmul.f32 %v952, %v982
  %v1070 = vmul.f32 %v952, %v987
  %v1071 = vmul.f32 %v952, %v992
  %v1072 = vmul.f32 %v952, %v997
  %v1073 = vmul.f32 %v952, %v1002
  %v1074 = vmul.f32 %v952, %v1007
  %v1075 = vmul.f32 %v952, %v1012
  %v1076 = vmul.f32 %v952, %v1017
  %v1077 = vmul.f32 %v952, %v1022
  %v1078 = vmul.f32 %v952, %v1027
  %v1079 = vmul.f32 %v952, %v1032
  %v1080 = vmul.f32 %v952, %v1037
  %v1081 = vmul.f32 %v952, %v1042
  %v1082 = vmul.f32 %v952, %v1047
  %v1083 = vmul.f32 %v952, %v1052
  %v1084 = vmul.f32 %v952, %v1057
  %v1085 = vmul.f32 %v952, %v1062
  %v1086 = vadd.f32 %v903, %v1064
  %v1087 = vadd.f32 %v904, %v1065
  %v1088 = vadd.f32 %v905, %v1066
  %v1089 = vadd.f32 %v906, %v1067
  %v1090 = vadd.f32 %v907, %v1068
  %v1091 = vadd.f32 %v908, %v1069
  %v1092 = vadd.f32 %v909, %v1070
  %v1093 = vadd.f32 %v910, %v1071
  %v1094 = vadd.f32 %v911, %v1072
  %v1095 = vadd.f32 %v912, %v1073
  %v1096 = vadd.f32 %v913, %v1074
  %v1097 = vadd.f32 %v914, %v1075
  %v1098 = vadd.f32 %v915, %v1076
  %v1099 = vadd.f32 %v916, %v1077
  %v1100 = vadd.f32 %v917, %v1078
  %v1101 = vadd.f32 %v918, %v1079
  %v1102 = vadd.f32 %v919, %v1080
  %v1103 = vadd.f32 %v920, %v1081
  %v1104 = vadd.f32 %v921, %v1082
  %v1105 = vadd.f32 %v922, %v1083
  %v1106 = vadd.f32 %v923, %v1084
  %v1107 = vadd.f32 %v924, %v1085
  %v1108 = vmul.f32 %v743, %v1086
  %v1109 = vmul.f32 %v744, %v1087
  %v1110 = vmul.f32 %v745, %v1088
  %v1111 = vmul.f32 %v746, %v1089
  %v1112 = vmul.f32 %v747, %v1090
  %v1113 = vmul.f32 %v748, %v1091
  %v1114 = vmul.f32 %v749, %v1092
  %v1115 = vmul.f32 %v750, %v1093
  %v1116 = vmul.f32 %v751, %v1094
  %v1117 = vmul.f32 %v752, %v1095
  %v1118 = vmul.f32 %v753, %v1096
  %v1119 = vmul.f32 %v754, %v1097
  %v1120 = vmul.f32 %v755, %v1098
  %v1121 = vmul.f32 %v756, %v1099
  %v1122 = vmul.f32 %v757, %v1100
  %v1123 = vmul.f32 %v758, %v1101
  %v1124 = vmul.f32 %v759, %v1102
  %v1125 = vmul.f32 %v760, %v1103
  %v1126 = vmul.f32 %v761, %v1104
  %v1127 = vmul.f32 %v762, %v1105
  %v1128 = vmul.f32 %v763, %v1106
  %v1129 = vmul.f32 %v764, %v1107
  %v1130 = vmul.f32 %v334, %v1108
  %v1131 = vmul.f32 %v337, %v1109
  %v1132 = vmul.f32 %v342, %v1110
  %v1133 = vmul.f32 %v345, %v1111
  %v1134 = vmul.f32 %v350, %v1112
  %v1135 = vmul.f32 %v353, %v1113
  %v1136 = vmul.f32 %v358, %v1114
  %v1137 = vmul.f32 %v361, %v1115
  %v1138 = vmul.f32 %v366, %v1116
  %v1139 = vmul.f32 %v369, %v1117
  %v1140 = vmul.f32 %v374, %v1118
  %v1141 = vmul.f32 %v377, %v1119
  %v1142 = vmul.f32 %v382, %v1120
  %v1143 = vmul.f32 %v385, %v1121
  %v1144 = vmul.f32 %v390, %v1122
  %v1145 = vmul.f32 %v393, %v1123
  %v1146 = vmul.f32 %v398, %v1124
  %v1147 = vmul.f32 %v401, %v1125
  %v1148 = vmul.f32 %v406, %v1126
  %v1149 = vmul.f32 %v409, %v1127
  %v1150 = vmul.f32 %v414, %v1128
  %v1151 = vmul.f32 %v417, %v1129
  %v1152 = vld [vmem:[%s8] sm:$0xff]
  %v1153 = vld [vmem:[%s8 + $0x8] sm:$0xff]
  %v1154 = vld [vmem:[%s8 + $0x10] sm:$0xff]
  %v1155 = vld [vmem:[%s8 + $0x18] sm:$0xff]
  %v1156 = vld [vmem:[%s8 + $0x20] sm:$0xff]
  %v1157 = vld [vmem:[%s8 + $0x28] sm:$0xff]
  %v1158 = vld [vmem:[%s8 + $0x30] sm:$0xff]
  %v1159 = vld [vmem:[%s8 + $0x38] sm:$0xff]
  %v1160 = vld [vmem:[%s8 + $0x40] sm:$0xff]
  %v1161 = vld [vmem:[%s8 + $0x48] sm:$0xff]
  %v1162 = vld [vmem:[%s8 + $0x50] sm:$0xff]
  %v1163 = vld [vmem:[%s8 + $0x58] sm:$0xff]
  %v1164 = vld [vmem:[%s8 + $0x60] sm:$0xff]
  %v1165 = vld [vmem:[%s8 + $0x68] sm:$0xff]
  %v1166 = vld [vmem:[%s8 + $0x70] sm:$0xff]
  %v1167 = vld [vmem:[%s8 + $0x78] sm:$0xff]
  %1168 = vmatprep.subr.mxu0 0.0
  %1169 = vmatpush1.msra.mxu0 %v1167
  %1170 = vmatprep.subr.mxu0 0.0
  %1171 = vmatpush1.msra.mxu0 %v1166
  %1172 = vmatprep.subr.mxu0 0.0
  %1173 = vmatpush1.msra.mxu0 %v1165
  %1174 = vmatprep.subr.mxu0 0.0
  %1175 = vmatpush1.msra.mxu0 %v1164
  %1176 = vmatprep.subr.mxu0 0.0
  %1177 = vmatpush1.msra.mxu0 %v1163
  %1178 = vmatprep.subr.mxu0 0.0
  %1179 = vmatpush1.msra.mxu0 %v1162
  %1180 = vmatprep.subr.mxu0 0.0
  %1181 = vmatpush1.msra.mxu0 %v1161
  %1182 = vmatprep.subr.mxu0 0.0
  %1183 = vmatpush1.msra.mxu0 %v1160
  %1184 = vmatprep.subr.mxu0 0.0
  %1185 = vmatpush1.msra.mxu0 %v1159
  %1186 = vmatprep.subr.mxu0 0.0
  %1187 = vmatpush1.msra.mxu0 %v1158
  %1188 = vmatprep.subr.mxu0 0.0
  %1189 = vmatpush1.msra.mxu0 %v1157
  %1190 = vmatprep.subr.mxu0 0.0
  %1191 = vmatpush1.msra.mxu0 %v1156
  %1192 = vmatprep.subr.mxu0 0.0
  %1193 = vmatpush1.msra.mxu0 %v1155
  %1194 = vmatprep.subr.mxu0 0.0
  %1195 = vmatpush1.msra.mxu0 %v1154
  %1196 = vmatprep.subr.mxu0 0.0
  %1197 = vmatpush1.msra.mxu0 %v1153
  %1198 = vmatprep.subr.mxu0 0.0
  %1199 = vmatpush1.msra.mxu0 %v1152
  %1200 = vmatprep.subr.mxu0 0.0
  %1201 = vmatpush2.msra.mxu0 0.0
  %1202 = vmatprep.subr.mxu0 0.0
  %1203 = vmatpush2.msra.mxu0 0.0
  %1204 = vmatprep.subr.mxu0 0.0
  %1205 = vmatpush2.msra.mxu0 0.0
  %1206 = vmatprep.subr.mxu0 0.0
  %1207 = vmatpush2.msra.mxu0 0.0
  %1208 = vmatprep.subr.mxu0 0.0
  %1209 = vmatpush2.msra.mxu0 0.0
  %1210 = vmatprep.subr.mxu0 0.0
  %1211 = vmatpush2.msra.mxu0 0.0
  %1212 = vmatprep.subr.mxu0 0.0
  %1213 = vmatpush2.msra.mxu0 0.0
  %1214 = vmatprep.subr.mxu0 0.0
  %1215 = vmatpush2.msra.mxu0 0.0
  %1216 = vmatprep.subr.mxu0 0.0
  %1217 = vmatpush2.msra.mxu0 0.0
  %1218 = vmatprep.subr.mxu0 0.0
  %1219 = vmatpush2.msra.mxu0 0.0
  %1220 = vmatprep.subr.mxu0 0.0
  %1221 = vmatpush2.msra.mxu0 0.0
  %1222 = vmatprep.subr.mxu0 0.0
  %1223 = vmatpush2.msra.mxu0 0.0
  %1224 = vmatprep.subr.mxu0 0.0
  %1225 = vmatpush2.msra.mxu0 0.0
  %1226 = vmatprep.subr.mxu0 0.0
  %1227 = vmatpush2.msra.mxu0 0.0
  %1228 = vmatprep.subr.mxu0 0.0
  %1229 = vmatpush2.msra.mxu0 0.0
  %1230 = vmatprep.subr.mxu0 0.0
  %1231 = vmatpush2.msra.mxu0 0.0
  %1232 = vmatprep.mubr.f32.mxu0 0.0
  %1233 = vmatmul.mubr.f32.gmra.mxu0 %v1130
  %v1234 = vpop.f32.mrf.mxu0
  %v1235 = vadd.f32 0.0, %v1234
  %v1236 = vpop.f32.mrf.mxu0
  %1237 = vmatprep.mubr.f32.mxu0 0.0
  %1238 = vmatmul.mubr.f32.gmra.mxu0 %v1131
  %v1239 = vpop.f32.mrf.mxu0
  %v1240 = vadd.f32 0.0, %v1239
  %v1241 = vpop.f32.mrf.mxu0
  %1242 = vmatprep.mubr.f32.mxu0 0.0
  %1243 = vmatmul.mubr.f32.gmra.mxu0 %v1132
  %v1244 = vpop.f32.mrf.mxu0
  %v1245 = vadd.f32 0.0, %v1244
  %v1246 = vpop.f32.mrf.mxu0
  %1247 = vmatprep.mubr.f32.mxu0 0.0
  %1248 = vmatmul.mubr.f32.gmra.mxu0 %v1133
  %v1249 = vpop.f32.mrf.mxu0
  %v1250 = vadd.f32 0.0, %v1249
  %v1251 = vpop.f32.mrf.mxu0
  %1252 = vmatprep.mubr.f32.mxu0 0.0
  %1253 = vmatmul.mubr.f32.gmra.mxu0 %v1134
  %v1254 = vpop.f32.mrf.mxu0
  %v1255 = vadd.f32 0.0, %v1254
  %v1256 = vpop.f32.mrf.mxu0
  %1257 = vmatprep.mubr.f32.mxu0 0.0
  %1258 = vmatmul.mubr.f32.gmra.mxu0 %v1135
  %v1259 = vpop.f32.mrf.mxu0
  %v1260 = vadd.f32 0.0, %v1259
  %v1261 = vpop.f32.mrf.mxu0
  %1262 = vmatprep.mubr.f32.mxu0 0.0
  %1263 = vmatmul.mubr.f32.gmra.mxu0 %v1136
  %v1264 = vpop.f32.mrf.mxu0
  %v1265 = vadd.f32 0.0, %v1264
  %v1266 = vpop.f32.mrf.mxu0
  %1267 = vmatprep.mubr.f32.mxu0 0.0
  %1268 = vmatmul.mubr.f32.gmra.mxu0 %v1137
  %v1269 = vpop.f32.mrf.mxu0
  %v1270 = vadd.f32 0.0, %v1269
  %v1271 = vpop.f32.mrf.mxu0
  %1272 = vmatprep.mubr.f32.mxu0 0.0
  %1273 = vmatmul.mubr.f32.gmra.mxu0 %v1138
  %v1274 = vpop.f32.mrf.mxu0
  %v1275 = vadd.f32 0.0, %v1274
  %v1276 = vpop.f32.mrf.mxu0
  %1277 = vmatprep.mubr.f32.mxu0 0.0
  %1278 = vmatmul.mubr.f32.gmra.mxu0 %v1139
  %v1279 = vpop.f32.mrf.mxu0
  %v1280 = vadd.f32 0.0, %v1279
  %v1281 = vpop.f32.mrf.mxu0
  %1282 = vmatprep.mubr.f32.mxu0 0.0
  %1283 = vmatmul.mubr.f32.gmra.mxu0 %v1140
  %v1284 = vpop.f32.mrf.mxu0
  %v1285 = vadd.f32 0.0, %v1284
  %v1286 = vpop.f32.mrf.mxu0
  %1287 = vmatprep.mubr.f32.mxu0 0.0
  %1288 = vmatmul.mubr.f32.gmra.mxu0 %v1141
  %v1289 = vpop.f32.mrf.mxu0
  %v1290 = vadd.f32 0.0, %v1289
  %v1291 = vpop.f32.mrf.mxu0
  %1292 = vmatprep.mubr.f32.mxu0 0.0
  %1293 = vmatmul.mubr.f32.gmra.mxu0 %v1142
  %v1294 = vpop.f32.mrf.mxu0
  %v1295 = vadd.f32 0.0, %v1294
  %v1296 = vpop.f32.mrf.mxu0
  %1297 = vmatprep.mubr.f32.mxu0 0.0
  %1298 = vmatmul.mubr.f32.gmra.mxu0 %v1143
  %v1299 = vpop.f32.mrf.mxu0
  %v1300 = vadd.f32 0.0, %v1299
  %v1301 = vpop.f32.mrf.mxu0
  %1302 = vmatprep.mubr.f32.mxu0 0.0
  %1303 = vmatmul.mubr.f32.gmra.mxu0 %v1144
  %v1304 = vpop.f32.mrf.mxu0
  %v1305 = vadd.f32 0.0, %v1304
  %v1306 = vpop.f32.mrf.mxu0
  %1307 = vmatprep.mubr.f32.mxu0 0.0
  %1308 = vmatmul.mubr.f32.gmra.mxu0 %v1145
  %v1309 = vpop.f32.mrf.mxu0
  %v1310 = vadd.f32 0.0, %v1309
  %v1311 = vpop.f32.mrf.mxu0
  %1312 = vmatprep.mubr.f32.mxu0 0.0
  %1313 = vmatmul.mubr.f32.gmra.mxu0 %v1146
  %v1314 = vpop.f32.mrf.mxu0
  %v1315 = vadd.f32 0.0, %v1314
  %v1316 = vpop.f32.mrf.mxu0
  %1317 = vmatprep.mubr.f32.mxu0 0.0
  %1318 = vmatmul.mubr.f32.gmra.mxu0 %v1147
  %v1319 = vpop.f32.mrf.mxu0
  %v1320 = vadd.f32 0.0, %v1319
  %v1321 = vpop.f32.mrf.mxu0
  %1322 = vmatprep.mubr.f32.mxu0 0.0
  %1323 = vmatmul.mubr.f32.gmra.mxu0 %v1148
  %v1324 = vpop.f32.mrf.mxu0
  %v1325 = vadd.f32 0.0, %v1324
  %v1326 = vpop.f32.mrf.mxu0
  %1327 = vmatprep.mubr.f32.mxu0 0.0
  %1328 = vmatmul.mubr.f32.gmra.mxu0 %v1149
  %v1329 = vpop.f32.mrf.mxu0
  %v1330 = vadd.f32 0.0, %v1329
  %v1331 = vpop.f32.mrf.mxu0
  %1332 = vmatprep.mubr.f32.mxu0 0.0
  %1333 = vmatmul.mubr.f32.gmra.mxu0 %v1150
  %v1334 = vpop.f32.mrf.mxu0
  %v1335 = vadd.f32 0.0, %v1334
  %v1336 = vpop.f32.mrf.mxu0
  %1337 = vmatprep.mubr.f32.mxu0 0.0
  %1338 = vmatmul.mubr.f32.gmra.mxu0 %v1151
  %v1339 = vpop.f32.mrf.mxu0
  %v1340 = vadd.f32 0.0, %v1339
  %v1341 = vpop.f32.mrf.mxu0
  %1342 = vdwg.mxu0
  %v1343 = vadd.f32 %v1235, %v1240
  %v1344 = vadd.f32 %v1343, %v1245
  %v1345 = vadd.f32 %v1344, %v1250
  %v1346 = vadd.f32 %v1345, %v1255
  %v1347 = vadd.f32 %v1346, %v1260
  %v1348 = vadd.f32 %v1347, %v1265
  %v1349 = vadd.f32 %v1348, %v1270
  %v1350 = vadd.f32 %v1349, %v1275
  %v1351 = vadd.f32 %v1350, %v1280
  %v1352 = vadd.f32 %v1351, %v1285
  %v1353 = vadd.f32 %v1352, %v1290
  %v1354 = vadd.f32 %v1353, %v1295
  %v1355 = vadd.f32 %v1354, %v1300
  %v1356 = vadd.f32 %v1355, %v1305
  %v1357 = vadd.f32 %v1356, %v1310
  %v1358 = vadd.f32 %v1357, %v1315
  %v1359 = vadd.f32 %v1358, %v1320
  %v1360 = vadd.f32 %v1359, %v1325
  %v1361 = vadd.f32 %v1360, %v1330
  %v1362 = vadd.f32 %v1361, %v1335
  %v1363 = vadd.f32 %v1362, %v1340
  %v1364 = vrot.slane %v1363, 4
  %v1365 = vadd.f32 %v1363, %v1364
  %v1366 = vrot.slane %v1365, 2
  %v1367 = vadd.f32 %v1365, %v1366
  %v1368 = vrot.slane %v1367, 1
  %v1369 = vadd.f32 %v1367, %v1368
  %v1370 = vmul.f32 %v1130, %v1130
  %v1371 = vmul.f32 %v1131, %v1131
  %v1372 = vmul.f32 %v1132, %v1132
  %v1373 = vmul.f32 %v1133, %v1133
  %v1374 = vmul.f32 %v1134, %v1134
  %v1375 = vmul.f32 %v1135, %v1135
  %v1376 = vmul.f32 %v1136, %v1136
  %v1377 = vmul.f32 %v1137, %v1137
  %v1378 = vmul.f32 %v1138, %v1138
  %v1379 = vmul.f32 %v1139, %v1139
  %v1380 = vmul.f32 %v1140, %v1140
  %v1381 = vmul.f32 %v1141, %v1141
  %v1382 = vmul.f32 %v1142, %v1142
  %v1383 = vmul.f32 %v1143, %v1143
  %v1384 = vmul.f32 %v1144, %v1144
  %v1385 = vmul.f32 %v1145, %v1145
  %v1386 = vmul.f32 %v1146, %v1146
  %v1387 = vmul.f32 %v1147, %v1147
  %v1388 = vmul.f32 %v1148, %v1148
  %v1389 = vmul.f32 %v1149, %v1149
  %v1390 = vmul.f32 %v1150, %v1150
  %v1391 = vmul.f32 %v1151, %v1151
  %1392 = vmatprep.subr.mxu0 0.0
  %1393 = vmatpush1.msra.mxu0 %v1167
  %1394 = vmatprep.subr.mxu0 0.0
  %1395 = vmatpush1.msra.mxu0 %v1166
  %1396 = vmatprep.subr.mxu0 0.0
  %1397 = vmatpush1.msra.mxu0 %v1165
  %1398 = vmatprep.subr.mxu0 0.0
  %1399 = vmatpush1.msra.mxu0 %v1164
  %1400 = vmatprep.subr.mxu0 0.0
  %1401 = vmatpush1.msra.mxu0 %v1163
  %1402 = vmatprep.subr.mxu0 0.0
  %1403 = vmatpush1.msra.mxu0 %v1162
  %1404 = vmatprep.subr.mxu0 0.0
  %1405 = vmatpush1.msra.mxu0 %v1161
  %1406 = vmatprep.subr.mxu0 0.0
  %1407 = vmatpush1.msra.mxu0 %v1160
  %1408 = vmatprep.subr.mxu0 0.0
  %1409 = vmatpush1.msra.mxu0 %v1159
  %1410 = vmatprep.subr.mxu0 0.0
  %1411 = vmatpush1.msra.mxu0 %v1158
  %1412 = vmatprep.subr.mxu0 0.0
  %1413 = vmatpush1.msra.mxu0 %v1157
  %1414 = vmatprep.subr.mxu0 0.0
  %1415 = vmatpush1.msra.mxu0 %v1156
  %1416 = vmatprep.subr.mxu0 0.0
  %1417 = vmatpush1.msra.mxu0 %v1155
  %1418 = vmatprep.subr.mxu0 0.0
  %1419 = vmatpush1.msra.mxu0 %v1154
  %1420 = vmatprep.subr.mxu0 0.0
  %1421 = vmatpush1.msra.mxu0 %v1153
  %1422 = vmatprep.subr.mxu0 0.0
  %1423 = vmatpush1.msra.mxu0 %v1152
  %1424 = vmatprep.subr.mxu0 0.0
  %1425 = vmatpush2.msra.mxu0 0.0
  %1426 = vmatprep.subr.mxu0 0.0
  %1427 = vmatpush2.msra.mxu0 0.0
  %1428 = vmatprep.subr.mxu0 0.0
  %1429 = vmatpush2.msra.mxu0 0.0
  %1430 = vmatprep.subr.mxu0 0.0
  %1431 = vmatpush2.msra.mxu0 0.0
  %1432 = vmatprep.subr.mxu0 0.0
  %1433 = vmatpush2.msra.mxu0 0.0
  %1434 = vmatprep.subr.mxu0 0.0
  %1435 = vmatpush2.msra.mxu0 0.0
  %1436 = vmatprep.subr.mxu0 0.0
  %1437 = vmatpush2.msra.mxu0 0.0
  %1438 = vmatprep.subr.mxu0 0.0
  %1439 = vmatpush2.msra.mxu0 0.0
  %1440 = vmatprep.subr.mxu0 0.0
  %1441 = vmatpush2.msra.mxu0 0.0
  %1442 = vmatprep.subr.mxu0 0.0
  %1443 = vmatpush2.msra.mxu0 0.0
  %1444 = vmatprep.subr.mxu0 0.0
  %1445 = vmatpush2.msra.mxu0 0.0
  %1446 = vmatprep.subr.mxu0 0.0
  %1447 = vmatpush2.msra.mxu0 0.0
  %1448 = vmatprep.subr.mxu0 0.0
  %1449 = vmatpush2.msra.mxu0 0.0
  %1450 = vmatprep.subr.mxu0 0.0
  %1451 = vmatpush2.msra.mxu0 0.0
  %1452 = vmatprep.subr.mxu0 0.0
  %1453 = vmatpush2.msra.mxu0 0.0
  %1454 = vmatprep.subr.mxu0 0.0
  %1455 = vmatpush2.msra.mxu0 0.0
  %1456 = vmatprep.mubr.f32.mxu0 0.0
  %1457 = vmatmul.mubr.f32.gmra.mxu0 %v1370
  %v1458 = vpop.f32.mrf.mxu0
  %v1459 = vadd.f32 0.0, %v1458
  %v1460 = vpop.f32.mrf.mxu0
  %1461 = vmatprep.mubr.f32.mxu0 0.0
  %1462 = vmatmul.mubr.f32.gmra.mxu0 %v1371
  %v1463 = vpop.f32.mrf.mxu0
  %v1464 = vadd.f32 0.0, %v1463
  %v1465 = vpop.f32.mrf.mxu0
  %1466 = vmatprep.mubr.f32.mxu0 0.0
  %1467 = vmatmul.mubr.f32.gmra.mxu0 %v1372
  %v1468 = vpop.f32.mrf.mxu0
  %v1469 = vadd.f32 0.0, %v1468
  %v1470 = vpop.f32.mrf.mxu0
  %1471 = vmatprep.mubr.f32.mxu0 0.0
  %1472 = vmatmul.mubr.f32.gmra.mxu0 %v1373
  %v1473 = vpop.f32.mrf.mxu0
  %v1474 = vadd.f32 0.0, %v1473
  %v1475 = vpop.f32.mrf.mxu0
  %1476 = vmatprep.mubr.f32.mxu0 0.0
  %1477 = vmatmul.mubr.f32.gmra.mxu0 %v1374
  %v1478 = vpop.f32.mrf.mxu0
  %v1479 = vadd.f32 0.0, %v1478
  %v1480 = vpop.f32.mrf.mxu0
  %1481 = vmatprep.mubr.f32.mxu0 0.0
  %1482 = vmatmul.mubr.f32.gmra.mxu0 %v1375
  %v1483 = vpop.f32.mrf.mxu0
  %v1484 = vadd.f32 0.0, %v1483
  %v1485 = vpop.f32.mrf.mxu0
  %1486 = vmatprep.mubr.f32.mxu0 0.0
  %1487 = vmatmul.mubr.f32.gmra.mxu0 %v1376
  %v1488 = vpop.f32.mrf.mxu0
  %v1489 = vadd.f32 0.0, %v1488
  %v1490 = vpop.f32.mrf.mxu0
  %1491 = vmatprep.mubr.f32.mxu0 0.0
  %1492 = vmatmul.mubr.f32.gmra.mxu0 %v1377
  %v1493 = vpop.f32.mrf.mxu0
  %v1494 = vadd.f32 0.0, %v1493
  %v1495 = vpop.f32.mrf.mxu0
  %1496 = vmatprep.mubr.f32.mxu0 0.0
  %1497 = vmatmul.mubr.f32.gmra.mxu0 %v1378
  %v1498 = vpop.f32.mrf.mxu0
  %v1499 = vadd.f32 0.0, %v1498
  %v1500 = vpop.f32.mrf.mxu0
  %1501 = vmatprep.mubr.f32.mxu0 0.0
  %1502 = vmatmul.mubr.f32.gmra.mxu0 %v1379
  %v1503 = vpop.f32.mrf.mxu0
  %v1504 = vadd.f32 0.0, %v1503
  %v1505 = vpop.f32.mrf.mxu0
  %1506 = vmatprep.mubr.f32.mxu0 0.0
  %1507 = vmatmul.mubr.f32.gmra.mxu0 %v1380
  %v1508 = vpop.f32.mrf.mxu0
  %v1509 = vadd.f32 0.0, %v1508
  %v1510 = vpop.f32.mrf.mxu0
  %1511 = vmatprep.mubr.f32.mxu0 0.0
  %1512 = vmatmul.mubr.f32.gmra.mxu0 %v1381
  %v1513 = vpop.f32.mrf.mxu0
  %v1514 = vadd.f32 0.0, %v1513
  %v1515 = vpop.f32.mrf.mxu0
  %1516 = vmatprep.mubr.f32.mxu0 0.0
  %1517 = vmatmul.mubr.f32.gmra.mxu0 %v1382
  %v1518 = vpop.f32.mrf.mxu0
  %v1519 = vadd.f32 0.0, %v1518
  %v1520 = vpop.f32.mrf.mxu0
  %1521 = vmatprep.mubr.f32.mxu0 0.0
  %1522 = vmatmul.mubr.f32.gmra.mxu0 %v1383
  %v1523 = vpop.f32.mrf.mxu0
  %v1524 = vadd.f32 0.0, %v1523
  %v1525 = vpop.f32.mrf.mxu0
  %1526 = vmatprep.mubr.f32.mxu0 0.0
  %1527 = vmatmul.mubr.f32.gmra.mxu0 %v1384
  %v1528 = vpop.f32.mrf.mxu0
  %v1529 = vadd.f32 0.0, %v1528
  %v1530 = vpop.f32.mrf.mxu0
  %1531 = vmatprep.mubr.f32.mxu0 0.0
  %1532 = vmatmul.mubr.f32.gmra.mxu0 %v1385
  %v1533 = vpop.f32.mrf.mxu0
  %v1534 = vadd.f32 0.0, %v1533
  %v1535 = vpop.f32.mrf.mxu0
  %1536 = vmatprep.mubr.f32.mxu0 0.0
  %1537 = vmatmul.mubr.f32.gmra.mxu0 %v1386
  %v1538 = vpop.f32.mrf.mxu0
  %v1539 = vadd.f32 0.0, %v1538
  %v1540 = vpop.f32.mrf.mxu0
  %1541 = vmatprep.mubr.f32.mxu0 0.0
  %1542 = vmatmul.mubr.f32.gmra.mxu0 %v1387
  %v1543 = vpop.f32.mrf.mxu0
  %v1544 = vadd.f32 0.0, %v1543
  %v1545 = vpop.f32.mrf.mxu0
  %1546 = vmatprep.mubr.f32.mxu0 0.0
  %1547 = vmatmul.mubr.f32.gmra.mxu0 %v1388
  %v1548 = vpop.f32.mrf.mxu0
  %v1549 = vadd.f32 0.0, %v1548
  %v1550 = vpop.f32.mrf.mxu0
  %1551 = vmatprep.mubr.f32.mxu0 0.0
  %1552 = vmatmul.mubr.f32.gmra.mxu0 %v1389
  %v1553 = vpop.f32.mrf.mxu0
  %v1554 = vadd.f32 0.0, %v1553
  %v1555 = vpop.f32.mrf.mxu0
  %1556 = vmatprep.mubr.f32.mxu0 0.0
  %1557 = vmatmul.mubr.f32.gmra.mxu0 %v1390
  %v1558 = vpop.f32.mrf.mxu0
  %v1559 = vadd.f32 0.0, %v1558
  %v1560 = vpop.f32.mrf.mxu0
  %1561 = vmatprep.mubr.f32.mxu0 0.0
  %1562 = vmatmul.mubr.f32.gmra.mxu0 %v1391
  %v1563 = vpop.f32.mrf.mxu0
  %v1564 = vadd.f32 0.0, %v1563
  %v1565 = vpop.f32.mrf.mxu0
  %1566 = vdwg.mxu0
  %v1567 = vadd.f32 %v1459, %v1464
  %v1568 = vadd.f32 %v1567, %v1469
  %v1569 = vadd.f32 %v1568, %v1474
  %v1570 = vadd.f32 %v1569, %v1479
  %v1571 = vadd.f32 %v1570, %v1484
  %v1572 = vadd.f32 %v1571, %v1489
  %v1573 = vadd.f32 %v1572, %v1494
  %v1574 = vadd.f32 %v1573, %v1499
  %v1575 = vadd.f32 %v1574, %v1504
  %v1576 = vadd.f32 %v1575, %v1509
  %v1577 = vadd.f32 %v1576, %v1514
  %v1578 = vadd.f32 %v1577, %v1519
  %v1579 = vadd.f32 %v1578, %v1524
  %v1580 = vadd.f32 %v1579, %v1529
  %v1581 = vadd.f32 %v1580, %v1534
  %v1582 = vadd.f32 %v1581, %v1539
  %v1583 = vadd.f32 %v1582, %v1544
  %v1584 = vadd.f32 %v1583, %v1549
  %v1585 = vadd.f32 %v1584, %v1554
  %v1586 = vadd.f32 %v1585, %v1559
  %v1587 = vadd.f32 %v1586, %v1564
  %v1588 = vrot.slane %v1587, 4
  %v1589 = vadd.f32 %v1587, %v1588
  %v1590 = vrot.slane %v1589, 2
  %v1591 = vadd.f32 %v1589, %v1590
  %v1592 = vrot.slane %v1591, 1
  %v1593 = vadd.f32 %v1591, %v1592
  %v1594 = vmul.f32 %v1369, 0.001953125
  %v1595 = vmul.f32 %v1593, 0.001953125
  %v1596 = vmul.f32 %v1594, %v1594
  %v1597 = vsub.f32 %v1595, %v1596
  %v1598 = vmax.f32 %v1597, 0.0
  %v1599 = vld [vmem:[%s9] sm:$0x1]
  %v1600 = vadd.f32 %v1598, 1e-05
  %v1601 = vrsqrt.pop %v1600
  %v1602 = vmul.f32 %v1599, %v1601
  %v1603 = vld [vmem:[%s10] sm:$0x1]
  %v1604 = vmul.f32 %v1594, %v1602
  %v1605 = vsub.f32 %v1603, %v1604
  %v1607 = vlaneseq
  %v1608 = vshrl.u32 %v1607, 7
  %v1609 = vsub.s32 0, %v1608
  %v1610 = vrot.slane %v1602, %v1609
  %v1612 = vmul.f32 %v334, %v1610
  %v1613 = vmul.f32 %v337, %v1610
  %v1614 = vmul.f32 %v342, %v1610
  %v1615 = vmul.f32 %v345, %v1610
  %v1616 = vmul.f32 %v350, %v1610
  %v1617 = vmul.f32 %v353, %v1610
  %v1618 = vmul.f32 %v358, %v1610
  %v1619 = vmul.f32 %v361, %v1610
  %v1620 = vmul.f32 %v366, %v1610
  %v1621 = vmul.f32 %v369, %v1610
  %v1622 = vmul.f32 %v374, %v1610
  %v1623 = vmul.f32 %v377, %v1610
  %v1624 = vmul.f32 %v382, %v1610
  %v1625 = vmul.f32 %v385, %v1610
  %v1626 = vmul.f32 %v390, %v1610
  %v1627 = vmul.f32 %v393, %v1610
  %v1628 = vmul.f32 %v398, %v1610
  %v1629 = vmul.f32 %v401, %v1610
  %v1630 = vmul.f32 %v406, %v1610
  %v1631 = vmul.f32 %v409, %v1610
  %v1632 = vmul.f32 %v414, %v1610
  %v1633 = vmul.f32 %v417, %v1610
  %v1635 = vlaneseq
  %v1636 = vshrl.u32 %v1635, 7
  %v1637 = vsub.s32 0, %v1636
  %v1638 = vrot.slane %v1605, %v1637
  %v1640 = vadd.f32 %v1612, %v1638
  %v1641 = vadd.f32 %v1613, %v1638
  %v1642 = vadd.f32 %v1614, %v1638
  %v1643 = vadd.f32 %v1615, %v1638
  %v1644 = vadd.f32 %v1616, %v1638
  %v1645 = vadd.f32 %v1617, %v1638
  %v1646 = vadd.f32 %v1618, %v1638
  %v1647 = vadd.f32 %v1619, %v1638
  %v1648 = vadd.f32 %v1620, %v1638
  %v1649 = vadd.f32 %v1621, %v1638
  %v1650 = vadd.f32 %v1622, %v1638
  %v1651 = vadd.f32 %v1623, %v1638
  %v1652 = vadd.f32 %v1624, %v1638
  %v1653 = vadd.f32 %v1625, %v1638
  %v1654 = vadd.f32 %v1626, %v1638
  %v1655 = vadd.f32 %v1627, %v1638
  %v1656 = vadd.f32 %v1628, %v1638
  %v1657 = vadd.f32 %v1629, %v1638
  %v1658 = vadd.f32 %v1630, %v1638
  %v1659 = vadd.f32 %v1631, %v1638
  %v1660 = vadd.f32 %v1632, %v1638
  %v1661 = vadd.f32 %v1633, %v1638
  %v1662 = vmax.f32 %v1640, 0.0
  %v1663 = vmax.f32 %v1641, 0.0
  %v1664 = vmax.f32 %v1642, 0.0
  %v1665 = vmax.f32 %v1643, 0.0
  %v1666 = vmax.f32 %v1644, 0.0
  %v1667 = vmax.f32 %v1645, 0.0
  %v1668 = vmax.f32 %v1646, 0.0
  %v1669 = vmax.f32 %v1647, 0.0
  %v1670 = vmax.f32 %v1648, 0.0
  %v1671 = vmax.f32 %v1649, 0.0
  %v1672 = vmax.f32 %v1650, 0.0
  %v1673 = vmax.f32 %v1651, 0.0
  %v1674 = vmax.f32 %v1652, 0.0
  %v1675 = vmax.f32 %v1653, 0.0
  %v1676 = vmax.f32 %v1654, 0.0
  %v1677 = vmax.f32 %v1655, 0.0
  %v1678 = vmax.f32 %v1656, 0.0
  %v1679 = vmax.f32 %v1657, 0.0
  %v1680 = vmax.f32 %v1658, 0.0
  %v1681 = vmax.f32 %v1659, 0.0
  %v1682 = vmax.f32 %v1660, 0.0
  %v1683 = vmax.f32 %v1661, 0.0
  %v1684 = vpack.c.bf16 %v1663, %v1662
  %v1685 = vpack.c.bf16 %v1665, %v1664
  %v1686 = vpack.c.bf16 %v1667, %v1666
  %v1687 = vpack.c.bf16 %v1669, %v1668
  %v1688 = vpack.c.bf16 %v1671, %v1670
  %v1689 = vpack.c.bf16 %v1673, %v1672
  %v1690 = vpack.c.bf16 %v1675, %v1674
  %v1691 = vpack.c.bf16 %v1677, %v1676
  %v1692 = vpack.c.bf16 %v1679, %v1678
  %v1693 = vpack.c.bf16 %v1681, %v1680
  %v1694 = vpack.c.bf16 %v1683, %v1682
  %v1706 = vunpack.c.l.b16 %v1684
  %v1707 = vunpack.c.h.b16 %v1684
  %v1708 = vunpack.c.l.b16 %v1685
  %v1709 = vunpack.c.h.b16 %v1685
  %v1710 = vunpack.c.l.b16 %v1686
  %v1711 = vunpack.c.h.b16 %v1686
  %v1712 = vunpack.c.l.b16 %v1687
  %v1713 = vunpack.c.h.b16 %v1687
  %v1714 = vunpack.c.l.b16 %v1688
  %v1715 = vunpack.c.h.b16 %v1688
  %v1716 = vunpack.c.l.b16 %v1689
  %v1717 = vunpack.c.h.b16 %v1689
  %v1718 = vunpack.c.l.b16 %v1690
  %v1719 = vunpack.c.h.b16 %v1690
  %v1720 = vunpack.c.l.b16 %v1691
  %v1721 = vunpack.c.h.b16 %v1691
  %v1722 = vunpack.c.l.b16 %v1692
  %v1723 = vunpack.c.h.b16 %v1692
  %v1724 = vunpack.c.l.b16 %v1693
  %v1725 = vunpack.c.h.b16 %v1693
  %v1726 = vunpack.c.l.b16 %v1694
  %v1727 = vunpack.c.h.b16 %v1694
  %v1728 = vpack.c.b16 %v1706, %v1706
  %v1729 = vpack.c.b16 %v1707, %v1707
  %v1730 = vpack.c.b16 %v1708, %v1708
  %v1731 = vpack.c.b16 %v1709, %v1709
  %v1732 = vpack.c.b16 %v1710, %v1710
  %v1733 = vpack.c.b16 %v1711, %v1711
  %v1734 = vpack.c.b16 %v1712, %v1712
  %v1735 = vpack.c.b16 %v1713, %v1713
  %v1736 = vpack.c.b16 %v1714, %v1714
  %v1737 = vpack.c.b16 %v1715, %v1715
  %v1738 = vpack.c.b16 %v1716, %v1716
  %v1739 = vpack.c.b16 %v1717, %v1717
  %v1740 = vpack.c.b16 %v1718, %v1718
  %v1741 = vpack.c.b16 %v1719, %v1719
  %v1742 = vpack.c.b16 %v1720, %v1720
  %v1743 = vpack.c.b16 %v1721, %v1721
  %v1744 = vpack.c.b16 %v1722, %v1722
  %v1745 = vpack.c.b16 %v1723, %v1723
  %v1746 = vpack.c.b16 %v1724, %v1724
  %v1747 = vpack.c.b16 %v1725, %v1725
  %v1748 = vpack.c.b16 %v1726, %v1726
  %v1749 = vpack.c.b16 %v1727, %v1727
  %1772 = vst [vmem:[%s11] sm:$0xf] %v1728
  %1773 = vst [vmem:[%s11 + $0x4] sm:$0xf] %v1729
  %1774 = vst [vmem:[%s11 + $0x8] sm:$0xf] %v1730
  %1775 = vst [vmem:[%s11 + $0xc] sm:$0xf] %v1731
  %1776 = vst [vmem:[%s11 + $0x10] sm:$0xf] %v1732
  %1777 = vst [vmem:[%s11 + $0x14] sm:$0xf] %v1733
  %1778 = vst [vmem:[%s11 + $0x18] sm:$0xf] %v1734
  %1779 = vst [vmem:[%s11 + $0x1c] sm:$0xf] %v1735
  %1780 = vst [vmem:[%s11 + $0x20] sm:$0xf] %v1736
  %1781 = vst [vmem:[%s11 + $0x24] sm:$0xf] %v1737
  %1782 = vst [vmem:[%s11 + $0x28] sm:$0xf] %v1738
  %1783 = vst [vmem:[%s11 + $0x2c] sm:$0xf] %v1739
  %1784 = vst [vmem:[%s11 + $0x30] sm:$0xf] %v1740
  %1785 = vst [vmem:[%s11 + $0x34] sm:$0xf] %v1741
  %1786 = vst [vmem:[%s11 + $0x38] sm:$0xf] %v1742
  %1787 = vst [vmem:[%s11 + $0x3c] sm:$0xf] %v1743
  %1788 = vst [vmem:[%s11 + $0x40] sm:$0xf] %v1744
  %1789 = vst [vmem:[%s11 + $0x44] sm:$0xf] %v1745
  %1790 = vst [vmem:[%s11 + $0x48] sm:$0xf] %v1746
  %1791 = vst [vmem:[%s11 + $0x4c] sm:$0xf] %v1747
  %1792 = vst [vmem:[%s11 + $0x50] sm:$0xf] %v1748
  %1793 = vst [vmem:[%s11 + $0x54] sm:$0xf] %v1749
  // Predicated region
  $region46: #{dcgan_generator_forward.7} parent=0 // pred_check
    _
  $region47: #{dcgan_generator_forward.7} parent=0 // pred_check_branch
    %1795 = sbr.rel (0) target = $region49
  $region48: #{dcgan_generator_forward.7} parent=0 // pred_region
    _
  $region49: #{dcgan_generator_forward.7} parent=0 // pred_fallthru
    _
  // Predicated region
  $region50: #{dcgan_generator_forward.7} parent=0 // pred_check
    _
  $region51: #{dcgan_generator_forward.7} parent=0 // pred_check_branch
    %1797 = sbr.rel (0) target = $region53
  $region52: #{dcgan_generator_forward.7} parent=0 // pred_region
    _
  $region53: #{dcgan_generator_forward.7} parent=0 // pred_fallthru
    _

// kernel: dcgan_generator_forward.8
$region0: #{dcgan_generator_forward.8}
  #allocation0 [shape = 'u32[]', space=smem, size = 0x4, offset = 0x4, fixed_abs, tag = 'smem constant byte address 0x4 - core index']
  #allocation1 [shape = 'u32[144,128]{1,0:T(1,128)}', space=vmem, size = 0x12000, scoped, tag = 'internal scratch']
  %s0 = inlined_call_operand.vmem [shape: bf16[592,128], index: 0, kind: input, shape index: {}]
  %s1 = inlined_call_operand.vmem [shape: bf16[128,128], index: 1, kind: input, shape index: {}]
  %s2 = inlined_call_operand.vmem [shape: f32[592,1], index: 2, kind: input, shape index: {}]
  %s3 = inlined_call_operand.vmem [shape: f32[592,1], index: 3, kind: input, shape index: {}]
  %s4 = inlined_call_operand.vmem [shape: f32[592,1], index: 4, kind: input, shape index: {}]
  %s5 = inlined_call_operand.vmem [shape: f32[592,1], index: 5, kind: input, shape index: {}]
  %s6 = inlined_call_operand.vmem [shape: f32[1,128], index: 6, kind: input, shape index: {}]
  %s7 = inlined_call_operand.vmem [shape: f32[1,128], index: 7, kind: input, shape index: {}]
  %s8 = inlined_call_operand.vmem [shape: f32[128,128], index: 8, kind: input, shape index: {}]
  %s9 = inlined_call_operand.vmem [shape: f32[1,128], index: 9, kind: input, shape index: {}]
  %s10 = inlined_call_operand.vmem [shape: f32[1,128], index: 10, kind: input, shape index: {}]
  %s11 = inlined_call_operand.vmem [shape: bf16[592,128], index: 11, kind: output, shape index: {}]
  %s12 = sld [smem:[#allocation0]]
  $region54: #{dcgan_generator_forward.8} parent=0
    _
  %s14 = ssub.s32 1, %s12
  %s15 = scalar_select 0, %s14, %s12
  // Predicated region
  $region2: #{dcgan_generator_forward.8} parent=0 // pred_check
    _
  $region3: #{dcgan_generator_forward.8} parent=0 // pred_check_branch
    %17 = sbr.rel (0) target = $region5
  $region4: #{dcgan_generator_forward.8} parent=0 // pred_region
    _
  $region5: #{dcgan_generator_forward.8} parent=0 // pred_fallthru
    _
  // Predicated region
  $region6: #{dcgan_generator_forward.8} parent=0 // pred_check
    _
  $region7: #{dcgan_generator_forward.8} parent=0 // pred_check_branch
    %19 = sbr.rel (0) target = $region9
  $region8: #{dcgan_generator_forward.8} parent=0 // pred_region
    _
  $region9: #{dcgan_generator_forward.8} parent=0 // pred_fallthru
    _
  // Predicated region
  $region10: #{dcgan_generator_forward.8} parent=0 // pred_check
    _
  $region11: #{dcgan_generator_forward.8} parent=0 // pred_check_branch
    %21 = sbr.rel (0) target = $region13
  $region12: #{dcgan_generator_forward.8} parent=0 // pred_region
    _
  $region13: #{dcgan_generator_forward.8} parent=0 // pred_fallthru
    _
  // Predicated region
  $region14: #{dcgan_generator_forward.8} parent=0 // pred_check
    _
  $region15: #{dcgan_generator_forward.8} parent=0 // pred_check_branch
    %23 = sbr.rel (0) target = $region17
  $region16: #{dcgan_generator_forward.8} parent=0 // pred_region
    _
  $region17: #{dcgan_generator_forward.8} parent=0 // pred_fallthru
    _
  // Predicated region
  $region18: #{dcgan_generator_forward.8} parent=0 // pred_check
    _
  $region19: #{dcgan_generator_forward.8} parent=0 // pred_check_branch
    %25 = sbr.rel (0) target = $region21
  $region20: #{dcgan_generator_forward.8} parent=0 // pred_region
    _
  $region21: #{dcgan_generator_forward.8} parent=0 // pred_fallthru
    _
  // Predicated region
  $region22: #{dcgan_generator_forward.8} parent=0 // pred_check
    _
  $region23: #{dcgan_generator_forward.8} parent=0 // pred_check_branch
    %27 = sbr.rel (0) target = $region25
  $region24: #{dcgan_generator_forward.8} parent=0 // pred_region
    _
  $region25: #{dcgan_generator_forward.8} parent=0 // pred_fallthru
    _
  // Predicated region
  $region26: #{dcgan_generator_forward.8} parent=0 // pred_check
    _
  $region27: #{dcgan_generator_forward.8} parent=0 // pred_check_branch
    %29 = sbr.rel (0) target = $region29
  $region28: #{dcgan_generator_forward.8} parent=0 // pred_region
    _
  $region29: #{dcgan_generator_forward.8} parent=0 // pred_fallthru
    _
  // Predicated region
  $region30: #{dcgan_generator_forward.8} parent=0 // pred_check
    _
  $region31: #{dcgan_generator_forward.8} parent=0 // pred_check_branch
    %31 = sbr.rel (0) target = $region33
  $region32: #{dcgan_generator_forward.8} parent=0 // pred_region
    _
  $region33: #{dcgan_generator_forward.8} parent=0 // pred_fallthru
    _
  // Predicated region
  $region34: #{dcgan_generator_forward.8} parent=0 // pred_check
    _
  $region35: #{dcgan_generator_forward.8} parent=0 // pred_check_branch
    %33 = sbr.rel (0) target = $region37
  $region36: #{dcgan_generator_forward.8} parent=0 // pred_region
    _
  $region37: #{dcgan_generator_forward.8} parent=0 // pred_fallthru
    _
  // Predicated region
  $region38: #{dcgan_generator_forward.8} parent=0 // pred_check
    _
  $region39: #{dcgan_generator_forward.8} parent=0 // pred_check_branch
    %35 = sbr.rel (0) target = $region41
  $region40: #{dcgan_generator_forward.8} parent=0 // pred_region
    _
  $region41: #{dcgan_generator_forward.8} parent=0 // pred_fallthru
    _
  // Predicated region
  $region42: #{dcgan_generator_forward.8} parent=0 // pred_check
    _
  $region43: #{dcgan_generator_forward.8} parent=0 // pred_check_branch
    %37 = sbr.rel (0) target = $region45
  $region44: #{dcgan_generator_forward.8} parent=0 // pred_region
    _
  $region45: #{dcgan_generator_forward.8} parent=0 // pred_fallthru
    _
  %v39 = vld [vmem:[%s0] sm:$0xf]
  %v40 = vld [vmem:[%s0 + $0x4] sm:$0xf]
  %v41 = vld [vmem:[%s0 + $0x8] sm:$0xf]
  %v42 = vld [vmem:[%s0 + $0xc] sm:$0xf]
  %v43 = vld [vmem:[%s0 + $0x10] sm:$0xf]
  %v44 = vld [vmem:[%s0 + $0x14] sm:$0xf]
  %v45 = vld [vmem:[%s0 + $0x18] sm:$0xf]
  %v46 = vld [vmem:[%s0 + $0x1c] sm:$0xf]
  %v47 = vld [vmem:[%s0 + $0x20] sm:$0xf]
  %v48 = vld [vmem:[%s0 + $0x24] sm:$0xf]
  %v49 = vld [vmem:[%s0 + $0x28] sm:$0xf]
  %v50 = vld [vmem:[%s0 + $0x2c] sm:$0xf]
  %v51 = vld [vmem:[%s0 + $0x30] sm:$0xf]
  %v52 = vld [vmem:[%s0 + $0x34] sm:$0xf]
  %v53 = vld [vmem:[%s0 + $0x38] sm:$0xf]
  %v54 = vld [vmem:[%s0 + $0x3c] sm:$0xf]
  %v55 = vld [vmem:[%s0 + $0x40] sm:$0xf]
  %v56 = vld [vmem:[%s0 + $0x44] sm:$0xf]
  %v57 = vld [vmem:[%s0 + $0x48] sm:$0xf]
  %v58 = vld [vmem:[%s0 + $0x4c] sm:$0xf]
  %v59 = vld [vmem:[%s0 + $0x50] sm:$0xf]
  %v60 = vld [vmem:[%s0 + $0x54] sm:$0xf]
  %v61 = vld [vmem:[%s0 + $0x58] sm:$0xf]
  %v62 = vld [vmem:[%s0 + $0x5c] sm:$0xf]
  %v63 = vld [vmem:[%s0 + $0x60] sm:$0xf]
  %v64 = vld [vmem:[%s0 + $0x64] sm:$0xf]
  %v65 = vld [vmem:[%s0 + $0x68] sm:$0xf]
  %v66 = vld [vmem:[%s0 + $0x6c] sm:$0xf]
  %v67 = vld [vmem:[%s0 + $0x70] sm:$0xf]
  %v68 = vld [vmem:[%s0 + $0x74] sm:$0xf]
  %v69 = vld [vmem:[%s0 + $0x78] sm:$0xf]
  %v70 = vld [vmem:[%s0 + $0x7c] sm:$0xf]
  %v71 = vld [vmem:[%s0 + $0x80] sm:$0xf]
  %v72 = vld [vmem:[%s0 + $0x84] sm:$0xf]
  %v73 = vld [vmem:[%s0 + $0x88] sm:$0xf]
  %v74 = vld [vmem:[%s0 + $0x8c] sm:$0xf]
  %v75 = vld [vmem:[%s0 + $0x90] sm:$0xf]
  %v76 = vld [vmem:[%s0 + $0x94] sm:$0xf]
  %v77 = vld [vmem:[%s0 + $0x98] sm:$0xf]
  %v78 = vld [vmem:[%s0 + $0x9c] sm:$0xf]
  %v79 = vld [vmem:[%s0 + $0xa0] sm:$0xf]
  %v80 = vld [vmem:[%s0 + $0xa4] sm:$0xf]
  %v81 = vld [vmem:[%s0 + $0xa8] sm:$0xf]
  %v82 = vld [vmem:[%s0 + $0xac] sm:$0xf]
  %v83 = vld [vmem:[%s0 + $0xb0] sm:$0xf]
  %v84 = vld [vmem:[%s0 + $0xb4] sm:$0xf]
  %v85 = vld [vmem:[%s0 + $0xb8] sm:$0xf]
  %v86 = vld [vmem:[%s0 + $0xbc] sm:$0xf]
  %v87 = vld [vmem:[%s0 + $0xc0] sm:$0xf]
  %v88 = vld [vmem:[%s0 + $0xc4] sm:$0xf]
  %v89 = vld [vmem:[%s0 + $0xc8] sm:$0xf]
  %v90 = vld [vmem:[%s0 + $0xcc] sm:$0xf]
  %v91 = vld [vmem:[%s0 + $0xd0] sm:$0xf]
  %v92 = vld [vmem:[%s0 + $0xd4] sm:$0xf]
  %v93 = vld [vmem:[%s0 + $0xd8] sm:$0xf]
  %v94 = vld [vmem:[%s0 + $0xdc] sm:$0xf]
  %v95 = vld [vmem:[%s0 + $0xe0] sm:$0xf]
  %v96 = vld [vmem:[%s0 + $0xe4] sm:$0xf]
  %v97 = vld [vmem:[%s0 + $0xe8] sm:$0xf]
  %v98 = vld [vmem:[%s0 + $0xec] sm:$0xf]
  %v99 = vld [vmem:[%s0 + $0xf0] sm:$0xf]
  %v100 = vld [vmem:[%s0 + $0xf4] sm:$0xf]
  %v101 = vld [vmem:[%s0 + $0xf8] sm:$0xf]
  %v102 = vld [vmem:[%s0 + $0xfc] sm:$0xf]
  %v103 = vld [vmem:[%s0 + $0x100] sm:$0xf]
  %v104 = vld [vmem:[%s0 + $0x104] sm:$0xf]
  %v105 = vld [vmem:[%s0 + $0x108] sm:$0xf]
  %v106 = vld [vmem:[%s0 + $0x10c] sm:$0xf]
  %v107 = vld [vmem:[%s0 + $0x110] sm:$0xf]
  %v108 = vld [vmem:[%s0 + $0x114] sm:$0xf]
  %v109 = vld [vmem:[%s0 + $0x118] sm:$0xf]
  %v110 = vld [vmem:[%s0 + $0x11c] sm:$0xf]
  %v111 = vld [vmem:[%s0 + $0x120] sm:$0xf]
  %v112 = vld [vmem:[%s0 + $0x124] sm:$0xf]
  %v113 = vld [vmem:[%s1] sm:$0xf]
  %v114 = vld [vmem:[%s1 + $0x4] sm:$0xf]
  %v115 = vld [vmem:[%s1 + $0x8] sm:$0xf]
  %v116 = vld [vmem:[%s1 + $0xc] sm:$0xf]
  %v117 = vld [vmem:[%s1 + $0x10] sm:$0xf]
  %v118 = vld [vmem:[%s1 + $0x14] sm:$0xf]
  %v119 = vld [vmem:[%s1 + $0x18] sm:$0xf]
  %v120 = vld [vmem:[%s1 + $0x1c] sm:$0xf]
  %v121 = vld [vmem:[%s1 + $0x20] sm:$0xf]
  %v122 = vld [vmem:[%s1 + $0x24] sm:$0xf]
  %v123 = vld [vmem:[%s1 + $0x28] sm:$0xf]
  %v124 = vld [vmem:[%s1 + $0x2c] sm:$0xf]
  %v125 = vld [vmem:[%s1 + $0x30] sm:$0xf]
  %v126 = vld [vmem:[%s1 + $0x34] sm:$0xf]
  %v127 = vld [vmem:[%s1 + $0x38] sm:$0xf]
  %v128 = vld [vmem:[%s1 + $0x3c] sm:$0xf]
  %v203 = vunpack.c.l.b16 %v39
  %v204 = vunpack.c.l.b16 %v40
  %v205 = vunpack.c.l.b16 %v41
  %v206 = vunpack.c.l.b16 %v42
  %v207 = vunpack.c.l.b16 %v43
  %v208 = vunpack.c.l.b16 %v44
  %v209 = vunpack.c.l.b16 %v45
  %v210 = vunpack.c.l.b16 %v46
  %v211 = vunpack.c.l.b16 %v47
  %v212 = vunpack.c.l.b16 %v48
  %v213 = vunpack.c.l.b16 %v49
  %v214 = vunpack.c.l.b16 %v50
  %v215 = vunpack.c.l.b16 %v51
  %v216 = vunpack.c.l.b16 %v52
  %v217 = vunpack.c.l.b16 %v53
  %v218 = vunpack.c.l.b16 %v54
  %v219 = vunpack.c.l.b16 %v55
  %v220 = vunpack.c.l.b16 %v56
  %v221 = vunpack.c.l.b16 %v57
  %v222 = vunpack.c.l.b16 %v58
  %v223 = vunpack.c.l.b16 %v59
  %v224 = vunpack.c.l.b16 %v60
  %v225 = vunpack.c.l.b16 %v61
  %v226 = vunpack.c.l.b16 %v62
  %v227 = vunpack.c.l.b16 %v63
  %v228 = vunpack.c.l.b16 %v64
  %v229 = vunpack.c.l.b16 %v65
  %v230 = vunpack.c.l.b16 %v66
  %v231 = vunpack.c.l.b16 %v67
  %v232 = vunpack.c.l.b16 %v68
  %v233 = vunpack.c.l.b16 %v69
  %v234 = vunpack.c.l.b16 %v70
  %v235 = vunpack.c.l.b16 %v71
  %v236 = vunpack.c.l.b16 %v72
  %v237 = vunpack.c.l.b16 %v73
  %v238 = vunpack.c.l.b16 %v74
  %v239 = vunpack.c.l.b16 %v75
  %v240 = vunpack.c.l.b16 %v76
  %v241 = vunpack.c.l.b16 %v77
  %v242 = vunpack.c.l.b16 %v78
  %v243 = vunpack.c.l.b16 %v79
  %v244 = vunpack.c.l.b16 %v80
  %v245 = vunpack.c.l.b16 %v81
  %v246 = vunpack.c.l.b16 %v82
  %v247 = vunpack.c.l.b16 %v83
  %v248 = vunpack.c.l.b16 %v84
  %v249 = vunpack.c.l.b16 %v85
  %v250 = vunpack.c.l.b16 %v86
  %v251 = vunpack.c.l.b16 %v87
  %v252 = vunpack.c.l.b16 %v88
  %v253 = vunpack.c.l.b16 %v89
  %v254 = vunpack.c.l.b16 %v90
  %v255 = vunpack.c.l.b16 %v91
  %v256 = vunpack.c.l.b16 %v92
  %v257 = vunpack.c.l.b16 %v93
  %v258 = vunpack.c.l.b16 %v94
  %v259 = vunpack.c.l.b16 %v95
  %v260 = vunpack.c.l.b16 %v96
  %v261 = vunpack.c.l.b16 %v97
  %v262 = vunpack.c.l.b16 %v98
  %v263 = vunpack.c.l.b16 %v99
  %v264 = vunpack.c.l.b16 %v100
  %v265 = vunpack.c.l.b16 %v101
  %v266 = vunpack.c.l.b16 %v102
  %v267 = vunpack.c.l.b16 %v103
  %v268 = vunpack.c.l.b16 %v104
  %v269 = vunpack.c.l.b16 %v105
  %v270 = vunpack.c.l.b16 %v106
  %v271 = vunpack.c.l.b16 %v107
  %v272 = vunpack.c.l.b16 %v108
  %v273 = vunpack.c.l.b16 %v109
  %v274 = vunpack.c.l.b16 %v110
  %v275 = vunpack.c.l.b16 %v111
  %v276 = vunpack.c.l.b16 %v112
  %v277 = vpack.c.b16 %v204, %v203
  %v278 = vpack.c.b16 %v206, %v205
  %v279 = vpack.c.b16 %v208, %v207
  %v280 = vpack.c.b16 %v210, %v209
  %v281 = vpack.c.b16 %v212, %v211
  %v282 = vpack.c.b16 %v214, %v213
  %v283 = vpack.c.b16 %v216, %v215
  %v284 = vpack.c.b16 %v218, %v217
  %v285 = vpack.c.b16 %v220, %v219
  %v286 = vpack.c.b16 %v222, %v221
  %v287 = vpack.c.b16 %v224, %v223
  %v288 = vpack.c.b16 %v226, %v225
  %v289 = vpack.c.b16 %v228, %v227
  %v290 = vpack.c.b16 %v230, %v229
  %v291 = vpack.c.b16 %v232, %v231
  %v292 = vpack.c.b16 %v234, %v233
  %v293 = vpack.c.b16 %v236, %v235
  %v294 = vpack.c.b16 %v238, %v237
  %v295 = vpack.c.b16 %v240, %v239
  %v296 = vpack.c.b16 %v242, %v241
  %v297 = vpack.c.b16 %v244, %v243
  %v298 = vpack.c.b16 %v246, %v245
  %v299 = vpack.c.b16 %v248, %v247
  %v300 = vpack.c.b16 %v250, %v249
  %v301 = vpack.c.b16 %v252, %v251
  %v302 = vpack.c.b16 %v254, %v253
  %v303 = vpack.c.b16 %v256, %v255
  %v304 = vpack.c.b16 %v258, %v257
  %v305 = vpack.c.b16 %v260, %v259
  %v306 = vpack.c.b16 %v262, %v261
  %v307 = vpack.c.b16 %v264, %v263
  %v308 = vpack.c.b16 %v266, %v265
  %v309 = vpack.c.b16 %v268, %v267
  %v310 = vpack.c.b16 %v270, %v269
  %v311 = vpack.c.b16 %v272, %v271
  %v312 = vpack.c.b16 %v274, %v273
  %v313 = vpack.c.b16 %v276, %v275
  %v367 = vunpack.c.l.b16 %v113
  %v368 = vunpack.c.l.b16 %v114
  %v369 = vunpack.c.l.b16 %v115
  %v370 = vunpack.c.l.b16 %v116
  %v371 = vunpack.c.l.b16 %v117
  %v372 = vunpack.c.l.b16 %v118
  %v373 = vunpack.c.l.b16 %v119
  %v374 = vunpack.c.l.b16 %v120
  %v375 = vunpack.c.l.b16 %v121
  %v376 = vunpack.c.l.b16 %v122
  %v377 = vunpack.c.l.b16 %v123
  %v378 = vunpack.c.l.b16 %v124
  %v379 = vunpack.c.l.b16 %v125
  %v380 = vunpack.c.l.b16 %v126
  %v381 = vunpack.c.l.b16 %v127
  %v382 = vunpack.c.l.b16 %v128
  %v383 = vpack.c.b16 %v368, %v367
  %v384 = vpack.c.b16 %v370, %v369
  %v385 = vpack.c.b16 %v372, %v371
  %v386 = vpack.c.b16 %v374, %v373
  %v387 = vpack.c.b16 %v376, %v375
  %v388 = vpack.c.b16 %v378, %v377
  %v389 = vpack.c.b16 %v380, %v379
  %v390 = vpack.c.b16 %v382, %v381
  %399 = vmatprep.subr.bf16.mxu0 0
  %400 = vmatpush1.bf16.msra.mxu0 %v390
  %401 = vmatprep.subr.bf16.mxu0 0
  %402 = vmatpush1.bf16.msra.mxu0 %v389
  %403 = vmatprep.subr.bf16.mxu0 0
  %404 = vmatpush1.bf16.msra.mxu0 %v388
  %405 = vmatprep.subr.bf16.mxu0 0
  %406 = vmatpush1.bf16.msra.mxu0 %v387
  %407 = vmatprep.subr.bf16.mxu0 0
  %408 = vmatpush1.bf16.msra.mxu0 %v386
  %409 = vmatprep.subr.bf16.mxu0 0
  %410 = vmatpush1.bf16.msra.mxu0 %v385
  %411 = vmatprep.subr.bf16.mxu0 0
  %412 = vmatpush1.bf16.msra.mxu0 %v384
  %413 = vmatprep.subr.bf16.mxu0 0
  %414 = vmatpush1.bf16.msra.mxu0 %v383
  %415 = vmatprep.subr.bf16.mxu0 0
  %416 = vmatpush2.bf16.msra.mxu0 0
  %417 = vmatprep.subr.bf16.mxu0 0
  %418 = vmatpush2.bf16.msra.mxu0 0
  %419 = vmatprep.subr.bf16.mxu0 0
  %420 = vmatpush2.bf16.msra.mxu0 0
  %421 = vmatprep.subr.bf16.mxu0 0
  %422 = vmatpush2.bf16.msra.mxu0 0
  %423 = vmatprep.subr.bf16.mxu0 0
  %424 = vmatpush2.bf16.msra.mxu0 0
  %425 = vmatprep.subr.bf16.mxu0 0
  %426 = vmatpush2.bf16.msra.mxu0 0
  %427 = vmatprep.subr.bf16.mxu0 0
  %428 = vmatpush2.bf16.msra.mxu0 0
  %429 = vmatprep.subr.bf16.mxu0 0
  %430 = vmatpush2.bf16.msra.mxu0 0
  %431 = vmatprep.mubr.bf16.mxu0 0
  %432 = vmatmul.mubr.bf16.gmra.mxu0 %v277
  %v433 = vpop.f32.mrf.mxu0
  %v434 = vadd.f32 0.0, %v433
  %v435 = vpop.f32.mrf.mxu0
  %v436 = vpop.f32.mrf.mxu0
  %v437 = vadd.f32 0.0, %v436
  %v438 = vpop.f32.mrf.mxu0
  %439 = vmatprep.mubr.bf16.mxu0 0
  %440 = vmatmul.mubr.bf16.gmra.mxu0 %v278
  %v441 = vpop.f32.mrf.mxu0
  %v442 = vadd.f32 0.0, %v441
  %v443 = vpop.f32.mrf.mxu0
  %v444 = vpop.f32.mrf.mxu0
  %v445 = vadd.f32 0.0, %v444
  %v446 = vpop.f32.mrf.mxu0
  %447 = vmatprep.mubr.bf16.mxu0 0
  %448 = vmatmul.mubr.bf16.gmra.mxu0 %v279
  %v449 = vpop.f32.mrf.mxu0
  %v450 = vadd.f32 0.0, %v449
  %v451 = vpop.f32.mrf.mxu0
  %v452 = vpop.f32.mrf.mxu0
  %v453 = vadd.f32 0.0, %v452
  %v454 = vpop.f32.mrf.mxu0
  %455 = vmatprep.mubr.bf16.mxu0 0
  %456 = vmatmul.mubr.bf16.gmra.mxu0 %v280
  %v457 = vpop.f32.mrf.mxu0
  %v458 = vadd.f32 0.0, %v457
  %v459 = vpop.f32.mrf.mxu0
  %v460 = vpop.f32.mrf.mxu0
  %v461 = vadd.f32 0.0, %v460
  %v462 = vpop.f32.mrf.mxu0
  %463 = vmatprep.mubr.bf16.mxu0 0
  %464 = vmatmul.mubr.bf16.gmra.mxu0 %v281
  %v465 = vpop.f32.mrf.mxu0
  %v466 = vadd.f32 0.0, %v465
  %v467 = vpop.f32.mrf.mxu0
  %v468 = vpop.f32.mrf.mxu0
  %v469 = vadd.f32 0.0, %v468
  %v470 = vpop.f32.mrf.mxu0
  %471 = vmatprep.mubr.bf16.mxu0 0
  %472 = vmatmul.mubr.bf16.gmra.mxu0 %v282
  %v473 = vpop.f32.mrf.mxu0
  %v474 = vadd.f32 0.0, %v473
  %v475 = vpop.f32.mrf.mxu0
  %v476 = vpop.f32.mrf.mxu0
  %v477 = vadd.f32 0.0, %v476
  %v478 = vpop.f32.mrf.mxu0
  %479 = vmatprep.mubr.bf16.mxu0 0
  %480 = vmatmul.mubr.bf16.gmra.mxu0 %v283
  %v481 = vpop.f32.mrf.mxu0
  %v482 = vadd.f32 0.0, %v481
  %v483 = vpop.f32.mrf.mxu0
  %v484 = vpop.f32.mrf.mxu0
  %v485 = vadd.f32 0.0, %v484
  %v486 = vpop.f32.mrf.mxu0
  %487 = vmatprep.mubr.bf16.mxu0 0
  %488 = vmatmul.mubr.bf16.gmra.mxu0 %v284
  %v489 = vpop.f32.mrf.mxu0
  %v490 = vadd.f32 0.0, %v489
  %v491 = vpop.f32.mrf.mxu0
  %v492 = vpop.f32.mrf.mxu0
  %v493 = vadd.f32 0.0, %v492
  %v494 = vpop.f32.mrf.mxu0
  %495 = vmatprep.mubr.bf16.mxu0 0
  %496 = vmatmul.mubr.bf16.gmra.mxu0 %v285
  %v497 = vpop.f32.mrf.mxu0
  %v498 = vadd.f32 0.0, %v497
  %v499 = vpop.f32.mrf.mxu0
  %v500 = vpop.f32.mrf.mxu0
  %v501 = vadd.f32 0.0, %v500
  %v502 = vpop.f32.mrf.mxu0
  %503 = vmatprep.mubr.bf16.mxu0 0
  %504 = vmatmul.mubr.bf16.gmra.mxu0 %v286
  %v505 = vpop.f32.mrf.mxu0
  %v506 = vadd.f32 0.0, %v505
  %v507 = vpop.f32.mrf.mxu0
  %v508 = vpop.f32.mrf.mxu0
  %v509 = vadd.f32 0.0, %v508
  %v510 = vpop.f32.mrf.mxu0
  %511 = vmatprep.mubr.bf16.mxu0 0
  %512 = vmatmul.mubr.bf16.gmra.mxu0 %v287
  %v513 = vpop.f32.mrf.mxu0
  %v514 = vadd.f32 0.0, %v513
  %v515 = vpop.f32.mrf.mxu0
  %v516 = vpop.f32.mrf.mxu0
  %v517 = vadd.f32 0.0, %v516
  %v518 = vpop.f32.mrf.mxu0
  %519 = vmatprep.mubr.bf16.mxu0 0
  %520 = vmatmul.mubr.bf16.gmra.mxu0 %v288
  %v521 = vpop.f32.mrf.mxu0
  %v522 = vadd.f32 0.0, %v521
  %v523 = vpop.f32.mrf.mxu0
  %v524 = vpop.f32.mrf.mxu0
  %v525 = vadd.f32 0.0, %v524
  %v526 = vpop.f32.mrf.mxu0
  %527 = vmatprep.mubr.bf16.mxu0 0
  %528 = vmatmul.mubr.bf16.gmra.mxu0 %v289
  %v529 = vpop.f32.mrf.mxu0
  %v530 = vadd.f32 0.0, %v529
  %v531 = vpop.f32.mrf.mxu0
  %v532 = vpop.f32.mrf.mxu0
  %v533 = vadd.f32 0.0, %v532
  %v534 = vpop.f32.mrf.mxu0
  %535 = vmatprep.mubr.bf16.mxu0 0
  %536 = vmatmul.mubr.bf16.gmra.mxu0 %v290
  %v537 = vpop.f32.mrf.mxu0
  %v538 = vadd.f32 0.0, %v537
  %v539 = vpop.f32.mrf.mxu0
  %v540 = vpop.f32.mrf.mxu0
  %v541 = vadd.f32 0.0, %v540
  %v542 = vpop.f32.mrf.mxu0
  %543 = vmatprep.mubr.bf16.mxu0 0
  %544 = vmatmul.mubr.bf16.gmra.mxu0 %v291
  %v545 = vpop.f32.mrf.mxu0
  %v546 = vadd.f32 0.0, %v545
  %v547 = vpop.f32.mrf.mxu0
  %v548 = vpop.f32.mrf.mxu0
  %v549 = vadd.f32 0.0, %v548
  %v550 = vpop.f32.mrf.mxu0
  %551 = vmatprep.mubr.bf16.mxu0 0
  %552 = vmatmul.mubr.bf16.gmra.mxu0 %v292
  %v553 = vpop.f32.mrf.mxu0
  %v554 = vadd.f32 0.0, %v553
  %v555 = vpop.f32.mrf.mxu0
  %v556 = vpop.f32.mrf.mxu0
  %v557 = vadd.f32 0.0, %v556
  %v558 = vpop.f32.mrf.mxu0
  %559 = vmatprep.mubr.bf16.mxu0 0
  %560 = vmatmul.mubr.bf16.gmra.mxu0 %v293
  %v561 = vpop.f32.mrf.mxu0
  %v562 = vadd.f32 0.0, %v561
  %v563 = vpop.f32.mrf.mxu0
  %v564 = vpop.f32.mrf.mxu0
  %v565 = vadd.f32 0.0, %v564
  %v566 = vpop.f32.mrf.mxu0
  %567 = vmatprep.mubr.bf16.mxu0 0
  %568 = vmatmul.mubr.bf16.gmra.mxu0 %v294
  %v569 = vpop.f32.mrf.mxu0
  %v570 = vadd.f32 0.0, %v569
  %v571 = vpop.f32.mrf.mxu0
  %v572 = vpop.f32.mrf.mxu0
  %v573 = vadd.f32 0.0, %v572
  %v574 = vpop.f32.mrf.mxu0
  %575 = vmatprep.mubr.bf16.mxu0 0
  %576 = vmatmul.mubr.bf16.gmra.mxu0 %v295
  %v577 = vpop.f32.mrf.mxu0
  %v578 = vadd.f32 0.0, %v577
  %v579 = vpop.f32.mrf.mxu0
  %v580 = vpop.f32.mrf.mxu0
  %v581 = vadd.f32 0.0, %v580
  %v582 = vpop.f32.mrf.mxu0
  %583 = vmatprep.mubr.bf16.mxu0 0
  %584 = vmatmul.mubr.bf16.gmra.mxu0 %v296
  %v585 = vpop.f32.mrf.mxu0
  %v586 = vadd.f32 0.0, %v585
  %v587 = vpop.f32.mrf.mxu0
  %v588 = vpop.f32.mrf.mxu0
  %v589 = vadd.f32 0.0, %v588
  %v590 = vpop.f32.mrf.mxu0
  %591 = vmatprep.mubr.bf16.mxu0 0
  %592 = vmatmul.mubr.bf16.gmra.mxu0 %v297
  %v593 = vpop.f32.mrf.mxu0
  %v594 = vadd.f32 0.0, %v593
  %v595 = vpop.f32.mrf.mxu0
  %v596 = vpop.f32.mrf.mxu0
  %v597 = vadd.f32 0.0, %v596
  %v598 = vpop.f32.mrf.mxu0
  %599 = vmatprep.mubr.bf16.mxu0 0
  %600 = vmatmul.mubr.bf16.gmra.mxu0 %v298
  %v601 = vpop.f32.mrf.mxu0
  %v602 = vadd.f32 0.0, %v601
  %v603 = vpop.f32.mrf.mxu0
  %v604 = vpop.f32.mrf.mxu0
  %v605 = vadd.f32 0.0, %v604
  %v606 = vpop.f32.mrf.mxu0
  %607 = vmatprep.mubr.bf16.mxu0 0
  %608 = vmatmul.mubr.bf16.gmra.mxu0 %v299
  %v609 = vpop.f32.mrf.mxu0
  %v610 = vadd.f32 0.0, %v609
  %v611 = vpop.f32.mrf.mxu0
  %v612 = vpop.f32.mrf.mxu0
  %v613 = vadd.f32 0.0, %v612
  %v614 = vpop.f32.mrf.mxu0
  %615 = vmatprep.mubr.bf16.mxu0 0
  %616 = vmatmul.mubr.bf16.gmra.mxu0 %v300
  %v617 = vpop.f32.mrf.mxu0
  %v618 = vadd.f32 0.0, %v617
  %v619 = vpop.f32.mrf.mxu0
  %v620 = vpop.f32.mrf.mxu0
  %v621 = vadd.f32 0.0, %v620
  %v622 = vpop.f32.mrf.mxu0
  %623 = vmatprep.mubr.bf16.mxu0 0
  %624 = vmatmul.mubr.bf16.gmra.mxu0 %v301
  %v625 = vpop.f32.mrf.mxu0
  %v626 = vadd.f32 0.0, %v625
  %v627 = vpop.f32.mrf.mxu0
  %v628 = vpop.f32.mrf.mxu0
  %v629 = vadd.f32 0.0, %v628
  %v630 = vpop.f32.mrf.mxu0
  %631 = vmatprep.mubr.bf16.mxu0 0
  %632 = vmatmul.mubr.bf16.gmra.mxu0 %v302
  %v633 = vpop.f32.mrf.mxu0
  %v634 = vadd.f32 0.0, %v633
  %v635 = vpop.f32.mrf.mxu0
  %v636 = vpop.f32.mrf.mxu0
  %v637 = vadd.f32 0.0, %v636
  %v638 = vpop.f32.mrf.mxu0
  %639 = vmatprep.mubr.bf16.mxu0 0
  %640 = vmatmul.mubr.bf16.gmra.mxu0 %v303
  %v641 = vpop.f32.mrf.mxu0
  %v642 = vadd.f32 0.0, %v641
  %v643 = vpop.f32.mrf.mxu0
  %v644 = vpop.f32.mrf.mxu0
  %v645 = vadd.f32 0.0, %v644
  %v646 = vpop.f32.mrf.mxu0
  %647 = vmatprep.mubr.bf16.mxu0 0
  %648 = vmatmul.mubr.bf16.gmra.mxu0 %v304
  %v649 = vpop.f32.mrf.mxu0
  %v650 = vadd.f32 0.0, %v649
  %v651 = vpop.f32.mrf.mxu0
  %v652 = vpop.f32.mrf.mxu0
  %v653 = vadd.f32 0.0, %v652
  %v654 = vpop.f32.mrf.mxu0
  %655 = vmatprep.mubr.bf16.mxu0 0
  %656 = vmatmul.mubr.bf16.gmra.mxu0 %v305
  %v657 = vpop.f32.mrf.mxu0
  %v658 = vadd.f32 0.0, %v657
  %v659 = vpop.f32.mrf.mxu0
  %v660 = vpop.f32.mrf.mxu0
  %v661 = vadd.f32 0.0, %v660
  %v662 = vpop.f32.mrf.mxu0
  %663 = vmatprep.mubr.bf16.mxu0 0
  %664 = vmatmul.mubr.bf16.gmra.mxu0 %v306
  %v665 = vpop.f32.mrf.mxu0
  %v666 = vadd.f32 0.0, %v665
  %v667 = vpop.f32.mrf.mxu0
  %v668 = vpop.f32.mrf.mxu0
  %v669 = vadd.f32 0.0, %v668
  %v670 = vpop.f32.mrf.mxu0
  %671 = vmatprep.mubr.bf16.mxu0 0
  %672 = vmatmul.mubr.bf16.gmra.mxu0 %v307
  %v673 = vpop.f32.mrf.mxu0
  %v674 = vadd.f32 0.0, %v673
  %v675 = vpop.f32.mrf.mxu0
  %v676 = vpop.f32.mrf.mxu0
  %v677 = vadd.f32 0.0, %v676
  %v678 = vpop.f32.mrf.mxu0
  %679 = vmatprep.mubr.bf16.mxu0 0
  %680 = vmatmul.mubr.bf16.gmra.mxu0 %v308
  %v681 = vpop.f32.mrf.mxu0
  %v682 = vadd.f32 0.0, %v681
  %v683 = vpop.f32.mrf.mxu0
  %v684 = vpop.f32.mrf.mxu0
  %v685 = vadd.f32 0.0, %v684
  %v686 = vpop.f32.mrf.mxu0
  %687 = vmatprep.mubr.bf16.mxu0 0
  %688 = vmatmul.mubr.bf16.gmra.mxu0 %v309
  %v689 = vpop.f32.mrf.mxu0
  %v690 = vadd.f32 0.0, %v689
  %v691 = vpop.f32.mrf.mxu0
  %v692 = vpop.f32.mrf.mxu0
  %v693 = vadd.f32 0.0, %v692
  %v694 = vpop.f32.mrf.mxu0
  %695 = vmatprep.mubr.bf16.mxu0 0
  %696 = vmatmul.mubr.bf16.gmra.mxu0 %v310
  %v697 = vpop.f32.mrf.mxu0
  %v698 = vadd.f32 0.0, %v697
  %v699 = vpop.f32.mrf.mxu0
  %v700 = vpop.f32.mrf.mxu0
  %v701 = vadd.f32 0.0, %v700
  %v702 = vpop.f32.mrf.mxu0
  %703 = vmatprep.mubr.bf16.mxu0 0
  %704 = vmatmul.mubr.bf16.gmra.mxu0 %v311
  %v705 = vpop.f32.mrf.mxu0
  %v706 = vadd.f32 0.0, %v705
  %v707 = vpop.f32.mrf.mxu0
  %v708 = vpop.f32.mrf.mxu0
  %v709 = vadd.f32 0.0, %v708
  %v710 = vpop.f32.mrf.mxu0
  %711 = vmatprep.mubr.bf16.mxu0 0
  %712 = vmatmul.mubr.bf16.gmra.mxu0 %v312
  %v713 = vpop.f32.mrf.mxu0
  %v714 = vadd.f32 0.0, %v713
  %v715 = vpop.f32.mrf.mxu0
  %v716 = vpop.f32.mrf.mxu0
  %v717 = vadd.f32 0.0, %v716
  %v718 = vpop.f32.mrf.mxu0
  %719 = vmatprep.mubr.bf16.mxu0 0
  %720 = vmatmul.mubr.bf16.gmra.mxu0 %v313
  %v721 = vpop.f32.mrf.mxu0
  %v722 = vadd.f32 0.0, %v721
  %v723 = vpop.f32.mrf.mxu0
  %v724 = vpop.f32.mrf.mxu0
  %v725 = vadd.f32 0.0, %v724
  %v726 = vpop.f32.mrf.mxu0
  %727 = vdwg.mxu0
  %v728 = vld [vmem:[%s6] sm:$0x1]
  %v729 = vld [vmem:[%s7] sm:$0x1]
  %v730 = vld [vmem:[%s3] sm:$0xff]
  %v731 = vld [vmem:[%s3 + $0x8] sm:$0xff]
  %v732 = vld [vmem:[%s3 + $0x10] sm:$0xff]
  %v733 = vld [vmem:[%s3 + $0x18] sm:$0xff]
  %v734 = vld [vmem:[%s3 + $0x20] sm:$0xff]
  %v735 = vld [vmem:[%s3 + $0x28] sm:$0xff]
  %v736 = vld [vmem:[%s3 + $0x30] sm:$0xff]
  %v737 = vld [vmem:[%s3 + $0x38] sm:$0xff]
  %v738 = vld [vmem:[%s3 + $0x40] sm:$0xff]
  %v739 = vld [vmem:[%s3 + $0x48] sm:$0xff]
  %v740 = vld [vmem:[%s3 + $0x50] sm:$0xff]
  %v741 = vld [vmem:[%s3 + $0x58] sm:$0xff]
  %v742 = vld [vmem:[%s3 + $0x60] sm:$0xff]
  %v743 = vld [vmem:[%s3 + $0x68] sm:$0xff]
  %v744 = vld [vmem:[%s3 + $0x70] sm:$0xff]
  %v745 = vld [vmem:[%s3 + $0x78] sm:$0xff]
  %v746 = vld [vmem:[%s3 + $0x80] sm:$0xff]
  %v747 = vld [vmem:[%s3 + $0x88] sm:$0xff]
  %v748 = vld [vmem:[%s3 + $0x90] sm:$0xff]
  %v749 = vld [vmem:[%s3 + $0x98] sm:$0xff]
  %v750 = vld [vmem:[%s3 + $0xa0] sm:$0xff]
  %v751 = vld [vmem:[%s3 + $0xa8] sm:$0xff]
  %v752 = vld [vmem:[%s3 + $0xb0] sm:$0xff]
  %v753 = vld [vmem:[%s3 + $0xb8] sm:$0xff]
  %v754 = vld [vmem:[%s3 + $0xc0] sm:$0xff]
  %v755 = vld [vmem:[%s3 + $0xc8] sm:$0xff]
  %v756 = vld [vmem:[%s3 + $0xd0] sm:$0xff]
  %v757 = vld [vmem:[%s3 + $0xd8] sm:$0xff]
  %v758 = vld [vmem:[%s3 + $0xe0] sm:$0xff]
  %v759 = vld [vmem:[%s3 + $0xe8] sm:$0xff]
  %v760 = vld [vmem:[%s3 + $0xf0] sm:$0xff]
  %v761 = vld [vmem:[%s3 + $0xf8] sm:$0xff]
  %v762 = vld [vmem:[%s3 + $0x100] sm:$0xff]
  %v763 = vld [vmem:[%s3 + $0x108] sm:$0xff]
  %v764 = vld [vmem:[%s3 + $0x110] sm:$0xff]
  %v765 = vld [vmem:[%s3 + $0x118] sm:$0xff]
  %v766 = vld [vmem:[%s3 + $0x120] sm:$0xff]
  %v767 = vld [vmem:[%s3 + $0x128] sm:$0xff]
  %v768 = vld [vmem:[%s3 + $0x130] sm:$0xff]
  %v769 = vld [vmem:[%s3 + $0x138] sm:$0xff]
  %v770 = vld [vmem:[%s3 + $0x140] sm:$0xff]
  %v771 = vld [vmem:[%s3 + $0x148] sm:$0xff]
  %v772 = vld [vmem:[%s3 + $0x150] sm:$0xff]
  %v773 = vld [vmem:[%s3 + $0x158] sm:$0xff]
  %v774 = vld [vmem:[%s3 + $0x160] sm:$0xff]
  %v775 = vld [vmem:[%s3 + $0x168] sm:$0xff]
  %v776 = vld [vmem:[%s3 + $0x170] sm:$0xff]
  %v777 = vld [vmem:[%s3 + $0x178] sm:$0xff]
  %v778 = vld [vmem:[%s3 + $0x180] sm:$0xff]
  %v779 = vld [vmem:[%s3 + $0x188] sm:$0xff]
  %v780 = vld [vmem:[%s3 + $0x190] sm:$0xff]
  %v781 = vld [vmem:[%s3 + $0x198] sm:$0xff]
  %v782 = vld [vmem:[%s3 + $0x1a0] sm:$0xff]
  %v783 = vld [vmem:[%s3 + $0x1a8] sm:$0xff]
  %v784 = vld [vmem:[%s3 + $0x1b0] sm:$0xff]
  %v785 = vld [vmem:[%s3 + $0x1b8] sm:$0xff]
  %v786 = vld [vmem:[%s3 + $0x1c0] sm:$0xff]
  %v787 = vld [vmem:[%s3 + $0x1c8] sm:$0xff]
  %v788 = vld [vmem:[%s3 + $0x1d0] sm:$0xff]
  %v789 = vld [vmem:[%s3 + $0x1d8] sm:$0xff]
  %v790 = vld [vmem:[%s3 + $0x1e0] sm:$0xff]
  %v791 = vld [vmem:[%s3 + $0x1e8] sm:$0xff]
  %v792 = vld [vmem:[%s3 + $0x1f0] sm:$0xff]
  %v793 = vld [vmem:[%s3 + $0x1f8] sm:$0xff]
  %v794 = vld [vmem:[%s3 + $0x200] sm:$0xff]
  %v795 = vld [vmem:[%s3 + $0x208] sm:$0xff]
  %v796 = vld [vmem:[%s3 + $0x210] sm:$0xff]
  %v797 = vld [vmem:[%s3 + $0x218] sm:$0xff]
  %v798 = vld [vmem:[%s3 + $0x220] sm:$0xff]
  %v799 = vld [vmem:[%s3 + $0x228] sm:$0xff]
  %v800 = vld [vmem:[%s3 + $0x230] sm:$0xff]
  %v801 = vld [vmem:[%s3 + $0x238] sm:$0xff]
  %v802 = vld [vmem:[%s3 + $0x240] sm:$0xff]
  %v803 = vld [vmem:[%s3 + $0x248] sm:$0xff]
  %v805 = vlaneseq
  %v806 = vshrl.u32 %v805, 7
  %v807 = vsub.s32 0, %v806
  %v808 = vrot.slane %v728, %v807
  %811 = vset.pattern.permute.xlu0 0
  %812 = vperm.xlu0 %811, %v730
  %v813 = vpop.permute.xlu0 %812
  %816 = vset.pattern.permute.xlu0 0
  %817 = vperm.xlu0 %816, %v731
  %v818 = vpop.permute.xlu0 %817
  %821 = vset.pattern.permute.xlu0 0
  %822 = vperm.xlu0 %821, %v732
  %v823 = vpop.permute.xlu0 %822
  %826 = vset.pattern.permute.xlu0 0
  %827 = vperm.xlu0 %826, %v733
  %v828 = vpop.permute.xlu0 %827
  %831 = vset.pattern.permute.xlu0 0
  %832 = vperm.xlu0 %831, %v734
  %v833 = vpop.permute.xlu0 %832
  %836 = vset.pattern.permute.xlu0 0
  %837 = vperm.xlu0 %836, %v735
  %v838 = vpop.permute.xlu0 %837
  %841 = vset.pattern.permute.xlu0 0
  %842 = vperm.xlu0 %841, %v736
  %v843 = vpop.permute.xlu0 %842
  %846 = vset.pattern.permute.xlu0 0
  %847 = vperm.xlu0 %846, %v737
  %v848 = vpop.permute.xlu0 %847
  %851 = vset.pattern.permute.xlu0 0
  %852 = vperm.xlu0 %851, %v738
  %v853 = vpop.permute.xlu0 %852
  %856 = vset.pattern.permute.xlu0 0
  %857 = vperm.xlu0 %856, %v739
  %v858 = vpop.permute.xlu0 %857
  %861 = vset.pattern.permute.xlu0 0
  %862 = vperm.xlu0 %861, %v740
  %v863 = vpop.permute.xlu0 %862
  %866 = vset.pattern.permute.xlu0 0
  %867 = vperm.xlu0 %866, %v741
  %v868 = vpop.permute.xlu0 %867
  %871 = vset.pattern.permute.xlu0 0
  %872 = vperm.xlu0 %871, %v742
  %v873 = vpop.permute.xlu0 %872
  %876 = vset.pattern.permute.xlu0 0
  %877 = vperm.xlu0 %876, %v743
  %v878 = vpop.permute.xlu0 %877
  %881 = vset.pattern.permute.xlu0 0
  %882 = vperm.xlu0 %881, %v744
  %v883 = vpop.permute.xlu0 %882
  %886 = vset.pattern.permute.xlu0 0
  %887 = vperm.xlu0 %886, %v745
  %v888 = vpop.permute.xlu0 %887
  %891 = vset.pattern.permute.xlu0 0
  %892 = vperm.xlu0 %891, %v746
  %v893 = vpop.permute.xlu0 %892
  %896 = vset.pattern.permute.xlu0 0
  %897 = vperm.xlu0 %896, %v747
  %v898 = vpop.permute.xlu0 %897
  %901 = vset.pattern.permute.xlu0 0
  %902 = vperm.xlu0 %901, %v748
  %v903 = vpop.permute.xlu0 %902
  %906 = vset.pattern.permute.xlu0 0
  %907 = vperm.xlu0 %906, %v749
  %v908 = vpop.permute.xlu0 %907
  %911 = vset.pattern.permute.xlu0 0
  %912 = vperm.xlu0 %911, %v750
  %v913 = vpop.permute.xlu0 %912
  %916 = vset.pattern.permute.xlu0 0
  %917 = vperm.xlu0 %916, %v751
  %v918 = vpop.permute.xlu0 %917
  %921 = vset.pattern.permute.xlu0 0
  %922 = vperm.xlu0 %921, %v752
  %v923 = vpop.permute.xlu0 %922
  %926 = vset.pattern.permute.xlu0 0
  %927 = vperm.xlu0 %926, %v753
  %v928 = vpop.permute.xlu0 %927
  %931 = vset.pattern.permute.xlu0 0
  %932 = vperm.xlu0 %931, %v754
  %v933 = vpop.permute.xlu0 %932
  %936 = vset.pattern.permute.xlu0 0
  %937 = vperm.xlu0 %936, %v755
  %v938 = vpop.permute.xlu0 %937
  %941 = vset.pattern.permute.xlu0 0
  %942 = vperm.xlu0 %941, %v756
  %v943 = vpop.permute.xlu0 %942
  %946 = vset.pattern.permute.xlu0 0
  %947 = vperm.xlu0 %946, %v757
  %v948 = vpop.permute.xlu0 %947
  %951 = vset.pattern.permute.xlu0 0
  %952 = vperm.xlu0 %951, %v758
  %v953 = vpop.permute.xlu0 %952
  %956 = vset.pattern.permute.xlu0 0
  %957 = vperm.xlu0 %956, %v759
  %v958 = vpop.permute.xlu0 %957
  %961 = vset.pattern.permute.xlu0 0
  %962 = vperm.xlu0 %961, %v760
  %v963 = vpop.permute.xlu0 %962
  %966 = vset.pattern.permute.xlu0 0
  %967 = vperm.xlu0 %966, %v761
  %v968 = vpop.permute.xlu0 %967
  %971 = vset.pattern.permute.xlu0 0
  %972 = vperm.xlu0 %971, %v762
  %v973 = vpop.permute.xlu0 %972
  %976 = vset.pattern.permute.xlu0 0
  %977 = vperm.xlu0 %976, %v763
  %v978 = vpop.permute.xlu0 %977
  %981 = vset.pattern.permute.xlu0 0
  %982 = vperm.xlu0 %981, %v764
  %v983 = vpop.permute.xlu0 %982
  %986 = vset.pattern.permute.xlu0 0
  %987 = vperm.xlu0 %986, %v765
  %v988 = vpop.permute.xlu0 %987
  %991 = vset.pattern.permute.xlu0 0
  %992 = vperm.xlu0 %991, %v766
  %v993 = vpop.permute.xlu0 %992
  %996 = vset.pattern.permute.xlu0 0
  %997 = vperm.xlu0 %996, %v767
  %v998 = vpop.permute.xlu0 %997
  %1001 = vset.pattern.permute.xlu0 0
  %1002 = vperm.xlu0 %1001, %v768
  %v1003 = vpop.permute.xlu0 %1002
  %1006 = vset.pattern.permute.xlu0 0
  %1007 = vperm.xlu0 %1006, %v769
  %v1008 = vpop.permute.xlu0 %1007
  %1011 = vset.pattern.permute.xlu0 0
  %1012 = vperm.xlu0 %1011, %v770
  %v1013 = vpop.permute.xlu0 %1012
  %1016 = vset.pattern.permute.xlu0 0
  %1017 = vperm.xlu0 %1016, %v771
  %v1018 = vpop.permute.xlu0 %1017
  %1021 = vset.pattern.permute.xlu0 0
  %1022 = vperm.xlu0 %1021, %v772
  %v1023 = vpop.permute.xlu0 %1022
  %1026 = vset.pattern.permute.xlu0 0
  %1027 = vperm.xlu0 %1026, %v773
  %v1028 = vpop.permute.xlu0 %1027
  %1031 = vset.pattern.permute.xlu0 0
  %1032 = vperm.xlu0 %1031, %v774
  %v1033 = vpop.permute.xlu0 %1032
  %1036 = vset.pattern.permute.xlu0 0
  %1037 = vperm.xlu0 %1036, %v775
  %v1038 = vpop.permute.xlu0 %1037
  %1041 = vset.pattern.permute.xlu0 0
  %1042 = vperm.xlu0 %1041, %v776
  %v1043 = vpop.permute.xlu0 %1042
  %1046 = vset.pattern.permute.xlu0 0
  %1047 = vperm.xlu0 %1046, %v777
  %v1048 = vpop.permute.xlu0 %1047
  %1051 = vset.pattern.permute.xlu0 0
  %1052 = vperm.xlu0 %1051, %v778
  %v1053 = vpop.permute.xlu0 %1052
  %1056 = vset.pattern.permute.xlu0 0
  %1057 = vperm.xlu0 %1056, %v779
  %v1058 = vpop.permute.xlu0 %1057
  %1061 = vset.pattern.permute.xlu0 0
  %1062 = vperm.xlu0 %1061, %v780
  %v1063 = vpop.permute.xlu0 %1062
  %1066 = vset.pattern.permute.xlu0 0
  %1067 = vperm.xlu0 %1066, %v781
  %v1068 = vpop.permute.xlu0 %1067
  %1071 = vset.pattern.permute.xlu0 0
  %1072 = vperm.xlu0 %1071, %v782
  %v1073 = vpop.permute.xlu0 %1072
  %1076 = vset.pattern.permute.xlu0 0
  %1077 = vperm.xlu0 %1076, %v783
  %v1078 = vpop.permute.xlu0 %1077
  %1081 = vset.pattern.permute.xlu0 0
  %1082 = vperm.xlu0 %1081, %v784
  %v1083 = vpop.permute.xlu0 %1082
  %1086 = vset.pattern.permute.xlu0 0
  %1087 = vperm.xlu0 %1086, %v785
  %v1088 = vpop.permute.xlu0 %1087
  %1091 = vset.pattern.permute.xlu0 0
  %1092 = vperm.xlu0 %1091, %v786
  %v1093 = vpop.permute.xlu0 %1092
  %1096 = vset.pattern.permute.xlu0 0
  %1097 = vperm.xlu0 %1096, %v787
  %v1098 = vpop.permute.xlu0 %1097
  %1101 = vset.pattern.permute.xlu0 0
  %1102 = vperm.xlu0 %1101, %v788
  %v1103 = vpop.permute.xlu0 %1102
  %1106 = vset.pattern.permute.xlu0 0
  %1107 = vperm.xlu0 %1106, %v789
  %v1108 = vpop.permute.xlu0 %1107
  %1111 = vset.pattern.permute.xlu0 0
  %1112 = vperm.xlu0 %1111, %v790
  %v1113 = vpop.permute.xlu0 %1112
  %1116 = vset.pattern.permute.xlu0 0
  %1117 = vperm.xlu0 %1116, %v791
  %v1118 = vpop.permute.xlu0 %1117
  %1121 = vset.pattern.permute.xlu0 0
  %1122 = vperm.xlu0 %1121, %v792
  %v1123 = vpop.permute.xlu0 %1122
  %1126 = vset.pattern.permute.xlu0 0
  %1127 = vperm.xlu0 %1126, %v793
  %v1128 = vpop.permute.xlu0 %1127
  %1131 = vset.pattern.permute.xlu0 0
  %1132 = vperm.xlu0 %1131, %v794
  %v1133 = vpop.permute.xlu0 %1132
  %1136 = vset.pattern.permute.xlu0 0
  %1137 = vperm.xlu0 %1136, %v795
  %v1138 = vpop.permute.xlu0 %1137
  %1141 = vset.pattern.permute.xlu0 0
  %1142 = vperm.xlu0 %1141, %v796
  %v1143 = vpop.permute.xlu0 %1142
  %1146 = vset.pattern.permute.xlu0 0
  %1147 = vperm.xlu0 %1146, %v797
  %v1148 = vpop.permute.xlu0 %1147
  %1151 = vset.pattern.permute.xlu0 0
  %1152 = vperm.xlu0 %1151, %v798
  %v1153 = vpop.permute.xlu0 %1152
  %1156 = vset.pattern.permute.xlu0 0
  %1157 = vperm.xlu0 %1156, %v799
  %v1158 = vpop.permute.xlu0 %1157
  %1161 = vset.pattern.permute.xlu0 0
  %1162 = vperm.xlu0 %1161, %v800
  %v1163 = vpop.permute.xlu0 %1162
  %1166 = vset.pattern.permute.xlu0 0
  %1167 = vperm.xlu0 %1166, %v801
  %v1168 = vpop.permute.xlu0 %1167
  %1171 = vset.pattern.permute.xlu0 0
  %1172 = vperm.xlu0 %1171, %v802
  %v1173 = vpop.permute.xlu0 %1172
  %1176 = vset.pattern.permute.xlu0 0
  %1177 = vperm.xlu0 %1176, %v803
  %v1178 = vpop.permute.xlu0 %1177
  %v1180 = vmul.f32 %v808, %v813
  %v1181 = vmul.f32 %v808, %v818
  %v1182 = vmul.f32 %v808, %v823
  %v1183 = vmul.f32 %v808, %v828
  %v1184 = vmul.f32 %v808, %v833
  %v1185 = vmul.f32 %v808, %v838
  %v1186 = vmul.f32 %v808, %v843
  %v1187 = vmul.f32 %v808, %v848
  %v1188 = vmul.f32 %v808, %v853
  %v1189 = vmul.f32 %v808, %v858
  %v1190 = vmul.f32 %v808, %v863
  %v1191 = vmul.f32 %v808, %v868
  %v1192 = vmul.f32 %v808, %v873
  %v1193 = vmul.f32 %v808, %v878
  %v1194 = vmul.f32 %v808, %v883
  %v1195 = vmul.f32 %v808, %v888
  %v1196 = vmul.f32 %v808, %v893
  %v1197 = vmul.f32 %v808, %v898
  %v1198 = vmul.f32 %v808, %v903
  %v1199 = vmul.f32 %v808, %v908
  %v1200 = vmul.f32 %v808, %v913
  %v1201 = vmul.f32 %v808, %v918
  %v1202 = vmul.f32 %v808, %v923
  %v1203 = vmul.f32 %v808, %v928
  %v1204 = vmul.f32 %v808, %v933
  %v1205 = vmul.f32 %v808, %v938
  %v1206 = vmul.f32 %v808, %v943
  %v1207 = vmul.f32 %v808, %v948
  %v1208 = vmul.f32 %v808, %v953
  %v1209 = vmul.f32 %v808, %v958
  %v1210 = vmul.f32 %v808, %v963
  %v1211 = vmul.f32 %v808, %v968
  %v1212 = vmul.f32 %v808, %v973
  %v1213 = vmul.f32 %v808, %v978
  %v1214 = vmul.f32 %v808, %v983
  %v1215 = vmul.f32 %v808, %v988
  %v1216 = vmul.f32 %v808, %v993
  %v1217 = vmul.f32 %v808, %v998
  %v1218 = vmul.f32 %v808, %v1003
  %v1219 = vmul.f32 %v808, %v1008
  %v1220 = vmul.f32 %v808, %v1013
  %v1221 = vmul.f32 %v808, %v1018
  %v1222 = vmul.f32 %v808, %v1023
  %v1223 = vmul.f32 %v808, %v1028
  %v1224 = vmul.f32 %v808, %v1033
  %v1225 = vmul.f32 %v808, %v1038
  %v1226 = vmul.f32 %v808, %v1043
  %v1227 = vmul.f32 %v808, %v1048
  %v1228 = vmul.f32 %v808, %v1053
  %v1229 = vmul.f32 %v808, %v1058
  %v1230 = vmul.f32 %v808, %v1063
  %v1231 = vmul.f32 %v808, %v1068
  %v1232 = vmul.f32 %v808, %v1073
  %v1233 = vmul.f32 %v808, %v1078
  %v1234 = vmul.f32 %v808, %v1083
  %v1235 = vmul.f32 %v808, %v1088
  %v1236 = vmul.f32 %v808, %v1093
  %v1237 = vmul.f32 %v808, %v1098
  %v1238 = vmul.f32 %v808, %v1103
  %v1239 = vmul.f32 %v808, %v1108
  %v1240 = vmul.f32 %v808, %v1113
  %v1241 = vmul.f32 %v808, %v1118
  %v1242 = vmul.f32 %v808, %v1123
  %v1243 = vmul.f32 %v808, %v1128
  %v1244 = vmul.f32 %v808, %v1133
  %v1245 = vmul.f32 %v808, %v1138
  %v1246 = vmul.f32 %v808, %v1143
  %v1247 = vmul.f32 %v808, %v1148
  %v1248 = vmul.f32 %v808, %v1153
  %v1249 = vmul.f32 %v808, %v1158
  %v1250 = vmul.f32 %v808, %v1163
  %v1251 = vmul.f32 %v808, %v1168
  %v1252 = vmul.f32 %v808, %v1173
  %v1253 = vmul.f32 %v808, %v1178
  %v1254 = vsub.f32 1.0, %v728
  %v1255 = vld [vmem:[%s2] sm:$0xff]
  %v1256 = vld [vmem:[%s2 + $0x8] sm:$0xff]
  %v1257 = vld [vmem:[%s2 + $0x10] sm:$0xff]
  %v1258 = vld [vmem:[%s2 + $0x18] sm:$0xff]
  %v1259 = vld [vmem:[%s2 + $0x20] sm:$0xff]
  %v1260 = vld [vmem:[%s2 + $0x28] sm:$0xff]
  %v1261 = vld [vmem:[%s2 + $0x30] sm:$0xff]
  %v1262 = vld [vmem:[%s2 + $0x38] sm:$0xff]
  %v1263 = vld [vmem:[%s2 + $0x40] sm:$0xff]
  %v1264 = vld [vmem:[%s2 + $0x48] sm:$0xff]
  %v1265 = vld [vmem:[%s2 + $0x50] sm:$0xff]
  %v1266 = vld [vmem:[%s2 + $0x58] sm:$0xff]
  %v1267 = vld [vmem:[%s2 + $0x60] sm:$0xff]
  %v1268 = vld [vmem:[%s2 + $0x68] sm:$0xff]
  %v1269 = vld [vmem:[%s2 + $0x70] sm:$0xff]
  %v1270 = vld [vmem:[%s2 + $0x78] sm:$0xff]
  %v1271 = vld [vmem:[%s2 + $0x80] sm:$0xff]
  %v1272 = vld [vmem:[%s2 + $0x88] sm:$0xff]
  %v1273 = vld [vmem:[%s2 + $0x90] sm:$0xff]
  %v1274 = vld [vmem:[%s2 + $0x98] sm:$0xff]
  %v1275 = vld [vmem:[%s2 + $0xa0] sm:$0xff]
  %v1276 = vld [vmem:[%s2 + $0xa8] sm:$0xff]
  %v1277 = vld [vmem:[%s2 + $0xb0] sm:$0xff]
  %v1278 = vld [vmem:[%s2 + $0xb8] sm:$0xff]
  %v1279 = vld [vmem:[%s2 + $0xc0] sm:$0xff]
  %v1280 = vld [vmem:[%s2 + $0xc8] sm:$0xff]
  %v1281 = vld [vmem:[%s2 + $0xd0] sm:$0xff]
  %v1282 = vld [vmem:[%s2 + $0xd8] sm:$0xff]
  %v1283 = vld [vmem:[%s2 + $0xe0] sm:$0xff]
  %v1284 = vld [vmem:[%s2 + $0xe8] sm:$0xff]
  %v1285 = vld [vmem:[%s2 + $0xf0] sm:$0xff]
  %v1286 = vld [vmem:[%s2 + $0xf8] sm:$0xff]
  %v1287 = vld [vmem:[%s2 + $0x100] sm:$0xff]
  %v1288 = vld [vmem:[%s2 + $0x108] sm:$0xff]
  %v1289 = vld [vmem:[%s2 + $0x110] sm:$0xff]
  %v1290 = vld [vmem:[%s2 + $0x118] sm:$0xff]
  %v1291 = vld [vmem:[%s2 + $0x120] sm:$0xff]
  %v1292 = vld [vmem:[%s2 + $0x128] sm:$0xff]
  %v1293 = vld [vmem:[%s2 + $0x130] sm:$0xff]
  %v1294 = vld [vmem:[%s2 + $0x138] sm:$0xff]
  %v1295 = vld [vmem:[%s2 + $0x140] sm:$0xff]
  %v1296 = vld [vmem:[%s2 + $0x148] sm:$0xff]
  %v1297 = vld [vmem:[%s2 + $0x150] sm:$0xff]
  %v1298 = vld [vmem:[%s2 + $0x158] sm:$0xff]
  %v1299 = vld [vmem:[%s2 + $0x160] sm:$0xff]
  %v1300 = vld [vmem:[%s2 + $0x168] sm:$0xff]
  %v1301 = vld [vmem:[%s2 + $0x170] sm:$0xff]
  %v1302 = vld [vmem:[%s2 + $0x178] sm:$0xff]
  %v1303 = vld [vmem:[%s2 + $0x180] sm:$0xff]
  %v1304 = vld [vmem:[%s2 + $0x188] sm:$0xff]
  %v1305 = vld [vmem:[%s2 + $0x190] sm:$0xff]
  %v1306 = vld [vmem:[%s2 + $0x198] sm:$0xff]
  %v1307 = vld [vmem:[%s2 + $0x1a0] sm:$0xff]
  %v1308 = vld [vmem:[%s2 + $0x1a8] sm:$0xff]
  %v1309 = vld [vmem:[%s2 + $0x1b0] sm:$0xff]
  %v1310 = vld [vmem:[%s2 + $0x1b8] sm:$0xff]
  %v1311 = vld [vmem:[%s2 + $0x1c0] sm:$0xff]
  %v1312 = vld [vmem:[%s2 + $0x1c8] sm:$0xff]
  %v1313 = vld [vmem:[%s2 + $0x1d0] sm:$0xff]
  %v1314 = vld [vmem:[%s2 + $0x1d8] sm:$0xff]
  %v1315 = vld [vmem:[%s2 + $0x1e0] sm:$0xff]
  %v1316 = vld [vmem:[%s2 + $0x1e8] sm:$0xff]
  %v1317 = vld [vmem:[%s2 + $0x1f0] sm:$0xff]
  %v1318 = vld [vmem:[%s2 + $0x1f8] sm:$0xff]
  %v1319 = vld [vmem:[%s2 + $0x200] sm:$0xff]
  %v1320 = vld [vmem:[%s2 + $0x208] sm:$0xff]
  %v1321 = vld [vmem:[%s2 + $0x210] sm:$0xff]
  %v1322 = vld [vmem:[%s2 + $0x218] sm:$0xff]
  %v1323 = vld [vmem:[%s2 + $0x220] sm:$0xff]
  %v1324 = vld [vmem:[%s2 + $0x228] sm:$0xff]
  %v1325 = vld [vmem:[%s2 + $0x230] sm:$0xff]
  %v1326 = vld [vmem:[%s2 + $0x238] sm:$0xff]
  %v1327 = vld [vmem:[%s2 + $0x240] sm:$0xff]
  %v1328 = vld [vmem:[%s2 + $0x248] sm:$0xff]
  %v1330 = vlaneseq
  %v1331 = vshrl.u32 %v1330, 7
  %v1332 = vsub.s32 0, %v1331
  %v1333 = vrot.slane %v1254, %v1332
  %1336 = vset.pattern.permute.xlu0 0
  %1337 = vperm.xlu0 %1336, %v1255
  %v1338 = vpop.permute.xlu0 %1337
  %1341 = vset.pattern.permute.xlu0 0
  %1342 = vperm.xlu0 %1341, %v1256
  %v1343 = vpop.permute.xlu0 %1342
  %1346 = vset.pattern.permute.xlu0 0
  %1347 = vperm.xlu0 %1346, %v1257
  %v1348 = vpop.permute.xlu0 %1347
  %1351 = vset.pattern.permute.xlu0 0
  %1352 = vperm.xlu0 %1351, %v1258
  %v1353 = vpop.permute.xlu0 %1352
  %1356 = vset.pattern.permute.xlu0 0
  %1357 = vperm.xlu0 %1356, %v1259
  %v1358 = vpop.permute.xlu0 %1357
  %1361 = vset.pattern.permute.xlu0 0
  %1362 = vperm.xlu0 %1361, %v1260
  %v1363 = vpop.permute.xlu0 %1362
  %1366 = vset.pattern.permute.xlu0 0
  %1367 = vperm.xlu0 %1366, %v1261
  %v1368 = vpop.permute.xlu0 %1367
  %1371 = vset.pattern.permute.xlu0 0
  %1372 = vperm.xlu0 %1371, %v1262
  %v1373 = vpop.permute.xlu0 %1372
  %1376 = vset.pattern.permute.xlu0 0
  %1377 = vperm.xlu0 %1376, %v1263
  %v1378 = vpop.permute.xlu0 %1377
  %1381 = vset.pattern.permute.xlu0 0
  %1382 = vperm.xlu0 %1381, %v1264
  %v1383 = vpop.permute.xlu0 %1382
  %1386 = vset.pattern.permute.xlu0 0
  %1387 = vperm.xlu0 %1386, %v1265
  %v1388 = vpop.permute.xlu0 %1387
  %1391 = vset.pattern.permute.xlu0 0
  %1392 = vperm.xlu0 %1391, %v1266
  %v1393 = vpop.permute.xlu0 %1392
  %1396 = vset.pattern.permute.xlu0 0
  %1397 = vperm.xlu0 %1396, %v1267
  %v1398 = vpop.permute.xlu0 %1397
  %1401 = vset.pattern.permute.xlu0 0
  %1402 = vperm.xlu0 %1401, %v1268
  %v1403 = vpop.permute.xlu0 %1402
  %1406 = vset.pattern.permute.xlu0 0
  %1407 = vperm.xlu0 %1406, %v1269
  %v1408 = vpop.permute.xlu0 %1407
  %1411 = vset.pattern.permute.xlu0 0
  %1412 = vperm.xlu0 %1411, %v1270
  %v1413 = vpop.permute.xlu0 %1412
  %1416 = vset.pattern.permute.xlu0 0
  %1417 = vperm.xlu0 %1416, %v1271
  %v1418 = vpop.permute.xlu0 %1417
  %1421 = vset.pattern.permute.xlu0 0
  %1422 = vperm.xlu0 %1421, %v1272
  %v1423 = vpop.permute.xlu0 %1422
  %1426 = vset.pattern.permute.xlu0 0
  %1427 = vperm.xlu0 %1426, %v1273
  %v1428 = vpop.permute.xlu0 %1427
  %1431 = vset.pattern.permute.xlu0 0
  %1432 = vperm.xlu0 %1431, %v1274
  %v1433 = vpop.permute.xlu0 %1432
  %1436 = vset.pattern.permute.xlu0 0
  %1437 = vperm.xlu0 %1436, %v1275
  %v1438 = vpop.permute.xlu0 %1437
  %1441 = vset.pattern.permute.xlu0 0
  %1442 = vperm.xlu0 %1441, %v1276
  %v1443 = vpop.permute.xlu0 %1442
  %1446 = vset.pattern.permute.xlu0 0
  %1447 = vperm.xlu0 %1446, %v1277
  %v1448 = vpop.permute.xlu0 %1447
  %1451 = vset.pattern.permute.xlu0 0
  %1452 = vperm.xlu0 %1451, %v1278
  %v1453 = vpop.permute.xlu0 %1452
  %1456 = vset.pattern.permute.xlu0 0
  %1457 = vperm.xlu0 %1456, %v1279
  %v1458 = vpop.permute.xlu0 %1457
  %1461 = vset.pattern.permute.xlu0 0
  %1462 = vperm.xlu0 %1461, %v1280
  %v1463 = vpop.permute.xlu0 %1462
  %1466 = vset.pattern.permute.xlu0 0
  %1467 = vperm.xlu0 %1466, %v1281
  %v1468 = vpop.permute.xlu0 %1467
  %1471 = vset.pattern.permute.xlu0 0
  %1472 = vperm.xlu0 %1471, %v1282
  %v1473 = vpop.permute.xlu0 %1472
  %1476 = vset.pattern.permute.xlu0 0
  %1477 = vperm.xlu0 %1476, %v1283
  %v1478 = vpop.permute.xlu0 %1477
  %1481 = vset.pattern.permute.xlu0 0
  %1482 = vperm.xlu0 %1481, %v1284
  %v1483 = vpop.permute.xlu0 %1482
  %1486 = vset.pattern.permute.xlu0 0
  %1487 = vperm.xlu0 %1486, %v1285
  %v1488 = vpop.permute.xlu0 %1487
  %1491 = vset.pattern.permute.xlu0 0
  %1492 = vperm.xlu0 %1491, %v1286
  %v1493 = vpop.permute.xlu0 %1492
  %1496 = vset.pattern.permute.xlu0 0
  %1497 = vperm.xlu0 %1496, %v1287
  %v1498 = vpop.permute.xlu0 %1497
  %1501 = vset.pattern.permute.xlu0 0
  %1502 = vperm.xlu0 %1501, %v1288
  %v1503 = vpop.permute.xlu0 %1502
  %1506 = vset.pattern.permute.xlu0 0
  %1507 = vperm.xlu0 %1506, %v1289
  %v1508 = vpop.permute.xlu0 %1507
  %1511 = vset.pattern.permute.xlu0 0
  %1512 = vperm.xlu0 %1511, %v1290
  %v1513 = vpop.permute.xlu0 %1512
  %1516 = vset.pattern.permute.xlu0 0
  %1517 = vperm.xlu0 %1516, %v1291
  %v1518 = vpop.permute.xlu0 %1517
  %1521 = vset.pattern.permute.xlu0 0
  %1522 = vperm.xlu0 %1521, %v1292
  %v1523 = vpop.permute.xlu0 %1522
  %1526 = vset.pattern.permute.xlu0 0
  %1527 = vperm.xlu0 %1526, %v1293
  %v1528 = vpop.permute.xlu0 %1527
  %1531 = vset.pattern.permute.xlu0 0
  %1532 = vperm.xlu0 %1531, %v1294
  %v1533 = vpop.permute.xlu0 %1532
  %1536 = vset.pattern.permute.xlu0 0
  %1537 = vperm.xlu0 %1536, %v1295
  %v1538 = vpop.permute.xlu0 %1537
  %1541 = vset.pattern.permute.xlu0 0
  %1542 = vperm.xlu0 %1541, %v1296
  %v1543 = vpop.permute.xlu0 %1542
  %1546 = vset.pattern.permute.xlu0 0
  %1547 = vperm.xlu0 %1546, %v1297
  %v1548 = vpop.permute.xlu0 %1547
  %1551 = vset.pattern.permute.xlu0 0
  %1552 = vperm.xlu0 %1551, %v1298
  %v1553 = vpop.permute.xlu0 %1552
  %1556 = vset.pattern.permute.xlu0 0
  %1557 = vperm.xlu0 %1556, %v1299
  %v1558 = vpop.permute.xlu0 %1557
  %1561 = vset.pattern.permute.xlu0 0
  %1562 = vperm.xlu0 %1561, %v1300
  %v1563 = vpop.permute.xlu0 %1562
  %1566 = vset.pattern.permute.xlu0 0
  %1567 = vperm.xlu0 %1566, %v1301
  %v1568 = vpop.permute.xlu0 %1567
  %1571 = vset.pattern.permute.xlu0 0
  %1572 = vperm.xlu0 %1571, %v1302
  %v1573 = vpop.permute.xlu0 %1572
  %1576 = vset.pattern.permute.xlu0 0
  %1577 = vperm.xlu0 %1576, %v1303
  %v1578 = vpop.permute.xlu0 %1577
  %1581 = vset.pattern.permute.xlu0 0
  %1582 = vperm.xlu0 %1581, %v1304
  %v1583 = vpop.permute.xlu0 %1582
  %1586 = vset.pattern.permute.xlu0 0
  %1587 = vperm.xlu0 %1586, %v1305
  %v1588 = vpop.permute.xlu0 %1587
  %1591 = vset.pattern.permute.xlu0 0
  %1592 = vperm.xlu0 %1591, %v1306
  %v1593 = vpop.permute.xlu0 %1592
  %1596 = vset.pattern.permute.xlu0 0
  %1597 = vperm.xlu0 %1596, %v1307
  %v1598 = vpop.permute.xlu0 %1597
  %1601 = vset.pattern.permute.xlu0 0
  %1602 = vperm.xlu0 %1601, %v1308
  %v1603 = vpop.permute.xlu0 %1602
  %1606 = vset.pattern.permute.xlu0 0
  %1607 = vperm.xlu0 %1606, %v1309
  %v1608 = vpop.permute.xlu0 %1607
  %1611 = vset.pattern.permute.xlu0 0
  %1612 = vperm.xlu0 %1611, %v1310
  %v1613 = vpop.permute.xlu0 %1612
  %1616 = vset.pattern.permute.xlu0 0
  %1617 = vperm.xlu0 %1616, %v1311
  %v1618 = vpop.permute.xlu0 %1617
  %1621 = vset.pattern.permute.xlu0 0
  %1622 = vperm.xlu0 %1621, %v1312
  %v1623 = vpop.permute.xlu0 %1622
  %1626 = vset.pattern.permute.xlu0 0
  %1627 = vperm.xlu0 %1626, %v1313
  %v1628 = vpop.permute.xlu0 %1627
  %1631 = vset.pattern.permute.xlu0 0
  %1632 = vperm.xlu0 %1631, %v1314
  %v1633 = vpop.permute.xlu0 %1632
  %1636 = vset.pattern.permute.xlu0 0
  %1637 = vperm.xlu0 %1636, %v1315
  %v1638 = vpop.permute.xlu0 %1637
  %1641 = vset.pattern.permute.xlu0 0
  %1642 = vperm.xlu0 %1641, %v1316
  %v1643 = vpop.permute.xlu0 %1642
  %1646 = vset.pattern.permute.xlu0 0
  %1647 = vperm.xlu0 %1646, %v1317
  %v1648 = vpop.permute.xlu0 %1647
  %1651 = vset.pattern.permute.xlu0 0
  %1652 = vperm.xlu0 %1651, %v1318
  %v1653 = vpop.permute.xlu0 %1652
  %1656 = vset.pattern.permute.xlu0 0
  %1657 = vperm.xlu0 %1656, %v1319
  %v1658 = vpop.permute.xlu0 %1657
  %1661 = vset.pattern.permute.xlu0 0
  %1662 = vperm.xlu0 %1661, %v1320
  %v1663 = vpop.permute.xlu0 %1662
  %1666 = vset.pattern.permute.xlu0 0
  %1667 = vperm.xlu0 %1666, %v1321
  %v1668 = vpop.permute.xlu0 %1667
  %1671 = vset.pattern.permute.xlu0 0
  %1672 = vperm.xlu0 %1671, %v1322
  %v1673 = vpop.permute.xlu0 %1672
  %1676 = vset.pattern.permute.xlu0 0
  %1677 = vperm.xlu0 %1676, %v1323
  %v1678 = vpop.permute.xlu0 %1677
  %1681 = vset.pattern.permute.xlu0 0
  %1682 = vperm.xlu0 %1681, %v1324
  %v1683 = vpop.permute.xlu0 %1682
  %1686 = vset.pattern.permute.xlu0 0
  %1687 = vperm.xlu0 %1686, %v1325
  %v1688 = vpop.permute.xlu0 %1687
  %1691 = vset.pattern.permute.xlu0 0
  %1692 = vperm.xlu0 %1691, %v1326
  %v1693 = vpop.permute.xlu0 %1692
  %1696 = vset.pattern.permute.xlu0 0
  %1697 = vperm.xlu0 %1696, %v1327
  %v1698 = vpop.permute.xlu0 %1697
  %1701 = vset.pattern.permute.xlu0 0
  %1702 = vperm.xlu0 %1701, %v1328
  %v1703 = vpop.permute.xlu0 %1702
  %v1705 = vmul.f32 %v1333, %v1338
  %v1706 = vmul.f32 %v1333, %v1343
  %v1707 = vmul.f32 %v1333, %v1348
  %v1708 = vmul.f32 %v1333, %v1353
  %v1709 = vmul.f32 %v1333, %v1358
  %v1710 = vmul.f32 %v1333, %v1363
  %v1711 = vmul.f32 %v1333, %v1368
  %v1712 = vmul.f32 %v1333, %v1373
  %v1713 = vmul.f32 %v1333, %v1378
  %v1714 = vmul.f32 %v1333, %v1383
  %v1715 = vmul.f32 %v1333, %v1388
  %v1716 = vmul.f32 %v1333, %v1393
  %v1717 = vmul.f32 %v1333, %v1398
  %v1718 = vmul.f32 %v1333, %v1403
  %v1719 = vmul.f32 %v1333, %v1408
  %v1720 = vmul.f32 %v1333, %v1413
  %v1721 = vmul.f32 %v1333, %v1418
  %v1722 = vmul.f32 %v1333, %v1423
  %v1723 = vmul.f32 %v1333, %v1428
  %v1724 = vmul.f32 %v1333, %v1433
  %v1725 = vmul.f32 %v1333, %v1438
  %v1726 = vmul.f32 %v1333, %v1443
  %v1727 = vmul.f32 %v1333, %v1448
  %v1728 = vmul.f32 %v1333, %v1453
  %v1729 = vmul.f32 %v1333, %v1458
  %v1730 = vmul.f32 %v1333, %v1463
  %v1731 = vmul.f32 %v1333, %v1468
  %v1732 = vmul.f32 %v1333, %v1473
  %v1733 = vmul.f32 %v1333, %v1478
  %v1734 = vmul.f32 %v1333, %v1483
  %v1735 = vmul.f32 %v1333, %v1488
  %v1736 = vmul.f32 %v1333, %v1493
  %v1737 = vmul.f32 %v1333, %v1498
  %v1738 = vmul.f32 %v1333, %v1503
  %v1739 = vmul.f32 %v1333, %v1508
  %v1740 = vmul.f32 %v1333, %v1513
  %v1741 = vmul.f32 %v1333, %v1518
  %v1742 = vmul.f32 %v1333, %v1523
  %v1743 = vmul.f32 %v1333, %v1528
  %v1744 = vmul.f32 %v1333, %v1533
  %v1745 = vmul.f32 %v1333, %v1538
  %v1746 = vmul.f32 %v1333, %v1543
  %v1747 = vmul.f32 %v1333, %v1548
  %v1748 = vmul.f32 %v1333, %v1553
  %v1749 = vmul.f32 %v1333, %v1558
  %v1750 = vmul.f32 %v1333, %v1563
  %v1751 = vmul.f32 %v1333, %v1568
  %v1752 = vmul.f32 %v1333, %v1573
  %v1753 = vmul.f32 %v1333, %v1578
  %v1754 = vmul.f32 %v1333, %v1583
  %v1755 = vmul.f32 %v1333, %v1588
  %v1756 = vmul.f32 %v1333, %v1593
  %v1757 = vmul.f32 %v1333, %v1598
  %v1758 = vmul.f32 %v1333, %v1603
  %v1759 = vmul.f32 %v1333, %v1608
  %v1760 = vmul.f32 %v1333, %v1613
  %v1761 = vmul.f32 %v1333, %v1618
  %v1762 = vmul.f32 %v1333, %v1623
  %v1763 = vmul.f32 %v1333, %v1628
  %v1764 = vmul.f32 %v1333, %v1633
  %v1765 = vmul.f32 %v1333, %v1638
  %v1766 = vmul.f32 %v1333, %v1643
  %v1767 = vmul.f32 %v1333, %v1648
  %v1768 = vmul.f32 %v1333, %v1653
  %v1769 = vmul.f32 %v1333, %v1658
  %v1770 = vmul.f32 %v1333, %v1663
  %v1771 = vmul.f32 %v1333, %v1668
  %v1772 = vmul.f32 %v1333, %v1673
  %v1773 = vmul.f32 %v1333, %v1678
  %v1774 = vmul.f32 %v1333, %v1683
  %v1775 = vmul.f32 %v1333, %v1688
  %v1776 = vmul.f32 %v1333, %v1693
  %v1777 = vmul.f32 %v1333, %v1698
  %v1778 = vmul.f32 %v1333, %v1703
  %v1779 = vadd.f32 %v1180, %v1705
  %v1780 = vadd.f32 %v1181, %v1706
  %v1781 = vadd.f32 %v1182, %v1707
  %v1782 = vadd.f32 %v1183, %v1708
  %v1783 = vadd.f32 %v1184, %v1709
  %v1784 = vadd.f32 %v1185, %v1710
  %v1785 = vadd.f32 %v1186, %v1711
  %v1786 = vadd.f32 %v1187, %v1712
  %v1787 = vadd.f32 %v1188, %v1713
  %v1788 = vadd.f32 %v1189, %v1714
  %v1789 = vadd.f32 %v1190, %v1715
  %v1790 = vadd.f32 %v1191, %v1716
  %v1791 = vadd.f32 %v1192, %v1717
  %v1792 = vadd.f32 %v1193, %v1718
  %v1793 = vadd.f32 %v1194, %v1719
  %v1794 = vadd.f32 %v1195, %v1720
  %v1795 = vadd.f32 %v1196, %v1721
  %v1796 = vadd.f32 %v1197, %v1722
  %v1797 = vadd.f32 %v1198, %v1723
  %v1798 = vadd.f32 %v1199, %v1724
  %v1799 = vadd.f32 %v1200, %v1725
  %v1800 = vadd.f32 %v1201, %v1726
  %v1801 = vadd.f32 %v1202, %v1727
  %v1802 = vadd.f32 %v1203, %v1728
  %v1803 = vadd.f32 %v1204, %v1729
  %v1804 = vadd.f32 %v1205, %v1730
  %v1805 = vadd.f32 %v1206, %v1731
  %v1806 = vadd.f32 %v1207, %v1732
  %v1807 = vadd.f32 %v1208, %v1733
  %v1808 = vadd.f32 %v1209, %v1734
  %v1809 = vadd.f32 %v1210, %v1735
  %v1810 = vadd.f32 %v1211, %v1736
  %v1811 = vadd.f32 %v1212, %v1737
  %v1812 = vadd.f32 %v1213, %v1738
  %v1813 = vadd.f32 %v1214, %v1739
  %v1814 = vadd.f32 %v1215, %v1740
  %v1815 = vadd.f32 %v1216, %v1741
  %v1816 = vadd.f32 %v1217, %v1742
  %v1817 = vadd.f32 %v1218, %v1743
  %v1818 = vadd.f32 %v1219, %v1744
  %v1819 = vadd.f32 %v1220, %v1745
  %v1820 = vadd.f32 %v1221, %v1746
  %v1821 = vadd.f32 %v1222, %v1747
  %v1822 = vadd.f32 %v1223, %v1748
  %v1823 = vadd.f32 %v1224, %v1749
  %v1824 = vadd.f32 %v1225, %v1750
  %v1825 = vadd.f32 %v1226, %v1751
  %v1826 = vadd.f32 %v1227, %v1752
  %v1827 = vadd.f32 %v1228, %v1753
  %v1828 = vadd.f32 %v1229, %v1754
  %v1829 = vadd.f32 %v1230, %v1755
  %v1830 = vadd.f32 %v1231, %v1756
  %v1831 = vadd.f32 %v1232, %v1757
  %v1832 = vadd.f32 %v1233, %v1758
  %v1833 = vadd.f32 %v1234, %v1759
  %v1834 = vadd.f32 %v1235, %v1760
  %v1835 = vadd.f32 %v1236, %v1761
  %v1836 = vadd.f32 %v1237, %v1762
  %v1837 = vadd.f32 %v1238, %v1763
  %v1838 = vadd.f32 %v1239, %v1764
  %v1839 = vadd.f32 %v1240, %v1765
  %v1840 = vadd.f32 %v1241, %v1766
  %v1841 = vadd.f32 %v1242, %v1767
  %v1842 = vadd.f32 %v1243, %v1768
  %v1843 = vadd.f32 %v1244, %v1769
  %v1844 = vadd.f32 %v1245, %v1770
  %v1845 = vadd.f32 %v1246, %v1771
  %v1846 = vadd.f32 %v1247, %v1772
  %v1847 = vadd.f32 %v1248, %v1773
  %v1848 = vadd.f32 %v1249, %v1774
  %v1849 = vadd.f32 %v1250, %v1775
  %v1850 = vadd.f32 %v1251, %v1776
  %v1851 = vadd.f32 %v1252, %v1777
  %v1852 = vadd.f32 %v1253, %v1778
  %v1853 = vld [vmem:[%s5] sm:$0xff]
  %v1854 = vld [vmem:[%s5 + $0x8] sm:$0xff]
  %v1855 = vld [vmem:[%s5 + $0x10] sm:$0xff]
  %v1856 = vld [vmem:[%s5 + $0x18] sm:$0xff]
  %v1857 = vld [vmem:[%s5 + $0x20] sm:$0xff]
  %v1858 = vld [vmem:[%s5 + $0x28] sm:$0xff]
  %v1859 = vld [vmem:[%s5 + $0x30] sm:$0xff]
  %v1860 = vld [vmem:[%s5 + $0x38] sm:$0xff]
  %v1861 = vld [vmem:[%s5 + $0x40] sm:$0xff]
  %v1862 = vld [vmem:[%s5 + $0x48] sm:$0xff]
  %v1863 = vld [vmem:[%s5 + $0x50] sm:$0xff]
  %v1864 = vld [vmem:[%s5 + $0x58] sm:$0xff]
  %v1865 = vld [vmem:[%s5 + $0x60] sm:$0xff]
  %v1866 = vld [vmem:[%s5 + $0x68] sm:$0xff]
  %v1867 = vld [vmem:[%s5 + $0x70] sm:$0xff]
  %v1868 = vld [vmem:[%s5 + $0x78] sm:$0xff]
  %v1869 = vld [vmem:[%s5 + $0x80] sm:$0xff]
  %v1870 = vld [vmem:[%s5 + $0x88] sm:$0xff]
  %v1871 = vld [vmem:[%s5 + $0x90] sm:$0xff]
  %v1872 = vld [vmem:[%s5 + $0x98] sm:$0xff]
  %v1873 = vld [vmem:[%s5 + $0xa0] sm:$0xff]
  %v1874 = vld [vmem:[%s5 + $0xa8] sm:$0xff]
  %v1875 = vld [vmem:[%s5 + $0xb0] sm:$0xff]
  %v1876 = vld [vmem:[%s5 + $0xb8] sm:$0xff]
  %v1877 = vld [vmem:[%s5 + $0xc0] sm:$0xff]
  %v1878 = vld [vmem:[%s5 + $0xc8] sm:$0xff]
  %v1879 = vld [vmem:[%s5 + $0xd0] sm:$0xff]
  %v1880 = vld [vmem:[%s5 + $0xd8] sm:$0xff]
  %v1881 = vld [vmem:[%s5 + $0xe0] sm:$0xff]
  %v1882 = vld [vmem:[%s5 + $0xe8] sm:$0xff]
  %v1883 = vld [vmem:[%s5 + $0xf0] sm:$0xff]
  %v1884 = vld [vmem:[%s5 + $0xf8] sm:$0xff]
  %v1885 = vld [vmem:[%s5 + $0x100] sm:$0xff]
  %v1886 = vld [vmem:[%s5 + $0x108] sm:$0xff]
  %v1887 = vld [vmem:[%s5 + $0x110] sm:$0xff]
  %v1888 = vld [vmem:[%s5 + $0x118] sm:$0xff]
  %v1889 = vld [vmem:[%s5 + $0x120] sm:$0xff]
  %v1890 = vld [vmem:[%s5 + $0x128] sm:$0xff]
  %v1891 = vld [vmem:[%s5 + $0x130] sm:$0xff]
  %v1892 = vld [vmem:[%s5 + $0x138] sm:$0xff]
  %v1893 = vld [vmem:[%s5 + $0x140] sm:$0xff]
  %v1894 = vld [vmem:[%s5 + $0x148] sm:$0xff]
  %v1895 = vld [vmem:[%s5 + $0x150] sm:$0xff]
  %v1896 = vld [vmem:[%s5 + $0x158] sm:$0xff]
  %v1897 = vld [vmem:[%s5 + $0x160] sm:$0xff]
  %v1898 = vld [vmem:[%s5 + $0x168] sm:$0xff]
  %v1899 = vld [vmem:[%s5 + $0x170] sm:$0xff]
  %v1900 = vld [vmem:[%s5 + $0x178] sm:$0xff]
  %v1901 = vld [vmem:[%s5 + $0x180] sm:$0xff]
  %v1902 = vld [vmem:[%s5 + $0x188] sm:$0xff]
  %v1903 = vld [vmem:[%s5 + $0x190] sm:$0xff]
  %v1904 = vld [vmem:[%s5 + $0x198] sm:$0xff]
  %v1905 = vld [vmem:[%s5 + $0x1a0] sm:$0xff]
  %v1906 = vld [vmem:[%s5 + $0x1a8] sm:$0xff]
  %v1907 = vld [vmem:[%s5 + $0x1b0] sm:$0xff]
  %v1908 = vld [vmem:[%s5 + $0x1b8] sm:$0xff]
  %v1909 = vld [vmem:[%s5 + $0x1c0] sm:$0xff]
  %v1910 = vld [vmem:[%s5 + $0x1c8] sm:$0xff]
  %v1911 = vld [vmem:[%s5 + $0x1d0] sm:$0xff]
  %v1912 = vld [vmem:[%s5 + $0x1d8] sm:$0xff]
  %v1913 = vld [vmem:[%s5 + $0x1e0] sm:$0xff]
  %v1914 = vld [vmem:[%s5 + $0x1e8] sm:$0xff]
  %v1915 = vld [vmem:[%s5 + $0x1f0] sm:$0xff]
  %v1916 = vld [vmem:[%s5 + $0x1f8] sm:$0xff]
  %v1917 = vld [vmem:[%s5 + $0x200] sm:$0xff]
  %v1918 = vld [vmem:[%s5 + $0x208] sm:$0xff]
  %v1919 = vld [vmem:[%s5 + $0x210] sm:$0xff]
  %v1920 = vld [vmem:[%s5 + $0x218] sm:$0xff]
  %v1921 = vld [vmem:[%s5 + $0x220] sm:$0xff]
  %v1922 = vld [vmem:[%s5 + $0x228] sm:$0xff]
  %v1923 = vld [vmem:[%s5 + $0x230] sm:$0xff]
  %v1924 = vld [vmem:[%s5 + $0x238] sm:$0xff]
  %v1925 = vld [vmem:[%s5 + $0x240] sm:$0xff]
  %v1926 = vld [vmem:[%s5 + $0x248] sm:$0xff]
  %v1928 = vlaneseq
  %v1929 = vshrl.u32 %v1928, 7
  %v1930 = vsub.s32 0, %v1929
  %v1931 = vrot.slane %v729, %v1930
  %1934 = vset.pattern.permute.xlu0 0
  %1935 = vperm.xlu0 %1934, %v1853
  %v1936 = vpop.permute.xlu0 %1935
  %1939 = vset.pattern.permute.xlu0 0
  %1940 = vperm.xlu0 %1939, %v1854
  %v1941 = vpop.permute.xlu0 %1940
  %1944 = vset.pattern.permute.xlu0 0
  %1945 = vperm.xlu0 %1944, %v1855
  %v1946 = vpop.permute.xlu0 %1945
  %1949 = vset.pattern.permute.xlu0 0
  %1950 = vperm.xlu0 %1949, %v1856
  %v1951 = vpop.permute.xlu0 %1950
  %1954 = vset.pattern.permute.xlu0 0
  %1955 = vperm.xlu0 %1954, %v1857
  %v1956 = vpop.permute.xlu0 %1955
  %1959 = vset.pattern.permute.xlu0 0
  %1960 = vperm.xlu0 %1959, %v1858
  %v1961 = vpop.permute.xlu0 %1960
  %1964 = vset.pattern.permute.xlu0 0
  %1965 = vperm.xlu0 %1964, %v1859
  %v1966 = vpop.permute.xlu0 %1965
  %1969 = vset.pattern.permute.xlu0 0
  %1970 = vperm.xlu0 %1969, %v1860
  %v1971 = vpop.permute.xlu0 %1970
  %1974 = vset.pattern.permute.xlu0 0
  %1975 = vperm.xlu0 %1974, %v1861
  %v1976 = vpop.permute.xlu0 %1975
  %1979 = vset.pattern.permute.xlu0 0
  %1980 = vperm.xlu0 %1979, %v1862
  %v1981 = vpop.permute.xlu0 %1980
  %1984 = vset.pattern.permute.xlu0 0
  %1985 = vperm.xlu0 %1984, %v1863
  %v1986 = vpop.permute.xlu0 %1985
  %1989 = vset.pattern.permute.xlu0 0
  %1990 = vperm.xlu0 %1989, %v1864
  %v1991 = vpop.permute.xlu0 %1990
  %1994 = vset.pattern.permute.xlu0 0
  %1995 = vperm.xlu0 %1994, %v1865
  %v1996 = vpop.permute.xlu0 %1995
  %1999 = vset.pattern.permute.xlu0 0
  %2000 = vperm.xlu0 %1999, %v1866
  %v2001 = vpop.permute.xlu0 %2000
  %2004 = vset.pattern.permute.xlu0 0
  %2005 = vperm.xlu0 %2004, %v1867
  %v2006 = vpop.permute.xlu0 %2005
  %2009 = vset.pattern.permute.xlu0 0
  %2010 = vperm.xlu0 %2009, %v1868
  %v2011 = vpop.permute.xlu0 %2010
  %2014 = vset.pattern.permute.xlu0 0
  %2015 = vperm.xlu0 %2014, %v1869
  %v2016 = vpop.permute.xlu0 %2015
  %2019 = vset.pattern.permute.xlu0 0
  %2020 = vperm.xlu0 %2019, %v1870
  %v2021 = vpop.permute.xlu0 %2020
  %2024 = vset.pattern.permute.xlu0 0
  %2025 = vperm.xlu0 %2024, %v1871
  %v2026 = vpop.permute.xlu0 %2025
  %2029 = vset.pattern.permute.xlu0 0
  %2030 = vperm.xlu0 %2029, %v1872
  %v2031 = vpop.permute.xlu0 %2030
  %2034 = vset.pattern.permute.xlu0 0
  %2035 = vperm.xlu0 %2034, %v1873
  %v2036 = vpop.permute.xlu0 %2035
  %2039 = vset.pattern.permute.xlu0 0
  %2040 = vperm.xlu0 %2039, %v1874
  %v2041 = vpop.permute.xlu0 %2040
  %2044 = vset.pattern.permute.xlu0 0
  %2045 = vperm.xlu0 %2044, %v1875
  %v2046 = vpop.permute.xlu0 %2045
  %2049 = vset.pattern.permute.xlu0 0
  %2050 = vperm.xlu0 %2049, %v1876
  %v2051 = vpop.permute.xlu0 %2050
  %2054 = vset.pattern.permute.xlu0 0
  %2055 = vperm.xlu0 %2054, %v1877
  %v2056 = vpop.permute.xlu0 %2055
  %2059 = vset.pattern.permute.xlu0 0
  %2060 = vperm.xlu0 %2059, %v1878
  %v2061 = vpop.permute.xlu0 %2060
  %2064 = vset.pattern.permute.xlu0 0
  %2065 = vperm.xlu0 %2064, %v1879
  %v2066 = vpop.permute.xlu0 %2065
  %2069 = vset.pattern.permute.xlu0 0
  %2070 = vperm.xlu0 %2069, %v1880
  %v2071 = vpop.permute.xlu0 %2070
  %2074 = vset.pattern.permute.xlu0 0
  %2075 = vperm.xlu0 %2074, %v1881
  %v2076 = vpop.permute.xlu0 %2075
  %2079 = vset.pattern.permute.xlu0 0
  %2080 = vperm.xlu0 %2079, %v1882
  %v2081 = vpop.permute.xlu0 %2080
  %2084 = vset.pattern.permute.xlu0 0
  %2085 = vperm.xlu0 %2084, %v1883
  %v2086 = vpop.permute.xlu0 %2085
  %2089 = vset.pattern.permute.xlu0 0
  %2090 = vperm.xlu0 %2089, %v1884
  %v2091 = vpop.permute.xlu0 %2090
  %2094 = vset.pattern.permute.xlu0 0
  %2095 = vperm.xlu0 %2094, %v1885
  %v2096 = vpop.permute.xlu0 %2095
  %2099 = vset.pattern.permute.xlu0 0
  %2100 = vperm.xlu0 %2099, %v1886
  %v2101 = vpop.permute.xlu0 %2100
  %2104 = vset.pattern.permute.xlu0 0
  %2105 = vperm.xlu0 %2104, %v1887
  %v2106 = vpop.permute.xlu0 %2105
  %2109 = vset.pattern.permute.xlu0 0
  %2110 = vperm.xlu0 %2109, %v1888
  %v2111 = vpop.permute.xlu0 %2110
  %2114 = vset.pattern.permute.xlu0 0
  %2115 = vperm.xlu0 %2114, %v1889
  %v2116 = vpop.permute.xlu0 %2115
  %2119 = vset.pattern.permute.xlu0 0
  %2120 = vperm.xlu0 %2119, %v1890
  %v2121 = vpop.permute.xlu0 %2120
  %2124 = vset.pattern.permute.xlu0 0
  %2125 = vperm.xlu0 %2124, %v1891
  %v2126 = vpop.permute.xlu0 %2125
  %2129 = vset.pattern.permute.xlu0 0
  %2130 = vperm.xlu0 %2129, %v1892
  %v2131 = vpop.permute.xlu0 %2130
  %2134 = vset.pattern.permute.xlu0 0
  %2135 = vperm.xlu0 %2134, %v1893
  %v2136 = vpop.permute.xlu0 %2135
  %2139 = vset.pattern.permute.xlu0 0
  %2140 = vperm.xlu0 %2139, %v1894
  %v2141 = vpop.permute.xlu0 %2140
  %2144 = vset.pattern.permute.xlu0 0
  %2145 = vperm.xlu0 %2144, %v1895
  %v2146 = vpop.permute.xlu0 %2145
  %2149 = vset.pattern.permute.xlu0 0
  %2150 = vperm.xlu0 %2149, %v1896
  %v2151 = vpop.permute.xlu0 %2150
  %2154 = vset.pattern.permute.xlu0 0
  %2155 = vperm.xlu0 %2154, %v1897
  %v2156 = vpop.permute.xlu0 %2155
  %2159 = vset.pattern.permute.xlu0 0
  %2160 = vperm.xlu0 %2159, %v1898
  %v2161 = vpop.permute.xlu0 %2160
  %2164 = vset.pattern.permute.xlu0 0
  %2165 = vperm.xlu0 %2164, %v1899
  %v2166 = vpop.permute.xlu0 %2165
  %2169 = vset.pattern.permute.xlu0 0
  %2170 = vperm.xlu0 %2169, %v1900
  %v2171 = vpop.permute.xlu0 %2170
  %2174 = vset.pattern.permute.xlu0 0
  %2175 = vperm.xlu0 %2174, %v1901
  %v2176 = vpop.permute.xlu0 %2175
  %2179 = vset.pattern.permute.xlu0 0
  %2180 = vperm.xlu0 %2179, %v1902
  %v2181 = vpop.permute.xlu0 %2180
  %2184 = vset.pattern.permute.xlu0 0
  %2185 = vperm.xlu0 %2184, %v1903
  %v2186 = vpop.permute.xlu0 %2185
  %2189 = vset.pattern.permute.xlu0 0
  %2190 = vperm.xlu0 %2189, %v1904
  %v2191 = vpop.permute.xlu0 %2190
  %2194 = vset.pattern.permute.xlu0 0
  %2195 = vperm.xlu0 %2194, %v1905
  %v2196 = vpop.permute.xlu0 %2195
  %2199 = vset.pattern.permute.xlu0 0
  %2200 = vperm.xlu0 %2199, %v1906
  %v2201 = vpop.permute.xlu0 %2200
  %2204 = vset.pattern.permute.xlu0 0
  %2205 = vperm.xlu0 %2204, %v1907
  %v2206 = vpop.permute.xlu0 %2205
  %2209 = vset.pattern.permute.xlu0 0
  %2210 = vperm.xlu0 %2209, %v1908
  %v2211 = vpop.permute.xlu0 %2210
  %2214 = vset.pattern.permute.xlu0 0
  %2215 = vperm.xlu0 %2214, %v1909
  %v2216 = vpop.permute.xlu0 %2215
  %2219 = vset.pattern.permute.xlu0 0
  %2220 = vperm.xlu0 %2219, %v1910
  %v2221 = vpop.permute.xlu0 %2220
  %2224 = vset.pattern.permute.xlu0 0
  %2225 = vperm.xlu0 %2224, %v1911
  %v2226 = vpop.permute.xlu0 %2225
  %2229 = vset.pattern.permute.xlu0 0
  %2230 = vperm.xlu0 %2229, %v1912
  %v2231 = vpop.permute.xlu0 %2230
  %2234 = vset.pattern.permute.xlu0 0
  %2235 = vperm.xlu0 %2234, %v1913
  %v2236 = vpop.permute.xlu0 %2235
  %2239 = vset.pattern.permute.xlu0 0
  %2240 = vperm.xlu0 %2239, %v1914
  %v2241 = vpop.permute.xlu0 %2240
  %2244 = vset.pattern.permute.xlu0 0
  %2245 = vperm.xlu0 %2244, %v1915
  %v2246 = vpop.permute.xlu0 %2245
  %2249 = vset.pattern.permute.xlu0 0
  %2250 = vperm.xlu0 %2249, %v1916
  %v2251 = vpop.permute.xlu0 %2250
  %2254 = vset.pattern.permute.xlu0 0
  %2255 = vperm.xlu0 %2254, %v1917
  %v2256 = vpop.permute.xlu0 %2255
  %2259 = vset.pattern.permute.xlu0 0
  %2260 = vperm.xlu0 %2259, %v1918
  %v2261 = vpop.permute.xlu0 %2260
  %2264 = vset.pattern.permute.xlu0 0
  %2265 = vperm.xlu0 %2264, %v1919
  %v2266 = vpop.permute.xlu0 %2265
  %2269 = vset.pattern.permute.xlu0 0
  %2270 = vperm.xlu0 %2269, %v1920
  %v2271 = vpop.permute.xlu0 %2270
  %2274 = vset.pattern.permute.xlu0 0
  %2275 = vperm.xlu0 %2274, %v1921
  %v2276 = vpop.permute.xlu0 %2275
  %2279 = vset.pattern.permute.xlu0 0
  %2280 = vperm.xlu0 %2279, %v1922
  %v2281 = vpop.permute.xlu0 %2280
  %2284 = vset.pattern.permute.xlu0 0
  %2285 = vperm.xlu0 %2284, %v1923
  %v2286 = vpop.permute.xlu0 %2285
  %2289 = vset.pattern.permute.xlu0 0
  %2290 = vperm.xlu0 %2289, %v1924
  %v2291 = vpop.permute.xlu0 %2290
  %2294 = vset.pattern.permute.xlu0 0
  %2295 = vperm.xlu0 %2294, %v1925
  %v2296 = vpop.permute.xlu0 %2295
  %2299 = vset.pattern.permute.xlu0 0
  %2300 = vperm.xlu0 %2299, %v1926
  %v2301 = vpop.permute.xlu0 %2300
  %v2303 = vmul.f32 %v1931, %v1936
  %v2304 = vmul.f32 %v1931, %v1941
  %v2305 = vmul.f32 %v1931, %v1946
  %v2306 = vmul.f32 %v1931, %v1951
  %v2307 = vmul.f32 %v1931, %v1956
  %v2308 = vmul.f32 %v1931, %v1961
  %v2309 = vmul.f32 %v1931, %v1966
  %v2310 = vmul.f32 %v1931, %v1971
  %v2311 = vmul.f32 %v1931, %v1976
  %v2312 = vmul.f32 %v1931, %v1981
  %v2313 = vmul.f32 %v1931, %v1986
  %v2314 = vmul.f32 %v1931, %v1991
  %v2315 = vmul.f32 %v1931, %v1996
  %v2316 = vmul.f32 %v1931, %v2001
  %v2317 = vmul.f32 %v1931, %v2006
  %v2318 = vmul.f32 %v1931, %v2011
  %v2319 = vmul.f32 %v1931, %v2016
  %v2320 = vmul.f32 %v1931, %v2021
  %v2321 = vmul.f32 %v1931, %v2026
  %v2322 = vmul.f32 %v1931, %v2031
  %v2323 = vmul.f32 %v1931, %v2036
  %v2324 = vmul.f32 %v1931, %v2041
  %v2325 = vmul.f32 %v1931, %v2046
  %v2326 = vmul.f32 %v1931, %v2051
  %v2327 = vmul.f32 %v1931, %v2056
  %v2328 = vmul.f32 %v1931, %v2061
  %v2329 = vmul.f32 %v1931, %v2066
  %v2330 = vmul.f32 %v1931, %v2071
  %v2331 = vmul.f32 %v1931, %v2076
  %v2332 = vmul.f32 %v1931, %v2081
  %v2333 = vmul.f32 %v1931, %v2086
  %v2334 = vmul.f32 %v1931, %v2091
  %v2335 = vmul.f32 %v1931, %v2096
  %v2336 = vmul.f32 %v1931, %v2101
  %v2337 = vmul.f32 %v1931, %v2106
  %v2338 = vmul.f32 %v1931, %v2111
  %v2339 = vmul.f32 %v1931, %v2116
  %v2340 = vmul.f32 %v1931, %v2121
  %v2341 = vmul.f32 %v1931, %v2126
  %v2342 = vmul.f32 %v1931, %v2131
  %v2343 = vmul.f32 %v1931, %v2136
  %v2344 = vmul.f32 %v1931, %v2141
  %v2345 = vmul.f32 %v1931, %v2146
  %v2346 = vmul.f32 %v1931, %v2151
  %v2347 = vmul.f32 %v1931, %v2156
  %v2348 = vmul.f32 %v1931, %v2161
  %v2349 = vmul.f32 %v1931, %v2166
  %v2350 = vmul.f32 %v1931, %v2171
  %v2351 = vmul.f32 %v1931, %v2176
  %v2352 = vmul.f32 %v1931, %v2181
  %v2353 = vmul.f32 %v1931, %v2186
  %v2354 = vmul.f32 %v1931, %v2191
  %v2355 = vmul.f32 %v1931, %v2196
  %v2356 = vmul.f32 %v1931, %v2201
  %v2357 = vmul.f32 %v1931, %v2206
  %v2358 = vmul.f32 %v1931, %v2211
  %v2359 = vmul.f32 %v1931, %v2216
  %v2360 = vmul.f32 %v1931, %v2221
  %v2361 = vmul.f32 %v1931, %v2226
  %v2362 = vmul.f32 %v1931, %v2231
  %v2363 = vmul.f32 %v1931, %v2236
  %v2364 = vmul.f32 %v1931, %v2241
  %v2365 = vmul.f32 %v1931, %v2246
  %v2366 = vmul.f32 %v1931, %v2251
  %v2367 = vmul.f32 %v1931, %v2256
  %v2368 = vmul.f32 %v1931, %v2261
  %v2369 = vmul.f32 %v1931, %v2266
  %v2370 = vmul.f32 %v1931, %v2271
  %v2371 = vmul.f32 %v1931, %v2276
  %v2372 = vmul.f32 %v1931, %v2281
  %v2373 = vmul.f32 %v1931, %v2286
  %v2374 = vmul.f32 %v1931, %v2291
  %v2375 = vmul.f32 %v1931, %v2296
  %v2376 = vmul.f32 %v1931, %v2301
  %v2377 = vsub.f32 1.0, %v729
  %v2378 = vld [vmem:[%s4] sm:$0xff]
  %v2379 = vld [vmem:[%s4 + $0x8] sm:$0xff]
  %v2380 = vld [vmem:[%s4 + $0x10] sm:$0xff]
  %v2381 = vld [vmem:[%s4 + $0x18] sm:$0xff]
  %v2382 = vld [vmem:[%s4 + $0x20] sm:$0xff]
  %v2383 = vld [vmem:[%s4 + $0x28] sm:$0xff]
  %v2384 = vld [vmem:[%s4 + $0x30] sm:$0xff]
  %v2385 = vld [vmem:[%s4 + $0x38] sm:$0xff]
  %v2386 = vld [vmem:[%s4 + $0x40] sm:$0xff]
  %v2387 = vld [vmem:[%s4 + $0x48] sm:$0xff]
  %v2388 = vld [vmem:[%s4 + $0x50] sm:$0xff]
  %v2389 = vld [vmem:[%s4 + $0x58] sm:$0xff]
  %v2390 = vld [vmem:[%s4 + $0x60] sm:$0xff]
  %v2391 = vld [vmem:[%s4 + $0x68] sm:$0xff]
  %v2392 = vld [vmem:[%s4 + $0x70] sm:$0xff]
  %v2393 = vld [vmem:[%s4 + $0x78] sm:$0xff]
  %v2394 = vld [vmem:[%s4 + $0x80] sm:$0xff]
  %v2395 = vld [vmem:[%s4 + $0x88] sm:$0xff]
  %v2396 = vld [vmem:[%s4 + $0x90] sm:$0xff]
  %v2397 = vld [vmem:[%s4 + $0x98] sm:$0xff]
  %v2398 = vld [vmem:[%s4 + $0xa0] sm:$0xff]
  %v2399 = vld [vmem:[%s4 + $0xa8] sm:$0xff]
  %v2400 = vld [vmem:[%s4 + $0xb0] sm:$0xff]
  %v2401 = vld [vmem:[%s4 + $0xb8] sm:$0xff]
  %v2402 = vld [vmem:[%s4 + $0xc0] sm:$0xff]
  %v2403 = vld [vmem:[%s4 + $0xc8] sm:$0xff]
  %v2404 = vld [vmem:[%s4 + $0xd0] sm:$0xff]
  %v2405 = vld [vmem:[%s4 + $0xd8] sm:$0xff]
  %v2406 = vld [vmem:[%s4 + $0xe0] sm:$0xff]
  %v2407 = vld [vmem:[%s4 + $0xe8] sm:$0xff]
  %v2408 = vld [vmem:[%s4 + $0xf0] sm:$0xff]
  %v2409 = vld [vmem:[%s4 + $0xf8] sm:$0xff]
  %v2410 = vld [vmem:[%s4 + $0x100] sm:$0xff]
  %v2411 = vld [vmem:[%s4 + $0x108] sm:$0xff]
  %v2412 = vld [vmem:[%s4 + $0x110] sm:$0xff]
  %v2413 = vld [vmem:[%s4 + $0x118] sm:$0xff]
  %v2414 = vld [vmem:[%s4 + $0x120] sm:$0xff]
  %v2415 = vld [vmem:[%s4 + $0x128] sm:$0xff]
  %v2416 = vld [vmem:[%s4 + $0x130] sm:$0xff]
  %v2417 = vld [vmem:[%s4 + $0x138] sm:$0xff]
  %v2418 = vld [vmem:[%s4 + $0x140] sm:$0xff]
  %v2419 = vld [vmem:[%s4 + $0x148] sm:$0xff]
  %v2420 = vld [vmem:[%s4 + $0x150] sm:$0xff]
  %v2421 = vld [vmem:[%s4 + $0x158] sm:$0xff]
  %v2422 = vld [vmem:[%s4 + $0x160] sm:$0xff]
  %v2423 = vld [vmem:[%s4 + $0x168] sm:$0xff]
  %v2424 = vld [vmem:[%s4 + $0x170] sm:$0xff]
  %v2425 = vld [vmem:[%s4 + $0x178] sm:$0xff]
  %v2426 = vld [vmem:[%s4 + $0x180] sm:$0xff]
  %v2427 = vld [vmem:[%s4 + $0x188] sm:$0xff]
  %v2428 = vld [vmem:[%s4 + $0x190] sm:$0xff]
  %v2429 = vld [vmem:[%s4 + $0x198] sm:$0xff]
  %v2430 = vld [vmem:[%s4 + $0x1a0] sm:$0xff]
  %v2431 = vld [vmem:[%s4 + $0x1a8] sm:$0xff]
  %v2432 = vld [vmem:[%s4 + $0x1b0] sm:$0xff]
  %v2433 = vld [vmem:[%s4 + $0x1b8] sm:$0xff]
  %v2434 = vld [vmem:[%s4 + $0x1c0] sm:$0xff]
  %v2435 = vld [vmem:[%s4 + $0x1c8] sm:$0xff]
  %v2436 = vld [vmem:[%s4 + $0x1d0] sm:$0xff]
  %v2437 = vld [vmem:[%s4 + $0x1d8] sm:$0xff]
  %v2438 = vld [vmem:[%s4 + $0x1e0] sm:$0xff]
  %v2439 = vld [vmem:[%s4 + $0x1e8] sm:$0xff]
  %v2440 = vld [vmem:[%s4 + $0x1f0] sm:$0xff]
  %v2441 = vld [vmem:[%s4 + $0x1f8] sm:$0xff]
  %v2442 = vld [vmem:[%s4 + $0x200] sm:$0xff]
  %v2443 = vld [vmem:[%s4 + $0x208] sm:$0xff]
  %v2444 = vld [vmem:[%s4 + $0x210] sm:$0xff]
  %v2445 = vld [vmem:[%s4 + $0x218] sm:$0xff]
  %v2446 = vld [vmem:[%s4 + $0x220] sm:$0xff]
  %v2447 = vld [vmem:[%s4 + $0x228] sm:$0xff]
  %v2448 = vld [vmem:[%s4 + $0x230] sm:$0xff]
  %v2449 = vld [vmem:[%s4 + $0x238] sm:$0xff]
  %v2450 = vld [vmem:[%s4 + $0x240] sm:$0xff]
  %v2451 = vld [vmem:[%s4 + $0x248] sm:$0xff]
  %v2453 = vlaneseq
  %v2454 = vshrl.u32 %v2453, 7
  %v2455 = vsub.s32 0, %v2454
  %v2456 = vrot.slane %v2377, %v2455
  %2459 = vset.pattern.permute.xlu0 0
  %2460 = vperm.xlu0 %2459, %v2378
  %v2461 = vpop.permute.xlu0 %2460
  %2464 = vset.pattern.permute.xlu0 0
  %2465 = vperm.xlu0 %2464, %v2379
  %v2466 = vpop.permute.xlu0 %2465
  %2469 = vset.pattern.permute.xlu0 0
  %2470 = vperm.xlu0 %2469, %v2380
  %v2471 = vpop.permute.xlu0 %2470
  %2474 = vset.pattern.permute.xlu0 0
  %2475 = vperm.xlu0 %2474, %v2381
  %v2476 = vpop.permute.xlu0 %2475
  %2479 = vset.pattern.permute.xlu0 0
  %2480 = vperm.xlu0 %2479, %v2382
  %v2481 = vpop.permute.xlu0 %2480
  %2484 = vset.pattern.permute.xlu0 0
  %2485 = vperm.xlu0 %2484, %v2383
  %v2486 = vpop.permute.xlu0 %2485
  %2489 = vset.pattern.permute.xlu0 0
  %2490 = vperm.xlu0 %2489, %v2384
  %v2491 = vpop.permute.xlu0 %2490
  %2494 = vset.pattern.permute.xlu0 0
  %2495 = vperm.xlu0 %2494, %v2385
  %v2496 = vpop.permute.xlu0 %2495
  %2499 = vset.pattern.permute.xlu0 0
  %2500 = vperm.xlu0 %2499, %v2386
  %v2501 = vpop.permute.xlu0 %2500
  %2504 = vset.pattern.permute.xlu0 0
  %2505 = vperm.xlu0 %2504, %v2387
  %v2506 = vpop.permute.xlu0 %2505
  %2509 = vset.pattern.permute.xlu0 0
  %2510 = vperm.xlu0 %2509, %v2388
  %v2511 = vpop.permute.xlu0 %2510
  %2514 = vset.pattern.permute.xlu0 0
  %2515 = vperm.xlu0 %2514, %v2389
  %v2516 = vpop.permute.xlu0 %2515
  %2519 = vset.pattern.permute.xlu0 0
  %2520 = vperm.xlu0 %2519, %v2390
  %v2521 = vpop.permute.xlu0 %2520
  %2524 = vset.pattern.permute.xlu0 0
  %2525 = vperm.xlu0 %2524, %v2391
  %v2526 = vpop.permute.xlu0 %2525
  %2529 = vset.pattern.permute.xlu0 0
  %2530 = vperm.xlu0 %2529, %v2392
  %v2531 = vpop.permute.xlu0 %2530
  %2534 = vset.pattern.permute.xlu0 0
  %2535 = vperm.xlu0 %2534, %v2393
  %v2536 = vpop.permute.xlu0 %2535
  %2539 = vset.pattern.permute.xlu0 0
  %2540 = vperm.xlu0 %2539, %v2394
  %v2541 = vpop.permute.xlu0 %2540
  %2544 = vset.pattern.permute.xlu0 0
  %2545 = vperm.xlu0 %2544, %v2395
  %v2546 = vpop.permute.xlu0 %2545
  %2549 = vset.pattern.permute.xlu0 0
  %2550 = vperm.xlu0 %2549, %v2396
  %v2551 = vpop.permute.xlu0 %2550
  %2554 = vset.pattern.permute.xlu0 0
  %2555 = vperm.xlu0 %2554, %v2397
  %v2556 = vpop.permute.xlu0 %2555
  %2559 = vset.pattern.permute.xlu0 0
  %2560 = vperm.xlu0 %2559, %v2398
  %v2561 = vpop.permute.xlu0 %2560
  %2564 = vset.pattern.permute.xlu0 0
  %2565 = vperm.xlu0 %2564, %v2399
  %v2566 = vpop.permute.xlu0 %2565
  %2569 = vset.pattern.permute.xlu0 0
  %2570 = vperm.xlu0 %2569, %v2400
  %v2571 = vpop.permute.xlu0 %2570
  %2574 = vset.pattern.permute.xlu0 0
  %2575 = vperm.xlu0 %2574, %v2401
  %v2576 = vpop.permute.xlu0 %2575
  %2579 = vset.pattern.permute.xlu0 0
  %2580 = vperm.xlu0 %2579, %v2402
  %v2581 = vpop.permute.xlu0 %2580
  %2584 = vset.pattern.permute.xlu0 0
  %2585 = vperm.xlu0 %2584, %v2403
  %v2586 = vpop.permute.xlu0 %2585
  %2589 = vset.pattern.permute.xlu0 0
  %2590 = vperm.xlu0 %2589, %v2404
  %v2591 = vpop.permute.xlu0 %2590
  %2594 = vset.pattern.permute.xlu0 0
  %2595 = vperm.xlu0 %2594, %v2405
  %v2596 = vpop.permute.xlu0 %2595
  %2599 = vset.pattern.permute.xlu0 0
  %2600 = vperm.xlu0 %2599, %v2406
  %v2601 = vpop.permute.xlu0 %2600
  %2604 = vset.pattern.permute.xlu0 0
  %2605 = vperm.xlu0 %2604, %v2407
  %v2606 = vpop.permute.xlu0 %2605
  %2609 = vset.pattern.permute.xlu0 0
  %2610 = vperm.xlu0 %2609, %v2408
  %v2611 = vpop.permute.xlu0 %2610
  %2614 = vset.pattern.permute.xlu0 0
  %2615 = vperm.xlu0 %2614, %v2409
  %v2616 = vpop.permute.xlu0 %2615
  %2619 = vset.pattern.permute.xlu0 0
  %2620 = vperm.xlu0 %2619, %v2410
  %v2621 = vpop.permute.xlu0 %2620
  %2624 = vset.pattern.permute.xlu0 0
  %2625 = vperm.xlu0 %2624, %v2411
  %v2626 = vpop.permute.xlu0 %2625
  %2629 = vset.pattern.permute.xlu0 0
  %2630 = vperm.xlu0 %2629, %v2412
  %v2631 = vpop.permute.xlu0 %2630
  %2634 = vset.pattern.permute.xlu0 0
  %2635 = vperm.xlu0 %2634, %v2413
  %v2636 = vpop.permute.xlu0 %2635
  %2639 = vset.pattern.permute.xlu0 0
  %2640 = vperm.xlu0 %2639, %v2414
  %v2641 = vpop.permute.xlu0 %2640
  %2644 = vset.pattern.permute.xlu0 0
  %2645 = vperm.xlu0 %2644, %v2415
  %v2646 = vpop.permute.xlu0 %2645
  %2649 = vset.pattern.permute.xlu0 0
  %2650 = vperm.xlu0 %2649, %v2416
  %v2651 = vpop.permute.xlu0 %2650
  %2654 = vset.pattern.permute.xlu0 0
  %2655 = vperm.xlu0 %2654, %v2417
  %v2656 = vpop.permute.xlu0 %2655
  %2659 = vset.pattern.permute.xlu0 0
  %2660 = vperm.xlu0 %2659, %v2418
  %v2661 = vpop.permute.xlu0 %2660
  %2664 = vset.pattern.permute.xlu0 0
  %2665 = vperm.xlu0 %2664, %v2419
  %v2666 = vpop.permute.xlu0 %2665
  %2669 = vset.pattern.permute.xlu0 0
  %2670 = vperm.xlu0 %2669, %v2420
  %v2671 = vpop.permute.xlu0 %2670
  %2674 = vset.pattern.permute.xlu0 0
  %2675 = vperm.xlu0 %2674, %v2421
  %v2676 = vpop.permute.xlu0 %2675
  %2679 = vset.pattern.permute.xlu0 0
  %2680 = vperm.xlu0 %2679, %v2422
  %v2681 = vpop.permute.xlu0 %2680
  %2684 = vset.pattern.permute.xlu0 0
  %2685 = vperm.xlu0 %2684, %v2423
  %v2686 = vpop.permute.xlu0 %2685
  %2689 = vset.pattern.permute.xlu0 0
  %2690 = vperm.xlu0 %2689, %v2424
  %v2691 = vpop.permute.xlu0 %2690
  %2694 = vset.pattern.permute.xlu0 0
  %2695 = vperm.xlu0 %2694, %v2425
  %v2696 = vpop.permute.xlu0 %2695
  %2699 = vset.pattern.permute.xlu0 0
  %2700 = vperm.xlu0 %2699, %v2426
  %v2701 = vpop.permute.xlu0 %2700
  %2704 = vset.pattern.permute.xlu0 0
  %2705 = vperm.xlu0 %2704, %v2427
  %v2706 = vpop.permute.xlu0 %2705
  %2709 = vset.pattern.permute.xlu0 0
  %2710 = vperm.xlu0 %2709, %v2428
  %v2711 = vpop.permute.xlu0 %2710
  %2714 = vset.pattern.permute.xlu0 0
  %2715 = vperm.xlu0 %2714, %v2429
  %v2716 = vpop.permute.xlu0 %2715
  %2719 = vset.pattern.permute.xlu0 0
  %2720 = vperm.xlu0 %2719, %v2430
  %v2721 = vpop.permute.xlu0 %2720
  %2724 = vset.pattern.permute.xlu0 0
  %2725 = vperm.xlu0 %2724, %v2431
  %v2726 = vpop.permute.xlu0 %2725
  %2729 = vset.pattern.permute.xlu0 0
  %2730 = vperm.xlu0 %2729, %v2432
  %v2731 = vpop.permute.xlu0 %2730
  %2734 = vset.pattern.permute.xlu0 0
  %2735 = vperm.xlu0 %2734, %v2433
  %v2736 = vpop.permute.xlu0 %2735
  %2739 = vset.pattern.permute.xlu0 0
  %2740 = vperm.xlu0 %2739, %v2434
  %v2741 = vpop.permute.xlu0 %2740
  %2744 = vset.pattern.permute.xlu0 0
  %2745 = vperm.xlu0 %2744, %v2435
  %v2746 = vpop.permute.xlu0 %2745
  %2749 = vset.pattern.permute.xlu0 0
  %2750 = vperm.xlu0 %2749, %v2436
  %v2751 = vpop.permute.xlu0 %2750
  %2754 = vset.pattern.permute.xlu0 0
  %2755 = vperm.xlu0 %2754, %v2437
  %v2756 = vpop.permute.xlu0 %2755
  %2759 = vset.pattern.permute.xlu0 0
  %2760 = vperm.xlu0 %2759, %v2438
  %v2761 = vpop.permute.xlu0 %2760
  %2764 = vset.pattern.permute.xlu0 0
  %2765 = vperm.xlu0 %2764, %v2439
  %v2766 = vpop.permute.xlu0 %2765
  %2769 = vset.pattern.permute.xlu0 0
  %2770 = vperm.xlu0 %2769, %v2440
  %v2771 = vpop.permute.xlu0 %2770
  %2774 = vset.pattern.permute.xlu0 0
  %2775 = vperm.xlu0 %2774, %v2441
  %v2776 = vpop.permute.xlu0 %2775
  %2779 = vset.pattern.permute.xlu0 0
  %2780 = vperm.xlu0 %2779, %v2442
  %v2781 = vpop.permute.xlu0 %2780
  %2784 = vset.pattern.permute.xlu0 0
  %2785 = vperm.xlu0 %2784, %v2443
  %v2786 = vpop.permute.xlu0 %2785
  %2789 = vset.pattern.permute.xlu0 0
  %2790 = vperm.xlu0 %2789, %v2444
  %v2791 = vpop.permute.xlu0 %2790
  %2794 = vset.pattern.permute.xlu0 0
  %2795 = vperm.xlu0 %2794, %v2445
  %v2796 = vpop.permute.xlu0 %2795
  %2799 = vset.pattern.permute.xlu0 0
  %2800 = vperm.xlu0 %2799, %v2446
  %v2801 = vpop.permute.xlu0 %2800
  %2804 = vset.pattern.permute.xlu0 0
  %2805 = vperm.xlu0 %2804, %v2447
  %v2806 = vpop.permute.xlu0 %2805
  %2809 = vset.pattern.permute.xlu0 0
  %2810 = vperm.xlu0 %2809, %v2448
  %v2811 = vpop.permute.xlu0 %2810
  %2814 = vset.pattern.permute.xlu0 0
  %2815 = vperm.xlu0 %2814, %v2449
  %v2816 = vpop.permute.xlu0 %2815
  %2819 = vset.pattern.permute.xlu0 0
  %2820 = vperm.xlu0 %2819, %v2450
  %v2821 = vpop.permute.xlu0 %2820
  %2824 = vset.pattern.permute.xlu0 0
  %2825 = vperm.xlu0 %2824, %v2451
  %v2826 = vpop.permute.xlu0 %2825
  %v2828 = vmul.f32 %v2456, %v2461
  %v2829 = vmul.f32 %v2456, %v2466
  %v2830 = vmul.f32 %v2456, %v2471
  %v2831 = vmul.f32 %v2456, %v2476
  %v2832 = vmul.f32 %v2456, %v2481
  %v2833 = vmul.f32 %v2456, %v2486
  %v2834 = vmul.f32 %v2456, %v2491
  %v2835 = vmul.f32 %v2456, %v2496
  %v2836 = vmul.f32 %v2456, %v2501
  %v2837 = vmul.f32 %v2456, %v2506
  %v2838 = vmul.f32 %v2456, %v2511
  %v2839 = vmul.f32 %v2456, %v2516
  %v2840 = vmul.f32 %v2456, %v2521
  %v2841 = vmul.f32 %v2456, %v2526
  %v2842 = vmul.f32 %v2456, %v2531
  %v2843 = vmul.f32 %v2456, %v2536
  %v2844 = vmul.f32 %v2456, %v2541
  %v2845 = vmul.f32 %v2456, %v2546
  %v2846 = vmul.f32 %v2456, %v2551
  %v2847 = vmul.f32 %v2456, %v2556
  %v2848 = vmul.f32 %v2456, %v2561
  %v2849 = vmul.f32 %v2456, %v2566
  %v2850 = vmul.f32 %v2456, %v2571
  %v2851 = vmul.f32 %v2456, %v2576
  %v2852 = vmul.f32 %v2456, %v2581
  %v2853 = vmul.f32 %v2456, %v2586
  %v2854 = vmul.f32 %v2456, %v2591
  %v2855 = vmul.f32 %v2456, %v2596
  %v2856 = vmul.f32 %v2456, %v2601
  %v2857 = vmul.f32 %v2456, %v2606
  %v2858 = vmul.f32 %v2456, %v2611
  %v2859 = vmul.f32 %v2456, %v2616
  %v2860 = vmul.f32 %v2456, %v2621
  %v2861 = vmul.f32 %v2456, %v2626
  %v2862 = vmul.f32 %v2456, %v2631
  %v2863 = vmul.f32 %v2456, %v2636
  %v2864 = vmul.f32 %v2456, %v2641
  %v2865 = vmul.f32 %v2456, %v2646
  %v2866 = vmul.f32 %v2456, %v2651
  %v2867 = vmul.f32 %v2456, %v2656
  %v2868 = vmul.f32 %v2456, %v2661
  %v2869 = vmul.f32 %v2456, %v2666
  %v2870 = vmul.f32 %v2456, %v2671
  %v2871 = vmul.f32 %v2456, %v2676
  %v2872 = vmul.f32 %v2456, %v2681
  %v2873 = vmul.f32 %v2456, %v2686
  %v2874 = vmul.f32 %v2456, %v2691
  %v2875 = vmul.f32 %v2456, %v2696
  %v2876 = vmul.f32 %v2456, %v2701
  %v2877 = vmul.f32 %v2456, %v2706
  %v2878 = vmul.f32 %v2456, %v2711
  %v2879 = vmul.f32 %v2456, %v2716
  %v2880 = vmul.f32 %v2456, %v2721
  %v2881 = vmul.f32 %v2456, %v2726
  %v2882 = vmul.f32 %v2456, %v2731
  %v2883 = vmul.f32 %v2456, %v2736
  %v2884 = vmul.f32 %v2456, %v2741
  %v2885 = vmul.f32 %v2456, %v2746
  %v2886 = vmul.f32 %v2456, %v2751
  %v2887 = vmul.f32 %v2456, %v2756
  %v2888 = vmul.f32 %v2456, %v2761
  %v2889 = vmul.f32 %v2456, %v2766
  %v2890 = vmul.f32 %v2456, %v2771
  %v2891 = vmul.f32 %v2456, %v2776
  %v2892 = vmul.f32 %v2456, %v2781
  %v2893 = vmul.f32 %v2456, %v2786
  %v2894 = vmul.f32 %v2456, %v2791
  %v2895 = vmul.f32 %v2456, %v2796
  %v2896 = vmul.f32 %v2456, %v2801
  %v2897 = vmul.f32 %v2456, %v2806
  %v2898 = vmul.f32 %v2456, %v2811
  %v2899 = vmul.f32 %v2456, %v2816
  %v2900 = vmul.f32 %v2456, %v2821
  %v2901 = vmul.f32 %v2456, %v2826
  %v2902 = vadd.f32 %v2303, %v2828
  %v2903 = vadd.f32 %v2304, %v2829
  %v2904 = vadd.f32 %v2305, %v2830
  %v2905 = vadd.f32 %v2306, %v2831
  %v2906 = vadd.f32 %v2307, %v2832
  %v2907 = vadd.f32 %v2308, %v2833
  %v2908 = vadd.f32 %v2309, %v2834
  %v2909 = vadd.f32 %v2310, %v2835
  %v2910 = vadd.f32 %v2311, %v2836
  %v2911 = vadd.f32 %v2312, %v2837
  %v2912 = vadd.f32 %v2313, %v2838
  %v2913 = vadd.f32 %v2314, %v2839
  %v2914 = vadd.f32 %v2315, %v2840
  %v2915 = vadd.f32 %v2316, %v2841
  %v2916 = vadd.f32 %v2317, %v2842
  %v2917 = vadd.f32 %v2318, %v2843
  %v2918 = vadd.f32 %v2319, %v2844
  %v2919 = vadd.f32 %v2320, %v2845
  %v2920 = vadd.f32 %v2321, %v2846
  %v2921 = vadd.f32 %v2322, %v2847
  %v2922 = vadd.f32 %v2323, %v2848
  %v2923 = vadd.f32 %v2324, %v2849
  %v2924 = vadd.f32 %v2325, %v2850
  %v2925 = vadd.f32 %v2326, %v2851
  %v2926 = vadd.f32 %v2327, %v2852
  %v2927 = vadd.f32 %v2328, %v2853
  %v2928 = vadd.f32 %v2329, %v2854
  %v2929 = vadd.f32 %v2330, %v2855
  %v2930 = vadd.f32 %v2331, %v2856
  %v2931 = vadd.f32 %v2332, %v2857
  %v2932 = vadd.f32 %v2333, %v2858
  %v2933 = vadd.f32 %v2334, %v2859
  %v2934 = vadd.f32 %v2335, %v2860
  %v2935 = vadd.f32 %v2336, %v2861
  %v2936 = vadd.f32 %v2337, %v2862
  %v2937 = vadd.f32 %v2338, %v2863
  %v2938 = vadd.f32 %v2339, %v2864
  %v2939 = vadd.f32 %v2340, %v2865
  %v2940 = vadd.f32 %v2341, %v2866
  %v2941 = vadd.f32 %v2342, %v2867
  %v2942 = vadd.f32 %v2343, %v2868
  %v2943 = vadd.f32 %v2344, %v2869
  %v2944 = vadd.f32 %v2345, %v2870
  %v2945 = vadd.f32 %v2346, %v2871
  %v2946 = vadd.f32 %v2347, %v2872
  %v2947 = vadd.f32 %v2348, %v2873
  %v2948 = vadd.f32 %v2349, %v2874
  %v2949 = vadd.f32 %v2350, %v2875
  %v2950 = vadd.f32 %v2351, %v2876
  %v2951 = vadd.f32 %v2352, %v2877
  %v2952 = vadd.f32 %v2353, %v2878
  %v2953 = vadd.f32 %v2354, %v2879
  %v2954 = vadd.f32 %v2355, %v2880
  %v2955 = vadd.f32 %v2356, %v2881
  %v2956 = vadd.f32 %v2357, %v2882
  %v2957 = vadd.f32 %v2358, %v2883
  %v2958 = vadd.f32 %v2359, %v2884
  %v2959 = vadd.f32 %v2360, %v2885
  %v2960 = vadd.f32 %v2361, %v2886
  %v2961 = vadd.f32 %v2362, %v2887
  %v2962 = vadd.f32 %v2363, %v2888
  %v2963 = vadd.f32 %v2364, %v2889
  %v2964 = vadd.f32 %v2365, %v2890
  %v2965 = vadd.f32 %v2366, %v2891
  %v2966 = vadd.f32 %v2367, %v2892
  %v2967 = vadd.f32 %v2368, %v2893
  %v2968 = vadd.f32 %v2369, %v2894
  %v2969 = vadd.f32 %v2370, %v2895
  %v2970 = vadd.f32 %v2371, %v2896
  %v2971 = vadd.f32 %v2372, %v2897
  %v2972 = vadd.f32 %v2373, %v2898
  %v2973 = vadd.f32 %v2374, %v2899
  %v2974 = vadd.f32 %v2375, %v2900
  %v2975 = vadd.f32 %v2376, %v2901
  %v2976 = vmul.f32 %v1779, %v2902
  %v2977 = vmul.f32 %v1780, %v2903
  %v2978 = vmul.f32 %v1781, %v2904
  %v2979 = vmul.f32 %v1782, %v2905
  %v2980 = vmul.f32 %v1783, %v2906
  %v2981 = vmul.f32 %v1784, %v2907
  %v2982 = vmul.f32 %v1785, %v2908
  %v2983 = vmul.f32 %v1786, %v2909
  %v2984 = vmul.f32 %v1787, %v2910
  %v2985 = vmul.f32 %v1788, %v2911
  %v2986 = vmul.f32 %v1789, %v2912
  %v2987 = vmul.f32 %v1790, %v2913
  %v2988 = vmul.f32 %v1791, %v2914
  %v2989 = vmul.f32 %v1792, %v2915
  %v2990 = vmul.f32 %v1793, %v2916
  %v2991 = vmul.f32 %v1794, %v2917
  %v2992 = vmul.f32 %v1795, %v2918
  %v2993 = vmul.f32 %v1796, %v2919
  %v2994 = vmul.f32 %v1797, %v2920
  %v2995 = vmul.f32 %v1798, %v2921
  %v2996 = vmul.f32 %v1799, %v2922
  %v2997 = vmul.f32 %v1800, %v2923
  %v2998 = vmul.f32 %v1801, %v2924
  %v2999 = vmul.f32 %v1802, %v2925
  %v3000 = vmul.f32 %v1803, %v2926
  %v3001 = vmul.f32 %v1804, %v2927
  %v3002 = vmul.f32 %v1805, %v2928
  %v3003 = vmul.f32 %v1806, %v2929
  %v3004 = vmul.f32 %v1807, %v2930
  %v3005 = vmul.f32 %v1808, %v2931
  %v3006 = vmul.f32 %v1809, %v2932
  %v3007 = vmul.f32 %v1810, %v2933
  %v3008 = vmul.f32 %v1811, %v2934
  %v3009 = vmul.f32 %v1812, %v2935
  %v3010 = vmul.f32 %v1813, %v2936
  %v3011 = vmul.f32 %v1814, %v2937
  %v3012 = vmul.f32 %v1815, %v2938
  %v3013 = vmul.f32 %v1816, %v2939
  %v3014 = vmul.f32 %v1817, %v2940
  %v3015 = vmul.f32 %v1818, %v2941
  %v3016 = vmul.f32 %v1819, %v2942
  %v3017 = vmul.f32 %v1820, %v2943
  %v3018 = vmul.f32 %v1821, %v2944
  %v3019 = vmul.f32 %v1822, %v2945
  %v3020 = vmul.f32 %v1823, %v2946
  %v3021 = vmul.f32 %v1824, %v2947
  %v3022 = vmul.f32 %v1825, %v2948
  %v3023 = vmul.f32 %v1826, %v2949
  %v3024 = vmul.f32 %v1827, %v2950
  %v3025 = vmul.f32 %v1828, %v2951
  %v3026 = vmul.f32 %v1829, %v2952
  %v3027 = vmul.f32 %v1830, %v2953
  %v3028 = vmul.f32 %v1831, %v2954
  %v3029 = vmul.f32 %v1832, %v2955
  %v3030 = vmul.f32 %v1833, %v2956
  %v3031 = vmul.f32 %v1834, %v2957
  %v3032 = vmul.f32 %v1835, %v2958
  %v3033 = vmul.f32 %v1836, %v2959
  %v3034 = vmul.f32 %v1837, %v2960
  %v3035 = vmul.f32 %v1838, %v2961
  %v3036 = vmul.f32 %v1839, %v2962
  %v3037 = vmul.f32 %v1840, %v2963
  %v3038 = vmul.f32 %v1841, %v2964
  %v3039 = vmul.f32 %v1842, %v2965
  %v3040 = vmul.f32 %v1843, %v2966
  %v3041 = vmul.f32 %v1844, %v2967
  %v3042 = vmul.f32 %v1845, %v2968
  %v3043 = vmul.f32 %v1846, %v2969
  %v3044 = vmul.f32 %v1847, %v2970
  %v3045 = vmul.f32 %v1848, %v2971
  %v3046 = vmul.f32 %v1849, %v2972
  %v3047 = vmul.f32 %v1850, %v2973
  %v3048 = vmul.f32 %v1851, %v2974
  %v3049 = vmul.f32 %v1852, %v2975
  %v3050 = vmul.f32 %v434, %v2976
  %v3051 = vmul.f32 %v437, %v2977
  %v3052 = vmul.f32 %v442, %v2978
  %v3053 = vmul.f32 %v445, %v2979
  %v3054 = vmul.f32 %v450, %v2980
  %v3055 = vmul.f32 %v453, %v2981
  %v3056 = vmul.f32 %v458, %v2982
  %v3057 = vmul.f32 %v461, %v2983
  %v3058 = vmul.f32 %v466, %v2984
  %v3059 = vmul.f32 %v469, %v2985
  %v3060 = vmul.f32 %v474, %v2986
  %v3061 = vmul.f32 %v477, %v2987
  %v3062 = vmul.f32 %v482, %v2988
  %v3063 = vmul.f32 %v485, %v2989
  %v3064 = vmul.f32 %v490, %v2990
  %v3065 = vmul.f32 %v493, %v2991
  %v3066 = vmul.f32 %v498, %v2992
  %v3067 = vmul.f32 %v501, %v2993
  %v3068 = vmul.f32 %v506, %v2994
  %v3069 = vmul.f32 %v509, %v2995
  %v3070 = vmul.f32 %v514, %v2996
  %v3071 = vmul.f32 %v517, %v2997
  %v3072 = vmul.f32 %v522, %v2998
  %v3073 = vmul.f32 %v525, %v2999
  %v3074 = vmul.f32 %v530, %v3000
  %v3075 = vmul.f32 %v533, %v3001
  %v3076 = vmul.f32 %v538, %v3002
  %v3077 = vmul.f32 %v541, %v3003
  %v3078 = vmul.f32 %v546, %v3004
  %v3079 = vmul.f32 %v549, %v3005
  %v3080 = vmul.f32 %v554, %v3006
  %v3081 = vmul.f32 %v557, %v3007
  %v3082 = vmul.f32 %v562, %v3008
  %v3083 = vmul.f32 %v565, %v3009
  %v3084 = vmul.f32 %v570, %v3010
  %v3085 = vmul.f32 %v573, %v3011
  %v3086 = vmul.f32 %v578, %v3012
  %v3087 = vmul.f32 %v581, %v3013
  %v3088 = vmul.f32 %v586, %v3014
  %v3089 = vmul.f32 %v589, %v3015
  %v3090 = vmul.f32 %v594, %v3016
  %v3091 = vmul.f32 %v597, %v3017
  %v3092 = vmul.f32 %v602, %v3018
  %v3093 = vmul.f32 %v605, %v3019
  %v3094 = vmul.f32 %v610, %v3020
  %v3095 = vmul.f32 %v613, %v3021
  %v3096 = vmul.f32 %v618, %v3022
  %v3097 = vmul.f32 %v621, %v3023
  %v3098 = vmul.f32 %v626, %v3024
  %v3099 = vmul.f32 %v629, %v3025
  %v3100 = vmul.f32 %v634, %v3026
  %v3101 = vmul.f32 %v637, %v3027
  %v3102 = vmul.f32 %v642, %v3028
  %v3103 = vmul.f32 %v645, %v3029
  %v3104 = vmul.f32 %v650, %v3030
  %v3105 = vmul.f32 %v653, %v3031
  %v3106 = vmul.f32 %v658, %v3032
  %v3107 = vmul.f32 %v661, %v3033
  %v3108 = vmul.f32 %v666, %v3034
  %v3109 = vmul.f32 %v669, %v3035
  %v3110 = vmul.f32 %v674, %v3036
  %v3111 = vmul.f32 %v677, %v3037
  %v3112 = vmul.f32 %v682, %v3038
  %v3113 = vmul.f32 %v685, %v3039
  %v3114 = vmul.f32 %v690, %v3040
  %v3115 = vmul.f32 %v693, %v3041
  %v3116 = vmul.f32 %v698, %v3042
  %v3117 = vmul.f32 %v701, %v3043
  %v3118 = vmul.f32 %v706, %v3044
  %v3119 = vmul.f32 %v709, %v3045
  %v3120 = vmul.f32 %v714, %v3046
  %v3121 = vmul.f32 %v717, %v3047
  %v3122 = vmul.f32 %v722, %v3048
  %v3123 = vmul.f32 %v725, %v3049
  %v3124 = vld [vmem:[%s8] sm:$0xff]
  %v3125 = vld [vmem:[%s8 + $0x8] sm:$0xff]
  %v3126 = vld [vmem:[%s8 + $0x10] sm:$0xff]
  %v3127 = vld [vmem:[%s8 + $0x18] sm:$0xff]
  %v3128 = vld [vmem:[%s8 + $0x20] sm:$0xff]
  %v3129 = vld [vmem:[%s8 + $0x28] sm:$0xff]
  %v3130 = vld [vmem:[%s8 + $0x30] sm:$0xff]
  %v3131 = vld [vmem:[%s8 + $0x38] sm:$0xff]
  %v3132 = vld [vmem:[%s8 + $0x40] sm:$0xff]
  %v3133 = vld [vmem:[%s8 + $0x48] sm:$0xff]
  %v3134 = vld [vmem:[%s8 + $0x50] sm:$0xff]
  %v3135 = vld [vmem:[%s8 + $0x58] sm:$0xff]
  %v3136 = vld [vmem:[%s8 + $0x60] sm:$0xff]
  %v3137 = vld [vmem:[%s8 + $0x68] sm:$0xff]
  %v3138 = vld [vmem:[%s8 + $0x70] sm:$0xff]
  %v3139 = vld [vmem:[%s8 + $0x78] sm:$0xff]
  %3140 = vmatprep.subr.mxu0 0.0
  %3141 = vmatpush1.msra.mxu0 %v3139
  %3142 = vmatprep.subr.mxu0 0.0
  %3143 = vmatpush1.msra.mxu0 %v3138
  %3144 = vmatprep.subr.mxu0 0.0
  %3145 = vmatpush1.msra.mxu0 %v3137
  %3146 = vmatprep.subr.mxu0 0.0
  %3147 = vmatpush1.msra.mxu0 %v3136
  %3148 = vmatprep.subr.mxu0 0.0
  %3149 = vmatpush1.msra.mxu0 %v3135
  %3150 = vmatprep.subr.mxu0 0.0
  %3151 = vmatpush1.msra.mxu0 %v3134
  %3152 = vmatprep.subr.mxu0 0.0
  %3153 = vmatpush1.msra.mxu0 %v3133
  %3154 = vmatprep.subr.mxu0 0.0
  %3155 = vmatpush1.msra.mxu0 %v3132
  %3156 = vmatprep.subr.mxu0 0.0
  %3157 = vmatpush1.msra.mxu0 %v3131
  %3158 = vmatprep.subr.mxu0 0.0
  %3159 = vmatpush1.msra.mxu0 %v3130
  %3160 = vmatprep.subr.mxu0 0.0
  %3161 = vmatpush1.msra.mxu0 %v3129
  %3162 = vmatprep.subr.mxu0 0.0
  %3163 = vmatpush1.msra.mxu0 %v3128
  %3164 = vmatprep.subr.mxu0 0.0
  %3165 = vmatpush1.msra.mxu0 %v3127
  %3166 = vmatprep.subr.mxu0 0.0
  %3167 = vmatpush1.msra.mxu0 %v3126
  %3168 = vmatprep.subr.mxu0 0.0
  %3169 = vmatpush1.msra.mxu0 %v3125
  %3170 = vmatprep.subr.mxu0 0.0
  %3171 = vmatpush1.msra.mxu0 %v3124
  %3172 = vmatprep.subr.mxu0 0.0
  %3173 = vmatpush2.msra.mxu0 0.0
  %3174 = vmatprep.subr.mxu0 0.0
  %3175 = vmatpush2.msra.mxu0 0.0
  %3176 = vmatprep.subr.mxu0 0.0
  %3177 = vmatpush2.msra.mxu0 0.0
  %3178 = vmatprep.subr.mxu0 0.0
  %3179 = vmatpush2.msra.mxu0 0.0
  %3180 = vmatprep.subr.mxu0 0.0
  %3181 = vmatpush2.msra.mxu0 0.0
  %3182 = vmatprep.subr.mxu0 0.0
  %3183 = vmatpush2.msra.mxu0 0.0
  %3184 = vmatprep.subr.mxu0 0.0
  %3185 = vmatpush2.msra.mxu0 0.0
  %3186 = vmatprep.subr.mxu0 0.0
  %3187 = vmatpush2.msra.mxu0 0.0
  %3188 = vmatprep.subr.mxu0 0.0
  %3189 = vmatpush2.msra.mxu0 0.0
  %3190 = vmatprep.subr.mxu0 0.0
  %3191 = vmatpush2.msra.mxu0 0.0
  %3192 = vmatprep.subr.mxu0 0.0
  %3193 = vmatpush2.msra.mxu0 0.0
  %3194 = vmatprep.subr.mxu0 0.0
  %3195 = vmatpush2.msra.mxu0 0.0
  %3196 = vmatprep.subr.mxu0 0.0
  %3197 = vmatpush2.msra.mxu0 0.0
  %3198 = vmatprep.subr.mxu0 0.0
  %3199 = vmatpush2.msra.mxu0 0.0
  %3200 = vmatprep.subr.mxu0 0.0
  %3201 = vmatpush2.msra.mxu0 0.0
  %3202 = vmatprep.subr.mxu0 0.0
  %3203 = vmatpush2.msra.mxu0 0.0
  %3204 = vmatprep.mubr.f32.mxu0 0.0
  %3205 = vmatmul.mubr.f32.gmra.mxu0 %v3050
  %v3206 = vpop.f32.mrf.mxu0
  %v3207 = vadd.f32 0.0, %v3206
  %v3208 = vpop.f32.mrf.mxu0
  %3209 = vmatprep.mubr.f32.mxu0 0.0
  %3210 = vmatmul.mubr.f32.gmra.mxu0 %v3051
  %v3211 = vpop.f32.mrf.mxu0
  %v3212 = vadd.f32 0.0, %v3211
  %v3213 = vpop.f32.mrf.mxu0
  %3214 = vmatprep.mubr.f32.mxu0 0.0
  %3215 = vmatmul.mubr.f32.gmra.mxu0 %v3052
  %v3216 = vpop.f32.mrf.mxu0
  %v3217 = vadd.f32 0.0, %v3216
  %v3218 = vpop.f32.mrf.mxu0
  %3219 = vmatprep.mubr.f32.mxu0 0.0
  %3220 = vmatmul.mubr.f32.gmra.mxu0 %v3053
  %v3221 = vpop.f32.mrf.mxu0
  %v3222 = vadd.f32 0.0, %v3221
  %v3223 = vpop.f32.mrf.mxu0
  %3224 = vmatprep.mubr.f32.mxu0 0.0
  %3225 = vmatmul.mubr.f32.gmra.mxu0 %v3054
  %v3226 = vpop.f32.mrf.mxu0
  %v3227 = vadd.f32 0.0, %v3226
  %v3228 = vpop.f32.mrf.mxu0
  %3229 = vmatprep.mubr.f32.mxu0 0.0
  %3230 = vmatmul.mubr.f32.gmra.mxu0 %v3055
  %v3231 = vpop.f32.mrf.mxu0
  %v3232 = vadd.f32 0.0, %v3231
  %v3233 = vpop.f32.mrf.mxu0
  %3234 = vmatprep.mubr.f32.mxu0 0.0
  %3235 = vmatmul.mubr.f32.gmra.mxu0 %v3056
  %v3236 = vpop.f32.mrf.mxu0
  %v3237 = vadd.f32 0.0, %v3236
  %v3238 = vpop.f32.mrf.mxu0
  %3239 = vmatprep.mubr.f32.mxu0 0.0
  %3240 = vmatmul.mubr.f32.gmra.mxu0 %v3057
  %v3241 = vpop.f32.mrf.mxu0
  %v3242 = vadd.f32 0.0, %v3241
  %v3243 = vpop.f32.mrf.mxu0
  %3244 = vmatprep.mubr.f32.mxu0 0.0
  %3245 = vmatmul.mubr.f32.gmra.mxu0 %v3058
  %v3246 = vpop.f32.mrf.mxu0
  %v3247 = vadd.f32 0.0, %v3246
  %v3248 = vpop.f32.mrf.mxu0
  %3249 = vmatprep.mubr.f32.mxu0 0.0
  %3250 = vmatmul.mubr.f32.gmra.mxu0 %v3059
  %v3251 = vpop.f32.mrf.mxu0
  %v3252 = vadd.f32 0.0, %v3251
  %v3253 = vpop.f32.mrf.mxu0
  %3254 = vmatprep.mubr.f32.mxu0 0.0
  %3255 = vmatmul.mubr.f32.gmra.mxu0 %v3060
  %v3256 = vpop.f32.mrf.mxu0
  %v3257 = vadd.f32 0.0, %v3256
  %v3258 = vpop.f32.mrf.mxu0
  %3259 = vmatprep.mubr.f32.mxu0 0.0
  %3260 = vmatmul.mubr.f32.gmra.mxu0 %v3061
  %v3261 = vpop.f32.mrf.mxu0
  %v3262 = vadd.f32 0.0, %v3261
  %v3263 = vpop.f32.mrf.mxu0
  %3264 = vmatprep.mubr.f32.mxu0 0.0
  %3265 = vmatmul.mubr.f32.gmra.mxu0 %v3062
  %v3266 = vpop.f32.mrf.mxu0
  %v3267 = vadd.f32 0.0, %v3266
  %v3268 = vpop.f32.mrf.mxu0
  %3269 = vmatprep.mubr.f32.mxu0 0.0
  %3270 = vmatmul.mubr.f32.gmra.mxu0 %v3063
  %v3271 = vpop.f32.mrf.mxu0
  %v3272 = vadd.f32 0.0, %v3271
  %v3273 = vpop.f32.mrf.mxu0
  %3274 = vmatprep.mubr.f32.mxu0 0.0
  %3275 = vmatmul.mubr.f32.gmra.mxu0 %v3064
  %v3276 = vpop.f32.mrf.mxu0
  %v3277 = vadd.f32 0.0, %v3276
  %v3278 = vpop.f32.mrf.mxu0
  %3279 = vmatprep.mubr.f32.mxu0 0.0
  %3280 = vmatmul.mubr.f32.gmra.mxu0 %v3065
  %v3281 = vpop.f32.mrf.mxu0
  %v3282 = vadd.f32 0.0, %v3281
  %v3283 = vpop.f32.mrf.mxu0
  %3284 = vmatprep.mubr.f32.mxu0 0.0
  %3285 = vmatmul.mubr.f32.gmra.mxu0 %v3066
  %v3286 = vpop.f32.mrf.mxu0
  %v3287 = vadd.f32 0.0, %v3286
  %v3288 = vpop.f32.mrf.mxu0
  %3289 = vmatprep.mubr.f32.mxu0 0.0
  %3290 = vmatmul.mubr.f32.gmra.mxu0 %v3067
  %v3291 = vpop.f32.mrf.mxu0
  %v3292 = vadd.f32 0.0, %v3291
  %v3293 = vpop.f32.mrf.mxu0
  %3294 = vmatprep.mubr.f32.mxu0 0.0
  %3295 = vmatmul.mubr.f32.gmra.mxu0 %v3068
  %v3296 = vpop.f32.mrf.mxu0
  %v3297 = vadd.f32 0.0, %v3296
  %v3298 = vpop.f32.mrf.mxu0
  %3299 = vmatprep.mubr.f32.mxu0 0.0
  %3300 = vmatmul.mubr.f32.gmra.mxu0 %v3069
  %v3301 = vpop.f32.mrf.mxu0
  %v3302 = vadd.f32 0.0, %v3301
  %v3303 = vpop.f32.mrf.mxu0
  %3304 = vmatprep.mubr.f32.mxu0 0.0
  %3305 = vmatmul.mubr.f32.gmra.mxu0 %v3070
  %v3306 = vpop.f32.mrf.mxu0
  %v3307 = vadd.f32 0.0, %v3306
  %v3308 = vpop.f32.mrf.mxu0
  %3309 = vmatprep.mubr.f32.mxu0 0.0
  %3310 = vmatmul.mubr.f32.gmra.mxu0 %v3071
  %v3311 = vpop.f32.mrf.mxu0
  %v3312 = vadd.f32 0.0, %v3311
  %v3313 = vpop.f32.mrf.mxu0
  %3314 = vmatprep.mubr.f32.mxu0 0.0
  %3315 = vmatmul.mubr.f32.gmra.mxu0 %v3072
  %v3316 = vpop.f32.mrf.mxu0
  %v3317 = vadd.f32 0.0, %v3316
  %v3318 = vpop.f32.mrf.mxu0
  %3319 = vmatprep.mubr.f32.mxu0 0.0
  %3320 = vmatmul.mubr.f32.gmra.mxu0 %v3073
  %v3321 = vpop.f32.mrf.mxu0
  %v3322 = vadd.f32 0.0, %v3321
  %v3323 = vpop.f32.mrf.mxu0
  %3324 = vmatprep.mubr.f32.mxu0 0.0
  %3325 = vmatmul.mubr.f32.gmra.mxu0 %v3074
  %v3326 = vpop.f32.mrf.mxu0
  %v3327 = vadd.f32 0.0, %v3326
  %v3328 = vpop.f32.mrf.mxu0
  %3329 = vmatprep.mubr.f32.mxu0 0.0
  %3330 = vmatmul.mubr.f32.gmra.mxu0 %v3075
  %v3331 = vpop.f32.mrf.mxu0
  %v3332 = vadd.f32 0.0, %v3331
  %v3333 = vpop.f32.mrf.mxu0
  %3334 = vmatprep.mubr.f32.mxu0 0.0
  %3335 = vmatmul.mubr.f32.gmra.mxu0 %v3076
  %v3336 = vpop.f32.mrf.mxu0
  %v3337 = vadd.f32 0.0, %v3336
  %v3338 = vpop.f32.mrf.mxu0
  %3339 = vmatprep.mubr.f32.mxu0 0.0
  %3340 = vmatmul.mubr.f32.gmra.mxu0 %v3077
  %v3341 = vpop.f32.mrf.mxu0
  %v3342 = vadd.f32 0.0, %v3341
  %v3343 = vpop.f32.mrf.mxu0
  %3344 = vmatprep.mubr.f32.mxu0 0.0
  %3345 = vmatmul.mubr.f32.gmra.mxu0 %v3078
  %v3346 = vpop.f32.mrf.mxu0
  %v3347 = vadd.f32 0.0, %v3346
  %v3348 = vpop.f32.mrf.mxu0
  %3349 = vmatprep.mubr.f32.mxu0 0.0
  %3350 = vmatmul.mubr.f32.gmra.mxu0 %v3079
  %v3351 = vpop.f32.mrf.mxu0
  %v3352 = vadd.f32 0.0, %v3351
  %v3353 = vpop.f32.mrf.mxu0
  %3354 = vmatprep.mubr.f32.mxu0 0.0
  %3355 = vmatmul.mubr.f32.gmra.mxu0 %v3080
  %v3356 = vpop.f32.mrf.mxu0
  %v3357 = vadd.f32 0.0, %v3356
  %v3358 = vpop.f32.mrf.mxu0
  %3359 = vmatprep.mubr.f32.mxu0 0.0
  %3360 = vmatmul.mubr.f32.gmra.mxu0 %v3081
  %v3361 = vpop.f32.mrf.mxu0
  %v3362 = vadd.f32 0.0, %v3361
  %v3363 = vpop.f32.mrf.mxu0
  %3364 = vmatprep.mubr.f32.mxu0 0.0
  %3365 = vmatmul.mubr.f32.gmra.mxu0 %v3082
  %v3366 = vpop.f32.mrf.mxu0
  %v3367 = vadd.f32 0.0, %v3366
  %v3368 = vpop.f32.mrf.mxu0
  %3369 = vmatprep.mubr.f32.mxu0 0.0
  %3370 = vmatmul.mubr.f32.gmra.mxu0 %v3083
  %v3371 = vpop.f32.mrf.mxu0
  %v3372 = vadd.f32 0.0, %v3371
  %v3373 = vpop.f32.mrf.mxu0
  %3374 = vmatprep.mubr.f32.mxu0 0.0
  %3375 = vmatmul.mubr.f32.gmra.mxu0 %v3084
  %v3376 = vpop.f32.mrf.mxu0
  %v3377 = vadd.f32 0.0, %v3376
  %v3378 = vpop.f32.mrf.mxu0
  %3379 = vmatprep.mubr.f32.mxu0 0.0
  %3380 = vmatmul.mubr.f32.gmra.mxu0 %v3085
  %v3381 = vpop.f32.mrf.mxu0
  %v3382 = vadd.f32 0.0, %v3381
  %v3383 = vpop.f32.mrf.mxu0
  %3384 = vmatprep.mubr.f32.mxu0 0.0
  %3385 = vmatmul.mubr.f32.gmra.mxu0 %v3086
  %v3386 = vpop.f32.mrf.mxu0
  %v3387 = vadd.f32 0.0, %v3386
  %v3388 = vpop.f32.mrf.mxu0
  %3389 = vmatprep.mubr.f32.mxu0 0.0
  %3390 = vmatmul.mubr.f32.gmra.mxu0 %v3087
  %v3391 = vpop.f32.mrf.mxu0
  %v3392 = vadd.f32 0.0, %v3391
  %v3393 = vpop.f32.mrf.mxu0
  %3394 = vmatprep.mubr.f32.mxu0 0.0
  %3395 = vmatmul.mubr.f32.gmra.mxu0 %v3088
  %v3396 = vpop.f32.mrf.mxu0
  %v3397 = vadd.f32 0.0, %v3396
  %v3398 = vpop.f32.mrf.mxu0
  %3399 = vmatprep.mubr.f32.mxu0 0.0
  %3400 = vmatmul.mubr.f32.gmra.mxu0 %v3089
  %v3401 = vpop.f32.mrf.mxu0
  %v3402 = vadd.f32 0.0, %v3401
  %v3403 = vpop.f32.mrf.mxu0
  %3404 = vmatprep.mubr.f32.mxu0 0.0
  %3405 = vmatmul.mubr.f32.gmra.mxu0 %v3090
  %v3406 = vpop.f32.mrf.mxu0
  %v3407 = vadd.f32 0.0, %v3406
  %v3408 = vpop.f32.mrf.mxu0
  %3409 = vmatprep.mubr.f32.mxu0 0.0
  %3410 = vmatmul.mubr.f32.gmra.mxu0 %v3091
  %v3411 = vpop.f32.mrf.mxu0
  %v3412 = vadd.f32 0.0, %v3411
  %v3413 = vpop.f32.mrf.mxu0
  %3414 = vmatprep.mubr.f32.mxu0 0.0
  %3415 = vmatmul.mubr.f32.gmra.mxu0 %v3092
  %v3416 = vpop.f32.mrf.mxu0
  %v3417 = vadd.f32 0.0, %v3416
  %v3418 = vpop.f32.mrf.mxu0
  %3419 = vmatprep.mubr.f32.mxu0 0.0
  %3420 = vmatmul.mubr.f32.gmra.mxu0 %v3093
  %v3421 = vpop.f32.mrf.mxu0
  %v3422 = vadd.f32 0.0, %v3421
  %v3423 = vpop.f32.mrf.mxu0
  %3424 = vmatprep.mubr.f32.mxu0 0.0
  %3425 = vmatmul.mubr.f32.gmra.mxu0 %v3094
  %v3426 = vpop.f32.mrf.mxu0
  %v3427 = vadd.f32 0.0, %v3426
  %v3428 = vpop.f32.mrf.mxu0
  %3429 = vmatprep.mubr.f32.mxu0 0.0
  %3430 = vmatmul.mubr.f32.gmra.mxu0 %v3095
  %v3431 = vpop.f32.mrf.mxu0
  %v3432 = vadd.f32 0.0, %v3431
  %v3433 = vpop.f32.mrf.mxu0
  %3434 = vmatprep.mubr.f32.mxu0 0.0
  %3435 = vmatmul.mubr.f32.gmra.mxu0 %v3096
  %v3436 = vpop.f32.mrf.mxu0
  %v3437 = vadd.f32 0.0, %v3436
  %v3438 = vpop.f32.mrf.mxu0
  %3439 = vmatprep.mubr.f32.mxu0 0.0
  %3440 = vmatmul.mubr.f32.gmra.mxu0 %v3097
  %v3441 = vpop.f32.mrf.mxu0
  %v3442 = vadd.f32 0.0, %v3441
  %v3443 = vpop.f32.mrf.mxu0
  %3444 = vmatprep.mubr.f32.mxu0 0.0
  %3445 = vmatmul.mubr.f32.gmra.mxu0 %v3098
  %v3446 = vpop.f32.mrf.mxu0
  %v3447 = vadd.f32 0.0, %v3446
  %v3448 = vpop.f32.mrf.mxu0
  %3449 = vmatprep.mubr.f32.mxu0 0.0
  %3450 = vmatmul.mubr.f32.gmra.mxu0 %v3099
  %v3451 = vpop.f32.mrf.mxu0
  %v3452 = vadd.f32 0.0, %v3451
  %v3453 = vpop.f32.mrf.mxu0
  %3454 = vmatprep.mubr.f32.mxu0 0.0
  %3455 = vmatmul.mubr.f32.gmra.mxu0 %v3100
  %v3456 = vpop.f32.mrf.mxu0
  %v3457 = vadd.f32 0.0, %v3456
  %v3458 = vpop.f32.mrf.mxu0
  %3459 = vmatprep.mubr.f32.mxu0 0.0
  %3460 = vmatmul.mubr.f32.gmra.mxu0 %v3101
  %v3461 = vpop.f32.mrf.mxu0
  %v3462 = vadd.f32 0.0, %v3461
  %v3463 = vpop.f32.mrf.mxu0
  %3464 = vmatprep.mubr.f32.mxu0 0.0
  %3465 = vmatmul.mubr.f32.gmra.mxu0 %v3102
  %v3466 = vpop.f32.mrf.mxu0
  %v3467 = vadd.f32 0.0, %v3466
  %v3468 = vpop.f32.mrf.mxu0
  %3469 = vmatprep.mubr.f32.mxu0 0.0
  %3470 = vmatmul.mubr.f32.gmra.mxu0 %v3103
  %v3471 = vpop.f32.mrf.mxu0
  %v3472 = vadd.f32 0.0, %v3471
  %v3473 = vpop.f32.mrf.mxu0
  %3474 = vmatprep.mubr.f32.mxu0 0.0
  %3475 = vmatmul.mubr.f32.gmra.mxu0 %v3104
  %v3476 = vpop.f32.mrf.mxu0
  %v3477 = vadd.f32 0.0, %v3476
  %v3478 = vpop.f32.mrf.mxu0
  %3479 = vmatprep.mubr.f32.mxu0 0.0
  %3480 = vmatmul.mubr.f32.gmra.mxu0 %v3105
  %v3481 = vpop.f32.mrf.mxu0
  %v3482 = vadd.f32 0.0, %v3481
  %v3483 = vpop.f32.mrf.mxu0
  %3484 = vmatprep.mubr.f32.mxu0 0.0
  %3485 = vmatmul.mubr.f32.gmra.mxu0 %v3106
  %v3486 = vpop.f32.mrf.mxu0
  %v3487 = vadd.f32 0.0, %v3486
  %v3488 = vpop.f32.mrf.mxu0
  %3489 = vmatprep.mubr.f32.mxu0 0.0
  %3490 = vmatmul.mubr.f32.gmra.mxu0 %v3107
  %v3491 = vpop.f32.mrf.mxu0
  %v3492 = vadd.f32 0.0, %v3491
  %v3493 = vpop.f32.mrf.mxu0
  %3494 = vmatprep.mubr.f32.mxu0 0.0
  %3495 = vmatmul.mubr.f32.gmra.mxu0 %v3108
  %v3496 = vpop.f32.mrf.mxu0
  %v3497 = vadd.f32 0.0, %v3496
  %v3498 = vpop.f32.mrf.mxu0
  %3499 = vmatprep.mubr.f32.mxu0 0.0
  %3500 = vmatmul.mubr.f32.gmra.mxu0 %v3109
  %v3501 = vpop.f32.mrf.mxu0
  %v3502 = vadd.f32 0.0, %v3501
  %v3503 = vpop.f32.mrf.mxu0
  %3504 = vmatprep.mubr.f32.mxu0 0.0
  %3505 = vmatmul.mubr.f32.gmra.mxu0 %v3110
  %v3506 = vpop.f32.mrf.mxu0
  %v3507 = vadd.f32 0.0, %v3506
  %v3508 = vpop.f32.mrf.mxu0
  %3509 = vmatprep.mubr.f32.mxu0 0.0
  %3510 = vmatmul.mubr.f32.gmra.mxu0 %v3111
  %v3511 = vpop.f32.mrf.mxu0
  %v3512 = vadd.f32 0.0, %v3511
  %v3513 = vpop.f32.mrf.mxu0
  %3514 = vmatprep.mubr.f32.mxu0 0.0
  %3515 = vmatmul.mubr.f32.gmra.mxu0 %v3112
  %v3516 = vpop.f32.mrf.mxu0
  %v3517 = vadd.f32 0.0, %v3516
  %v3518 = vpop.f32.mrf.mxu0
  %3519 = vmatprep.mubr.f32.mxu0 0.0
  %3520 = vmatmul.mubr.f32.gmra.mxu0 %v3113
  %v3521 = vpop.f32.mrf.mxu0
  %v3522 = vadd.f32 0.0, %v3521
  %v3523 = vpop.f32.mrf.mxu0
  %3524 = vmatprep.mubr.f32.mxu0 0.0
  %3525 = vmatmul.mubr.f32.gmra.mxu0 %v3114
  %v3526 = vpop.f32.mrf.mxu0
  %v3527 = vadd.f32 0.0, %v3526
  %v3528 = vpop.f32.mrf.mxu0
  %3529 = vmatprep.mubr.f32.mxu0 0.0
  %3530 = vmatmul.mubr.f32.gmra.mxu0 %v3115
  %v3531 = vpop.f32.mrf.mxu0
  %v3532 = vadd.f32 0.0, %v3531
  %v3533 = vpop.f32.mrf.mxu0
  %3534 = vmatprep.mubr.f32.mxu0 0.0
  %3535 = vmatmul.mubr.f32.gmra.mxu0 %v3116
  %v3536 = vpop.f32.mrf.mxu0
  %v3537 = vadd.f32 0.0, %v3536
  %v3538 = vpop.f32.mrf.mxu0
  %3539 = vmatprep.mubr.f32.mxu0 0.0
  %3540 = vmatmul.mubr.f32.gmra.mxu0 %v3117
  %v3541 = vpop.f32.mrf.mxu0
  %v3542 = vadd.f32 0.0, %v3541
  %v3543 = vpop.f32.mrf.mxu0
  %3544 = vmatprep.mubr.f32.mxu0 0.0
  %3545 = vmatmul.mubr.f32.gmra.mxu0 %v3118
  %v3546 = vpop.f32.mrf.mxu0
  %v3547 = vadd.f32 0.0, %v3546
  %v3548 = vpop.f32.mrf.mxu0
  %3549 = vmatprep.mubr.f32.mxu0 0.0
  %3550 = vmatmul.mubr.f32.gmra.mxu0 %v3119
  %v3551 = vpop.f32.mrf.mxu0
  %v3552 = vadd.f32 0.0, %v3551
  %v3553 = vpop.f32.mrf.mxu0
  %3554 = vmatprep.mubr.f32.mxu0 0.0
  %3555 = vmatmul.mubr.f32.gmra.mxu0 %v3120
  %v3556 = vpop.f32.mrf.mxu0
  %v3557 = vadd.f32 0.0, %v3556
  %v3558 = vpop.f32.mrf.mxu0
  %3559 = vmatprep.mubr.f32.mxu0 0.0
  %3560 = vmatmul.mubr.f32.gmra.mxu0 %v3121
  %v3561 = vpop.f32.mrf.mxu0
  %v3562 = vadd.f32 0.0, %v3561
  %v3563 = vpop.f32.mrf.mxu0
  %3564 = vmatprep.mubr.f32.mxu0 0.0
  %3565 = vmatmul.mubr.f32.gmra.mxu0 %v3122
  %v3566 = vpop.f32.mrf.mxu0
  %v3567 = vadd.f32 0.0, %v3566
  %v3568 = vpop.f32.mrf.mxu0
  %3569 = vmatprep.mubr.f32.mxu0 0.0
  %3570 = vmatmul.mubr.f32.gmra.mxu0 %v3123
  %v3571 = vpop.f32.mrf.mxu0
  %v3572 = vadd.f32 0.0, %v3571
  %v3573 = vpop.f32.mrf.mxu0
  %3574 = vdwg.mxu0
  %v3575 = vadd.f32 %v3207, %v3212
  %v3576 = vadd.f32 %v3575, %v3217
  %v3577 = vadd.f32 %v3576, %v3222
  %v3578 = vadd.f32 %v3577, %v3227
  %v3579 = vadd.f32 %v3578, %v3232
  %v3580 = vadd.f32 %v3579, %v3237
  %v3581 = vadd.f32 %v3580, %v3242
  %v3582 = vadd.f32 %v3581, %v3247
  %v3583 = vadd.f32 %v3582, %v3252
  %v3584 = vadd.f32 %v3583, %v3257
  %v3585 = vadd.f32 %v3584, %v3262
  %v3586 = vadd.f32 %v3585, %v3267
  %v3587 = vadd.f32 %v3586, %v3272
  %v3588 = vadd.f32 %v3587, %v3277
  %v3589 = vadd.f32 %v3588, %v3282
  %v3590 = vadd.f32 %v3589, %v3287
  %v3591 = vadd.f32 %v3590, %v3292
  %v3592 = vadd.f32 %v3591, %v3297
  %v3593 = vadd.f32 %v3592, %v3302
  %v3594 = vadd.f32 %v3593, %v3307
  %v3595 = vadd.f32 %v3594, %v3312
  %v3596 = vadd.f32 %v3595, %v3317
  %v3597 = vadd.f32 %v3596, %v3322
  %v3598 = vadd.f32 %v3597, %v3327
  %v3599 = vadd.f32 %v3598, %v3332
  %v3600 = vadd.f32 %v3599, %v3337
  %v3601 = vadd.f32 %v3600, %v3342
  %v3602 = vadd.f32 %v3601, %v3347
  %v3603 = vadd.f32 %v3602, %v3352
  %v3604 = vadd.f32 %v3603, %v3357
  %v3605 = vadd.f32 %v3604, %v3362
  %v3606 = vadd.f32 %v3605, %v3367
  %v3607 = vadd.f32 %v3606, %v3372
  %v3608 = vadd.f32 %v3607, %v3377
  %v3609 = vadd.f32 %v3608, %v3382
  %v3610 = vadd.f32 %v3609, %v3387
  %v3611 = vadd.f32 %v3610, %v3392
  %v3612 = vadd.f32 %v3611, %v3397
  %v3613 = vadd.f32 %v3612, %v3402
  %v3614 = vadd.f32 %v3613, %v3407
  %v3615 = vadd.f32 %v3614, %v3412
  %v3616 = vadd.f32 %v3615, %v3417
  %v3617 = vadd.f32 %v3616, %v3422
  %v3618 = vadd.f32 %v3617, %v3427
  %v3619 = vadd.f32 %v3618, %v3432
  %v3620 = vadd.f32 %v3619, %v3437
  %v3621 = vadd.f32 %v3620, %v3442
  %v3622 = vadd.f32 %v3621, %v3447
  %v3623 = vadd.f32 %v3622, %v3452
  %v3624 = vadd.f32 %v3623, %v3457
  %v3625 = vadd.f32 %v3624, %v3462
  %v3626 = vadd.f32 %v3625, %v3467
  %v3627 = vadd.f32 %v3626, %v3472
  %v3628 = vadd.f32 %v3627, %v3477
  %v3629 = vadd.f32 %v3628, %v3482
  %v3630 = vadd.f32 %v3629, %v3487
  %v3631 = vadd.f32 %v3630, %v3492
  %v3632 = vadd.f32 %v3631, %v3497
  %v3633 = vadd.f32 %v3632, %v3502
  %v3634 = vadd.f32 %v3633, %v3507
  %v3635 = vadd.f32 %v3634, %v3512
  %v3636 = vadd.f32 %v3635, %v3517
  %v3637 = vadd.f32 %v3636, %v3522
  %v3638 = vadd.f32 %v3637, %v3527
  %v3639 = vadd.f32 %v3638, %v3532
  %v3640 = vadd.f32 %v3639, %v3537
  %v3641 = vadd.f32 %v3640, %v3542
  %v3642 = vadd.f32 %v3641, %v3547
  %v3643 = vadd.f32 %v3642, %v3552
  %v3644 = vadd.f32 %v3643, %v3557
  %v3645 = vadd.f32 %v3644, %v3562
  %v3646 = vadd.f32 %v3645, %v3567
  %v3647 = vadd.f32 %v3646, %v3572
  %v3648 = vrot.slane %v3647, 4
  %v3649 = vadd.f32 %v3647, %v3648
  %v3650 = vrot.slane %v3649, 2
  %v3651 = vadd.f32 %v3649, %v3650
  %v3652 = vrot.slane %v3651, 1
  %v3653 = vadd.f32 %v3651, %v3652
  %v3654 = vmul.f32 %v3050, %v3050
  %v3655 = vmul.f32 %v3051, %v3051
  %v3656 = vmul.f32 %v3052, %v3052
  %v3657 = vmul.f32 %v3053, %v3053
  %v3658 = vmul.f32 %v3054, %v3054
  %v3659 = vmul.f32 %v3055, %v3055
  %v3660 = vmul.f32 %v3056, %v3056
  %v3661 = vmul.f32 %v3057, %v3057
  %v3662 = vmul.f32 %v3058, %v3058
  %v3663 = vmul.f32 %v3059, %v3059
  %v3664 = vmul.f32 %v3060, %v3060
  %v3665 = vmul.f32 %v3061, %v3061
  %v3666 = vmul.f32 %v3062, %v3062
  %v3667 = vmul.f32 %v3063, %v3063
  %v3668 = vmul.f32 %v3064, %v3064
  %v3669 = vmul.f32 %v3065, %v3065
  %v3670 = vmul.f32 %v3066, %v3066
  %v3671 = vmul.f32 %v3067, %v3067
  %v3672 = vmul.f32 %v3068, %v3068
  %v3673 = vmul.f32 %v3069, %v3069
  %v3674 = vmul.f32 %v3070, %v3070
  %v3675 = vmul.f32 %v3071, %v3071
  %v3676 = vmul.f32 %v3072, %v3072
  %v3677 = vmul.f32 %v3073, %v3073
  %v3678 = vmul.f32 %v3074, %v3074
  %v3679 = vmul.f32 %v3075, %v3075
  %v3680 = vmul.f32 %v3076, %v3076
  %v3681 = vmul.f32 %v3077, %v3077
  %v3682 = vmul.f32 %v3078, %v3078
  %v3683 = vmul.f32 %v3079, %v3079
  %v3684 = vmul.f32 %v3080, %v3080
  %v3685 = vmul.f32 %v3081, %v3081
  %v3686 = vmul.f32 %v3082, %v3082
  %v3687 = vmul.f32 %v3083, %v3083
  %v3688 = vmul.f32 %v3084, %v3084
  %v3689 = vmul.f32 %v3085, %v3085
  %v3690 = vmul.f32 %v3086, %v3086
  %v3691 = vmul.f32 %v3087, %v3087
  %v3692 = vmul.f32 %v3088, %v3088
  %v3693 = vmul.f32 %v3089, %v3089
  %v3694 = vmul.f32 %v3090, %v3090
  %v3695 = vmul.f32 %v3091, %v3091
  %v3696 = vmul.f32 %v3092, %v3092
  %v3697 = vmul.f32 %v3093, %v3093
  %v3698 = vmul.f32 %v3094, %v3094
  %v3699 = vmul.f32 %v3095, %v3095
  %v3700 = vmul.f32 %v3096, %v3096
  %v3701 = vmul.f32 %v3097, %v3097
  %v3702 = vmul.f32 %v3098, %v3098
  %v3703 = vmul.f32 %v3099, %v3099
  %v3704 = vmul.f32 %v3100, %v3100
  %v3705 = vmul.f32 %v3101, %v3101
  %v3706 = vmul.f32 %v3102, %v3102
  %v3707 = vmul.f32 %v3103, %v3103
  %v3708 = vmul.f32 %v3104, %v3104
  %v3709 = vmul.f32 %v3105, %v3105
  %v3710 = vmul.f32 %v3106, %v3106
  %v3711 = vmul.f32 %v3107, %v3107
  %v3712 = vmul.f32 %v3108, %v3108
  %v3713 = vmul.f32 %v3109, %v3109
  %v3714 = vmul.f32 %v3110, %v3110
  %v3715 = vmul.f32 %v3111, %v3111
  %v3716 = vmul.f32 %v3112, %v3112
  %v3717 = vmul.f32 %v3113, %v3113
  %v3718 = vmul.f32 %v3114, %v3114
  %v3719 = vmul.f32 %v3115, %v3115
  %v3720 = vmul.f32 %v3116, %v3116
  %v3721 = vmul.f32 %v3117, %v3117
  %v3722 = vmul.f32 %v3118, %v3118
  %v3723 = vmul.f32 %v3119, %v3119
  %v3724 = vmul.f32 %v3120, %v3120
  %v3725 = vmul.f32 %v3121, %v3121
  %v3726 = vmul.f32 %v3122, %v3122
  %v3727 = vmul.f32 %v3123, %v3123
  %3728 = vmatprep.subr.mxu0 0.0
  %3729 = vmatpush1.msra.mxu0 %v3139
  %3730 = vmatprep.subr.mxu0 0.0
  %3731 = vmatpush1.msra.mxu0 %v3138
  %3732 = vmatprep.subr.mxu0 0.0
  %3733 = vmatpush1.msra.mxu0 %v3137
  %3734 = vmatprep.subr.mxu0 0.0
  %3735 = vmatpush1.msra.mxu0 %v3136
  %3736 = vmatprep.subr.mxu0 0.0
  %3737 = vmatpush1.msra.mxu0 %v3135
  %3738 = vmatprep.subr.mxu0 0.0
  %3739 = vmatpush1.msra.mxu0 %v3134
  %3740 = vmatprep.subr.mxu0 0.0
  %3741 = vmatpush1.msra.mxu0 %v3133
  %3742 = vmatprep.subr.mxu0 0.0
  %3743 = vmatpush1.msra.mxu0 %v3132
  %3744 = vmatprep.subr.mxu0 0.0
  %3745 = vmatpush1.msra.mxu0 %v3131
  %3746 = vmatprep.subr.mxu0 0.0
  %3747 = vmatpush1.msra.mxu0 %v3130
  %3748 = vmatprep.subr.mxu0 0.0
  %3749 = vmatpush1.msra.mxu0 %v3129
  %3750 = vmatprep.subr.mxu0 0.0
  %3751 = vmatpush1.msra.mxu0 %v3128
  %3752 = vmatprep.subr.mxu0 0.0
  %3753 = vmatpush1.msra.mxu0 %v3127
  %3754 = vmatprep.subr.mxu0 0.0
  %3755 = vmatpush1.msra.mxu0 %v3126
  %3756 = vmatprep.subr.mxu0 0.0
  %3757 = vmatpush1.msra.mxu0 %v3125
  %3758 = vmatprep.subr.mxu0 0.0
  %3759 = vmatpush1.msra.mxu0 %v3124
  %3760 = vmatprep.subr.mxu0 0.0
  %3761 = vmatpush2.msra.mxu0 0.0
  %3762 = vmatprep.subr.mxu0 0.0
  %3763 = vmatpush2.msra.mxu0 0.0
  %3764 = vmatprep.subr.mxu0 0.0
  %3765 = vmatpush2.msra.mxu0 0.0
  %3766 = vmatprep.subr.mxu0 0.0
  %3767 = vmatpush2.msra.mxu0 0.0
  %3768 = vmatprep.subr.mxu0 0.0
  %3769 = vmatpush2.msra.mxu0 0.0
  %3770 = vmatprep.subr.mxu0 0.0
  %3771 = vmatpush2.msra.mxu0 0.0
  %3772 = vmatprep.subr.mxu0 0.0
  %3773 = vmatpush2.msra.mxu0 0.0
  %3774 = vmatprep.subr.mxu0 0.0
  %3775 = vmatpush2.msra.mxu0 0.0
  %3776 = vmatprep.subr.mxu0 0.0
  %3777 = vmatpush2.msra.mxu0 0.0
  %3778 = vmatprep.subr.mxu0 0.0
  %3779 = vmatpush2.msra.mxu0 0.0
  %3780 = vmatprep.subr.mxu0 0.0
  %3781 = vmatpush2.msra.mxu0 0.0
  %3782 = vmatprep.subr.mxu0 0.0
  %3783 = vmatpush2.msra.mxu0 0.0
  %3784 = vmatprep.subr.mxu0 0.0
  %3785 = vmatpush2.msra.mxu0 0.0
  %3786 = vmatprep.subr.mxu0 0.0
  %3787 = vmatpush2.msra.mxu0 0.0
  %3788 = vmatprep.subr.mxu0 0.0
  %3789 = vmatpush2.msra.mxu0 0.0
  %3790 = vmatprep.subr.mxu0 0.0
  %3791 = vmatpush2.msra.mxu0 0.0
  %3792 = vmatprep.mubr.f32.mxu0 0.0
  %3793 = vmatmul.mubr.f32.gmra.mxu0 %v3654
  %v3794 = vpop.f32.mrf.mxu0
  %v3795 = vadd.f32 0.0, %v3794
  %v3796 = vpop.f32.mrf.mxu0
  %3797 = vmatprep.mubr.f32.mxu0 0.0
  %3798 = vmatmul.mubr.f32.gmra.mxu0 %v3655
  %v3799 = vpop.f32.mrf.mxu0
  %v3800 = vadd.f32 0.0, %v3799
  %v3801 = vpop.f32.mrf.mxu0
  %3802 = vmatprep.mubr.f32.mxu0 0.0
  %3803 = vmatmul.mubr.f32.gmra.mxu0 %v3656
  %v3804 = vpop.f32.mrf.mxu0
  %v3805 = vadd.f32 0.0, %v3804
  %v3806 = vpop.f32.mrf.mxu0
  %3807 = vmatprep.mubr.f32.mxu0 0.0
  %3808 = vmatmul.mubr.f32.gmra.mxu0 %v3657
  %v3809 = vpop.f32.mrf.mxu0
  %v3810 = vadd.f32 0.0, %v3809
  %v3811 = vpop.f32.mrf.mxu0
  %3812 = vmatprep.mubr.f32.mxu0 0.0
  %3813 = vmatmul.mubr.f32.gmra.mxu0 %v3658
  %v3814 = vpop.f32.mrf.mxu0
  %v3815 = vadd.f32 0.0, %v3814
  %v3816 = vpop.f32.mrf.mxu0
  %3817 = vmatprep.mubr.f32.mxu0 0.0
  %3818 = vmatmul.mubr.f32.gmra.mxu0 %v3659
  %v3819 = vpop.f32.mrf.mxu0
  %v3820 = vadd.f32 0.0, %v3819
  %v3821 = vpop.f32.mrf.mxu0
  %3822 = vmatprep.mubr.f32.mxu0 0.0
  %3823 = vmatmul.mubr.f32.gmra.mxu0 %v3660
  %v3824 = vpop.f32.mrf.mxu0
  %v3825 = vadd.f32 0.0, %v3824
  %v3826 = vpop.f32.mrf.mxu0
  %3827 = vmatprep.mubr.f32.mxu0 0.0
  %3828 = vmatmul.mubr.f32.gmra.mxu0 %v3661
  %v3829 = vpop.f32.mrf.mxu0
  %v3830 = vadd.f32 0.0, %v3829
  %v3831 = vpop.f32.mrf.mxu0
  %3832 = vmatprep.mubr.f32.mxu0 0.0
  %3833 = vmatmul.mubr.f32.gmra.mxu0 %v3662
  %v3834 = vpop.f32.mrf.mxu0
  %v3835 = vadd.f32 0.0, %v3834
  %v3836 = vpop.f32.mrf.mxu0
  %3837 = vmatprep.mubr.f32.mxu0 0.0
  %3838 = vmatmul.mubr.f32.gmra.mxu0 %v3663
  %v3839 = vpop.f32.mrf.mxu0
  %v3840 = vadd.f32 0.0, %v3839
  %v3841 = vpop.f32.mrf.mxu0
  %3842 = vmatprep.mubr.f32.mxu0 0.0
  %3843 = vmatmul.mubr.f32.gmra.mxu0 %v3664
  %v3844 = vpop.f32.mrf.mxu0
  %v3845 = vadd.f32 0.0, %v3844
  %v3846 = vpop.f32.mrf.mxu0
  %3847 = vmatprep.mubr.f32.mxu0 0.0
  %3848 = vmatmul.mubr.f32.gmra.mxu0 %v3665
  %v3849 = vpop.f32.mrf.mxu0
  %v3850 = vadd.f32 0.0, %v3849
  %v3851 = vpop.f32.mrf.mxu0
  %3852 = vmatprep.mubr.f32.mxu0 0.0
  %3853 = vmatmul.mubr.f32.gmra.mxu0 %v3666
  %v3854 = vpop.f32.mrf.mxu0
  %v3855 = vadd.f32 0.0, %v3854
  %v3856 = vpop.f32.mrf.mxu0
  %3857 = vmatprep.mubr.f32.mxu0 0.0
  %3858 = vmatmul.mubr.f32.gmra.mxu0 %v3667
  %v3859 = vpop.f32.mrf.mxu0
  %v3860 = vadd.f32 0.0, %v3859
  %v3861 = vpop.f32.mrf.mxu0
  %3862 = vmatprep.mubr.f32.mxu0 0.0
  %3863 = vmatmul.mubr.f32.gmra.mxu0 %v3668
  %v3864 = vpop.f32.mrf.mxu0
  %v3865 = vadd.f32 0.0, %v3864
  %v3866 = vpop.f32.mrf.mxu0
  %3867 = vmatprep.mubr.f32.mxu0 0.0
  %3868 = vmatmul.mubr.f32.gmra.mxu0 %v3669
  %v3869 = vpop.f32.mrf.mxu0
  %v3870 = vadd.f32 0.0, %v3869
  %v3871 = vpop.f32.mrf.mxu0
  %3872 = vmatprep.mubr.f32.mxu0 0.0
  %3873 = vmatmul.mubr.f32.gmra.mxu0 %v3670
  %v3874 = vpop.f32.mrf.mxu0
  %v3875 = vadd.f32 0.0, %v3874
  %v3876 = vpop.f32.mrf.mxu0
  %3877 = vmatprep.mubr.f32.mxu0 0.0
  %3878 = vmatmul.mubr.f32.gmra.mxu0 %v3671
  %v3879 = vpop.f32.mrf.mxu0
  %v3880 = vadd.f32 0.0, %v3879
  %v3881 = vpop.f32.mrf.mxu0
  %3882 = vmatprep.mubr.f32.mxu0 0.0
  %3883 = vmatmul.mubr.f32.gmra.mxu0 %v3672
  %v3884 = vpop.f32.mrf.mxu0
  %v3885 = vadd.f32 0.0, %v3884
  %v3886 = vpop.f32.mrf.mxu0
  %3887 = vmatprep.mubr.f32.mxu0 0.0
  %3888 = vmatmul.mubr.f32.gmra.mxu0 %v3673
  %v3889 = vpop.f32.mrf.mxu0
  %v3890 = vadd.f32 0.0, %v3889
  %v3891 = vpop.f32.mrf.mxu0
  %3892 = vmatprep.mubr.f32.mxu0 0.0
  %3893 = vmatmul.mubr.f32.gmra.mxu0 %v3674
  %v3894 = vpop.f32.mrf.mxu0
  %v3895 = vadd.f32 0.0, %v3894
  %v3896 = vpop.f32.mrf.mxu0
  %3897 = vmatprep.mubr.f32.mxu0 0.0
  %3898 = vmatmul.mubr.f32.gmra.mxu0 %v3675
  %v3899 = vpop.f32.mrf.mxu0
  %v3900 = vadd.f32 0.0, %v3899
  %v3901 = vpop.f32.mrf.mxu0
  %3902 = vmatprep.mubr.f32.mxu0 0.0
  %3903 = vmatmul.mubr.f32.gmra.mxu0 %v3676
  %v3904 = vpop.f32.mrf.mxu0
  %v3905 = vadd.f32 0.0, %v3904
  %v3906 = vpop.f32.mrf.mxu0
  %3907 = vmatprep.mubr.f32.mxu0 0.0
  %3908 = vmatmul.mubr.f32.gmra.mxu0 %v3677
  %v3909 = vpop.f32.mrf.mxu0
  %v3910 = vadd.f32 0.0, %v3909
  %v3911 = vpop.f32.mrf.mxu0
  %3912 = vmatprep.mubr.f32.mxu0 0.0
  %3913 = vmatmul.mubr.f32.gmra.mxu0 %v3678
  %v3914 = vpop.f32.mrf.mxu0
  %v3915 = vadd.f32 0.0, %v3914
  %v3916 = vpop.f32.mrf.mxu0
  %3917 = vmatprep.mubr.f32.mxu0 0.0
  %3918 = vmatmul.mubr.f32.gmra.mxu0 %v3679
  %v3919 = vpop.f32.mrf.mxu0
  %v3920 = vadd.f32 0.0, %v3919
  %v3921 = vpop.f32.mrf.mxu0
  %3922 = vmatprep.mubr.f32.mxu0 0.0
  %3923 = vmatmul.mubr.f32.gmra.mxu0 %v3680
  %v3924 = vpop.f32.mrf.mxu0
  %v3925 = vadd.f32 0.0, %v3924
  %v3926 = vpop.f32.mrf.mxu0
  %3927 = vmatprep.mubr.f32.mxu0 0.0
  %3928 = vmatmul.mubr.f32.gmra.mxu0 %v3681
  %v3929 = vpop.f32.mrf.mxu0
  %v3930 = vadd.f32 0.0, %v3929
  %v3931 = vpop.f32.mrf.mxu0
  %3932 = vmatprep.mubr.f32.mxu0 0.0
  %3933 = vmatmul.mubr.f32.gmra.mxu0 %v3682
  %v3934 = vpop.f32.mrf.mxu0
  %v3935 = vadd.f32 0.0, %v3934
  %v3936 = vpop.f32.mrf.mxu0
  %3937 = vmatprep.mubr.f32.mxu0 0.0
  %3938 = vmatmul.mubr.f32.gmra.mxu0 %v3683
  %v3939 = vpop.f32.mrf.mxu0
  %v3940 = vadd.f32 0.0, %v3939
  %v3941 = vpop.f32.mrf.mxu0
  %3942 = vmatprep.mubr.f32.mxu0 0.0
  %3943 = vmatmul.mubr.f32.gmra.mxu0 %v3684
  %v3944 = vpop.f32.mrf.mxu0
  %v3945 = vadd.f32 0.0, %v3944
  %v3946 = vpop.f32.mrf.mxu0
  %3947 = vmatprep.mubr.f32.mxu0 0.0
  %3948 = vmatmul.mubr.f32.gmra.mxu0 %v3685
  %v3949 = vpop.f32.mrf.mxu0
  %v3950 = vadd.f32 0.0, %v3949
  %v3951 = vpop.f32.mrf.mxu0
  %3952 = vmatprep.mubr.f32.mxu0 0.0
  %3953 = vmatmul.mubr.f32.gmra.mxu0 %v3686
  %v3954 = vpop.f32.mrf.mxu0
  %v3955 = vadd.f32 0.0, %v3954
  %v3956 = vpop.f32.mrf.mxu0
  %3957 = vmatprep.mubr.f32.mxu0 0.0
  %3958 = vmatmul.mubr.f32.gmra.mxu0 %v3687
  %v3959 = vpop.f32.mrf.mxu0
  %v3960 = vadd.f32 0.0, %v3959
  %v3961 = vpop.f32.mrf.mxu0
  %3962 = vmatprep.mubr.f32.mxu0 0.0
  %3963 = vmatmul.mubr.f32.gmra.mxu0 %v3688
  %v3964 = vpop.f32.mrf.mxu0
  %v3965 = vadd.f32 0.0, %v3964
  %v3966 = vpop.f32.mrf.mxu0
  %3967 = vmatprep.mubr.f32.mxu0 0.0
  %3968 = vmatmul.mubr.f32.gmra.mxu0 %v3689
  %v3969 = vpop.f32.mrf.mxu0
  %v3970 = vadd.f32 0.0, %v3969
  %v3971 = vpop.f32.mrf.mxu0
  %3972 = vmatprep.mubr.f32.mxu0 0.0
  %3973 = vmatmul.mubr.f32.gmra.mxu0 %v3690
  %v3974 = vpop.f32.mrf.mxu0
  %v3975 = vadd.f32 0.0, %v3974
  %v3976 = vpop.f32.mrf.mxu0
  %3977 = vmatprep.mubr.f32.mxu0 0.0
  %3978 = vmatmul.mubr.f32.gmra.mxu0 %v3691
  %v3979 = vpop.f32.mrf.mxu0
  %v3980 = vadd.f32 0.0, %v3979
  %v3981 = vpop.f32.mrf.mxu0
  %3982 = vmatprep.mubr.f32.mxu0 0.0
  %3983 = vmatmul.mubr.f32.gmra.mxu0 %v3692
  %v3984 = vpop.f32.mrf.mxu0
  %v3985 = vadd.f32 0.0, %v3984
  %v3986 = vpop.f32.mrf.mxu0
  %3987 = vmatprep.mubr.f32.mxu0 0.0
  %3988 = vmatmul.mubr.f32.gmra.mxu0 %v3693
  %v3989 = vpop.f32.mrf.mxu0
  %v3990 = vadd.f32 0.0, %v3989
  %v3991 = vpop.f32.mrf.mxu0
  %3992 = vmatprep.mubr.f32.mxu0 0.0
  %3993 = vmatmul.mubr.f32.gmra.mxu0 %v3694
  %v3994 = vpop.f32.mrf.mxu0
  %v3995 = vadd.f32 0.0, %v3994
  %v3996 = vpop.f32.mrf.mxu0
  %3997 = vmatprep.mubr.f32.mxu0 0.0
  %3998 = vmatmul.mubr.f32.gmra.mxu0 %v3695
  %v3999 = vpop.f32.mrf.mxu0
  %v4000 = vadd.f32 0.0, %v3999
  %v4001 = vpop.f32.mrf.mxu0
  %4002 = vmatprep.mubr.f32.mxu0 0.0
  %4003 = vmatmul.mubr.f32.gmra.mxu0 %v3696
  %v4004 = vpop.f32.mrf.mxu0
  %v4005 = vadd.f32 0.0, %v4004
  %v4006 = vpop.f32.mrf.mxu0
  %4007 = vmatprep.mubr.f32.mxu0 0.0
  %4008 = vmatmul.mubr.f32.gmra.mxu0 %v3697
  %v4009 = vpop.f32.mrf.mxu0
  %v4010 = vadd.f32 0.0, %v4009
  %v4011 = vpop.f32.mrf.mxu0
  %4012 = vmatprep.mubr.f32.mxu0 0.0
  %4013 = vmatmul.mubr.f32.gmra.mxu0 %v3698
  %v4014 = vpop.f32.mrf.mxu0
  %v4015 = vadd.f32 0.0, %v4014
  %v4016 = vpop.f32.mrf.mxu0
  %4017 = vmatprep.mubr.f32.mxu0 0.0
  %4018 = vmatmul.mubr.f32.gmra.mxu0 %v3699
  %v4019 = vpop.f32.mrf.mxu0
  %v4020 = vadd.f32 0.0, %v4019
  %v4021 = vpop.f32.mrf.mxu0
  %4022 = vmatprep.mubr.f32.mxu0 0.0
  %4023 = vmatmul.mubr.f32.gmra.mxu0 %v3700
  %v4024 = vpop.f32.mrf.mxu0
  %v4025 = vadd.f32 0.0, %v4024
  %v4026 = vpop.f32.mrf.mxu0
  %4027 = vmatprep.mubr.f32.mxu0 0.0
  %4028 = vmatmul.mubr.f32.gmra.mxu0 %v3701
  %v4029 = vpop.f32.mrf.mxu0
  %v4030 = vadd.f32 0.0, %v4029
  %v4031 = vpop.f32.mrf.mxu0
  %4032 = vmatprep.mubr.f32.mxu0 0.0
  %4033 = vmatmul.mubr.f32.gmra.mxu0 %v3702
  %v4034 = vpop.f32.mrf.mxu0
  %v4035 = vadd.f32 0.0, %v4034
  %v4036 = vpop.f32.mrf.mxu0
  %4037 = vmatprep.mubr.f32.mxu0 0.0
  %4038 = vmatmul.mubr.f32.gmra.mxu0 %v3703
  %v4039 = vpop.f32.mrf.mxu0
  %v4040 = vadd.f32 0.0, %v4039
  %v4041 = vpop.f32.mrf.mxu0
  %4042 = vmatprep.mubr.f32.mxu0 0.0
  %4043 = vmatmul.mubr.f32.gmra.mxu0 %v3704
  %v4044 = vpop.f32.mrf.mxu0
  %v4045 = vadd.f32 0.0, %v4044
  %v4046 = vpop.f32.mrf.mxu0
  %4047 = vmatprep.mubr.f32.mxu0 0.0
  %4048 = vmatmul.mubr.f32.gmra.mxu0 %v3705
  %v4049 = vpop.f32.mrf.mxu0
  %v4050 = vadd.f32 0.0, %v4049
  %v4051 = vpop.f32.mrf.mxu0
  %4052 = vmatprep.mubr.f32.mxu0 0.0
  %4053 = vmatmul.mubr.f32.gmra.mxu0 %v3706
  %v4054 = vpop.f32.mrf.mxu0
  %v4055 = vadd.f32 0.0, %v4054
  %v4056 = vpop.f32.mrf.mxu0
  %4057 = vmatprep.mubr.f32.mxu0 0.0
  %4058 = vmatmul.mubr.f32.gmra.mxu0 %v3707
  %v4059 = vpop.f32.mrf.mxu0
  %v4060 = vadd.f32 0.0, %v4059
  %v4061 = vpop.f32.mrf.mxu0
  %4062 = vmatprep.mubr.f32.mxu0 0.0
  %4063 = vmatmul.mubr.f32.gmra.mxu0 %v3708
  %v4064 = vpop.f32.mrf.mxu0
  %v4065 = vadd.f32 0.0, %v4064
  %v4066 = vpop.f32.mrf.mxu0
  %4067 = vmatprep.mubr.f32.mxu0 0.0
  %4068 = vmatmul.mubr.f32.gmra.mxu0 %v3709
  %v4069 = vpop.f32.mrf.mxu0
  %v4070 = vadd.f32 0.0, %v4069
  %v4071 = vpop.f32.mrf.mxu0
  %4072 = vmatprep.mubr.f32.mxu0 0.0
  %4073 = vmatmul.mubr.f32.gmra.mxu0 %v3710
  %v4074 = vpop.f32.mrf.mxu0
  %v4075 = vadd.f32 0.0, %v4074
  %v4076 = vpop.f32.mrf.mxu0
  %4077 = vmatprep.mubr.f32.mxu0 0.0
  %4078 = vmatmul.mubr.f32.gmra.mxu0 %v3711
  %v4079 = vpop.f32.mrf.mxu0
  %v4080 = vadd.f32 0.0, %v4079
  %v4081 = vpop.f32.mrf.mxu0
  %4082 = vmatprep.mubr.f32.mxu0 0.0
  %4083 = vmatmul.mubr.f32.gmra.mxu0 %v3712
  %v4084 = vpop.f32.mrf.mxu0
  %v4085 = vadd.f32 0.0, %v4084
  %v4086 = vpop.f32.mrf.mxu0
  %4087 = vmatprep.mubr.f32.mxu0 0.0
  %4088 = vmatmul.mubr.f32.gmra.mxu0 %v3713
  %v4089 = vpop.f32.mrf.mxu0
  %v4090 = vadd.f32 0.0, %v4089
  %v4091 = vpop.f32.mrf.mxu0
  %4092 = vmatprep.mubr.f32.mxu0 0.0
  %4093 = vmatmul.mubr.f32.gmra.mxu0 %v3714
  %v4094 = vpop.f32.mrf.mxu0
  %v4095 = vadd.f32 0.0, %v4094
  %v4096 = vpop.f32.mrf.mxu0
  %4097 = vmatprep.mubr.f32.mxu0 0.0
  %4098 = vmatmul.mubr.f32.gmra.mxu0 %v3715
  %v4099 = vpop.f32.mrf.mxu0
  %v4100 = vadd.f32 0.0, %v4099
  %v4101 = vpop.f32.mrf.mxu0
  %4102 = vmatprep.mubr.f32.mxu0 0.0
  %4103 = vmatmul.mubr.f32.gmra.mxu0 %v3716
  %v4104 = vpop.f32.mrf.mxu0
  %v4105 = vadd.f32 0.0, %v4104
  %v4106 = vpop.f32.mrf.mxu0
  %4107 = vmatprep.mubr.f32.mxu0 0.0
  %4108 = vmatmul.mubr.f32.gmra.mxu0 %v3717
  %v4109 = vpop.f32.mrf.mxu0
  %v4110 = vadd.f32 0.0, %v4109
  %v4111 = vpop.f32.mrf.mxu0
  %4112 = vmatprep.mubr.f32.mxu0 0.0
  %4113 = vmatmul.mubr.f32.gmra.mxu0 %v3718
  %v4114 = vpop.f32.mrf.mxu0
  %v4115 = vadd.f32 0.0, %v4114
  %v4116 = vpop.f32.mrf.mxu0
  %4117 = vmatprep.mubr.f32.mxu0 0.0
  %4118 = vmatmul.mubr.f32.gmra.mxu0 %v3719
  %v4119 = vpop.f32.mrf.mxu0
  %v4120 = vadd.f32 0.0, %v4119
  %v4121 = vpop.f32.mrf.mxu0
  %4122 = vmatprep.mubr.f32.mxu0 0.0
  %4123 = vmatmul.mubr.f32.gmra.mxu0 %v3720
  %v4124 = vpop.f32.mrf.mxu0
  %v4125 = vadd.f32 0.0, %v4124
  %v4126 = vpop.f32.mrf.mxu0
  %4127 = vmatprep.mubr.f32.mxu0 0.0
  %4128 = vmatmul.mubr.f32.gmra.mxu0 %v3721
  %v4129 = vpop.f32.mrf.mxu0
  %v4130 = vadd.f32 0.0, %v4129
  %v4131 = vpop.f32.mrf.mxu0
  %4132 = vmatprep.mubr.f32.mxu0 0.0
  %4133 = vmatmul.mubr.f32.gmra.mxu0 %v3722
  %v4134 = vpop.f32.mrf.mxu0
  %v4135 = vadd.f32 0.0, %v4134
  %v4136 = vpop.f32.mrf.mxu0
  %4137 = vmatprep.mubr.f32.mxu0 0.0
  %4138 = vmatmul.mubr.f32.gmra.mxu0 %v3723
  %v4139 = vpop.f32.mrf.mxu0
  %v4140 = vadd.f32 0.0, %v4139
  %v4141 = vpop.f32.mrf.mxu0
  %4142 = vmatprep.mubr.f32.mxu0 0.0
  %4143 = vmatmul.mubr.f32.gmra.mxu0 %v3724
  %v4144 = vpop.f32.mrf.mxu0
  %v4145 = vadd.f32 0.0, %v4144
  %v4146 = vpop.f32.mrf.mxu0
  %4147 = vmatprep.mubr.f32.mxu0 0.0
  %4148 = vmatmul.mubr.f32.gmra.mxu0 %v3725
  %v4149 = vpop.f32.mrf.mxu0
  %v4150 = vadd.f32 0.0, %v4149
  %v4151 = vpop.f32.mrf.mxu0
  %4152 = vmatprep.mubr.f32.mxu0 0.0
  %4153 = vmatmul.mubr.f32.gmra.mxu0 %v3726
  %v4154 = vpop.f32.mrf.mxu0
  %v4155 = vadd.f32 0.0, %v4154
  %v4156 = vpop.f32.mrf.mxu0
  %4157 = vmatprep.mubr.f32.mxu0 0.0
  %4158 = vmatmul.mubr.f32.gmra.mxu0 %v3727
  %v4159 = vpop.f32.mrf.mxu0
  %v4160 = vadd.f32 0.0, %v4159
  %v4161 = vpop.f32.mrf.mxu0
  %4162 = vdwg.mxu0
  %v4163 = vadd.f32 %v3795, %v3800
  %v4164 = vadd.f32 %v4163, %v3805
  %v4165 = vadd.f32 %v4164, %v3810
  %v4166 = vadd.f32 %v4165, %v3815
  %v4167 = vadd.f32 %v4166, %v3820
  %v4168 = vadd.f32 %v4167, %v3825
  %v4169 = vadd.f32 %v4168, %v3830
  %v4170 = vadd.f32 %v4169, %v3835
  %v4171 = vadd.f32 %v4170, %v3840
  %v4172 = vadd.f32 %v4171, %v3845
  %v4173 = vadd.f32 %v4172, %v3850
  %v4174 = vadd.f32 %v4173, %v3855
  %v4175 = vadd.f32 %v4174, %v3860
  %v4176 = vadd.f32 %v4175, %v3865
  %v4177 = vadd.f32 %v4176, %v3870
  %v4178 = vadd.f32 %v4177, %v3875
  %v4179 = vadd.f32 %v4178, %v3880
  %v4180 = vadd.f32 %v4179, %v3885
  %v4181 = vadd.f32 %v4180, %v3890
  %v4182 = vadd.f32 %v4181, %v3895
  %v4183 = vadd.f32 %v4182, %v3900
  %v4184 = vadd.f32 %v4183, %v3905
  %v4185 = vadd.f32 %v4184, %v3910
  %v4186 = vadd.f32 %v4185, %v3915
  %v4187 = vadd.f32 %v4186, %v3920
  %v4188 = vadd.f32 %v4187, %v3925
  %v4189 = vadd.f32 %v4188, %v3930
  %v4190 = vadd.f32 %v4189, %v3935
  %v4191 = vadd.f32 %v4190, %v3940
  %v4192 = vadd.f32 %v4191, %v3945
  %v4193 = vadd.f32 %v4192, %v3950
  %v4194 = vadd.f32 %v4193, %v3955
  %v4195 = vadd.f32 %v4194, %v3960
  %v4196 = vadd.f32 %v4195, %v3965
  %v4197 = vadd.f32 %v4196, %v3970
  %v4198 = vadd.f32 %v4197, %v3975
  %v4199 = vadd.f32 %v4198, %v3980
  %v4200 = vadd.f32 %v4199, %v3985
  %v4201 = vadd.f32 %v4200, %v3990
  %v4202 = vadd.f32 %v4201, %v3995
  %v4203 = vadd.f32 %v4202, %v4000
  %v4204 = vadd.f32 %v4203, %v4005
  %v4205 = vadd.f32 %v4204, %v4010
  %v4206 = vadd.f32 %v4205, %v4015
  %v4207 = vadd.f32 %v4206, %v4020
  %v4208 = vadd.f32 %v4207, %v4025
  %v4209 = vadd.f32 %v4208, %v4030
  %v4210 = vadd.f32 %v4209, %v4035
  %v4211 = vadd.f32 %v4210, %v4040
  %v4212 = vadd.f32 %v4211, %v4045
  %v4213 = vadd.f32 %v4212, %v4050
  %v4214 = vadd.f32 %v4213, %v4055
  %v4215 = vadd.f32 %v4214, %v4060
  %v4216 = vadd.f32 %v4215, %v4065
  %v4217 = vadd.f32 %v4216, %v4070
  %v4218 = vadd.f32 %v4217, %v4075
  %v4219 = vadd.f32 %v4218, %v4080
  %v4220 = vadd.f32 %v4219, %v4085
  %v4221 = vadd.f32 %v4220, %v4090
  %v4222 = vadd.f32 %v4221, %v4095
  %v4223 = vadd.f32 %v4222, %v4100
  %v4224 = vadd.f32 %v4223, %v4105
  %v4225 = vadd.f32 %v4224, %v4110
  %v4226 = vadd.f32 %v4225, %v4115
  %v4227 = vadd.f32 %v4226, %v4120
  %v4228 = vadd.f32 %v4227, %v4125
  %v4229 = vadd.f32 %v4228, %v4130
  %v4230 = vadd.f32 %v4229, %v4135
  %v4231 = vadd.f32 %v4230, %v4140
  %v4232 = vadd.f32 %v4231, %v4145
  %v4233 = vadd.f32 %v4232, %v4150
  %v4234 = vadd.f32 %v4233, %v4155
  %v4235 = vadd.f32 %v4234, %v4160
  %v4236 = vrot.slane %v4235, 4
  %v4237 = vadd.f32 %v4235, %v4236
  %v4238 = vrot.slane %v4237, 2
  %v4239 = vadd.f32 %v4237, %v4238
  %v4240 = vrot.slane %v4239, 1
  %v4241 = vadd.f32 %v4239, %v4240
  %v4242 = vmul.f32 %v3653, 0.00048828125
  %v4243 = vmul.f32 %v4241, 0.00048828125
  %v4244 = vmul.f32 %v4242, %v4242
  %v4245 = vsub.f32 %v4243, %v4244
  %v4246 = vmax.f32 %v4245, 0.0
  %v4247 = vld [vmem:[%s9] sm:$0x1]
  %v4248 = vadd.f32 %v4246, 1e-05
  %v4249 = vrsqrt.pop %v4248
  %v4250 = vmul.f32 %v4247, %v4249
  %v4251 = vld [vmem:[%s10] sm:$0x1]
  %v4252 = vmul.f32 %v4242, %v4250
  %v4253 = vsub.f32 %v4251, %v4252
  %v4255 = vlaneseq
  %v4256 = vshrl.u32 %v4255, 7
  %v4257 = vsub.s32 0, %v4256
  %v4258 = vrot.slane %v4250, %v4257
  %v4260 = vmul.f32 %v434, %v4258
  %v4261 = vmul.f32 %v437, %v4258
  %v4262 = vmul.f32 %v442, %v4258
  %v4263 = vmul.f32 %v445, %v4258
  %v4264 = vmul.f32 %v450, %v4258
  %v4265 = vmul.f32 %v453, %v4258
  %v4266 = vmul.f32 %v458, %v4258
  %v4267 = vmul.f32 %v461, %v4258
  %v4268 = vmul.f32 %v466, %v4258
  %v4269 = vmul.f32 %v469, %v4258
  %v4270 = vmul.f32 %v474, %v4258
  %v4271 = vmul.f32 %v477, %v4258
  %v4272 = vmul.f32 %v482, %v4258
  %v4273 = vmul.f32 %v485, %v4258
  %v4274 = vmul.f32 %v490, %v4258
  %v4275 = vmul.f32 %v493, %v4258
  %v4276 = vmul.f32 %v498, %v4258
  %v4277 = vmul.f32 %v501, %v4258
  %v4278 = vmul.f32 %v506, %v4258
  %v4279 = vmul.f32 %v509, %v4258
  %v4280 = vmul.f32 %v514, %v4258
  %v4281 = vmul.f32 %v517, %v4258
  %v4282 = vmul.f32 %v522, %v4258
  %v4283 = vmul.f32 %v525, %v4258
  %v4284 = vmul.f32 %v530, %v4258
  %v4285 = vmul.f32 %v533, %v4258
  %v4286 = vmul.f32 %v538, %v4258
  %v4287 = vmul.f32 %v541, %v4258
  %v4288 = vmul.f32 %v546, %v4258
  %v4289 = vmul.f32 %v549, %v4258
  %v4290 = vmul.f32 %v554, %v4258
  %v4291 = vmul.f32 %v557, %v4258
  %v4292 = vmul.f32 %v562, %v4258
  %v4293 = vmul.f32 %v565, %v4258
  %v4294 = vmul.f32 %v570, %v4258
  %v4295 = vmul.f32 %v573, %v4258
  %v4296 = vmul.f32 %v578, %v4258
  %v4297 = vmul.f32 %v581, %v4258
  %v4298 = vmul.f32 %v586, %v4258
  %v4299 = vmul.f32 %v589, %v4258
  %v4300 = vmul.f32 %v594, %v4258
  %v4301 = vmul.f32 %v597, %v4258
  %v4302 = vmul.f32 %v602, %v4258
  %v4303 = vmul.f32 %v605, %v4258
  %v4304 = vmul.f32 %v610, %v4258
  %v4305 = vmul.f32 %v613, %v4258
  %v4306 = vmul.f32 %v618, %v4258
  %v4307 = vmul.f32 %v621, %v4258
  %v4308 = vmul.f32 %v626, %v4258
  %v4309 = vmul.f32 %v629, %v4258
  %v4310 = vmul.f32 %v634, %v4258
  %v4311 = vmul.f32 %v637, %v4258
  %v4312 = vmul.f32 %v642, %v4258
  %v4313 = vmul.f32 %v645, %v4258
  %v4314 = vmul.f32 %v650, %v4258
  %v4315 = vmul.f32 %v653, %v4258
  %v4316 = vmul.f32 %v658, %v4258
  %v4317 = vmul.f32 %v661, %v4258
  %v4318 = vmul.f32 %v666, %v4258
  %v4319 = vmul.f32 %v669, %v4258
  %v4320 = vmul.f32 %v674, %v4258
  %v4321 = vmul.f32 %v677, %v4258
  %v4322 = vmul.f32 %v682, %v4258
  %v4323 = vmul.f32 %v685, %v4258
  %v4324 = vmul.f32 %v690, %v4258
  %v4325 = vmul.f32 %v693, %v4258
  %v4326 = vmul.f32 %v698, %v4258
  %v4327 = vmul.f32 %v701, %v4258
  %v4328 = vmul.f32 %v706, %v4258
  %v4329 = vmul.f32 %v709, %v4258
  %v4330 = vmul.f32 %v714, %v4258
  %v4331 = vmul.f32 %v717, %v4258
  %v4332 = vmul.f32 %v722, %v4258
  %v4333 = vmul.f32 %v725, %v4258
  %v4335 = vlaneseq
  %v4336 = vshrl.u32 %v4335, 7
  %v4337 = vsub.s32 0, %v4336
  %v4338 = vrot.slane %v4253, %v4337
  %v4340 = vadd.f32 %v4260, %v4338
  %v4341 = vadd.f32 %v4261, %v4338
  %v4342 = vadd.f32 %v4262, %v4338
  %v4343 = vadd.f32 %v4263, %v4338
  %v4344 = vadd.f32 %v4264, %v4338
  %v4345 = vadd.f32 %v4265, %v4338
  %v4346 = vadd.f32 %v4266, %v4338
  %v4347 = vadd.f32 %v4267, %v4338
  %v4348 = vadd.f32 %v4268, %v4338
  %v4349 = vadd.f32 %v4269, %v4338
  %v4350 = vadd.f32 %v4270, %v4338
  %v4351 = vadd.f32 %v4271, %v4338
  %v4352 = vadd.f32 %v4272, %v4338
  %v4353 = vadd.f32 %v4273, %v4338
  %v4354 = vadd.f32 %v4274, %v4338
  %v4355 = vadd.f32 %v4275, %v4338
  %v4356 = vadd.f32 %v4276, %v4338
  %v4357 = vadd.f32 %v4277, %v4338
  %v4358 = vadd.f32 %v4278, %v4338
  %v4359 = vadd.f32 %v4279, %v4338
  %v4360 = vadd.f32 %v4280, %v4338
  %v4361 = vadd.f32 %v4281, %v4338
  %v4362 = vadd.f32 %v4282, %v4338
  %v4363 = vadd.f32 %v4283, %v4338
  %v4364 = vadd.f32 %v4284, %v4338
  %v4365 = vadd.f32 %v4285, %v4338
  %v4366 = vadd.f32 %v4286, %v4338
  %v4367 = vadd.f32 %v4287, %v4338
  %v4368 = vadd.f32 %v4288, %v4338
  %v4369 = vadd.f32 %v4289, %v4338
  %v4370 = vadd.f32 %v4290, %v4338
  %v4371 = vadd.f32 %v4291, %v4338
  %v4372 = vadd.f32 %v4292, %v4338
  %v4373 = vadd.f32 %v4293, %v4338
  %v4374 = vadd.f32 %v4294, %v4338
  %v4375 = vadd.f32 %v4295, %v4338
  %v4376 = vadd.f32 %v4296, %v4338
  %v4377 = vadd.f32 %v4297, %v4338
  %v4378 = vadd.f32 %v4298, %v4338
  %v4379 = vadd.f32 %v4299, %v4338
  %v4380 = vadd.f32 %v4300, %v4338
  %v4381 = vadd.f32 %v4301, %v4338
  %v4382 = vadd.f32 %v4302, %v4338
  %v4383 = vadd.f32 %v4303, %v4338
  %v4384 = vadd.f32 %v4304, %v4338
  %v4385 = vadd.f32 %v4305, %v4338
  %v4386 = vadd.f32 %v4306, %v4338
  %v4387 = vadd.f32 %v4307, %v4338
  %v4388 = vadd.f32 %v4308, %v4338
  %v4389 = vadd.f32 %v4309, %v4338
  %v4390 = vadd.f32 %v4310, %v4338
  %v4391 = vadd.f32 %v4311, %v4338
  %v4392 = vadd.f32 %v4312, %v4338
  %v4393 = vadd.f32 %v4313, %v4338
  %v4394 = vadd.f32 %v4314, %v4338
  %v4395 = vadd.f32 %v4315, %v4338
  %v4396 = vadd.f32 %v4316, %v4338
  %v4397 = vadd.f32 %v4317, %v4338
  %v4398 = vadd.f32 %v4318, %v4338
  %v4399 = vadd.f32 %v4319, %v4338
  %v4400 = vadd.f32 %v4320, %v4338
  %v4401 = vadd.f32 %v4321, %v4338
  %v4402 = vadd.f32 %v4322, %v4338
  %v4403 = vadd.f32 %v4323, %v4338
  %v4404 = vadd.f32 %v4324, %v4338
  %v4405 = vadd.f32 %v4325, %v4338
  %v4406 = vadd.f32 %v4326, %v4338
  %v4407 = vadd.f32 %v4327, %v4338
  %v4408 = vadd.f32 %v4328, %v4338
  %v4409 = vadd.f32 %v4329, %v4338
  %v4410 = vadd.f32 %v4330, %v4338
  %v4411 = vadd.f32 %v4331, %v4338
  %v4412 = vadd.f32 %v4332, %v4338
  %v4413 = vadd.f32 %v4333, %v4338
  %v4414 = vmax.f32 %v4340, 0.0
  %v4415 = vmax.f32 %v4341, 0.0
  %v4416 = vmax.f32 %v4342, 0.0
  %v4417 = vmax.f32 %v4343, 0.0
  %v4418 = vmax.f32 %v4344, 0.0
  %v4419 = vmax.f32 %v4345, 0.0
  %v4420 = vmax.f32 %v4346, 0.0
  %v4421 = vmax.f32 %v4347, 0.0
  %v4422 = vmax.f32 %v4348, 0.0
  %v4423 = vmax.f32 %v4349, 0.0
  %v4424 = vmax.f32 %v4350, 0.0
  %v4425 = vmax.f32 %v4351, 0.0
  %v4426 = vmax.f32 %v4352, 0.0
  %v4427 = vmax.f32 %v4353, 0.0
  %v4428 = vmax.f32 %v4354, 0.0
  %v4429 = vmax.f32 %v4355, 0.0
  %v4430 = vmax.f32 %v4356, 0.0
  %v4431 = vmax.f32 %v4357, 0.0
  %v4432 = vmax.f32 %v4358, 0.0
  %v4433 = vmax.f32 %v4359, 0.0
  %v4434 = vmax.f32 %v4360, 0.0
  %v4435 = vmax.f32 %v4361, 0.0
  %v4436 = vmax.f32 %v4362, 0.0
  %v4437 = vmax.f32 %v4363, 0.0
  %v4438 = vmax.f32 %v4364, 0.0
  %v4439 = vmax.f32 %v4365, 0.0
  %v4440 = vmax.f32 %v4366, 0.0
  %v4441 = vmax.f32 %v4367, 0.0
  %v4442 = vmax.f32 %v4368, 0.0
  %v4443 = vmax.f32 %v4369, 0.0
  %v4444 = vmax.f32 %v4370, 0.0
  %v4445 = vmax.f32 %v4371, 0.0
  %v4446 = vmax.f32 %v4372, 0.0
  %v4447 = vmax.f32 %v4373, 0.0
  %v4448 = vmax.f32 %v4374, 0.0
  %v4449 = vmax.f32 %v4375, 0.0
  %v4450 = vmax.f32 %v4376, 0.0
  %v4451 = vmax.f32 %v4377, 0.0
  %v4452 = vmax.f32 %v4378, 0.0
  %v4453 = vmax.f32 %v4379, 0.0
  %v4454 = vmax.f32 %v4380, 0.0
  %v4455 = vmax.f32 %v4381, 0.0
  %v4456 = vmax.f32 %v4382, 0.0
  %v4457 = vmax.f32 %v4383, 0.0
  %v4458 = vmax.f32 %v4384, 0.0
  %v4459 = vmax.f32 %v4385, 0.0
  %v4460 = vmax.f32 %v4386, 0.0
  %v4461 = vmax.f32 %v4387, 0.0
  %v4462 = vmax.f32 %v4388, 0.0
  %v4463 = vmax.f32 %v4389, 0.0
  %v4464 = vmax.f32 %v4390, 0.0
  %v4465 = vmax.f32 %v4391, 0.0
  %v4466 = vmax.f32 %v4392, 0.0
  %v4467 = vmax.f32 %v4393, 0.0
  %v4468 = vmax.f32 %v4394, 0.0
  %v4469 = vmax.f32 %v4395, 0.0
  %v4470 = vmax.f32 %v4396, 0.0
  %v4471 = vmax.f32 %v4397, 0.0
  %v4472 = vmax.f32 %v4398, 0.0
  %v4473 = vmax.f32 %v4399, 0.0
  %v4474 = vmax.f32 %v4400, 0.0
  %v4475 = vmax.f32 %v4401, 0.0
  %v4476 = vmax.f32 %v4402, 0.0
  %v4477 = vmax.f32 %v4403, 0.0
  %v4478 = vmax.f32 %v4404, 0.0
  %v4479 = vmax.f32 %v4405, 0.0
  %v4480 = vmax.f32 %v4406, 0.0
  %v4481 = vmax.f32 %v4407, 0.0
  %v4482 = vmax.f32 %v4408, 0.0
  %v4483 = vmax.f32 %v4409, 0.0
  %v4484 = vmax.f32 %v4410, 0.0
  %v4485 = vmax.f32 %v4411, 0.0
  %v4486 = vmax.f32 %v4412, 0.0
  %v4487 = vmax.f32 %v4413, 0.0
  %v4488 = vpack.c.bf16 %v4415, %v4414
  %v4489 = vpack.c.bf16 %v4417, %v4416
  %v4490 = vpack.c.bf16 %v4419, %v4418
  %v4491 = vpack.c.bf16 %v4421, %v4420
  %v4492 = vpack.c.bf16 %v4423, %v4422
  %v4493 = vpack.c.bf16 %v4425, %v4424
  %v4494 = vpack.c.bf16 %v4427, %v4426
  %v4495 = vpack.c.bf16 %v4429, %v4428
  %v4496 = vpack.c.bf16 %v4431, %v4430
  %v4497 = vpack.c.bf16 %v4433, %v4432
  %v4498 = vpack.c.bf16 %v4435, %v4434
  %v4499 = vpack.c.bf16 %v4437, %v4436
  %v4500 = vpack.c.bf16 %v4439, %v4438
  %v4501 = vpack.c.bf16 %v4441, %v4440
  %v4502 = vpack.c.bf16 %v4443, %v4442
  %v4503 = vpack.c.bf16 %v4445, %v4444
  %v4504 = vpack.c.bf16 %v4447, %v4446
  %v4505 = vpack.c.bf16 %v4449, %v4448
  %v4506 = vpack.c.bf16 %v4451, %v4450
  %v4507 = vpack.c.bf16 %v4453, %v4452
  %v4508 = vpack.c.bf16 %v4455, %v4454
  %v4509 = vpack.c.bf16 %v4457, %v4456
  %v4510 = vpack.c.bf16 %v4459, %v4458
  %v4511 = vpack.c.bf16 %v4461, %v4460
  %v4512 = vpack.c.bf16 %v4463, %v4462
  %v4513 = vpack.c.bf16 %v4465, %v4464
  %v4514 = vpack.c.bf16 %v4467, %v4466
  %v4515 = vpack.c.bf16 %v4469, %v4468
  %v4516 = vpack.c.bf16 %v4471, %v4470
  %v4517 = vpack.c.bf16 %v4473, %v4472
  %v4518 = vpack.c.bf16 %v4475, %v4474
  %v4519 = vpack.c.bf16 %v4477, %v4476
  %v4520 = vpack.c.bf16 %v4479, %v4478
  %v4521 = vpack.c.bf16 %v4481, %v4480
  %v4522 = vpack.c.bf16 %v4483, %v4482
  %v4523 = vpack.c.bf16 %v4485, %v4484
  %v4524 = vpack.c.bf16 %v4487, %v4486
  %v4562 = vunpack.c.l.b16 %v4488
  %v4563 = vunpack.c.h.b16 %v4488
  %v4564 = vunpack.c.l.b16 %v4489
  %v4565 = vunpack.c.h.b16 %v4489
  %v4566 = vunpack.c.l.b16 %v4490
  %v4567 = vunpack.c.h.b16 %v4490
  %v4568 = vunpack.c.l.b16 %v4491
  %v4569 = vunpack.c.h.b16 %v4491
  %v4570 = vunpack.c.l.b16 %v4492
  %v4571 = vunpack.c.h.b16 %v4492
  %v4572 = vunpack.c.l.b16 %v4493
  %v4573 = vunpack.c.h.b16 %v4493
  %v4574 = vunpack.c.l.b16 %v4494
  %v4575 = vunpack.c.h.b16 %v4494
  %v4576 = vunpack.c.l.b16 %v4495
  %v4577 = vunpack.c.h.b16 %v4495
  %v4578 = vunpack.c.l.b16 %v4496
  %v4579 = vunpack.c.h.b16 %v4496
  %v4580 = vunpack.c.l.b16 %v4497
  %v4581 = vunpack.c.h.b16 %v4497
  %v4582 = vunpack.c.l.b16 %v4498
  %v4583 = vunpack.c.h.b16 %v4498
  %v4584 = vunpack.c.l.b16 %v4499
  %v4585 = vunpack.c.h.b16 %v4499
  %v4586 = vunpack.c.l.b16 %v4500
  %v4587 = vunpack.c.h.b16 %v4500
  %v4588 = vunpack.c.l.b16 %v4501
  %v4589 = vunpack.c.h.b16 %v4501
  %v4590 = vunpack.c.l.b16 %v4502
  %v4591 = vunpack.c.h.b16 %v4502
  %v4592 = vunpack.c.l.b16 %v4503
  %v4593 = vunpack.c.h.b16 %v4503
  %v4594 = vunpack.c.l.b16 %v4504
  %v4595 = vunpack.c.h.b16 %v4504
  %v4596 = vunpack.c.l.b16 %v4505
  %v4597 = vunpack.c.h.b16 %v4505
  %v4598 = vunpack.c.l.b16 %v4506
  %v4599 = vunpack.c.h.b16 %v4506
  %v4600 = vunpack.c.l.b16 %v4507
  %v4601 = vunpack.c.h.b16 %v4507
  %v4602 = vunpack.c.l.b16 %v4508
  %v4603 = vunpack.c.h.b16 %v4508
  %v4604 = vunpack.c.l.b16 %v4509
  %v4605 = vunpack.c.h.b16 %v4509
  %v4606 = vunpack.c.l.b16 %v4510
  %v4607 = vunpack.c.h.b16 %v4510
  %v4608 = vunpack.c.l.b16 %v4511
  %v4609 = vunpack.c.h.b16 %v4511
  %v4610 = vunpack.c.l.b16 %v4512
  %v4611 = vunpack.c.h.b16 %v4512
  %v4612 = vunpack.c.l.b16 %v4513
  %v4613 = vunpack.c.h.b16 %v4513
  %v4614 = vunpack.c.l.b16 %v4514
  %v4615 = vunpack.c.h.b16 %v4514
  %v4616 = vunpack.c.l.b16 %v4515
  %v4617 = vunpack.c.h.b16 %v4515
  %v4618 = vunpack.c.l.b16 %v4516
  %v4619 = vunpack.c.h.b16 %v4516
  %v4620 = vunpack.c.l.b16 %v4517
  %v4621 = vunpack.c.h.b16 %v4517
  %v4622 = vunpack.c.l.b16 %v4518
  %v4623 = vunpack.c.h.b16 %v4518
  %v4624 = vunpack.c.l.b16 %v4519
  %v4625 = vunpack.c.h.b16 %v4519
  %v4626 = vunpack.c.l.b16 %v4520
  %v4627 = vunpack.c.h.b16 %v4520
  %v4628 = vunpack.c.l.b16 %v4521
  %v4629 = vunpack.c.h.b16 %v4521
  %v4630 = vunpack.c.l.b16 %v4522
  %v4631 = vunpack.c.h.b16 %v4522
  %v4632 = vunpack.c.l.b16 %v4523
  %v4633 = vunpack.c.h.b16 %v4523
  %v4634 = vunpack.c.l.b16 %v4524
  %v4635 = vunpack.c.h.b16 %v4524
  %v4636 = vpack.c.b16 %v4562, %v4562
  %v4637 = vpack.c.b16 %v4563, %v4563
  %v4638 = vpack.c.b16 %v4564, %v4564
  %v4639 = vpack.c.b16 %v4565, %v4565
  %v4640 = vpack.c.b16 %v4566, %v4566
  %v4641 = vpack.c.b16 %v4567, %v4567
  %v4642 = vpack.c.b16 %v4568, %v4568
  %v4643 = vpack.c.b16 %v4569, %v4569
  %v4644 = vpack.c.b16 %v4570, %v4570
  %v4645 = vpack.c.b16 %v4571, %v4571
  %v4646 = vpack.c.b16 %v4572, %v4572
  %v4647 = vpack.c.b16 %v4573, %v4573
  %v4648 = vpack.c.b16 %v4574, %v4574
  %v4649 = vpack.c.b16 %v4575, %v4575
  %v4650 = vpack.c.b16 %v4576, %v4576
  %v4651 = vpack.c.b16 %v4577, %v4577
  %v4652 = vpack.c.b16 %v4578, %v4578
  %v4653 = vpack.c.b16 %v4579, %v4579
  %v4654 = vpack.c.b16 %v4580, %v4580
  %v4655 = vpack.c.b16 %v4581, %v4581
  %v4656 = vpack.c.b16 %v4582, %v4582
  %v4657 = vpack.c.b16 %v4583, %v4583
  %v4658 = vpack.c.b16 %v4584, %v4584
  %v4659 = vpack.c.b16 %v4585, %v4585
  %v4660 = vpack.c.b16 %v4586, %v4586
  %v4661 = vpack.c.b16 %v4587, %v4587
  %v4662 = vpack.c.b16 %v4588, %v4588
  %v4663 = vpack.c.b16 %v4589, %v4589
  %v4664 = vpack.c.b16 %v4590, %v4590
  %v4665 = vpack.c.b16 %v4591, %v4591
  %v4666 = vpack.c.b16 %v4592, %v4592
  %v4667 = vpack.c.b16 %v4593, %v4593
  %v4668 = vpack.c.b16 %v4594, %v4594
  %v4669 = vpack.c.b16 %v4595, %v4595
  %v4670 = vpack.c.b16 %v4596, %v4596
  %v4671 = vpack.c.b16 %v4597, %v4597
  %v4672 = vpack.c.b16 %v4598, %v4598
  %v4673 = vpack.c.b16 %v4599, %v4599
  %v4674 = vpack.c.b16 %v4600, %v4600
  %v4675 = vpack.c.b16 %v4601, %v4601
  %v4676 = vpack.c.b16 %v4602, %v4602
  %v4677 = vpack.c.b16 %v4603, %v4603
  %v4678 = vpack.c.b16 %v4604, %v4604
  %v4679 = vpack.c.b16 %v4605, %v4605
  %v4680 = vpack.c.b16 %v4606, %v4606
  %v4681 = vpack.c.b16 %v4607, %v4607
  %v4682 = vpack.c.b16 %v4608, %v4608
  %v4683 = vpack.c.b16 %v4609, %v4609
  %v4684 = vpack.c.b16 %v4610, %v4610
  %v4685 = vpack.c.b16 %v4611, %v4611
  %v4686 = vpack.c.b16 %v4612, %v4612
  %v4687 = vpack.c.b16 %v4613, %v4613
  %v4688 = vpack.c.b16 %v4614, %v4614
  %v4689 = vpack.c.b16 %v4615, %v4615
  %v4690 = vpack.c.b16 %v4616, %v4616
  %v4691 = vpack.c.b16 %v4617, %v4617
  %v4692 = vpack.c.b16 %v4618, %v4618
  %v4693 = vpack.c.b16 %v4619, %v4619
  %v4694 = vpack.c.b16 %v4620, %v4620
  %v4695 = vpack.c.b16 %v4621, %v4621
  %v4696 = vpack.c.b16 %v4622, %v4622
  %v4697 = vpack.c.b16 %v4623, %v4623
  %v4698 = vpack.c.b16 %v4624, %v4624
  %v4699 = vpack.c.b16 %v4625, %v4625
  %v4700 = vpack.c.b16 %v4626, %v4626
  %v4701 = vpack.c.b16 %v4627, %v4627
  %v4702 = vpack.c.b16 %v4628, %v4628
  %v4703 = vpack.c.b16 %v4629, %v4629
  %v4704 = vpack.c.b16 %v4630, %v4630
  %v4705 = vpack.c.b16 %v4631, %v4631
  %v4706 = vpack.c.b16 %v4632, %v4632
  %v4707 = vpack.c.b16 %v4633, %v4633
  %v4708 = vpack.c.b16 %v4634, %v4634
  %v4709 = vpack.c.b16 %v4635, %v4635
  %4784 = vst [vmem:[%s11] sm:$0xf] %v4636
  %4785 = vst [vmem:[%s11 + $0x4] sm:$0xf] %v4637
  %4786 = vst [vmem:[%s11 + $0x8] sm:$0xf] %v4638
  %4787 = vst [vmem:[%s11 + $0xc] sm:$0xf] %v4639
  %4788 = vst [vmem:[%s11 + $0x10] sm:$0xf] %v4640
  %4789 = vst [vmem:[%s11 + $0x14] sm:$0xf] %v4641
  %4790 = vst [vmem:[%s11 + $0x18] sm:$0xf] %v4642
  %4791 = vst [vmem:[%s11 + $0x1c] sm:$0xf] %v4643
  %4792 = vst [vmem:[%s11 + $0x20] sm:$0xf] %v4644
  %4793 = vst [vmem:[%s11 + $0x24] sm:$0xf] %v4645
  %4794 = vst [vmem:[%s11 + $0x28] sm:$0xf] %v4646
  %4795 = vst [vmem:[%s11 + $0x2c] sm:$0xf] %v4647
  %4796 = vst [vmem:[%s11 + $0x30] sm:$0xf] %v4648
  %4797 = vst [vmem:[%s11 + $0x34] sm:$0xf] %v4649
  %4798 = vst [vmem:[%s11 + $0x38] sm:$0xf] %v4650
  %4799 = vst [vmem:[%s11 + $0x3c] sm:$0xf] %v4651
  %4800 = vst [vmem:[%s11 + $0x40] sm:$0xf] %v4652
  %4801 = vst [vmem:[%s11 + $0x44] sm:$0xf] %v4653
  %4802 = vst [vmem:[%s11 + $0x48] sm:$0xf] %v4654
  %4803 = vst [vmem:[%s11 + $0x4c] sm:$0xf] %v4655
  %4804 = vst [vmem:[%s11 + $0x50] sm:$0xf] %v4656
  %4805 = vst [vmem:[%s11 + $0x54] sm:$0xf] %v4657
  %4806 = vst [vmem:[%s11 + $0x58] sm:$0xf] %v4658
  %4807 = vst [vmem:[%s11 + $0x5c] sm:$0xf] %v4659
  %4808 = vst [vmem:[%s11 + $0x60] sm:$0xf] %v4660
  %4809 = vst [vmem:[%s11 + $0x64] sm:$0xf] %v4661
  %4810 = vst [vmem:[%s11 + $0x68] sm:$0xf] %v4662
  %4811 = vst [vmem:[%s11 + $0x6c] sm:$0xf] %v4663
  %4812 = vst [vmem:[%s11 + $0x70] sm:$0xf] %v4664
  %4813 = vst [vmem:[%s11 + $0x74] sm:$0xf] %v4665
  %4814 = vst [vmem:[%s11 + $0x78] sm:$0xf] %v4666
  %4815 = vst [vmem:[%s11 + $0x7c] sm:$0xf] %v4667
  %4816 = vst [vmem:[%s11 + $0x80] sm:$0xf] %v4668
  %4817 = vst [vmem:[%s11 + $0x84] sm:$0xf] %v4669
  %4818 = vst [vmem:[%s11 + $0x88] sm:$0xf] %v4670
  %4819 = vst [vmem:[%s11 + $0x8c] sm:$0xf] %v4671
  %4820 = vst [vmem:[%s11 + $0x90] sm:$0xf] %v4672
  %4821 = vst [vmem:[%s11 + $0x94] sm:$0xf] %v4673
  %4822 = vst [vmem:[%s11 + $0x98] sm:$0xf] %v4674
  %4823 = vst [vmem:[%s11 + $0x9c] sm:$0xf] %v4675
  %4824 = vst [vmem:[%s11 + $0xa0] sm:$0xf] %v4676
  %4825 = vst [vmem:[%s11 + $0xa4] sm:$0xf] %v4677
  %4826 = vst [vmem:[%s11 + $0xa8] sm:$0xf] %v4678
  %4827 = vst [vmem:[%s11 + $0xac] sm:$0xf] %v4679
  %4828 = vst [vmem:[%s11 + $0xb0] sm:$0xf] %v4680
  %4829 = vst [vmem:[%s11 + $0xb4] sm:$0xf] %v4681
  %4830 = vst [vmem:[%s11 + $0xb8] sm:$0xf] %v4682
  %4831 = vst [vmem:[%s11 + $0xbc] sm:$0xf] %v4683
  %4832 = vst [vmem:[%s11 + $0xc0] sm:$0xf] %v4684
  %4833 = vst [vmem:[%s11 + $0xc4] sm:$0xf] %v4685
  %4834 = vst [vmem:[%s11 + $0xc8] sm:$0xf] %v4686
  %4835 = vst [vmem:[%s11 + $0xcc] sm:$0xf] %v4687
  %4836 = vst [vmem:[%s11 + $0xd0] sm:$0xf] %v4688
  %4837 = vst [vmem:[%s11 + $0xd4] sm:$0xf] %v4689
  %4838 = vst [vmem:[%s11 + $0xd8] sm:$0xf] %v4690
  %4839 = vst [vmem:[%s11 + $0xdc] sm:$0xf] %v4691
  %4840 = vst [vmem:[%s11 + $0xe0] sm:$0xf] %v4692
  %4841 = vst [vmem:[%s11 + $0xe4] sm:$0xf] %v4693
  %4842 = vst [vmem:[%s11 + $0xe8] sm:$0xf] %v4694
  %4843 = vst [vmem:[%s11 + $0xec] sm:$0xf] %v4695
  %4844 = vst [vmem:[%s11 + $0xf0] sm:$0xf] %v4696
  %4845 = vst [vmem:[%s11 + $0xf4] sm:$0xf] %v4697
  %4846 = vst [vmem:[%s11 + $0xf8] sm:$0xf] %v4698
  %4847 = vst [vmem:[%s11 + $0xfc] sm:$0xf] %v4699
  %4848 = vst [vmem:[%s11 + $0x100] sm:$0xf] %v4700
  %4849 = vst [vmem:[%s11 + $0x104] sm:$0xf] %v4701
  %4850 = vst [vmem:[%s11 + $0x108] sm:$0xf] %v4702
  %4851 = vst [vmem:[%s11 + $0x10c] sm:$0xf] %v4703
  %4852 = vst [vmem:[%s11 + $0x110] sm:$0xf] %v4704
  %4853 = vst [vmem:[%s11 + $0x114] sm:$0xf] %v4705
  %4854 = vst [vmem:[%s11 + $0x118] sm:$0xf] %v4706
  %4855 = vst [vmem:[%s11 + $0x11c] sm:$0xf] %v4707
  %4856 = vst [vmem:[%s11 + $0x120] sm:$0xf] %v4708
  %4857 = vst [vmem:[%s11 + $0x124] sm:$0xf] %v4709
  // Predicated region
  $region46: #{dcgan_generator_forward.8} parent=0 // pred_check
    _
  $region47: #{dcgan_generator_forward.8} parent=0 // pred_check_branch
    %4859 = sbr.rel (0) target = $region49
  $region48: #{dcgan_generator_forward.8} parent=0 // pred_region
    _
  $region49: #{dcgan_generator_forward.8} parent=0 // pred_fallthru
    _
  // Predicated region
  $region50: #{dcgan_generator_forward.8} parent=0 // pred_check
    _
  $region51: #{dcgan_generator_forward.8} parent=0 // pred_check_branch
    %4861 = sbr.rel (0) target = $region53
  $region52: #{dcgan_generator_forward.8} parent=0 // pred_region
    _
  $region53: #{dcgan_generator_forward.8} parent=0 // pred_fallthru
    _

// kernel: dcgan_generator_forward.9
$region0: #{dcgan_generator_forward.9}
  #allocation0 [shape = 'u32[]', space=smem, size = 0x4, offset = 0x4, fixed_abs, tag = 'smem constant byte address 0x4 - core index']
  #allocation1 [shape = 'u32[144,128]{1,0:T(1,128)}', space=vmem, size = 0x12000, scoped, tag = 'internal scratch']
  %s0 = inlined_call_operand.vmem [shape: bf16[8,64], index: 0, kind: input, shape index: {}]
  %s1 = inlined_call_operand.vmem [shape: bf16[64,2304], index: 1, kind: input, shape index: {}]
  %s2 = inlined_call_operand.vmem [shape: f32[8,1], index: 2, kind: input, shape index: {}]
  %s3 = inlined_call_operand.vmem [shape: f32[8,2304], index: 3, kind: output, shape index: {}]
  %s4 = sld [smem:[#allocation0]]
  $region22: #{dcgan_generator_forward.9} parent=0
    _
  %s6 = ssub.s32 1, %s4
  %s7 = scalar_select 0, %s6, %s4
  // Predicated region
  $region2: #{dcgan_generator_forward.9} parent=0 // pred_check
    _
  $region3: #{dcgan_generator_forward.9} parent=0 // pred_check_branch
    %9 = sbr.rel (0) target = $region5
  $region4: #{dcgan_generator_forward.9} parent=0 // pred_region
    _
  $region5: #{dcgan_generator_forward.9} parent=0 // pred_fallthru
    _
  // Predicated region
  $region6: #{dcgan_generator_forward.9} parent=0 // pred_check
    _
  $region7: #{dcgan_generator_forward.9} parent=0 // pred_check_branch
    %11 = sbr.rel (0) target = $region9
  $region8: #{dcgan_generator_forward.9} parent=0 // pred_region
    _
  $region9: #{dcgan_generator_forward.9} parent=0 // pred_fallthru
    _
  // Predicated region
  $region10: #{dcgan_generator_forward.9} parent=0 // pred_check
    _
  $region11: #{dcgan_generator_forward.9} parent=0 // pred_check_branch
    %13 = sbr.rel (0) target = $region13
  $region12: #{dcgan_generator_forward.9} parent=0 // pred_region
    _
  $region13: #{dcgan_generator_forward.9} parent=0 // pred_fallthru
    _
  %v15 = vld [vmem:[%s0] sm:$0xf]
  %v16 = vld [vmem:[%s1] sm:$0xff]
  %v17 = vld [vmem:[%s1 + $0x8] sm:$0xff]
  %v18 = vld [vmem:[%s1 + $0x10] sm:$0xff]
  %v19 = vld [vmem:[%s1 + $0x18] sm:$0xff]
  %v20 = vld [vmem:[%s1 + $0x20] sm:$0xff]
  %v21 = vld [vmem:[%s1 + $0x28] sm:$0xff]
  %v22 = vld [vmem:[%s1 + $0x30] sm:$0xff]
  %v23 = vld [vmem:[%s1 + $0x38] sm:$0xff]
  %v24 = vld [vmem:[%s1 + $0x40] sm:$0xff]
  %v25 = vld [vmem:[%s1 + $0x48] sm:$0xff]
  %v26 = vld [vmem:[%s1 + $0x50] sm:$0xff]
  %v27 = vld [vmem:[%s1 + $0x58] sm:$0xff]
  %v28 = vld [vmem:[%s1 + $0x60] sm:$0xff]
  %v29 = vld [vmem:[%s1 + $0x68] sm:$0xff]
  %v30 = vld [vmem:[%s1 + $0x70] sm:$0xff]
  %v31 = vld [vmem:[%s1 + $0x78] sm:$0xff]
  %v32 = vld [vmem:[%s1 + $0x80] sm:$0xff]
  %v33 = vld [vmem:[%s1 + $0x88] sm:$0xff]
  %v34 = vld [vmem:[%s1 + $0x90] sm:$0xff]
  %v35 = vld [vmem:[%s1 + $0x98] sm:$0xff]
  %v36 = vld [vmem:[%s1 + $0xa0] sm:$0xff]
  %v37 = vld [vmem:[%s1 + $0xa8] sm:$0xff]
  %v38 = vld [vmem:[%s1 + $0xb0] sm:$0xff]
  %v39 = vld [vmem:[%s1 + $0xb8] sm:$0xff]
  %v40 = vld [vmem:[%s1 + $0xc0] sm:$0xff]
  %v41 = vld [vmem:[%s1 + $0xc8] sm:$0xff]
  %v42 = vld [vmem:[%s1 + $0xd0] sm:$0xff]
  %v43 = vld [vmem:[%s1 + $0xd8] sm:$0xff]
  %v44 = vld [vmem:[%s1 + $0xe0] sm:$0xff]
  %v45 = vld [vmem:[%s1 + $0xe8] sm:$0xff]
  %v46 = vld [vmem:[%s1 + $0xf0] sm:$0xff]
  %v47 = vld [vmem:[%s1 + $0xf8] sm:$0xff]
  %v48 = vld [vmem:[%s1 + $0x100] sm:$0xff]
  %v49 = vld [vmem:[%s1 + $0x108] sm:$0xff]
  %v50 = vld [vmem:[%s1 + $0x110] sm:$0xff]
  %v51 = vld [vmem:[%s1 + $0x118] sm:$0xff]
  %v52 = vld [vmem:[%s1 + $0x120] sm:$0xff]
  %v53 = vld [vmem:[%s1 + $0x128] sm:$0xff]
  %v54 = vld [vmem:[%s1 + $0x130] sm:$0xff]
  %v55 = vld [vmem:[%s1 + $0x138] sm:$0xff]
  %v56 = vld [vmem:[%s1 + $0x140] sm:$0xff]
  %v57 = vld [vmem:[%s1 + $0x148] sm:$0xff]
  %v58 = vld [vmem:[%s1 + $0x150] sm:$0xff]
  %v59 = vld [vmem:[%s1 + $0x158] sm:$0xff]
  %v60 = vld [vmem:[%s1 + $0x160] sm:$0xff]
  %v61 = vld [vmem:[%s1 + $0x168] sm:$0xff]
  %v62 = vld [vmem:[%s1 + $0x170] sm:$0xff]
  %v63 = vld [vmem:[%s1 + $0x178] sm:$0xff]
  %v64 = vld [vmem:[%s1 + $0x180] sm:$0xff]
  %v65 = vld [vmem:[%s1 + $0x188] sm:$0xff]
  %v66 = vld [vmem:[%s1 + $0x190] sm:$0xff]
  %v67 = vld [vmem:[%s1 + $0x198] sm:$0xff]
  %v68 = vld [vmem:[%s1 + $0x1a0] sm:$0xff]
  %v69 = vld [vmem:[%s1 + $0x1a8] sm:$0xff]
  %v70 = vld [vmem:[%s1 + $0x1b0] sm:$0xff]
  %v71 = vld [vmem:[%s1 + $0x1b8] sm:$0xff]
  %v72 = vld [vmem:[%s1 + $0x1c0] sm:$0xff]
  %v73 = vld [vmem:[%s1 + $0x1c8] sm:$0xff]
  %v74 = vld [vmem:[%s1 + $0x1d0] sm:$0xff]
  %v75 = vld [vmem:[%s1 + $0x1d8] sm:$0xff]
  %v76 = vld [vmem:[%s1 + $0x1e0] sm:$0xff]
  %v77 = vld [vmem:[%s1 + $0x1e8] sm:$0xff]
  %v78 = vld [vmem:[%s1 + $0x1f0] sm:$0xff]
  %v79 = vld [vmem:[%s1 + $0x1f8] sm:$0xff]
  %v80 = vld [vmem:[%s1 + $0x200] sm:$0xff]
  %v81 = vld [vmem:[%s1 + $0x208] sm:$0xff]
  %v82 = vld [vmem:[%s1 + $0x210] sm:$0xff]
  %v83 = vld [vmem:[%s1 + $0x218] sm:$0xff]
  %v84 = vld [vmem:[%s1 + $0x220] sm:$0xff]
  %v85 = vld [vmem:[%s1 + $0x228] sm:$0xff]
  %v86 = vld [vmem:[%s1 + $0x230] sm:$0xff]
  %v87 = vld [vmem:[%s1 + $0x238] sm:$0xff]
  %v88 = vld [vmem:[%s2] sm:$0xff]
  %90 = vset.pattern.permute.xlu0 0
  %91 = vperm.xlu0 %90, %v88
  %v92 = vpop.permute.xlu0 %91
  %v166 = vunpack.c.l.b16 %v16
  %v167 = vunpack.c.h.b16 %v16
  %v168 = vunpack.c.l.b16 %v17
  %v169 = vunpack.c.h.b16 %v17
  %v170 = vunpack.c.l.b16 %v18
  %v171 = vunpack.c.h.b16 %v18
  %v172 = vunpack.c.l.b16 %v19
  %v173 = vunpack.c.h.b16 %v19
  %v174 = vunpack.c.l.b16 %v20
  %v175 = vunpack.c.h.b16 %v20
  %v176 = vunpack.c.l.b16 %v21
  %v177 = vunpack.c.h.b16 %v21
  %v178 = vunpack.c.l.b16 %v22
  %v179 = vunpack.c.h.b16 %v22
  %v180 = vunpack.c.l.b16 %v23
  %v181 = vunpack.c.h.b16 %v23
  %v182 = vunpack.c.l.b16 %v24
  %v183 = vunpack.c.h.b16 %v24
  %v184 = vunpack.c.l.b16 %v25
  %v185 = vunpack.c.h.b16 %v25
  %v186 = vunpack.c.l.b16 %v26
  %v187 = vunpack.c.h.b16 %v26
  %v188 = vunpack.c.l.b16 %v27
  %v189 = vunpack.c.h.b16 %v27
  %v190 = vunpack.c.l.b16 %v28
  %v191 = vunpack.c.h.b16 %v28
  %v192 = vunpack.c.l.b16 %v29
  %v193 = vunpack.c.h.b16 %v29
  %v194 = vunpack.c.l.b16 %v30
  %v195 = vunpack.c.h.b16 %v30
  %v196 = vunpack.c.l.b16 %v31
  %v197 = vunpack.c.h.b16 %v31
  %v198 = vunpack.c.l.b16 %v32
  %v199 = vunpack.c.h.b16 %v32
  %v200 = vunpack.c.l.b16 %v33
  %v201 = vunpack.c.h.b16 %v33
  %v202 = vunpack.c.l.b16 %v34
  %v203 = vunpack.c.h.b16 %v34
  %v204 = vunpack.c.l.b16 %v35
  %v205 = vunpack.c.h.b16 %v35
  %v206 = vunpack.c.l.b16 %v36
  %v207 = vunpack.c.h.b16 %v36
  %v208 = vunpack.c.l.b16 %v37
  %v209 = vunpack.c.h.b16 %v37
  %v210 = vunpack.c.l.b16 %v38
  %v211 = vunpack.c.h.b16 %v38
  %v212 = vunpack.c.l.b16 %v39
  %v213 = vunpack.c.h.b16 %v39
  %v214 = vunpack.c.l.b16 %v40
  %v215 = vunpack.c.h.b16 %v40
  %v216 = vunpack.c.l.b16 %v41
  %v217 = vunpack.c.h.b16 %v41
  %v218 = vunpack.c.l.b16 %v42
  %v219 = vunpack.c.h.b16 %v42
  %v220 = vunpack.c.l.b16 %v43
  %v221 = vunpack.c.h.b16 %v43
  %v222 = vunpack.c.l.b16 %v44
  %v223 = vunpack.c.h.b16 %v44
  %v224 = vunpack.c.l.b16 %v45
  %v225 = vunpack.c.h.b16 %v45
  %v226 = vunpack.c.l.b16 %v46
  %v227 = vunpack.c.h.b16 %v46
  %v228 = vunpack.c.l.b16 %v47
  %v229 = vunpack.c.h.b16 %v47
  %v230 = vunpack.c.l.b16 %v48
  %v231 = vunpack.c.h.b16 %v48
  %v232 = vunpack.c.l.b16 %v49
  %v233 = vunpack.c.h.b16 %v49
  %v234 = vunpack.c.l.b16 %v50
  %v235 = vunpack.c.h.b16 %v50
  %v236 = vunpack.c.l.b16 %v51
  %v237 = vunpack.c.h.b16 %v51
  %v238 = vunpack.c.l.b16 %v52
  %v239 = vunpack.c.h.b16 %v52
  %v240 = vunpack.c.l.b16 %v53
  %v241 = vunpack.c.h.b16 %v53
  %v242 = vunpack.c.l.b16 %v54
  %v243 = vunpack.c.h.b16 %v54
  %v244 = vunpack.c.l.b16 %v55
  %v245 = vunpack.c.h.b16 %v55
  %v246 = vunpack.c.l.b16 %v56
  %v247 = vunpack.c.h.b16 %v56
  %v248 = vunpack.c.l.b16 %v57
  %v249 = vunpack.c.h.b16 %v57
  %v250 = vunpack.c.l.b16 %v58
  %v251 = vunpack.c.h.b16 %v58
  %v252 = vunpack.c.l.b16 %v59
  %v253 = vunpack.c.h.b16 %v59
  %v254 = vunpack.c.l.b16 %v60
  %v255 = vunpack.c.h.b16 %v60
  %v256 = vunpack.c.l.b16 %v61
  %v257 = vunpack.c.h.b16 %v61
  %v258 = vunpack.c.l.b16 %v62
  %v259 = vunpack.c.h.b16 %v62
  %v260 = vunpack.c.l.b16 %v63
  %v261 = vunpack.c.h.b16 %v63
  %v262 = vunpack.c.l.b16 %v64
  %v263 = vunpack.c.h.b16 %v64
  %v264 = vunpack.c.l.b16 %v65
  %v265 = vunpack.c.h.b16 %v65
  %v266 = vunpack.c.l.b16 %v66
  %v267 = vunpack.c.h.b16 %v66
  %v268 = vunpack.c.l.b16 %v67
  %v269 = vunpack.c.h.b16 %v67
  %v270 = vunpack.c.l.b16 %v68
  %v271 = vunpack.c.h.b16 %v68
  %v272 = vunpack.c.l.b16 %v69
  %v273 = vunpack.c.h.b16 %v69
  %v274 = vunpack.c.l.b16 %v70
  %v275 = vunpack.c.h.b16 %v70
  %v276 = vunpack.c.l.b16 %v71
  %v277 = vunpack.c.h.b16 %v71
  %v278 = vunpack.c.l.b16 %v72
  %v279 = vunpack.c.h.b16 %v72
  %v280 = vunpack.c.l.b16 %v73
  %v281 = vunpack.c.h.b16 %v73
  %v282 = vunpack.c.l.b16 %v74
  %v283 = vunpack.c.h.b16 %v74
  %v284 = vunpack.c.l.b16 %v75
  %v285 = vunpack.c.h.b16 %v75
  %v286 = vunpack.c.l.b16 %v76
  %v287 = vunpack.c.h.b16 %v76
  %v288 = vunpack.c.l.b16 %v77
  %v289 = vunpack.c.h.b16 %v77
  %v290 = vunpack.c.l.b16 %v78
  %v291 = vunpack.c.h.b16 %v78
  %v292 = vunpack.c.l.b16 %v79
  %v293 = vunpack.c.h.b16 %v79
  %v294 = vunpack.c.l.b16 %v80
  %v295 = vunpack.c.h.b16 %v80
  %v296 = vunpack.c.l.b16 %v81
  %v297 = vunpack.c.h.b16 %v81
  %v298 = vunpack.c.l.b16 %v82
  %v299 = vunpack.c.h.b16 %v82
  %v300 = vunpack.c.l.b16 %v83
  %v301 = vunpack.c.h.b16 %v83
  %v302 = vunpack.c.l.b16 %v84
  %v303 = vunpack.c.h.b16 %v84
  %v304 = vunpack.c.l.b16 %v85
  %v305 = vunpack.c.h.b16 %v85
  %v306 = vunpack.c.l.b16 %v86
  %v307 = vunpack.c.h.b16 %v86
  %v308 = vunpack.c.l.b16 %v87
  %v309 = vunpack.c.h.b16 %v87
  %v310 = vpack.c.b16 %v184, %v166
  %v311 = vpack.c.b16 %v185, %v167
  %v312 = vpack.c.b16 %v186, %v168
  %v313 = vpack.c.b16 %v187, %v169
  %v314 = vpack.c.b16 %v188, %v170
  %v315 = vpack.c.b16 %v189, %v171
  %v316 = vpack.c.b16 %v190, %v172
  %v317 = vpack.c.b16 %v191, %v173
  %v318 = vpack.c.b16 %v192, %v174
  %v319 = vpack.c.b16 %v193, %v175
  %v320 = vpack.c.b16 %v194, %v176
  %v321 = vpack.c.b16 %v195, %v177
  %v322 = vpack.c.b16 %v196, %v178
  %v323 = vpack.c.b16 %v197, %v179
  %v324 = vpack.c.b16 %v198, %v180
  %v325 = vpack.c.b16 %v199, %v181
  %v326 = vpack.c.b16 %v200, %v182
  %v327 = vpack.c.b16 %v201, %v183
  %v328 = vpack.c.b16 %v220, %v202
  %v329 = vpack.c.b16 %v221, %v203
  %v330 = vpack.c.b16 %v222, %v204
  %v331 = vpack.c.b16 %v223, %v205
  %v332 = vpack.c.b16 %v224, %v206
  %v333 = vpack.c.b16 %v225, %v207
  %v334 = vpack.c.b16 %v226, %v208
  %v335 = vpack.c.b16 %v227, %v209
  %v336 = vpack.c.b16 %v228, %v210
  %v337 = vpack.c.b16 %v229, %v211
  %v338 = vpack.c.b16 %v230, %v212
  %v339 = vpack.c.b16 %v231, %v213
  %v340 = vpack.c.b16 %v232, %v214
  %v341 = vpack.c.b16 %v233, %v215
  %v342 = vpack.c.b16 %v234, %v216
  %v343 = vpack.c.b16 %v235, %v217
  %v344 = vpack.c.b16 %v236, %v218
  %v345 = vpack.c.b16 %v237, %v219
  %v346 = vpack.c.b16 %v256, %v238
  %v347 = vpack.c.b16 %v257, %v239
  %v348 = vpack.c.b16 %v258, %v240
  %v349 = vpack.c.b16 %v259, %v241
  %v350 = vpack.c.b16 %v260, %v242
  %v351 = vpack.c.b16 %v261, %v243
  %v352 = vpack.c.b16 %v262, %v244
  %v353 = vpack.c.b16 %v263, %v245
  %v354 = vpack.c.b16 %v264, %v246
  %v355 = vpack.c.b16 %v265, %v247
  %v356 = vpack.c.b16 %v266, %v248
  %v357 = vpack.c.b16 %v267, %v249
  %v358 = vpack.c.b16 %v268, %v250
  %v359 = vpack.c.b16 %v269, %v251
  %v360 = vpack.c.b16 %v270, %v252
  %v361 = vpack.c.b16 %v271, %v253
  %v362 = vpack.c.b16 %v272, %v254
  %v363 = vpack.c.b16 %v273, %v255
  %v364 = vpack.c.b16 %v292, %v274
  %v365 = vpack.c.b16 %v293, %v275
  %v366 = vpack.c.b16 %v294, %v276
  %v367 = vpack.c.b16 %v295, %v277
  %v368 = vpack.c.b16 %v296, %v278
  %v369 = vpack.c.b16 %v297, %v279
  %v370 = vpack.c.b16 %v298, %v280
  %v371 = vpack.c.b16 %v299, %v281
  %v372 = vpack.c.b16 %v300, %v282
  %v373 = vpack.c.b16 %v301, %v283
  %v374 = vpack.c.b16 %v302, %v284
  %v375 = vpack.c.b16 %v303, %v285
  %v376 = vpack.c.b16 %v304, %v286
  %v377 = vpack.c.b16 %v305, %v287
  %v378 = vpack.c.b16 %v306, %v288
  %v379 = vpack.c.b16 %v307, %v289
  %v380 = vpack.c.b16 %v308, %v290
  %v381 = vpack.c.b16 %v309, %v291
  %vm454 = vcmask 523264
  %v456 = vsel %vm454, %v15, 0
  %458 = vmatprep.subr.bf16.mxu0 0
  %459 = vmatpush1.bf16.msra.mxu0 0
  %460 = vmatprep.subr.bf16.mxu0 0
  %461 = vmatpush1.bf16.msra.mxu0 0
  %462 = vmatprep.subr.bf16.mxu0 0
  %463 = vmatpush1.bf16.msra.mxu0 0
  %464 = vmatprep.subr.bf16.mxu0 0
  %465 = vmatpush1.bf16.msra.mxu0 0
  %466 = vmatprep.subr.bf16.mxu0 %v365
  %467 = vmatpush1.bf16.msra.mxu0 %v364
  %468 = vmatprep.subr.bf16.mxu0 %v347
  %469 = vmatpush1.bf16.msra.mxu0 %v346
  %470 = vmatprep.subr.bf16.mxu0 %v329
  %471 = vmatpush1.bf16.msra.mxu0 %v328
  %472 = vmatprep.subr.bf16.mxu0 %v311
  %473 = vmatpush1.bf16.msra.mxu0 %v310
  %474 = vmatprep.subr.bf16.mxu0 0
  %475 = vmatpush2.bf16.msra.mxu0 0
  %476 = vmatprep.subr.bf16.mxu0 0
  %477 = vmatpush2.bf16.msra.mxu0 0
  %478 = vmatprep.subr.bf16.mxu0 0
  %479 = vmatpush2.bf16.msra.mxu0 0
  %480 = vmatprep.subr.bf16.mxu0 0
  %481 = vmatpush2.bf16.msra.mxu0 0
  %482 = vmatprep.subr.bf16.mxu0 0
  %483 = vmatpush2.bf16.msra.mxu0 0
  %484 = vmatprep.subr.bf16.mxu0 0
  %485 = vmatpush2.bf16.msra.mxu0 0
  %486 = vmatprep.subr.bf16.mxu0 0
  %487 = vmatpush2.bf16.msra.mxu0 0
  %488 = vmatprep.subr.bf16.mxu0 0
  %489 = vmatpush2.bf16.msra.mxu0 0
  %490 = vmatprep.mubr.bf16.mxu0 0
  %491 = vmatmul.mubr.bf16.gmra.mxu0 %v456
  %v492 = vpop.f32.mrf.mxu0
  %v493 = vadd.f32 %v92, %v492
  %v494 = vpop.f32.mrf.mxu0
  %v495 = vadd.f32 %v92, %v494
  %v496 = vpop.f32.mrf.mxu0
  %v497 = vpop.f32.mrf.mxu0
  %498 = vdwg.mxu0
  %499 = vmatprep.subr.bf16.mxu0 0
  %500 = vmatpush1.bf16.msra.mxu0 0
  %501 = vmatprep.subr.bf16.mxu0 0
  %502 = vmatpush1.bf16.msra.mxu0 0
  %503 = vmatprep.subr.bf16.mxu0 0
  %504 = vmatpush1.bf16.msra.mxu0 0
  %505 = vmatprep.subr.bf16.mxu0 0
  %506 = vmatpush1.bf16.msra.mxu0 0
  %507 = vmatprep.subr.bf16.mxu0 %v367
  %508 = vmatpush1.bf16.msra.mxu0 %v366
  %509 = vmatprep.subr.bf16.mxu0 %v349
  %510 = vmatpush1.bf16.msra.mxu0 %v348
  %511 = vmatprep.subr.bf16.mxu0 %v331
  %512 = vmatpush1.bf16.msra.mxu0 %v330
  %513 = vmatprep.subr.bf16.mxu0 %v313
  %514 = vmatpush1.bf16.msra.mxu0 %v312
  %515 = vmatprep.subr.bf16.mxu0 0
  %516 = vmatpush2.bf16.msra.mxu0 0
  %517 = vmatprep.subr.bf16.mxu0 0
  %518 = vmatpush2.bf16.msra.mxu0 0
  %519 = vmatprep.subr.bf16.mxu0 0
  %520 = vmatpush2.bf16.msra.mxu0 0
  %521 = vmatprep.subr.bf16.mxu0 0
  %522 = vmatpush2.bf16.msra.mxu0 0
  %523 = vmatprep.subr.bf16.mxu0 0
  %524 = vmatpush2.bf16.msra.mxu0 0
  %525 = vmatprep.subr.bf16.mxu0 0
  %526 = vmatpush2.bf16.msra.mxu0 0
  %527 = vmatprep.subr.bf16.mxu0 0
  %528 = vmatpush2.bf16.msra.mxu0 0
  %529 = vmatprep.subr.bf16.mxu0 0
  %530 = vmatpush2.bf16.msra.mxu0 0
  %531 = vmatprep.mubr.bf16.mxu0 0
  %532 = vmatmul.mubr.bf16.gmra.mxu0 %v456
  %v533 = vpop.f32.mrf.mxu0
  %v534 = vadd.f32 %v92, %v533
  %v535 = vpop.f32.mrf.mxu0
  %v536 = vadd.f32 %v92, %v535
  %v537 = vpop.f32.mrf.mxu0
  %v538 = vpop.f32.mrf.mxu0
  %539 = vdwg.mxu0
  %540 = vmatprep.subr.bf16.mxu0 0
  %541 = vmatpush1.bf16.msra.mxu0 0
  %542 = vmatprep.subr.bf16.mxu0 0
  %543 = vmatpush1.bf16.msra.mxu0 0
  %544 = vmatprep.subr.bf16.mxu0 0
  %545 = vmatpush1.bf16.msra.mxu0 0
  %546 = vmatprep.subr.bf16.mxu0 0
  %547 = vmatpush1.bf16.msra.mxu0 0
  %548 = vmatprep.subr.bf16.mxu0 %v369
  %549 = vmatpush1.bf16.msra.mxu0 %v368
  %550 = vmatprep.subr.bf16.mxu0 %v351
  %551 = vmatpush1.bf16.msra.mxu0 %v350
  %552 = vmatprep.subr.bf16.mxu0 %v333
  %553 = vmatpush1.bf16.msra.mxu0 %v332
  %554 = vmatprep.subr.bf16.mxu0 %v315
  %555 = vmatpush1.bf16.msra.mxu0 %v314
  %556 = vmatprep.subr.bf16.mxu0 0
  %557 = vmatpush2.bf16.msra.mxu0 0
  %558 = vmatprep.subr.bf16.mxu0 0
  %559 = vmatpush2.bf16.msra.mxu0 0
  %560 = vmatprep.subr.bf16.mxu0 0
  %561 = vmatpush2.bf16.msra.mxu0 0
  %562 = vmatprep.subr.bf16.mxu0 0
  %563 = vmatpush2.bf16.msra.mxu0 0
  %564 = vmatprep.subr.bf16.mxu0 0
  %565 = vmatpush2.bf16.msra.mxu0 0
  %566 = vmatprep.subr.bf16.mxu0 0
  %567 = vmatpush2.bf16.msra.mxu0 0
  %568 = vmatprep.subr.bf16.mxu0 0
  %569 = vmatpush2.bf16.msra.mxu0 0
  %570 = vmatprep.subr.bf16.mxu0 0
  %571 = vmatpush2.bf16.msra.mxu0 0
  %572 = vmatprep.mubr.bf16.mxu0 0
  %573 = vmatmul.mubr.bf16.gmra.mxu0 %v456
  %v574 = vpop.f32.mrf.mxu0
  %v575 = vadd.f32 %v92, %v574
  %v576 = vpop.f32.mrf.mxu0
  %v577 = vadd.f32 %v92, %v576
  %v578 = vpop.f32.mrf.mxu0
  %v579 = vpop.f32.mrf.mxu0
  %580 = vdwg.mxu0
  %581 = vmatprep.subr.bf16.mxu0 0
  %582 = vmatpush1.bf16.msra.mxu0 0
  %583 = vmatprep.subr.bf16.mxu0 0
  %584 = vmatpush1.bf16.msra.mxu0 0
  %585 = vmatprep.subr.bf16.mxu0 0
  %586 = vmatpush1.bf16.msra.mxu0 0
  %587 = vmatprep.subr.bf16.mxu0 0
  %588 = vmatpush1.bf16.msra.mxu0 0
  %589 = vmatprep.subr.bf16.mxu0 %v371
  %590 = vmatpush1.bf16.msra.mxu0 %v370
  %591 = vmatprep.subr.bf16.mxu0 %v353
  %592 = vmatpush1.bf16.msra.mxu0 %v352
  %593 = vmatprep.subr.bf16.mxu0 %v335
  %594 = vmatpush1.bf16.msra.mxu0 %v334
  %595 = vmatprep.subr.bf16.mxu0 %v317
  %596 = vmatpush1.bf16.msra.mxu0 %v316
  %597 = vmatprep.subr.bf16.mxu0 0
  %598 = vmatpush2.bf16.msra.mxu0 0
  %599 = vmatprep.subr.bf16.mxu0 0
  %600 = vmatpush2.bf16.msra.mxu0 0
  %601 = vmatprep.subr.bf16.mxu0 0
  %602 = vmatpush2.bf16.msra.mxu0 0
  %603 = vmatprep.subr.bf16.mxu0 0
  %604 = vmatpush2.bf16.msra.mxu0 0
  %605 = vmatprep.subr.bf16.mxu0 0
  %606 = vmatpush2.bf16.msra.mxu0 0
  %607 = vmatprep.subr.bf16.mxu0 0
  %608 = vmatpush2.bf16.msra.mxu0 0
  %609 = vmatprep.subr.bf16.mxu0 0
  %610 = vmatpush2.bf16.msra.mxu0 0
  %611 = vmatprep.subr.bf16.mxu0 0
  %612 = vmatpush2.bf16.msra.mxu0 0
  %613 = vmatprep.mubr.bf16.mxu0 0
  %614 = vmatmul.mubr.bf16.gmra.mxu0 %v456
  %v615 = vpop.f32.mrf.mxu0
  %v616 = vadd.f32 %v92, %v615
  %v617 = vpop.f32.mrf.mxu0
  %v618 = vadd.f32 %v92, %v617
  %v619 = vpop.f32.mrf.mxu0
  %v620 = vpop.f32.mrf.mxu0
  %621 = vdwg.mxu0
  %622 = vmatprep.subr.bf16.mxu0 0
  %623 = vmatpush1.bf16.msra.mxu0 0
  %624 = vmatprep.subr.bf16.mxu0 0
  %625 = vmatpush1.bf16.msra.mxu0 0
  %626 = vmatprep.subr.bf16.mxu0 0
  %627 = vmatpush1.bf16.msra.mxu0 0
  %628 = vmatprep.subr.bf16.mxu0 0
  %629 = vmatpush1.bf16.msra.mxu0 0
  %630 = vmatprep.subr.bf16.mxu0 %v373
  %631 = vmatpush1.bf16.msra.mxu0 %v372
  %632 = vmatprep.subr.bf16.mxu0 %v355
  %633 = vmatpush1.bf16.msra.mxu0 %v354
  %634 = vmatprep.subr.bf16.mxu0 %v337
  %635 = vmatpush1.bf16.msra.mxu0 %v336
  %636 = vmatprep.subr.bf16.mxu0 %v319
  %637 = vmatpush1.bf16.msra.mxu0 %v318
  %638 = vmatprep.subr.bf16.mxu0 0
  %639 = vmatpush2.bf16.msra.mxu0 0
  %640 = vmatprep.subr.bf16.mxu0 0
  %641 = vmatpush2.bf16.msra.mxu0 0
  %642 = vmatprep.subr.bf16.mxu0 0
  %643 = vmatpush2.bf16.msra.mxu0 0
  %644 = vmatprep.subr.bf16.mxu0 0
  %645 = vmatpush2.bf16.msra.mxu0 0
  %646 = vmatprep.subr.bf16.mxu0 0
  %647 = vmatpush2.bf16.msra.mxu0 0
  %648 = vmatprep.subr.bf16.mxu0 0
  %649 = vmatpush2.bf16.msra.mxu0 0
  %650 = vmatprep.subr.bf16.mxu0 0
  %651 = vmatpush2.bf16.msra.mxu0 0
  %652 = vmatprep.subr.bf16.mxu0 0
  %653 = vmatpush2.bf16.msra.mxu0 0
  %654 = vmatprep.mubr.bf16.mxu0 0
  %655 = vmatmul.mubr.bf16.gmra.mxu0 %v456
  %v656 = vpop.f32.mrf.mxu0
  %v657 = vadd.f32 %v92, %v656
  %v658 = vpop.f32.mrf.mxu0
  %v659 = vadd.f32 %v92, %v658
  %v660 = vpop.f32.mrf.mxu0
  %v661 = vpop.f32.mrf.mxu0
  %662 = vdwg.mxu0
  %663 = vmatprep.subr.bf16.mxu0 0
  %664 = vmatpush1.bf16.msra.mxu0 0
  %665 = vmatprep.subr.bf16.mxu0 0
  %666 = vmatpush1.bf16.msra.mxu0 0
  %667 = vmatprep.subr.bf16.mxu0 0
  %668 = vmatpush1.bf16.msra.mxu0 0
  %669 = vmatprep.subr.bf16.mxu0 0
  %670 = vmatpush1.bf16.msra.mxu0 0
  %671 = vmatprep.subr.bf16.mxu0 %v375
  %672 = vmatpush1.bf16.msra.mxu0 %v374
  %673 = vmatprep.subr.bf16.mxu0 %v357
  %674 = vmatpush1.bf16.msra.mxu0 %v356
  %675 = vmatprep.subr.bf16.mxu0 %v339
  %676 = vmatpush1.bf16.msra.mxu0 %v338
  %677 = vmatprep.subr.bf16.mxu0 %v321
  %678 = vmatpush1.bf16.msra.mxu0 %v320
  %679 = vmatprep.subr.bf16.mxu0 0
  %680 = vmatpush2.bf16.msra.mxu0 0
  %681 = vmatprep.subr.bf16.mxu0 0
  %682 = vmatpush2.bf16.msra.mxu0 0
  %683 = vmatprep.subr.bf16.mxu0 0
  %684 = vmatpush2.bf16.msra.mxu0 0
  %685 = vmatprep.subr.bf16.mxu0 0
  %686 = vmatpush2.bf16.msra.mxu0 0
  %687 = vmatprep.subr.bf16.mxu0 0
  %688 = vmatpush2.bf16.msra.mxu0 0
  %689 = vmatprep.subr.bf16.mxu0 0
  %690 = vmatpush2.bf16.msra.mxu0 0
  %691 = vmatprep.subr.bf16.mxu0 0
  %692 = vmatpush2.bf16.msra.mxu0 0
  %693 = vmatprep.subr.bf16.mxu0 0
  %694 = vmatpush2.bf16.msra.mxu0 0
  %695 = vmatprep.mubr.bf16.mxu0 0
  %696 = vmatmul.mubr.bf16.gmra.mxu0 %v456
  %v697 = vpop.f32.mrf.mxu0
  %v698 = vadd.f32 %v92, %v697
  %v699 = vpop.f32.mrf.mxu0
  %v700 = vadd.f32 %v92, %v699
  %v701 = vpop.f32.mrf.mxu0
  %v702 = vpop.f32.mrf.mxu0
  %703 = vdwg.mxu0
  %704 = vmatprep.subr.bf16.mxu0 0
  %705 = vmatpush1.bf16.msra.mxu0 0
  %706 = vmatprep.subr.bf16.mxu0 0
  %707 = vmatpush1.bf16.msra.mxu0 0
  %708 = vmatprep.subr.bf16.mxu0 0
  %709 = vmatpush1.bf16.msra.mxu0 0
  %710 = vmatprep.subr.bf16.mxu0 0
  %711 = vmatpush1.bf16.msra.mxu0 0
  %712 = vmatprep.subr.bf16.mxu0 %v377
  %713 = vmatpush1.bf16.msra.mxu0 %v376
  %714 = vmatprep.subr.bf16.mxu0 %v359
  %715 = vmatpush1.bf16.msra.mxu0 %v358
  %716 = vmatprep.subr.bf16.mxu0 %v341
  %717 = vmatpush1.bf16.msra.mxu0 %v340
  %718 = vmatprep.subr.bf16.mxu0 %v323
  %719 = vmatpush1.bf16.msra.mxu0 %v322
  %720 = vmatprep.subr.bf16.mxu0 0
  %721 = vmatpush2.bf16.msra.mxu0 0
  %722 = vmatprep.subr.bf16.mxu0 0
  %723 = vmatpush2.bf16.msra.mxu0 0
  %724 = vmatprep.subr.bf16.mxu0 0
  %725 = vmatpush2.bf16.msra.mxu0 0
  %726 = vmatprep.subr.bf16.mxu0 0
  %727 = vmatpush2.bf16.msra.mxu0 0
  %728 = vmatprep.subr.bf16.mxu0 0
  %729 = vmatpush2.bf16.msra.mxu0 0
  %730 = vmatprep.subr.bf16.mxu0 0
  %731 = vmatpush2.bf16.msra.mxu0 0
  %732 = vmatprep.subr.bf16.mxu0 0
  %733 = vmatpush2.bf16.msra.mxu0 0
  %734 = vmatprep.subr.bf16.mxu0 0
  %735 = vmatpush2.bf16.msra.mxu0 0
  %736 = vmatprep.mubr.bf16.mxu0 0
  %737 = vmatmul.mubr.bf16.gmra.mxu0 %v456
  %v738 = vpop.f32.mrf.mxu0
  %v739 = vadd.f32 %v92, %v738
  %v740 = vpop.f32.mrf.mxu0
  %v741 = vadd.f32 %v92, %v740
  %v742 = vpop.f32.mrf.mxu0
  %v743 = vpop.f32.mrf.mxu0
  %744 = vdwg.mxu0
  %745 = vmatprep.subr.bf16.mxu0 0
  %746 = vmatpush1.bf16.msra.mxu0 0
  %747 = vmatprep.subr.bf16.mxu0 0
  %748 = vmatpush1.bf16.msra.mxu0 0
  %749 = vmatprep.subr.bf16.mxu0 0
  %750 = vmatpush1.bf16.msra.mxu0 0
  %751 = vmatprep.subr.bf16.mxu0 0
  %752 = vmatpush1.bf16.msra.mxu0 0
  %753 = vmatprep.subr.bf16.mxu0 %v379
  %754 = vmatpush1.bf16.msra.mxu0 %v378
  %755 = vmatprep.subr.bf16.mxu0 %v361
  %756 = vmatpush1.bf16.msra.mxu0 %v360
  %757 = vmatprep.subr.bf16.mxu0 %v343
  %758 = vmatpush1.bf16.msra.mxu0 %v342
  %759 = vmatprep.subr.bf16.mxu0 %v325
  %760 = vmatpush1.bf16.msra.mxu0 %v324
  %761 = vmatprep.subr.bf16.mxu0 0
  %762 = vmatpush2.bf16.msra.mxu0 0
  %763 = vmatprep.subr.bf16.mxu0 0
  %764 = vmatpush2.bf16.msra.mxu0 0
  %765 = vmatprep.subr.bf16.mxu0 0
  %766 = vmatpush2.bf16.msra.mxu0 0
  %767 = vmatprep.subr.bf16.mxu0 0
  %768 = vmatpush2.bf16.msra.mxu0 0
  %769 = vmatprep.subr.bf16.mxu0 0
  %770 = vmatpush2.bf16.msra.mxu0 0
  %771 = vmatprep.subr.bf16.mxu0 0
  %772 = vmatpush2.bf16.msra.mxu0 0
  %773 = vmatprep.subr.bf16.mxu0 0
  %774 = vmatpush2.bf16.msra.mxu0 0
  %775 = vmatprep.subr.bf16.mxu0 0
  %776 = vmatpush2.bf16.msra.mxu0 0
  %777 = vmatprep.mubr.bf16.mxu0 0
  %778 = vmatmul.mubr.bf16.gmra.mxu0 %v456
  %v779 = vpop.f32.mrf.mxu0
  %v780 = vadd.f32 %v92, %v779
  %v781 = vpop.f32.mrf.mxu0
  %v782 = vadd.f32 %v92, %v781
  %v783 = vpop.f32.mrf.mxu0
  %v784 = vpop.f32.mrf.mxu0
  %785 = vdwg.mxu0
  %786 = vmatprep.subr.bf16.mxu0 0
  %787 = vmatpush1.bf16.msra.mxu0 0
  %788 = vmatprep.subr.bf16.mxu0 0
  %789 = vmatpush1.bf16.msra.mxu0 0
  %790 = vmatprep.subr.bf16.mxu0 0
  %791 = vmatpush1.bf16.msra.mxu0 0
  %792 = vmatprep.subr.bf16.mxu0 0
  %793 = vmatpush1.bf16.msra.mxu0 0
  %794 = vmatprep.subr.bf16.mxu0 %v381
  %795 = vmatpush1.bf16.msra.mxu0 %v380
  %796 = vmatprep.subr.bf16.mxu0 %v363
  %797 = vmatpush1.bf16.msra.mxu0 %v362
  %798 = vmatprep.subr.bf16.mxu0 %v345
  %799 = vmatpush1.bf16.msra.mxu0 %v344
  %800 = vmatprep.subr.bf16.mxu0 %v327
  %801 = vmatpush1.bf16.msra.mxu0 %v326
  %802 = vmatprep.subr.bf16.mxu0 0
  %803 = vmatpush2.bf16.msra.mxu0 0
  %804 = vmatprep.subr.bf16.mxu0 0
  %805 = vmatpush2.bf16.msra.mxu0 0
  %806 = vmatprep.subr.bf16.mxu0 0
  %807 = vmatpush2.bf16.msra.mxu0 0
  %808 = vmatprep.subr.bf16.mxu0 0
  %809 = vmatpush2.bf16.msra.mxu0 0
  %810 = vmatprep.subr.bf16.mxu0 0
  %811 = vmatpush2.bf16.msra.mxu0 0
  %812 = vmatprep.subr.bf16.mxu0 0
  %813 = vmatpush2.bf16.msra.mxu0 0
  %814 = vmatprep.subr.bf16.mxu0 0
  %815 = vmatpush2.bf16.msra.mxu0 0
  %816 = vmatprep.subr.bf16.mxu0 0
  %817 = vmatpush2.bf16.msra.mxu0 0
  %818 = vmatprep.mubr.bf16.mxu0 0
  %819 = vmatmul.mubr.bf16.gmra.mxu0 %v456
  %v820 = vpop.f32.mrf.mxu0
  %v821 = vadd.f32 %v92, %v820
  %v822 = vpop.f32.mrf.mxu0
  %v823 = vadd.f32 %v92, %v822
  %v824 = vpop.f32.mrf.mxu0
  %v825 = vpop.f32.mrf.mxu0
  %826 = vdwg.mxu0
  %v827 = vtanh.pop %v493
  %v828 = vtanh.pop %v495
  %v829 = vtanh.pop %v534
  %v830 = vtanh.pop %v536
  %v831 = vtanh.pop %v575
  %v832 = vtanh.pop %v577
  %v833 = vtanh.pop %v616
  %v834 = vtanh.pop %v618
  %v835 = vtanh.pop %v657
  %v836 = vtanh.pop %v659
  %v837 = vtanh.pop %v698
  %v838 = vtanh.pop %v700
  %v839 = vtanh.pop %v739
  %v840 = vtanh.pop %v741
  %v841 = vtanh.pop %v780
  %v842 = vtanh.pop %v782
  %v843 = vtanh.pop %v821
  %v844 = vtanh.pop %v823
  %845 = vst [vmem:[%s3] sm:$0xff] %v827
  %846 = vst [vmem:[%s3 + $0x8] sm:$0xff] %v828
  %847 = vst [vmem:[%s3 + $0x10] sm:$0xff] %v829
  %848 = vst [vmem:[%s3 + $0x18] sm:$0xff] %v830
  %849 = vst [vmem:[%s3 + $0x20] sm:$0xff] %v831
  %850 = vst [vmem:[%s3 + $0x28] sm:$0xff] %v832
  %851 = vst [vmem:[%s3 + $0x30] sm:$0xff] %v833
  %852 = vst [vmem:[%s3 + $0x38] sm:$0xff] %v834
  %853 = vst [vmem:[%s3 + $0x40] sm:$0xff] %v835
  %854 = vst [vmem:[%s3 + $0x48] sm:$0xff] %v836
  %855 = vst [vmem:[%s3 + $0x50] sm:$0xff] %v837
  %856 = vst [vmem:[%s3 + $0x58] sm:$0xff] %v838
  %857 = vst [vmem:[%s3 + $0x60] sm:$0xff] %v839
  %858 = vst [vmem:[%s3 + $0x68] sm:$0xff] %v840
  %859 = vst [vmem:[%s3 + $0x70] sm:$0xff] %v841
  %860 = vst [vmem:[%s3 + $0x78] sm:$0xff] %v842
  %861 = vst [vmem:[%s3 + $0x80] sm:$0xff] %v843
  %862 = vst [vmem:[%s3 + $0x88] sm:$0xff] %v844
  // Predicated region
  $region14: #{dcgan_generator_forward.9} parent=0 // pred_check
    _
  $region15: #{dcgan_generator_forward.9} parent=0 // pred_check_branch
    %864 = sbr.rel (0) target = $region17
  $region16: #{dcgan_generator_forward.9} parent=0 // pred_region
    _
  $region17: #{dcgan_generator_forward.9} parent=0 // pred_fallthru
    _
  // Predicated region
  $region18: #{dcgan_generator_forward.9} parent=0 // pred_check
    _
  $region19: #{dcgan_generator_forward.9} parent=0 // pred_check_branch
    %866 = sbr.rel (0) target = $region21
  $region20: #{dcgan_generator_forward.9} parent=0 // pred_region
    _
  $region21: #{dcgan_generator_forward.9} parent=0 // pred_fallthru
    _

</llo_original>
